<compile_context>
chip_gen: v7x
topology: tpu7x:2x2x1
jax: 0.10.0
libtpu: 0.0.40
codegen_flags: <defaults>
</compile_context>

<pallas_src>
import math
import functools

import jax
import jax.numpy as jnp
from jax.experimental import pallas as pl
from jax.experimental.pallas import tpu as pltpu

LANE = 128


def _layer_norm(x, g, b, eps=1e-5):
    mu = jnp.mean(x, axis=-1, keepdims=True)
    var = jnp.mean((x - mu) ** 2, axis=-1, keepdims=True)
    return (x - mu) * jax.lax.rsqrt(var + eps) * g + b


# ----------------------------------------------------------------------------
# fused forward kernel (one grid step == one transformer encoder layer)
# ----------------------------------------------------------------------------
def _fused_encoder_kernel(n_layers, n_heads, B, S, D,
                          x_ref, bnsc_ref, bnsh_ref,
                          we1_ref, be1_ref, we2_ref, be2_ref, pe_ref,
                          win_ref, bin_ref, wo_ref, bo_ref, g1_ref, bln1_ref,
                          wf1_ref, bf1_ref, wf2_ref, bf2_ref, g2_ref, bln2_ref,
                          wa_ref, ba_ref, wfc_ref, bfc_ref,
                          o_ref, xc_ref):
    layer = pl.program_id(0)
    M = B * S
    H = n_heads
    hd = D // H

    # ---- grid step 0: BatchNorm1d (eval) + chart_embedder + positional encoding ----
    @pl.when(layer == 0)
    def _():
        xb = x_ref[...] * bnsc_ref[...] + bnsh_ref[...]                      # (M, F)
        h0 = jnp.dot(xb.astype(jnp.bfloat16), we1_ref[...],
                     preferred_element_type=jnp.float32) + be1_ref[...]      # (M, 128)
        h0 = jnp.maximum(h0, 0.0)
        e = jnp.dot(h0.astype(jnp.bfloat16), we2_ref[...],
                    preferred_element_type=jnp.float32) + be2_ref[...]       # (M, D)
        xc_ref[...] = e + pe_ref[...]

    xc = xc_ref[...]                                                         # (M, D) f32

    # ---- multi-head self-attention (1/sqrt(hd) pre-folded into Q columns of win) ----
    qkv = (jnp.dot(xc.astype(jnp.bfloat16), win_ref[...],
                   preferred_element_type=jnp.float32)
           + bin_ref[...]).astype(jnp.bfloat16)                              # (M, 3D)
    # lane-aligned 128-wide slices — no sub-(8,128) accesses
    q3 = qkv[:, 0:D].reshape(B, S, D)
    k3 = qkv[:, D:2 * D].reshape(B, S, D)
    v3 = qkv[:, 2 * D:3 * D].reshape(B, S, D)

    # Heads are separated with lane masks instead of 16-lane slices / transposes:
    # operands stay lane-dense, every matmul is a plain 3-D batched einsum, and the
    # per-head outputs land in disjoint (zeroed-elsewhere) lane ranges so a simple
    # sum reconstructs the concatenated context exactly.
    lane = jax.lax.broadcasted_iota(jnp.int32, (1, 1, D), 2)
    ctx = jnp.zeros((B, S, D), dtype=jnp.float32)
    for h in range(H):                                       # static unroll, tiny work
        c0 = h * hd
        mh = ((lane >= c0) & (lane < c0 + hd)).astype(jnp.bfloat16)
        s = jnp.einsum('bqd,bkd->bqk', q3, k3 * mh,
                       preferred_element_type=jnp.float32)                   # (B, S, S)
        mx = jnp.max(s, axis=-1, keepdims=True)
        p = jnp.exp(s - mx)
        a = p * pl.reciprocal(jnp.sum(p, axis=-1, keepdims=True), approx=True)
        ctx = ctx + jnp.einsum('bqk,bkd->bqd', a.astype(jnp.bfloat16), v3 * mh,
                               preferred_element_type=jnp.float32)           # (B, S, D)
    ctx = ctx.reshape(M, D)

    attn = jnp.dot(ctx.astype(jnp.bfloat16), wo_ref[...],
                   preferred_element_type=jnp.float32) + bo_ref[...]
    x1 = _layer_norm(xc + attn, g1_ref[...], bln1_ref[...])

    # ---- feed-forward ----
    hm = jnp.dot(x1.astype(jnp.bfloat16), wf1_ref[...],
                 preferred_element_type=jnp.float32) + bf1_ref[...]
    hm = jnp.maximum(hm, 0.0)
    y = jnp.dot(hm.astype(jnp.bfloat16), wf2_ref[...],
                preferred_element_type=jnp.float32) + bf2_ref[...]
    x2 = _layer_norm(x1 + y, g2_ref[...], bln2_ref[...])
    xc_ref[...] = x2                                          # carry to next grid step

    # ---- last grid step: attentive pooling + fc (MultiSampleDropout in eval == fc) ----
    @pl.when(layer == n_layers - 1)
    def _():
        logit = jnp.sum(x2 * wa_ref[...], axis=-1, keepdims=True) + ba_ref[...]   # (M, 1)
        lg = logit.reshape(B, S, 1)
        mx = jnp.max(lg, axis=1, keepdims=True)
        p = jnp.exp(lg - mx)
        aw = p / jnp.sum(p, axis=1, keepdims=True)            # exact final softmax
        pooled = jnp.sum(x2.reshape(B, S, D) * aw, axis=1)                        # (B, D)
        o_ref[...] = jnp.dot(pooled.astype(jnp.bfloat16), wfc_ref[...],
                             preferred_element_type=jnp.float32) + bfc_ref[...]   # (B, 128)


# ----------------------------------------------------------------------------
# wrapper
# ----------------------------------------------------------------------------
def encoder_forward(x, params, *, n_heads, n_layers, num_classes):
    B, S, F = x.shape
    D = params["we2"].shape[1]
    FF = params["wf1"].shape[2]
    M = B * S
    H = n_heads

    operands = [
        x.reshape(M, F),
        params["bn_scale_rows"], params["bn_shift_rows"],
        params["we1"], params["be1"], params["we2"], params["be2"],
        params["pe_rows"],
        params["win"], params["bin"], params["wo"], params["bo"],
        params["g1"], params["bln1"],
        params["wf1"], params["bf1"], params["wf2"], params["bf2"],
        params["g2"], params["bln2"],
        params["wa"], params["ba"], params["wfc"], params["bfc"],
    ]

    def inv(shape):          # layer-invariant operand: same block every step -> resident
        return pl.BlockSpec(shape, lambda l: (0,) * len(shape))

    def per_layer(tail):     # (L, *tail) stack: one layer's slab per grid step
        return pl.BlockSpec((None,) + tail, lambda l: (l,) + (0,) * len(tail))

    in_specs = [
        inv((M, F)), inv((M, 1)), inv((M, 1)),
        inv((F, LANE)), inv((1, LANE)), inv((LANE, D)), inv((1, D)),
        inv((M, D)),
        per_layer((D, 3 * D)), per_layer((1, 3 * D)),
        per_layer((D, D)), per_layer((1, D)),
        per_layer((1, D)), per_layer((1, D)),
        per_layer((D, FF)), per_layer((1, FF)),
        per_layer((FF, D)), per_layer((1, D)),
        per_layer((1, D)), per_layer((1, D)),
        inv((1, D)), inv((1, 1)), inv((D, LANE)), inv((1, LANE)),
    ]

    # advisory cost estimate for XLA scheduling around this small kernel
    flops = int(2 * M * F * LANE + 2 * M * LANE * D                       # embedder
                + n_layers * (2 * M * D * 3 * D                           # qkv proj
                              + 4 * B * H * S * S * D                     # masked attention
                              + 2 * M * D * D                             # out proj
                              + 4 * M * D * FF)                           # FFN
                + 2 * M * D + 2 * B * D * LANE)                           # pool + fc
    transcendentals = int(n_layers * B * H * S * S + B * S)
    bytes_accessed = int(sum(int(op.size) * op.dtype.itemsize for op in operands)
                         + B * LANE * 4)

    out_pad = pl.pallas_call(
        functools.partial(_fused_encoder_kernel, n_layers, n_heads, B, S, D),
        grid=(n_layers,),
        in_specs=in_specs,
        out_specs=pl.BlockSpec((B, LANE), lambda l: (0, 0)),
        out_shape=jax.ShapeDtypeStruct((B, LANE), jnp.float32),
        scratch_shapes=[pltpu.VMEM((M, D), jnp.float32)],      # xc carried across layers
        compiler_params=pltpu.CompilerParams(dimension_semantics=("arbitrary",)),
        cost_estimate=pl.CostEstimate(flops=flops,
                                      transcendentals=transcendentals,
                                      bytes_accessed=bytes_accessed),
    )(*operands)
    return out_pad[:, :num_classes]                            # (B, C)


# ----------------------------------------------------------------------------
# deterministic parameter construction (synthetic weights)
# ----------------------------------------------------------------------------
def make_params(key, B, S, F, D, FF, C, n_layers, n_heads):
    def nrm(k, shape, scale=0.05):
        return (scale * jax.random.normal(k, shape)).astype(jnp.float32)

    keys = iter(jax.random.split(key, 32 + 16 * n_layers))
    Dh = D // 2
    qk_scale = 1.0 / math.sqrt(D // n_heads)

    # BatchNorm1d(S) eval: fold running stats + affine into per-(b,s)-row scale/shift.
    gamma = nrm(next(keys), (S,)) + 1.0
    beta = nrm(next(keys), (S,))
    run_mean = nrm(next(keys), (S,))
    run_var = jnp.abs(nrm(next(keys), (S,))) + 1.0
    inv = 1.0 / jnp.sqrt(run_var + 1e-5)
    bn_scale = (gamma * inv).reshape(S, 1)
    bn_shift = (beta - run_mean * gamma * inv).reshape(S, 1)

    we1 = nrm(next(keys), (F, Dh))
    be1 = nrm(next(keys), (1, Dh))
    we2 = nrm(next(keys), (Dh, D))
    be2 = nrm(next(keys), (1, D))

    params = {
        "bn_scale_rows": jnp.tile(bn_scale, (B, 1)),                           # (B*S, 1)
        "bn_shift_rows": jnp.tile(bn_shift, (B, 1)),
        # embedder hidden padded 64 -> 128 lanes (zero columns / rows, exact)
        "we1": jnp.pad(we1, ((0, 0), (0, LANE - Dh))).astype(jnp.bfloat16),    # (F, 128)
        "be1": jnp.pad(be1, ((0, 0), (0, LANE - Dh))),                         # (1, 128)
        "we2": jnp.pad(we2, ((0, LANE - Dh), (0, 0))).astype(jnp.bfloat16),    # (128, D)
        "be2": be2,                                                            # (1, D)
        "wa": nrm(next(keys), (1, D)),                                         # pooling W
        "ba": nrm(next(keys), (1, 1)),
        # fc output padded C -> 128 lanes (lane-dense store; sliced in wrapper)
        "wfc": jnp.pad(nrm(next(keys), (D, C)),
                       ((0, 0), (0, LANE - C))).astype(jnp.bfloat16),          # (D, 128)
        "bfc": jnp.pad(nrm(next(keys), (1, C)), ((0, 0), (0, LANE - C))),      # (1, 128)
    }

    # positional encoding — exactly as in the reference (indexed by the batch axis),
    # pre-expanded to one row per flattened (b, s).
    pos = jnp.arange(B, dtype=jnp.float32)[:, None]
    div = jnp.exp(jnp.arange(0, D, 2, dtype=jnp.float32) * (-math.log(10000.0) / D))
    pe = jnp.zeros((B, D), dtype=jnp.float32)
    pe = pe.at[:, 0::2].set(jnp.sin(pos * div))
    pe = pe.at[:, 1::2].set(jnp.cos(pos * div))
    params["pe_rows"] = jnp.repeat(pe, S, axis=0)                              # (B*S, D)

    win, bin_, wo, bo, g1, bln1 = [], [], [], [], [], []
    wf1, bf1, wf2, bf2, g2, bln2 = [], [], [], [], [], []
    for _ in range(n_layers):
        w = nrm(next(keys), (D, 3 * D))               # in_proj_weight.T
        b = nrm(next(keys), (1, 3 * D))               # in_proj_bias
        # fold 1/sqrt(head_dim) into the Q third of the in-projection (free at runtime)
        w = w.at[:, :D].multiply(qk_scale)
        b = b.at[:, :D].multiply(qk_scale)
        win.append(w); bin_.append(b)
        wo.append(nrm(next(keys), (D, D)))            # out_proj.weight.T
        bo.append(nrm(next(keys), (1, D)))
        g1.append(nrm(next(keys), (1, D)) + 1.0)      # LayerNorm1
        bln1.append(nrm(next(keys), (1, D)))
        wf1.append(nrm(next(keys), (D, FF)))          # linear1.weight.T
        bf1.append(nrm(next(keys), (1, FF)))
        wf2.append(nrm(next(keys), (FF, D)))          # linear2.weight.T
        bf2.append(nrm(next(keys), (1, D)))
        g2.append(nrm(next(keys), (1, D)) + 1.0)      # LayerNorm2
        bln2.append(nrm(next(keys), (1, D)))

    st = lambda xs, dt=jnp.float32: jnp.stack(xs).astype(dt)
    params.update({
        "win": st(win, jnp.bfloat16), "bin": st(bin_),
        "wo": st(wo, jnp.bfloat16), "bo": st(bo),
        "g1": st(g1), "bln1": st(bln1),
        "wf1": st(wf1, jnp.bfloat16), "bf1": st(bf1),
        "wf2": st(wf2, jnp.bfloat16), "bf2": st(bf2),
        "g2": st(g2), "bln2": st(bln2),
    })
    return params


# ----------------------------------------------------------------------------
if __name__ == "__main__":
    # small shapes consistent with Encoder(chart_features=8, sequence_length=16,
    # d_model=128, num_classes=3, n_heads=8, num_encoders=2)
    B, S, F = 2, 16, 8
    D, FF, C = 128, 2048, 3      # FF=2048 is the PyTorch TransformerEncoderLayer default
    N_HEADS, N_LAYERS = 8, 2

    key = jax.random.PRNGKey(0)
    kx, kp = jax.random.split(key)
    x = jax.random.normal(kx, (B, S, F), dtype=jnp.float32)
    params = make_params(kp, B, S, F, D, FF, C, N_LAYERS, N_HEADS)

    fwd = jax.jit(functools.partial(encoder_forward,
                                    n_heads=N_HEADS, n_layers=N_LAYERS, num_classes=C))
    out = jax.block_until_ready(fwd(x, params))

    assert out.shape == (B, C), out.shape
    assert bool(jnp.all(jnp.isfinite(out)))
    print("KERNEL_OK")
</pallas_src>

<mosaic_0001>
module attributes {stable_mosaic.version = 11 : i64} {
  func.func @_fused_encoder_kernel(%arg0: i32, %arg1: memref<32x8xf32, #tpu.memory_space<vmem>>, %arg2: memref<32x1xf32, #tpu.memory_space<vmem>>, %arg3: memref<32x1xf32, #tpu.memory_space<vmem>>, %arg4: memref<8x128xbf16, #tpu.memory_space<vmem>>, %arg5: memref<1x128xf32, #tpu.memory_space<vmem>>, %arg6: memref<128x128xbf16, #tpu.memory_space<vmem>>, %arg7: memref<1x128xf32, #tpu.memory_space<vmem>>, %arg8: memref<32x128xf32, #tpu.memory_space<vmem>>, %arg9: memref<1x128x384xbf16, #tpu.memory_space<vmem>>, %arg10: memref<1x1x384xf32, #tpu.memory_space<vmem>>, %arg11: memref<1x128x128xbf16, #tpu.memory_space<vmem>>, %arg12: memref<1x1x128xf32, #tpu.memory_space<vmem>>, %arg13: memref<1x1x128xf32, #tpu.memory_space<vmem>>, %arg14: memref<1x1x128xf32, #tpu.memory_space<vmem>>, %arg15: memref<1x128x2048xbf16, #tpu.memory_space<vmem>>, %arg16: memref<1x1x2048xf32, #tpu.memory_space<vmem>>, %arg17: memref<1x2048x128xbf16, #tpu.memory_space<vmem>>, %arg18: memref<1x1x128xf32, #tpu.memory_space<vmem>>, %arg19: memref<1x1x128xf32, #tpu.memory_space<vmem>>, %arg20: memref<1x1x128xf32, #tpu.memory_space<vmem>>, %arg21: memref<1x128xf32, #tpu.memory_space<vmem>>, %arg22: memref<1x1xf32, #tpu.memory_space<vmem>>, %arg23: memref<128x128xbf16, #tpu.memory_space<vmem>>, %arg24: memref<1x128xf32, #tpu.memory_space<vmem>>, %arg25: memref<2x128xf32, #tpu.memory_space<vmem>>, %arg26: memref<32x128xf32, #tpu.memory_space<vmem>>) attributes {dimension_semantics = [#tpu.dimension_semantics<arbitrary>], iteration_bounds = array<i64: 2>, scalar_prefetch = 0 : i64, scratch_operands = 1 : i64, tpu.core_type = #tpu.core_type<tc>, window_params = [{pipeline_mode = #tpu.pipeline_mode<synchronous>, transform_indices = @transform_0, window_bounds = array<i64: 32, 8>}, {pipeline_mode = #tpu.pipeline_mode<synchronous>, transform_indices = @transform_1, window_bounds = array<i64: 32, 1>}, {pipeline_mode = #tpu.pipeline_mode<synchronous>, transform_indices = @transform_2, window_bounds = array<i64: 32, 1>}, {pipeline_mode = #tpu.pipeline_mode<synchronous>, transform_indices = @transform_3, window_bounds = array<i64: 8, 128>}, {pipeline_mode = #tpu.pipeline_mode<synchronous>, transform_indices = @transform_4, window_bounds = array<i64: 1, 128>}, {pipeline_mode = #tpu.pipeline_mode<synchronous>, transform_indices = @transform_5, window_bounds = array<i64: 128, 128>}, {pipeline_mode = #tpu.pipeline_mode<synchronous>, transform_indices = @transform_6, window_bounds = array<i64: 1, 128>}, {pipeline_mode = #tpu.pipeline_mode<synchronous>, transform_indices = @transform_7, window_bounds = array<i64: 32, 128>}, {transform_indices = @transform_8, window_bounds = array<i64: 1, 128, 384>}, {transform_indices = @transform_9, window_bounds = array<i64: 1, 1, 384>}, {transform_indices = @transform_10, window_bounds = array<i64: 1, 128, 128>}, {transform_indices = @transform_11, window_bounds = array<i64: 1, 1, 128>}, {transform_indices = @transform_12, window_bounds = array<i64: 1, 1, 128>}, {transform_indices = @transform_13, window_bounds = array<i64: 1, 1, 128>}, {transform_indices = @transform_14, window_bounds = array<i64: 1, 128, 2048>}, {transform_indices = @transform_15, window_bounds = array<i64: 1, 1, 2048>}, {transform_indices = @transform_16, window_bounds = array<i64: 1, 2048, 128>}, {transform_indices = @transform_17, window_bounds = array<i64: 1, 1, 128>}, {transform_indices = @transform_18, window_bounds = array<i64: 1, 1, 128>}, {transform_indices = @transform_19, window_bounds = array<i64: 1, 1, 128>}, {pipeline_mode = #tpu.pipeline_mode<synchronous>, transform_indices = @transform_20, window_bounds = array<i64: 1, 128>}, {pipeline_mode = #tpu.pipeline_mode<synchronous>, transform_indices = @transform_21, window_bounds = array<i64: 1, 1>}, {pipeline_mode = #tpu.pipeline_mode<synchronous>, transform_indices = @transform_22, window_bounds = array<i64: 128, 128>}, {pipeline_mode = #tpu.pipeline_mode<synchronous>, transform_indices = @transform_23, window_bounds = array<i64: 1, 128>}, {pipeline_mode = #tpu.pipeline_mode<synchronous>, transform_indices = @transform_24, window_bounds = array<i64: 2, 128>}]} {
    %c0_i32 = arith.constant 0 : i32
    %0 = arith.cmpi eq, %arg0, %c0_i32 : i32
    %1 = arith.extui %0 : i1 to i32
    %c0_i32_0 = arith.constant 0 : i32
    %2 = arith.cmpi ne, %1, %c0_i32_0 : i32
    scf.if %2 {
      %c0_96 = arith.constant 0 : index
      %c0_97 = arith.constant 0 : index
      %314 = vector.load %arg1[%c0_96, %c0_97] : memref<32x8xf32, #tpu.memory_space<vmem>>, vector<32x8xf32>
      %c0_98 = arith.constant 0 : index
      %c0_99 = arith.constant 0 : index
      %315 = vector.load %arg2[%c0_98, %c0_99] : memref<32x1xf32, #tpu.memory_space<vmem>>, vector<32x1xf32>
      %316 = vector.broadcast %315 : vector<32x1xf32> to vector<32x8xf32>
      %317 = arith.mulf %314, %316 : vector<32x8xf32>
      %c0_100 = arith.constant 0 : index
      %c0_101 = arith.constant 0 : index
      %318 = vector.load %arg3[%c0_100, %c0_101] : memref<32x1xf32, #tpu.memory_space<vmem>>, vector<32x1xf32>
      %319 = vector.broadcast %318 : vector<32x1xf32> to vector<32x8xf32>
      %320 = arith.addf %317, %319 : vector<32x8xf32>
      %321 = arith.truncf %320 : vector<32x8xf32> to vector<32x8xbf16>
      %c0_102 = arith.constant 0 : index
      %c0_103 = arith.constant 0 : index
      %322 = vector.load %arg4[%c0_102, %c0_103] : memref<8x128xbf16, #tpu.memory_space<vmem>>, vector<8x128xbf16>
      %cst_104 = arith.constant dense<0.000000e+00> : vector<32x128xf32>
      %323 = tpu.matmul %321, %322, %cst_104 {dimension_numbers = #tpu.dot_dimension_numbers<[1], [0], [0], [1], [0, 0, 1, 1], [], []>} : vector<32x8xbf16>, vector<8x128xbf16>, vector<32x128xf32> -> vector<32x128xf32>
      %c0_105 = arith.constant 0 : index
      %c0_106 = arith.constant 0 : index
      %324 = vector.load %arg5[%c0_105, %c0_106] : memref<1x128xf32, #tpu.memory_space<vmem>>, vector<1x128xf32>
      %325 = vector.broadcast %324 : vector<1x128xf32> to vector<32x128xf32>
      %326 = arith.addf %323, %325 : vector<32x128xf32>
      %cst_107 = arith.constant 0.000000e+00 : f32
      %327 = vector.broadcast %cst_107 : f32 to vector<32x128xf32>
      %328 = arith.maximumf %326, %327 : vector<32x128xf32>
      %329 = arith.truncf %328 : vector<32x128xf32> to vector<32x128xbf16>
      %c0_108 = arith.constant 0 : index
      %c0_109 = arith.constant 0 : index
      %330 = vector.load %arg6[%c0_108, %c0_109] : memref<128x128xbf16, #tpu.memory_space<vmem>>, vector<128x128xbf16>
      %cst_110 = arith.constant dense<0.000000e+00> : vector<32x128xf32>
      %331 = tpu.matmul %329, %330, %cst_110 {dimension_numbers = #tpu.dot_dimension_numbers<[1], [0], [0], [1], [0, 0, 1, 1], [], []>} : vector<32x128xbf16>, vector<128x128xbf16>, vector<32x128xf32> -> vector<32x128xf32>
      %c0_111 = arith.constant 0 : index
      %c0_112 = arith.constant 0 : index
      %332 = vector.load %arg7[%c0_111, %c0_112] : memref<1x128xf32, #tpu.memory_space<vmem>>, vector<1x128xf32>
      %333 = vector.broadcast %332 : vector<1x128xf32> to vector<32x128xf32>
      %334 = arith.addf %331, %333 : vector<32x128xf32>
      %c0_113 = arith.constant 0 : index
      %c0_114 = arith.constant 0 : index
      %335 = vector.load %arg8[%c0_113, %c0_114] : memref<32x128xf32, #tpu.memory_space<vmem>>, vector<32x128xf32>
      %336 = arith.addf %334, %335 : vector<32x128xf32>
      %c0_115 = arith.constant 0 : index
      %c0_116 = arith.constant 0 : index
      %337 = vector.load %arg26[%c0_115, %c0_116] : memref<32x128xf32, #tpu.memory_space<vmem>>, vector<32x128xf32>
      tpu.vector_store %arg26[%c0_115, %c0_116], %336 {strides = array<i32>} : memref<32x128xf32, #tpu.memory_space<vmem>>, vector<32x128xf32>,
    } else {
    }
    %c0 = arith.constant 0 : index
    %c0_1 = arith.constant 0 : index
    %3 = vector.load %arg26[%c0, %c0_1] : memref<32x128xf32, #tpu.memory_space<vmem>>, vector<32x128xf32>
    %4 = arith.truncf %3 : vector<32x128xf32> to vector<32x128xbf16>
    %c0_2 = arith.constant 0 : index
    %c0_3 = arith.constant 0 : index
    %c0_4 = arith.constant 0 : index
    %5 = vector.load %arg9[%c0_2, %c0_3, %c0_4] : memref<1x128x384xbf16, #tpu.memory_space<vmem>>, vector<1x128x384xbf16>
    %6 = vector.shape_cast %5 : vector<1x128x384xbf16> to vector<128x384xbf16>
    %cst = arith.constant dense<0.000000e+00> : vector<32x384xf32>
    %7 = tpu.matmul %4, %6, %cst {dimension_numbers = #tpu.dot_dimension_numbers<[1], [0], [0], [1], [0, 0, 1, 1], [], []>} : vector<32x128xbf16>, vector<128x384xbf16>, vector<32x384xf32> -> vector<32x384xf32>
    %c0_5 = arith.constant 0 : index
    %c0_6 = arith.constant 0 : index
    %c0_7 = arith.constant 0 : index
    %8 = vector.load %arg10[%c0_5, %c0_6, %c0_7] : memref<1x1x384xf32, #tpu.memory_space<vmem>>, vector<1x1x384xf32>
    %9 = vector.shape_cast %8 : vector<1x1x384xf32> to vector<1x384xf32>
    %10 = vector.broadcast %9 : vector<1x384xf32> to vector<32x384xf32>
    %11 = arith.addf %7, %10 : vector<32x384xf32>
    %12 = arith.truncf %11 : vector<32x384xf32> to vector<32x384xbf16>
    %13 = vector.extract_strided_slice %12 {offsets = [0, 0], sizes = [32, 128], strides = [1, 1]} : vector<32x384xbf16> to vector<32x128xbf16>
    %14 = vector.shape_cast %13 : vector<32x128xbf16> to vector<2x16x128xbf16>
    %15 = vector.extract_strided_slice %12 {offsets = [0, 128], sizes = [32, 128], strides = [1, 1]} : vector<32x384xbf16> to vector<32x128xbf16>
    %16 = vector.shape_cast %15 : vector<32x128xbf16> to vector<2x16x128xbf16>
    %17 = vector.extract_strided_slice %12 {offsets = [0, 256], sizes = [32, 128], strides = [1, 1]} : vector<32x384xbf16> to vector<32x128xbf16>
    %18 = vector.shape_cast %17 : vector<32x128xbf16> to vector<2x16x128xbf16>
    %19 = tpu.iota {dimensions = array<i32: 2>} : vector<1x1x128xi32>
    %cst_8 = arith.constant 0.000000e+00 : f32
    %20 = vector.broadcast %cst_8 : f32 to vector<2x16x128xf32>
    %c0_i32_9 = arith.constant 0 : i32
    %21 = vector.broadcast %c0_i32_9 : i32 to vector<1x1x128xi32>
    %22 = arith.cmpi sge, %19, %21 : vector<1x1x128xi32>
    %c16_i32 = arith.constant 16 : i32
    %23 = vector.broadcast %c16_i32 : i32 to vector<1x1x128xi32>
    %24 = arith.cmpi slt, %19, %23 : vector<1x1x128xi32>
    %25 = arith.andi %22, %24 : vector<1x1x128xi1>
    %26 = arith.extui %25 : vector<1x1x128xi1> to vector<1x1x128xi32>
    %27 = arith.sitofp %26 : vector<1x1x128xi32> to vector<1x1x128xf32>
    %28 = arith.truncf %27 : vector<1x1x128xf32> to vector<1x1x128xbf16>
    %29 = vector.broadcast %28 : vector<1x1x128xbf16> to vector<2x16x128xbf16>
    %30 = arith.mulf %16, %29 : vector<2x16x128xbf16>
    "tpu.trace_start"() <{level = 10 : i32, message = "bqd,bkd->bqk"}> : () -> ()
    %cst_10 = arith.constant dense<0.000000e+00> : vector<2x16x16xf32>
    %31 = tpu.matmul %14, %30, %cst_10 {dimension_numbers = #tpu.dot_dimension_numbers<[2], [2], [1], [1], [0, 0, 0, 1, 1, 1], [0], [0]>} : vector<2x16x128xbf16>, vector<2x16x128xbf16>, vector<2x16x16xf32> -> vector<2x16x16xf32>
    "tpu.trace_stop"() : () -> ()
    %cst_11 = arith.constant dense<0xFF800000> : vector<2x16xf32>
    %32 = vector.multi_reduction <maximumf>, %31, %cst_11 [2] : vector<2x16x16xf32> to vector<2x16xf32>
    %33 = vector.shape_cast %32 : vector<2x16xf32> to vector<2x16x1xf32>
    %34 = vector.broadcast %33 : vector<2x16x1xf32> to vector<2x16x16xf32>
    %35 = arith.subf %31, %34 : vector<2x16x16xf32>
    %36 = math.exp %35 : vector<2x16x16xf32>
    %cst_12 = arith.constant dense<0.000000e+00> : vector<2x16xf32>
    %37 = vector.multi_reduction <add>, %36, %cst_12 [2] : vector<2x16x16xf32> to vector<2x16xf32>
    %38 = vector.shape_cast %37 : vector<2x16xf32> to vector<2x16x1xf32>
    %39 = tpu.reciprocal %38 {approx = true} : vector<2x16x1xf32> -> vector<2x16x1xf32>
    %40 = vector.broadcast %39 : vector<2x16x1xf32> to vector<2x16x16xf32>
    %41 = arith.mulf %36, %40 : vector<2x16x16xf32>
    %42 = arith.truncf %41 : vector<2x16x16xf32> to vector<2x16x16xbf16>
    %43 = vector.broadcast %28 : vector<1x1x128xbf16> to vector<2x16x128xbf16>
    %44 = arith.mulf %18, %43 : vector<2x16x128xbf16>
    "tpu.trace_start"() <{level = 10 : i32, message = "bqk,bkd->bqd"}> : () -> ()
    %cst_13 = arith.constant dense<0.000000e+00> : vector<2x16x128xf32>
    %45 = tpu.matmul %42, %44, %cst_13 {dimension_numbers = #tpu.dot_dimension_numbers<[2], [1], [1], [2], [0, 0, 0, 1, 1, 2], [0], [0]>} : vector<2x16x16xbf16>, vector<2x16x128xbf16>, vector<2x16x128xf32> -> vector<2x16x128xf32>
    "tpu.trace_stop"() : () -> ()
    %46 = arith.addf %20, %45 : vector<2x16x128xf32>
    %c16_i32_14 = arith.constant 16 : i32
    %47 = vector.broadcast %c16_i32_14 : i32 to vector<1x1x128xi32>
    %48 = arith.cmpi sge, %19, %47 : vector<1x1x128xi32>
    %c32_i32 = arith.constant 32 : i32
    %49 = vector.broadcast %c32_i32 : i32 to vector<1x1x128xi32>
    %50 = arith.cmpi slt, %19, %49 : vector<1x1x128xi32>
    %51 = arith.andi %48, %50 : vector<1x1x128xi1>
    %52 = arith.extui %51 : vector<1x1x128xi1> to vector<1x1x128xi32>
    %53 = arith.sitofp %52 : vector<1x1x128xi32> to vector<1x1x128xf32>
    %54 = arith.truncf %53 : vector<1x1x128xf32> to vector<1x1x128xbf16>
    %55 = vector.broadcast %54 : vector<1x1x128xbf16> to vector<2x16x128xbf16>
    %56 = arith.mulf %16, %55 : vector<2x16x128xbf16>
    "tpu.trace_start"() <{level = 10 : i32, message = "bqd,bkd->bqk"}> : () -> ()
    %cst_15 = arith.constant dense<0.000000e+00> : vector<2x16x16xf32>
    %57 = tpu.matmul %14, %56, %cst_15 {dimension_numbers = #tpu.dot_dimension_numbers<[2], [2], [1], [1], [0, 0, 0, 1, 1, 1], [0], [0]>} : vector<2x16x128xbf16>, vector<2x16x128xbf16>, vector<2x16x16xf32> -> vector<2x16x16xf32>
    "tpu.trace_stop"() : () -> ()
    %cst_16 = arith.constant dense<0xFF800000> : vector<2x16xf32>
    %58 = vector.multi_reduction <maximumf>, %57, %cst_16 [2] : vector<2x16x16xf32> to vector<2x16xf32>
    %59 = vector.shape_cast %58 : vector<2x16xf32> to vector<2x16x1xf32>
    %60 = vector.broadcast %59 : vector<2x16x1xf32> to vector<2x16x16xf32>
    %61 = arith.subf %57, %60 : vector<2x16x16xf32>
    %62 = math.exp %61 : vector<2x16x16xf32>
    %cst_17 = arith.constant dense<0.000000e+00> : vector<2x16xf32>
    %63 = vector.multi_reduction <add>, %62, %cst_17 [2] : vector<2x16x16xf32> to vector<2x16xf32>
    %64 = vector.shape_cast %63 : vector<2x16xf32> to vector<2x16x1xf32>
    %65 = tpu.reciprocal %64 {approx = true} : vector<2x16x1xf32> -> vector<2x16x1xf32>
    %66 = vector.broadcast %65 : vector<2x16x1xf32> to vector<2x16x16xf32>
    %67 = arith.mulf %62, %66 : vector<2x16x16xf32>
    %68 = arith.truncf %67 : vector<2x16x16xf32> to vector<2x16x16xbf16>
    %69 = vector.broadcast %54 : vector<1x1x128xbf16> to vector<2x16x128xbf16>
    %70 = arith.mulf %18, %69 : vector<2x16x128xbf16>
    "tpu.trace_start"() <{level = 10 : i32, message = "bqk,bkd->bqd"}> : () -> ()
    %cst_18 = arith.constant dense<0.000000e+00> : vector<2x16x128xf32>
    %71 = tpu.matmul %68, %70, %cst_18 {dimension_numbers = #tpu.dot_dimension_numbers<[2], [1], [1], [2], [0, 0, 0, 1, 1, 2], [0], [0]>} : vector<2x16x16xbf16>, vector<2x16x128xbf16>, vector<2x16x128xf32> -> vector<2x16x128xf32>
    "tpu.trace_stop"() : () -> ()
    %72 = arith.addf %46, %71 : vector<2x16x128xf32>
    %c32_i32_19 = arith.constant 32 : i32
    %73 = vector.broadcast %c32_i32_19 : i32 to vector<1x1x128xi32>
    %74 = arith.cmpi sge, %19, %73 : vector<1x1x128xi32>
    %c48_i32 = arith.constant 48 : i32
    %75 = vector.broadcast %c48_i32 : i32 to vector<1x1x128xi32>
    %76 = arith.cmpi slt, %19, %75 : vector<1x1x128xi32>
    %77 = arith.andi %74, %76 : vector<1x1x128xi1>
    %78 = arith.extui %77 : vector<1x1x128xi1> to vector<1x1x128xi32>
    %79 = arith.sitofp %78 : vector<1x1x128xi32> to vector<1x1x128xf32>
    %80 = arith.truncf %79 : vector<1x1x128xf32> to vector<1x1x128xbf16>
    %81 = vector.broadcast %80 : vector<1x1x128xbf16> to vector<2x16x128xbf16>
    %82 = arith.mulf %16, %81 : vector<2x16x128xbf16>
    "tpu.trace_start"() <{level = 10 : i32, message = "bqd,bkd->bqk"}> : () -> ()
    %cst_20 = arith.constant dense<0.000000e+00> : vector<2x16x16xf32>
    %83 = tpu.matmul %14, %82, %cst_20 {dimension_numbers = #tpu.dot_dimension_numbers<[2], [2], [1], [1], [0, 0, 0, 1, 1, 1], [0], [0]>} : vector<2x16x128xbf16>, vector<2x16x128xbf16>, vector<2x16x16xf32> -> vector<2x16x16xf32>
    "tpu.trace_stop"() : () -> ()
    %cst_21 = arith.constant dense<0xFF800000> : vector<2x16xf32>
    %84 = vector.multi_reduction <maximumf>, %83, %cst_21 [2] : vector<2x16x16xf32> to vector<2x16xf32>
    %85 = vector.shape_cast %84 : vector<2x16xf32> to vector<2x16x1xf32>
    %86 = vector.broadcast %85 : vector<2x16x1xf32> to vector<2x16x16xf32>
    %87 = arith.subf %83, %86 : vector<2x16x16xf32>
    %88 = math.exp %87 : vector<2x16x16xf32>
    %cst_22 = arith.constant dense<0.000000e+00> : vector<2x16xf32>
    %89 = vector.multi_reduction <add>, %88, %cst_22 [2] : vector<2x16x16xf32> to vector<2x16xf32>
    %90 = vector.shape_cast %89 : vector<2x16xf32> to vector<2x16x1xf32>
    %91 = tpu.reciprocal %90 {approx = true} : vector<2x16x1xf32> -> vector<2x16x1xf32>
    %92 = vector.broadcast %91 : vector<2x16x1xf32> to vector<2x16x16xf32>
    %93 = arith.mulf %88, %92 : vector<2x16x16xf32>
    %94 = arith.truncf %93 : vector<2x16x16xf32> to vector<2x16x16xbf16>
    %95 = vector.broadcast %80 : vector<1x1x128xbf16> to vector<2x16x128xbf16>
    %96 = arith.mulf %18, %95 : vector<2x16x128xbf16>
    "tpu.trace_start"() <{level = 10 : i32, message = "bqk,bkd->bqd"}> : () -> ()
    %cst_23 = arith.constant dense<0.000000e+00> : vector<2x16x128xf32>
    %97 = tpu.matmul %94, %96, %cst_23 {dimension_numbers = #tpu.dot_dimension_numbers<[2], [1], [1], [2], [0, 0, 0, 1, 1, 2], [0], [0]>} : vector<2x16x16xbf16>, vector<2x16x128xbf16>, vector<2x16x128xf32> -> vector<2x16x128xf32>
    "tpu.trace_stop"() : () -> ()
    %98 = arith.addf %72, %97 : vector<2x16x128xf32>
    %c48_i32_24 = arith.constant 48 : i32
    %99 = vector.broadcast %c48_i32_24 : i32 to vector<1x1x128xi32>
    %100 = arith.cmpi sge, %19, %99 : vector<1x1x128xi32>
    %c64_i32 = arith.constant 64 : i32
    %101 = vector.broadcast %c64_i32 : i32 to vector<1x1x128xi32>
    %102 = arith.cmpi slt, %19, %101 : vector<1x1x128xi32>
    %103 = arith.andi %100, %102 : vector<1x1x128xi1>
    %104 = arith.extui %103 : vector<1x1x128xi1> to vector<1x1x128xi32>
    %105 = arith.sitofp %104 : vector<1x1x128xi32> to vector<1x1x128xf32>
    %106 = arith.truncf %105 : vector<1x1x128xf32> to vector<1x1x128xbf16>
    %107 = vector.broadcast %106 : vector<1x1x128xbf16> to vector<2x16x128xbf16>
    %108 = arith.mulf %16, %107 : vector<2x16x128xbf16>
    "tpu.trace_start"() <{level = 10 : i32, message = "bqd,bkd->bqk"}> : () -> ()
    %cst_25 = arith.constant dense<0.000000e+00> : vector<2x16x16xf32>
    %109 = tpu.matmul %14, %108, %cst_25 {dimension_numbers = #tpu.dot_dimension_numbers<[2], [2], [1], [1], [0, 0, 0, 1, 1, 1], [0], [0]>} : vector<2x16x128xbf16>, vector<2x16x128xbf16>, vector<2x16x16xf32> -> vector<2x16x16xf32>
    "tpu.trace_stop"() : () -> ()
    %cst_26 = arith.constant dense<0xFF800000> : vector<2x16xf32>
    %110 = vector.multi_reduction <maximumf>, %109, %cst_26 [2] : vector<2x16x16xf32> to vector<2x16xf32>
    %111 = vector.shape_cast %110 : vector<2x16xf32> to vector<2x16x1xf32>
    %112 = vector.broadcast %111 : vector<2x16x1xf32> to vector<2x16x16xf32>
    %113 = arith.subf %109, %112 : vector<2x16x16xf32>
    %114 = math.exp %113 : vector<2x16x16xf32>
    %cst_27 = arith.constant dense<0.000000e+00> : vector<2x16xf32>
    %115 = vector.multi_reduction <add>, %114, %cst_27 [2] : vector<2x16x16xf32> to vector<2x16xf32>
    %116 = vector.shape_cast %115 : vector<2x16xf32> to vector<2x16x1xf32>
    %117 = tpu.reciprocal %116 {approx = true} : vector<2x16x1xf32> -> vector<2x16x1xf32>
    %118 = vector.broadcast %117 : vector<2x16x1xf32> to vector<2x16x16xf32>
    %119 = arith.mulf %114, %118 : vector<2x16x16xf32>
    %120 = arith.truncf %119 : vector<2x16x16xf32> to vector<2x16x16xbf16>
    %121 = vector.broadcast %106 : vector<1x1x128xbf16> to vector<2x16x128xbf16>
    %122 = arith.mulf %18, %121 : vector<2x16x128xbf16>
    "tpu.trace_start"() <{level = 10 : i32, message = "bqk,bkd->bqd"}> : () -> ()
    %cst_28 = arith.constant dense<0.000000e+00> : vector<2x16x128xf32>
    %123 = tpu.matmul %120, %122, %cst_28 {dimension_numbers = #tpu.dot_dimension_numbers<[2], [1], [1], [2], [0, 0, 0, 1, 1, 2], [0], [0]>} : vector<2x16x16xbf16>, vector<2x16x128xbf16>, vector<2x16x128xf32> -> vector<2x16x128xf32>
    "tpu.trace_stop"() : () -> ()
    %124 = arith.addf %98, %123 : vector<2x16x128xf32>
    %c64_i32_29 = arith.constant 64 : i32
    %125 = vector.broadcast %c64_i32_29 : i32 to vector<1x1x128xi32>
    %126 = arith.cmpi sge, %19, %125 : vector<1x1x128xi32>
    %c80_i32 = arith.constant 80 : i32
    %127 = vector.broadcast %c80_i32 : i32 to vector<1x1x128xi32>
    %128 = arith.cmpi slt, %19, %127 : vector<1x1x128xi32>
    %129 = arith.andi %126, %128 : vector<1x1x128xi1>
    %130 = arith.extui %129 : vector<1x1x128xi1> to vector<1x1x128xi32>
    %131 = arith.sitofp %130 : vector<1x1x128xi32> to vector<1x1x128xf32>
    %132 = arith.truncf %131 : vector<1x1x128xf32> to vector<1x1x128xbf16>
    %133 = vector.broadcast %132 : vector<1x1x128xbf16> to vector<2x16x128xbf16>
    %134 = arith.mulf %16, %133 : vector<2x16x128xbf16>
    "tpu.trace_start"() <{level = 10 : i32, message = "bqd,bkd->bqk"}> : () -> ()
    %cst_30 = arith.constant dense<0.000000e+00> : vector<2x16x16xf32>
    %135 = tpu.matmul %14, %134, %cst_30 {dimension_numbers = #tpu.dot_dimension_numbers<[2], [2], [1], [1], [0, 0, 0, 1, 1, 1], [0], [0]>} : vector<2x16x128xbf16>, vector<2x16x128xbf16>, vector<2x16x16xf32> -> vector<2x16x16xf32>
    "tpu.trace_stop"() : () -> ()
    %cst_31 = arith.constant dense<0xFF800000> : vector<2x16xf32>
    %136 = vector.multi_reduction <maximumf>, %135, %cst_31 [2] : vector<2x16x16xf32> to vector<2x16xf32>
    %137 = vector.shape_cast %136 : vector<2x16xf32> to vector<2x16x1xf32>
    %138 = vector.broadcast %137 : vector<2x16x1xf32> to vector<2x16x16xf32>
    %139 = arith.subf %135, %138 : vector<2x16x16xf32>
    %140 = math.exp %139 : vector<2x16x16xf32>
    %cst_32 = arith.constant dense<0.000000e+00> : vector<2x16xf32>
    %141 = vector.multi_reduction <add>, %140, %cst_32 [2] : vector<2x16x16xf32> to vector<2x16xf32>
    %142 = vector.shape_cast %141 : vector<2x16xf32> to vector<2x16x1xf32>
    %143 = tpu.reciprocal %142 {approx = true} : vector<2x16x1xf32> -> vector<2x16x1xf32>
    %144 = vector.broadcast %143 : vector<2x16x1xf32> to vector<2x16x16xf32>
    %145 = arith.mulf %140, %144 : vector<2x16x16xf32>
    %146 = arith.truncf %145 : vector<2x16x16xf32> to vector<2x16x16xbf16>
    %147 = vector.broadcast %132 : vector<1x1x128xbf16> to vector<2x16x128xbf16>
    %148 = arith.mulf %18, %147 : vector<2x16x128xbf16>
    "tpu.trace_start"() <{level = 10 : i32, message = "bqk,bkd->bqd"}> : () -> ()
    %cst_33 = arith.constant dense<0.000000e+00> : vector<2x16x128xf32>
    %149 = tpu.matmul %146, %148, %cst_33 {dimension_numbers = #tpu.dot_dimension_numbers<[2], [1], [1], [2], [0, 0, 0, 1, 1, 2], [0], [0]>} : vector<2x16x16xbf16>, vector<2x16x128xbf16>, vector<2x16x128xf32> -> vector<2x16x128xf32>
    "tpu.trace_stop"() : () -> ()
    %150 = arith.addf %124, %149 : vector<2x16x128xf32>
    %c80_i32_34 = arith.constant 80 : i32
    %151 = vector.broadcast %c80_i32_34 : i32 to vector<1x1x128xi32>
    %152 = arith.cmpi sge, %19, %151 : vector<1x1x128xi32>
    %c96_i32 = arith.constant 96 : i32
    %153 = vector.broadcast %c96_i32 : i32 to vector<1x1x128xi32>
    %154 = arith.cmpi slt, %19, %153 : vector<1x1x128xi32>
    %155 = arith.andi %152, %154 : vector<1x1x128xi1>
    %156 = arith.extui %155 : vector<1x1x128xi1> to vector<1x1x128xi32>
    %157 = arith.sitofp %156 : vector<1x1x128xi32> to vector<1x1x128xf32>
    %158 = arith.truncf %157 : vector<1x1x128xf32> to vector<1x1x128xbf16>
    %159 = vector.broadcast %158 : vector<1x1x128xbf16> to vector<2x16x128xbf16>
    %160 = arith.mulf %16, %159 : vector<2x16x128xbf16>
    "tpu.trace_start"() <{level = 10 : i32, message = "bqd,bkd->bqk"}> : () -> ()
    %cst_35 = arith.constant dense<0.000000e+00> : vector<2x16x16xf32>
    %161 = tpu.matmul %14, %160, %cst_35 {dimension_numbers = #tpu.dot_dimension_numbers<[2], [2], [1], [1], [0, 0, 0, 1, 1, 1], [0], [0]>} : vector<2x16x128xbf16>, vector<2x16x128xbf16>, vector<2x16x16xf32> -> vector<2x16x16xf32>
    "tpu.trace_stop"() : () -> ()
    %cst_36 = arith.constant dense<0xFF800000> : vector<2x16xf32>
    %162 = vector.multi_reduction <maximumf>, %161, %cst_36 [2] : vector<2x16x16xf32> to vector<2x16xf32>
    %163 = vector.shape_cast %162 : vector<2x16xf32> to vector<2x16x1xf32>
    %164 = vector.broadcast %163 : vector<2x16x1xf32> to vector<2x16x16xf32>
    %165 = arith.subf %161, %164 : vector<2x16x16xf32>
    %166 = math.exp %165 : vector<2x16x16xf32>
    %cst_37 = arith.constant dense<0.000000e+00> : vector<2x16xf32>
    %167 = vector.multi_reduction <add>, %166, %cst_37 [2] : vector<2x16x16xf32> to vector<2x16xf32>
    %168 = vector.shape_cast %167 : vector<2x16xf32> to vector<2x16x1xf32>
    %169 = tpu.reciprocal %168 {approx = true} : vector<2x16x1xf32> -> vector<2x16x1xf32>
    %170 = vector.broadcast %169 : vector<2x16x1xf32> to vector<2x16x16xf32>
    %171 = arith.mulf %166, %170 : vector<2x16x16xf32>
    %172 = arith.truncf %171 : vector<2x16x16xf32> to vector<2x16x16xbf16>
    %173 = vector.broadcast %158 : vector<1x1x128xbf16> to vector<2x16x128xbf16>
    %174 = arith.mulf %18, %173 : vector<2x16x128xbf16>
    "tpu.trace_start"() <{level = 10 : i32, message = "bqk,bkd->bqd"}> : () -> ()
    %cst_38 = arith.constant dense<0.000000e+00> : vector<2x16x128xf32>
    %175 = tpu.matmul %172, %174, %cst_38 {dimension_numbers = #tpu.dot_dimension_numbers<[2], [1], [1], [2], [0, 0, 0, 1, 1, 2], [0], [0]>} : vector<2x16x16xbf16>, vector<2x16x128xbf16>, vector<2x16x128xf32> -> vector<2x16x128xf32>
    "tpu.trace_stop"() : () -> ()
    %176 = arith.addf %150, %175 : vector<2x16x128xf32>
    %c96_i32_39 = arith.constant 96 : i32
    %177 = vector.broadcast %c96_i32_39 : i32 to vector<1x1x128xi32>
    %178 = arith.cmpi sge, %19, %177 : vector<1x1x128xi32>
    %c112_i32 = arith.constant 112 : i32
    %179 = vector.broadcast %c112_i32 : i32 to vector<1x1x128xi32>
    %180 = arith.cmpi slt, %19, %179 : vector<1x1x128xi32>
    %181 = arith.andi %178, %180 : vector<1x1x128xi1>
    %182 = arith.extui %181 : vector<1x1x128xi1> to vector<1x1x128xi32>
    %183 = arith.sitofp %182 : vector<1x1x128xi32> to vector<1x1x128xf32>
    %184 = arith.truncf %183 : vector<1x1x128xf32> to vector<1x1x128xbf16>
    %185 = vector.broadcast %184 : vector<1x1x128xbf16> to vector<2x16x128xbf16>
    %186 = arith.mulf %16, %185 : vector<2x16x128xbf16>
    "tpu.trace_start"() <{level = 10 : i32, message = "bqd,bkd->bqk"}> : () -> ()
    %cst_40 = arith.constant dense<0.000000e+00> : vector<2x16x16xf32>
    %187 = tpu.matmul %14, %186, %cst_40 {dimension_numbers = #tpu.dot_dimension_numbers<[2], [2], [1], [1], [0, 0, 0, 1, 1, 1], [0], [0]>} : vector<2x16x128xbf16>, vector<2x16x128xbf16>, vector<2x16x16xf32> -> vector<2x16x16xf32>
    "tpu.trace_stop"() : () -> ()
    %cst_41 = arith.constant dense<0xFF800000> : vector<2x16xf32>
    %188 = vector.multi_reduction <maximumf>, %187, %cst_41 [2] : vector<2x16x16xf32> to vector<2x16xf32>
    %189 = vector.shape_cast %188 : vector<2x16xf32> to vector<2x16x1xf32>
    %190 = vector.broadcast %189 : vector<2x16x1xf32> to vector<2x16x16xf32>
    %191 = arith.subf %187, %190 : vector<2x16x16xf32>
    %192 = math.exp %191 : vector<2x16x16xf32>
    %cst_42 = arith.constant dense<0.000000e+00> : vector<2x16xf32>
    %193 = vector.multi_reduction <add>, %192, %cst_42 [2] : vector<2x16x16xf32> to vector<2x16xf32>
    %194 = vector.shape_cast %193 : vector<2x16xf32> to vector<2x16x1xf32>
    %195 = tpu.reciprocal %194 {approx = true} : vector<2x16x1xf32> -> vector<2x16x1xf32>
    %196 = vector.broadcast %195 : vector<2x16x1xf32> to vector<2x16x16xf32>
    %197 = arith.mulf %192, %196 : vector<2x16x16xf32>
    %198 = arith.truncf %197 : vector<2x16x16xf32> to vector<2x16x16xbf16>
    %199 = vector.broadcast %184 : vector<1x1x128xbf16> to vector<2x16x128xbf16>
    %200 = arith.mulf %18, %199 : vector<2x16x128xbf16>
    "tpu.trace_start"() <{level = 10 : i32, message = "bqk,bkd->bqd"}> : () -> ()
    %cst_43 = arith.constant dense<0.000000e+00> : vector<2x16x128xf32>
    %201 = tpu.matmul %198, %200, %cst_43 {dimension_numbers = #tpu.dot_dimension_numbers<[2], [1], [1], [2], [0, 0, 0, 1, 1, 2], [0], [0]>} : vector<2x16x16xbf16>, vector<2x16x128xbf16>, vector<2x16x128xf32> -> vector<2x16x128xf32>
    "tpu.trace_stop"() : () -> ()
    %202 = arith.addf %176, %201 : vector<2x16x128xf32>
    %c112_i32_44 = arith.constant 112 : i32
    %203 = vector.broadcast %c112_i32_44 : i32 to vector<1x1x128xi32>
    %204 = arith.cmpi sge, %19, %203 : vector<1x1x128xi32>
    %c128_i32 = arith.constant 128 : i32
    %205 = vector.broadcast %c128_i32 : i32 to vector<1x1x128xi32>
    %206 = arith.cmpi slt, %19, %205 : vector<1x1x128xi32>
    %207 = arith.andi %204, %206 : vector<1x1x128xi1>
    %208 = arith.extui %207 : vector<1x1x128xi1> to vector<1x1x128xi32>
    %209 = arith.sitofp %208 : vector<1x1x128xi32> to vector<1x1x128xf32>
    %210 = arith.truncf %209 : vector<1x1x128xf32> to vector<1x1x128xbf16>
    %211 = vector.broadcast %210 : vector<1x1x128xbf16> to vector<2x16x128xbf16>
    %212 = arith.mulf %16, %211 : vector<2x16x128xbf16>
    "tpu.trace_start"() <{level = 10 : i32, message = "bqd,bkd->bqk"}> : () -> ()
    %cst_45 = arith.constant dense<0.000000e+00> : vector<2x16x16xf32>
    %213 = tpu.matmul %14, %212, %cst_45 {dimension_numbers = #tpu.dot_dimension_numbers<[2], [2], [1], [1], [0, 0, 0, 1, 1, 1], [0], [0]>} : vector<2x16x128xbf16>, vector<2x16x128xbf16>, vector<2x16x16xf32> -> vector<2x16x16xf32>
    "tpu.trace_stop"() : () -> ()
    %cst_46 = arith.constant dense<0xFF800000> : vector<2x16xf32>
    %214 = vector.multi_reduction <maximumf>, %213, %cst_46 [2] : vector<2x16x16xf32> to vector<2x16xf32>
    %215 = vector.shape_cast %214 : vector<2x16xf32> to vector<2x16x1xf32>
    %216 = vector.broadcast %215 : vector<2x16x1xf32> to vector<2x16x16xf32>
    %217 = arith.subf %213, %216 : vector<2x16x16xf32>
    %218 = math.exp %217 : vector<2x16x16xf32>
    %cst_47 = arith.constant dense<0.000000e+00> : vector<2x16xf32>
    %219 = vector.multi_reduction <add>, %218, %cst_47 [2] : vector<2x16x16xf32> to vector<2x16xf32>
    %220 = vector.shape_cast %219 : vector<2x16xf32> to vector<2x16x1xf32>
    %221 = tpu.reciprocal %220 {approx = true} : vector<2x16x1xf32> -> vector<2x16x1xf32>
    %222 = vector.broadcast %221 : vector<2x16x1xf32> to vector<2x16x16xf32>
    %223 = arith.mulf %218, %222 : vector<2x16x16xf32>
    %224 = arith.truncf %223 : vector<2x16x16xf32> to vector<2x16x16xbf16>
    %225 = vector.broadcast %210 : vector<1x1x128xbf16> to vector<2x16x128xbf16>
    %226 = arith.mulf %18, %225 : vector<2x16x128xbf16>
    "tpu.trace_start"() <{level = 10 : i32, message = "bqk,bkd->bqd"}> : () -> ()
    %cst_48 = arith.constant dense<0.000000e+00> : vector<2x16x128xf32>
    %227 = tpu.matmul %224, %226, %cst_48 {dimension_numbers = #tpu.dot_dimension_numbers<[2], [1], [1], [2], [0, 0, 0, 1, 1, 2], [0], [0]>} : vector<2x16x16xbf16>, vector<2x16x128xbf16>, vector<2x16x128xf32> -> vector<2x16x128xf32>
    "tpu.trace_stop"() : () -> ()
    %228 = arith.addf %202, %227 : vector<2x16x128xf32>
    %229 = vector.shape_cast %228 : vector<2x16x128xf32> to vector<32x128xf32>
    %230 = arith.truncf %229 : vector<32x128xf32> to vector<32x128xbf16>
    %c0_49 = arith.constant 0 : index
    %c0_50 = arith.constant 0 : index
    %c0_51 = arith.constant 0 : index
    %231 = vector.load %arg11[%c0_49, %c0_50, %c0_51] : memref<1x128x128xbf16, #tpu.memory_space<vmem>>, vector<1x128x128xbf16>
    %232 = vector.shape_cast %231 : vector<1x128x128xbf16> to vector<128x128xbf16>
    %cst_52 = arith.constant dense<0.000000e+00> : vector<32x128xf32>
    %233 = tpu.matmul %230, %232, %cst_52 {dimension_numbers = #tpu.dot_dimension_numbers<[1], [0], [0], [1], [0, 0, 1, 1], [], []>} : vector<32x128xbf16>, vector<128x128xbf16>, vector<32x128xf32> -> vector<32x128xf32>
    %c0_53 = arith.constant 0 : index
    %c0_54 = arith.constant 0 : index
    %c0_55 = arith.constant 0 : index
    %234 = vector.load %arg12[%c0_53, %c0_54, %c0_55] : memref<1x1x128xf32, #tpu.memory_space<vmem>>, vector<1x1x128xf32>
    %235 = vector.shape_cast %234 : vector<1x1x128xf32> to vector<1x128xf32>
    %236 = vector.broadcast %235 : vector<1x128xf32> to vector<32x128xf32>
    %237 = arith.addf %233, %236 : vector<32x128xf32>
    %238 = arith.addf %3, %237 : vector<32x128xf32>
    %c0_56 = arith.constant 0 : index
    %c0_57 = arith.constant 0 : index
    %c0_58 = arith.constant 0 : index
    %239 = vector.load %arg13[%c0_56, %c0_57, %c0_58] : memref<1x1x128xf32, #tpu.memory_space<vmem>>, vector<1x1x128xf32>
    %240 = vector.shape_cast %239 : vector<1x1x128xf32> to vector<1x128xf32>
    %c0_59 = arith.constant 0 : index
    %c0_60 = arith.constant 0 : index
    %c0_61 = arith.constant 0 : index
    %241 = vector.load %arg14[%c0_59, %c0_60, %c0_61] : memref<1x1x128xf32, #tpu.memory_space<vmem>>, vector<1x1x128xf32>
    %242 = vector.shape_cast %241 : vector<1x1x128xf32> to vector<1x128xf32>
    %cst_62 = arith.constant dense<0.000000e+00> : vector<32xf32>
    %243 = vector.multi_reduction <add>, %238, %cst_62 [1] : vector<32x128xf32> to vector<32xf32>
    %244 = vector.shape_cast %243 : vector<32xf32> to vector<32x1xf32>
    %cst_63 = arith.constant 1.280000e+02 : f32
    %245 = vector.broadcast %cst_63 : f32 to vector<32x1xf32>
    %246 = arith.divf %244, %245 : vector<32x1xf32>
    %247 = vector.broadcast %246 : vector<32x1xf32> to vector<32x128xf32>
    %248 = arith.subf %238, %247 : vector<32x128xf32>
    %249 = arith.mulf %248, %248 : vector<32x128xf32>
    %cst_64 = arith.constant dense<0.000000e+00> : vector<32xf32>
    %250 = vector.multi_reduction <add>, %249, %cst_64 [1] : vector<32x128xf32> to vector<32xf32>
    %251 = vector.shape_cast %250 : vector<32xf32> to vector<32x1xf32>
    %cst_65 = arith.constant 1.280000e+02 : f32
    %252 = vector.broadcast %cst_65 : f32 to vector<32x1xf32>
    %253 = arith.divf %251, %252 : vector<32x1xf32>
    %254 = vector.broadcast %246 : vector<32x1xf32> to vector<32x128xf32>
    %255 = arith.subf %238, %254 : vector<32x128xf32>
    %cst_66 = arith.constant 9.99999974E-6 : f32
    %256 = vector.broadcast %cst_66 : f32 to vector<32x1xf32>
    %257 = arith.addf %253, %256 : vector<32x1xf32>
    %258 = math.rsqrt %257 : vector<32x1xf32>
    %259 = vector.broadcast %258 : vector<32x1xf32> to vector<32x128xf32>
    %260 = arith.mulf %255, %259 : vector<32x128xf32>
    %261 = vector.broadcast %240 : vector<1x128xf32> to vector<32x128xf32>
    %262 = arith.mulf %260, %261 : vector<32x128xf32>
    %263 = vector.broadcast %242 : vector<1x128xf32> to vector<32x128xf32>
    %264 = arith.addf %262, %263 : vector<32x128xf32>
    %265 = arith.truncf %264 : vector<32x128xf32> to vector<32x128xbf16>
    %c0_67 = arith.constant 0 : index
    %c0_68 = arith.constant 0 : index
    %c0_69 = arith.constant 0 : index
    %266 = vector.load %arg15[%c0_67, %c0_68, %c0_69] : memref<1x128x2048xbf16, #tpu.memory_space<vmem>>, vector<1x128x2048xbf16>
    %267 = vector.shape_cast %266 : vector<1x128x2048xbf16> to vector<128x2048xbf16>
    %cst_70 = arith.constant dense<0.000000e+00> : vector<32x2048xf32>
    %268 = tpu.matmul %265, %267, %cst_70 {dimension_numbers = #tpu.dot_dimension_numbers<[1], [0], [0], [1], [0, 0, 1, 1], [], []>} : vector<32x128xbf16>, vector<128x2048xbf16>, vector<32x2048xf32> -> vector<32x2048xf32>
    %c0_71 = arith.constant 0 : index
    %c0_72 = arith.constant 0 : index
    %c0_73 = arith.constant 0 : index
    %269 = vector.load %arg16[%c0_71, %c0_72, %c0_73] : memref<1x1x2048xf32, #tpu.memory_space<vmem>>, vector<1x1x2048xf32>
    %270 = vector.shape_cast %269 : vector<1x1x2048xf32> to vector<1x2048xf32>
    %271 = vector.broadcast %270 : vector<1x2048xf32> to vector<32x2048xf32>
    %272 = arith.addf %268, %271 : vector<32x2048xf32>
    %cst_74 = arith.constant 0.000000e+00 : f32
    %273 = vector.broadcast %cst_74 : f32 to vector<32x2048xf32>
    %274 = arith.maximumf %272, %273 : vector<32x2048xf32>
    %275 = arith.truncf %274 : vector<32x2048xf32> to vector<32x2048xbf16>
    %c0_75 = arith.constant 0 : index
    %c0_76 = arith.constant 0 : index
    %c0_77 = arith.constant 0 : index
    %276 = vector.load %arg17[%c0_75, %c0_76, %c0_77] : memref<1x2048x128xbf16, #tpu.memory_space<vmem>>, vector<1x2048x128xbf16>
    %277 = vector.shape_cast %276 : vector<1x2048x128xbf16> to vector<2048x128xbf16>
    %cst_78 = arith.constant dense<0.000000e+00> : vector<32x128xf32>
    %278 = tpu.matmul %275, %277, %cst_78 {dimension_numbers = #tpu.dot_dimension_numbers<[1], [0], [0], [1], [0, 0, 1, 1], [], []>} : vector<32x2048xbf16>, vector<2048x128xbf16>, vector<32x128xf32> -> vector<32x128xf32>
    %c0_79 = arith.constant 0 : index
    %c0_80 = arith.constant 0 : index
    %c0_81 = arith.constant 0 : index
    %279 = vector.load %arg18[%c0_79, %c0_80, %c0_81] : memref<1x1x128xf32, #tpu.memory_space<vmem>>, vector<1x1x128xf32>
    %280 = vector.shape_cast %279 : vector<1x1x128xf32> to vector<1x128xf32>
    %281 = vector.broadcast %280 : vector<1x128xf32> to vector<32x128xf32>
    %282 = arith.addf %278, %281 : vector<32x128xf32>
    %283 = arith.addf %264, %282 : vector<32x128xf32>
    %c0_82 = arith.constant 0 : index
    %c0_83 = arith.constant 0 : index
    %c0_84 = arith.constant 0 : index
    %284 = vector.load %arg19[%c0_82, %c0_83, %c0_84] : memref<1x1x128xf32, #tpu.memory_space<vmem>>, vector<1x1x128xf32>
    %285 = vector.shape_cast %284 : vector<1x1x128xf32> to vector<1x128xf32>
    %c0_85 = arith.constant 0 : index
    %c0_86 = arith.constant 0 : index
    %c0_87 = arith.constant 0 : index
    %286 = vector.load %arg20[%c0_85, %c0_86, %c0_87] : memref<1x1x128xf32, #tpu.memory_space<vmem>>, vector<1x1x128xf32>
    %287 = vector.shape_cast %286 : vector<1x1x128xf32> to vector<1x128xf32>
    %cst_88 = arith.constant dense<0.000000e+00> : vector<32xf32>
    %288 = vector.multi_reduction <add>, %283, %cst_88 [1] : vector<32x128xf32> to vector<32xf32>
    %289 = vector.shape_cast %288 : vector<32xf32> to vector<32x1xf32>
    %cst_89 = arith.constant 1.280000e+02 : f32
    %290 = vector.broadcast %cst_89 : f32 to vector<32x1xf32>
    %291 = arith.divf %289, %290 : vector<32x1xf32>
    %292 = vector.broadcast %291 : vector<32x1xf32> to vector<32x128xf32>
    %293 = arith.subf %283, %292 : vector<32x128xf32>
    %294 = arith.mulf %293, %293 : vector<32x128xf32>
    %cst_90 = arith.constant dense<0.000000e+00> : vector<32xf32>
    %295 = vector.multi_reduction <add>, %294, %cst_90 [1] : vector<32x128xf32> to vector<32xf32>
    %296 = vector.shape_cast %295 : vector<32xf32> to vector<32x1xf32>
    %cst_91 = arith.constant 1.280000e+02 : f32
    %297 = vector.broadcast %cst_91 : f32 to vector<32x1xf32>
    %298 = arith.divf %296, %297 : vector<32x1xf32>
    %299 = vector.broadcast %291 : vector<32x1xf32> to vector<32x128xf32>
    %300 = arith.subf %283, %299 : vector<32x128xf32>
    %cst_92 = arith.constant 9.99999974E-6 : f32
    %301 = vector.broadcast %cst_92 : f32 to vector<32x1xf32>
    %302 = arith.addf %298, %301 : vector<32x1xf32>
    %303 = math.rsqrt %302 : vector<32x1xf32>
    %304 = vector.broadcast %303 : vector<32x1xf32> to vector<32x128xf32>
    %305 = arith.mulf %300, %304 : vector<32x128xf32>
    %306 = vector.broadcast %285 : vector<1x128xf32> to vector<32x128xf32>
    %307 = arith.mulf %305, %306 : vector<32x128xf32>
    %308 = vector.broadcast %287 : vector<1x128xf32> to vector<32x128xf32>
    %309 = arith.addf %307, %308 : vector<32x128xf32>
    %c0_93 = arith.constant 0 : index
    %c0_94 = arith.constant 0 : index
    %310 = vector.load %arg26[%c0_93, %c0_94] : memref<32x128xf32, #tpu.memory_space<vmem>>, vector<32x128xf32>
    tpu.vector_store %arg26[%c0_93, %c0_94], %309 {strides = array<i32>} : memref<32x128xf32, #tpu.memory_space<vmem>>, vector<32x128xf32>,
    %c1_i32 = arith.constant 1 : i32
    %311 = arith.cmpi eq, %arg0, %c1_i32 : i32
    %312 = arith.extui %311 : i1 to i32
    %c0_i32_95 = arith.constant 0 : i32
    %313 = arith.cmpi ne, %312, %c0_i32_95 : i32
    scf.if %313 {
      %c0_96 = arith.constant 0 : index
      %c0_97 = arith.constant 0 : index
      %314 = vector.load %arg21[%c0_96, %c0_97] : memref<1x128xf32, #tpu.memory_space<vmem>>, vector<1x128xf32>
      %315 = vector.broadcast %314 : vector<1x128xf32> to vector<32x128xf32>
      %316 = arith.mulf %309, %315 : vector<32x128xf32>
      %cst_98 = arith.constant dense<0.000000e+00> : vector<32xf32>
      %317 = vector.multi_reduction <add>, %316, %cst_98 [1] : vector<32x128xf32> to vector<32xf32>
      %318 = vector.shape_cast %317 : vector<32xf32> to vector<32x1xf32>
      %c0_99 = arith.constant 0 : index
      %c0_100 = arith.constant 0 : index
      %319 = vector.load %arg22[%c0_99, %c0_100] : memref<1x1xf32, #tpu.memory_space<vmem>>, vector<1x1xf32>
      %320 = vector.broadcast %319 : vector<1x1xf32> to vector<32x1xf32>
      %321 = arith.addf %318, %320 : vector<32x1xf32>
      %322 = vector.shape_cast %321 : vector<32x1xf32> to vector<2x16x1xf32>
      %cst_101 = arith.constant dense<0xFF800000> : vector<2x1xf32>
      %323 = vector.multi_reduction <maximumf>, %322, %cst_101 [1] : vector<2x16x1xf32> to vector<2x1xf32>
      %324 = vector.shape_cast %323 : vector<2x1xf32> to vector<2x1x1xf32>
      %325 = vector.broadcast %324 : vector<2x1x1xf32> to vector<2x16x1xf32>
      %326 = arith.subf %322, %325 : vector<2x16x1xf32>
      %327 = math.exp %326 : vector<2x16x1xf32>
      %cst_102 = arith.constant dense<0.000000e+00> : vector<2x1xf32>
      %328 = vector.multi_reduction <add>, %327, %cst_102 [1] : vector<2x16x1xf32> to vector<2x1xf32>
      %329 = vector.shape_cast %328 : vector<2x1xf32> to vector<2x1x1xf32>
      %330 = vector.broadcast %329 : vector<2x1x1xf32> to vector<2x16x1xf32>
      %331 = arith.divf %327, %330 : vector<2x16x1xf32>
      %332 = vector.shape_cast %309 : vector<32x128xf32> to vector<2x16x128xf32>
      %333 = vector.broadcast %331 : vector<2x16x1xf32> to vector<2x16x128xf32>
      %334 = arith.mulf %332, %333 : vector<2x16x128xf32>
      %cst_103 = arith.constant dense<0.000000e+00> : vector<2x128xf32>
      %335 = vector.multi_reduction <add>, %334, %cst_103 [1] : vector<2x16x128xf32> to vector<2x128xf32>
      %336 = arith.truncf %335 : vector<2x128xf32> to vector<2x128xbf16>
      %c0_104 = arith.constant 0 : index
      %c0_105 = arith.constant 0 : index
      %337 = vector.load %arg23[%c0_104, %c0_105] : memref<128x128xbf16, #tpu.memory_space<vmem>>, vector<128x128xbf16>
      %cst_106 = arith.constant dense<0.000000e+00> : vector<2x128xf32>
      %338 = tpu.matmul %336, %337, %cst_106 {dimension_numbers = #tpu.dot_dimension_numbers<[1], [0], [0], [1], [0, 0, 1, 1], [], []>} : vector<2x128xbf16>, vector<128x128xbf16>, vector<2x128xf32> -> vector<2x128xf32>
      %c0_107 = arith.constant 0 : index
      %c0_108 = arith.constant 0 : index
      %339 = vector.load %arg24[%c0_107, %c0_108] : memref<1x128xf32, #tpu.memory_space<vmem>>, vector<1x128xf32>
      %340 = vector.broadcast %339 : vector<1x128xf32> to vector<2x128xf32>
      %341 = arith.addf %338, %340 : vector<2x128xf32>
      %c0_109 = arith.constant 0 : index
      %c0_110 = arith.constant 0 : index
      %342 = vector.load %arg25[%c0_109, %c0_110] : memref<2x128xf32, #tpu.memory_space<vmem>>, vector<2x128xf32>
      tpu.vector_store %arg25[%c0_109, %c0_110], %341 {strides = array<i32>} : memref<2x128xf32, #tpu.memory_space<vmem>>, vector<2x128xf32>,
    } else {
    }
    return
  }
  func.func @transform_0(%arg0: i32) -> (i32, i32) {
    %c0_i32 = arith.constant 0 : i32
    %c0_i32_0 = arith.constant 0 : i32
    %c0_i32_1 = arith.constant 0 : i32
    return %c0_i32, %c0_i32_0 : i32, i32
  }
  func.func @transform_1(%arg0: i32) -> (i32, i32) {
    %c0_i32 = arith.constant 0 : i32
    %c0_i32_0 = arith.constant 0 : i32
    %c0_i32_1 = arith.constant 0 : i32
    return %c0_i32, %c0_i32_0 : i32, i32
  }
  func.func @transform_2(%arg0: i32) -> (i32, i32) {
    %c0_i32 = arith.constant 0 : i32
    %c0_i32_0 = arith.constant 0 : i32
    %c0_i32_1 = arith.constant 0 : i32
    return %c0_i32, %c0_i32_0 : i32, i32
  }
  func.func @transform_3(%arg0: i32) -> (i32, i32) {
    %c0_i32 = arith.constant 0 : i32
    %c0_i32_0 = arith.constant 0 : i32
    %c0_i32_1 = arith.constant 0 : i32
    return %c0_i32, %c0_i32_0 : i32, i32
  }
  func.func @transform_4(%arg0: i32) -> (i32, i32) {
    %c0_i32 = arith.constant 0 : i32
    %c0_i32_0 = arith.constant 0 : i32
    %c0_i32_1 = arith.constant 0 : i32
    return %c0_i32, %c0_i32_0 : i32, i32
  }
  func.func @transform_5(%arg0: i32) -> (i32, i32) {
    %c0_i32 = arith.constant 0 : i32
    %c0_i32_0 = arith.constant 0 : i32
    %c0_i32_1 = arith.constant 0 : i32
    return %c0_i32, %c0_i32_0 : i32, i32
  }
  func.func @transform_6(%arg0: i32) -> (i32, i32) {
    %c0_i32 = arith.constant 0 : i32
    %c0_i32_0 = arith.constant 0 : i32
    %c0_i32_1 = arith.constant 0 : i32
    return %c0_i32, %c0_i32_0 : i32, i32
  }
  func.func @transform_7(%arg0: i32) -> (i32, i32) {
    %c0_i32 = arith.constant 0 : i32
    %c0_i32_0 = arith.constant 0 : i32
    %c0_i32_1 = arith.constant 0 : i32
    return %c0_i32, %c0_i32_0 : i32, i32
  }
  func.func @transform_8(%arg0: i32) -> (i32, i32, i32) {
    %c0_i32 = arith.constant 0 : i32
    %c0_i32_0 = arith.constant 0 : i32
    %c0_i32_1 = arith.constant 0 : i32
    return %arg0, %c0_i32, %c0_i32_0 : i32, i32, i32
  }
  func.func @transform_9(%arg0: i32) -> (i32, i32, i32) {
    %c0_i32 = arith.constant 0 : i32
    %c0_i32_0 = arith.constant 0 : i32
    %c0_i32_1 = arith.constant 0 : i32
    return %arg0, %c0_i32, %c0_i32_0 : i32, i32, i32
  }
  func.func @transform_10(%arg0: i32) -> (i32, i32, i32) {
    %c0_i32 = arith.constant 0 : i32
    %c0_i32_0 = arith.constant 0 : i32
    %c0_i32_1 = arith.constant 0 : i32
    return %arg0, %c0_i32, %c0_i32_0 : i32, i32, i32
  }
  func.func @transform_11(%arg0: i32) -> (i32, i32, i32) {
    %c0_i32 = arith.constant 0 : i32
    %c0_i32_0 = arith.constant 0 : i32
    %c0_i32_1 = arith.constant 0 : i32
    return %arg0, %c0_i32, %c0_i32_0 : i32, i32, i32
  }
  func.func @transform_12(%arg0: i32) -> (i32, i32, i32) {
    %c0_i32 = arith.constant 0 : i32
    %c0_i32_0 = arith.constant 0 : i32
    %c0_i32_1 = arith.constant 0 : i32
    return %arg0, %c0_i32, %c0_i32_0 : i32, i32, i32
  }
  func.func @transform_13(%arg0: i32) -> (i32, i32, i32) {
    %c0_i32 = arith.constant 0 : i32
    %c0_i32_0 = arith.constant 0 : i32
    %c0_i32_1 = arith.constant 0 : i32
    return %arg0, %c0_i32, %c0_i32_0 : i32, i32, i32
  }
  func.func @transform_14(%arg0: i32) -> (i32, i32, i32) {
    %c0_i32 = arith.constant 0 : i32
    %c0_i32_0 = arith.constant 0 : i32
    %c0_i32_1 = arith.constant 0 : i32
    return %arg0, %c0_i32, %c0_i32_0 : i32, i32, i32
  }
  func.func @transform_15(%arg0: i32) -> (i32, i32, i32) {
    %c0_i32 = arith.constant 0 : i32
    %c0_i32_0 = arith.constant 0 : i32
    %c0_i32_1 = arith.constant 0 : i32
    return %arg0, %c0_i32, %c0_i32_0 : i32, i32, i32
  }
  func.func @transform_16(%arg0: i32) -> (i32, i32, i32) {
    %c0_i32 = arith.constant 0 : i32
    %c0_i32_0 = arith.constant 0 : i32
    %c0_i32_1 = arith.constant 0 : i32
    return %arg0, %c0_i32, %c0_i32_0 : i32, i32, i32
  }
  func.func @transform_17(%arg0: i32) -> (i32, i32, i32) {
    %c0_i32 = arith.constant 0 : i32
    %c0_i32_0 = arith.constant 0 : i32
    %c0_i32_1 = arith.constant 0 : i32
    return %arg0, %c0_i32, %c0_i32_0 : i32, i32, i32
  }
  func.func @transform_18(%arg0: i32) -> (i32, i32, i32) {
    %c0_i32 = arith.constant 0 : i32
    %c0_i32_0 = arith.constant 0 : i32
    %c0_i32_1 = arith.constant 0 : i32
    return %arg0, %c0_i32, %c0_i32_0 : i32, i32, i32
  }
  func.func @transform_19(%arg0: i32) -> (i32, i32, i32) {
    %c0_i32 = arith.constant 0 : i32
    %c0_i32_0 = arith.constant 0 : i32
    %c0_i32_1 = arith.constant 0 : i32
    return %arg0, %c0_i32, %c0_i32_0 : i32, i32, i32
  }
  func.func @transform_20(%arg0: i32) -> (i32, i32) {
    %c0_i32 = arith.constant 0 : i32
    %c0_i32_0 = arith.constant 0 : i32
    %c0_i32_1 = arith.constant 0 : i32
    return %c0_i32, %c0_i32_0 : i32, i32
  }
  func.func @transform_21(%arg0: i32) -> (i32, i32) {
    %c0_i32 = arith.constant 0 : i32
    %c0_i32_0 = arith.constant 0 : i32
    %c0_i32_1 = arith.constant 0 : i32
    return %c0_i32, %c0_i32_0 : i32, i32
  }
  func.func @transform_22(%arg0: i32) -> (i32, i32) {
    %c0_i32 = arith.constant 0 : i32
    %c0_i32_0 = arith.constant 0 : i32
    %c0_i32_1 = arith.constant 0 : i32
    return %c0_i32, %c0_i32_0 : i32, i32
  }
  func.func @transform_23(%arg0: i32) -> (i32, i32) {
    %c0_i32 = arith.constant 0 : i32
    %c0_i32_0 = arith.constant 0 : i32
    %c0_i32_1 = arith.constant 0 : i32
    return %c0_i32, %c0_i32_0 : i32, i32
  }
  func.func @transform_24(%arg0: i32) -> (i32, i32) {
    %c0_i32 = arith.constant 0 : i32
    %c0_i32_0 = arith.constant 0 : i32
    %c0_i32_1 = arith.constant 0 : i32
    return %c0_i32, %c0_i32_0 : i32, i32
  }
}

</mosaic_0001>

<llo_original>
// kernel: encoder_forward.1
$region0: #{encoder_forward.1}
  #allocation0 [shape = 'u32[]', space=smem, size = 0x4, offset = 0x4, fixed_abs, tag = 'smem constant byte address 0x4 - core index']
  #allocation1 [shape = 'u32[144,128]{1,0:T(1,128)}', space=vmem, size = 0x12000, scoped, tag = 'internal scratch']
  #allocation2 [shape = 'f32[32,128]{1,0:T(8,128)}', space=vmem, size = 0x4000, scoped, tag = 'scratch operand']
  #allocation3 [shape = 'f32[1,1]{1,0:T(1,128)S(1)}', space=vmem, size = 0x200, scoped, tag = 'scoped memory for encoder_forward.1']
  %s0 = inlined_call_operand.vmem [shape: f32[32,8], index: 0, kind: input, shape index: {}]
  %s1 = inlined_call_operand.vmem [shape: f32[32,1], index: 1, kind: input, shape index: {}]
  %s2 = inlined_call_operand.vmem [shape: f32[32,1], index: 2, kind: input, shape index: {}]
  %s3 = inlined_call_operand.vmem [shape: bf16[8,128], index: 3, kind: input, shape index: {}]
  %s4 = inlined_call_operand.hbm [shape: f32[1,128], index: 4, kind: input, shape index: {}]
  %s5 = inlined_call_operand.vmem [shape: bf16[128,128], index: 5, kind: input, shape index: {}]
  %s6 = inlined_call_operand.hbm [shape: f32[1,128], index: 6, kind: input, shape index: {}]
  %s7 = inlined_call_operand.hbm [shape: f32[32,128], index: 7, kind: input, shape index: {}]
  %s8 = inlined_call_operand.hbm [shape: bf16[2,128,384], index: 8, kind: input, shape index: {}]
  %s9 = inlined_call_operand.vmem [shape: f32[2,1,384], index: 9, kind: input, shape index: {}]
  %s10 = inlined_call_operand.vmem [shape: bf16[2,128,128], index: 10, kind: input, shape index: {}]
  %s11 = inlined_call_operand.vmem [shape: f32[2,1,128], index: 11, kind: input, shape index: {}]
  %s12 = inlined_call_operand.hbm [shape: f32[2,1,128], index: 12, kind: input, shape index: {}]
  %s13 = inlined_call_operand.hbm [shape: f32[2,1,128], index: 13, kind: input, shape index: {}]
  %s14 = inlined_call_operand.hbm [shape: bf16[2,128,2048], index: 14, kind: input, shape index: {}]
  %s15 = inlined_call_operand.hbm [shape: f32[2,1,2048], index: 15, kind: input, shape index: {}]
  %s16 = inlined_call_operand.hbm [shape: bf16[2,2048,128], index: 16, kind: input, shape index: {}]
  %s17 = inlined_call_operand.hbm [shape: f32[2,1,128], index: 17, kind: input, shape index: {}]
  %s18 = inlined_call_operand.hbm [shape: f32[2,1,128], index: 18, kind: input, shape index: {}]
  %s19 = inlined_call_operand.hbm [shape: f32[2,1,128], index: 19, kind: input, shape index: {}]
  %s20 = inlined_call_operand.hbm [shape: f32[1,128], index: 20, kind: input, shape index: {}]
  %s21 = inlined_call_operand.<no memory space> [shape: f32[1,1], index: 21, kind: input, shape index: {}]
  %s22 = inlined_call_operand.hbm [shape: bf16[128,128], index: 22, kind: input, shape index: {}]
  %s23 = inlined_call_operand.hbm [shape: f32[1,128], index: 23, kind: input, shape index: {}]
  %s24 = inlined_call_operand.hbm [shape: f32[2,128], index: 24, kind: output, shape index: {}]
  %s25 = sld [smem:[#allocation0]]
  $region197: #{encoder_forward.1} parent=0
    _
  %s27 = ssub.s32 1, %s25
  %s28 = scalar_select 0, %s27, %s25
  %v29 = vstv %s21
  %30 = vst [vmem:[#allocation3] sm:$0x1] %v29
  $region1: #{encoder_forward.1} parent=0
    #allocation4 [shape = 'u8[512]{0}', space=vmem, size = 0x400, scoped, tag = 'input window, operand 4, single buffered']
    #allocation5 [shape = 's32[2]{0}', space=sflag, size = 0x8, scoped, tag = 'scoped memory for encoder_forward.1']
    #allocation6 [shape = 's32[2]{0}', space=sflag, size = 0x8, scoped, tag = 'scoped memory for encoder_forward.1']
    #allocation7 [shape = 'u8[512]{0}', space=vmem, size = 0x400, scoped, tag = 'input window, operand 6, single buffered']
    #allocation8 [shape = 's32[1]{0}', space=sflag, size = 0x4, scoped, tag = 'scoped memory for encoder_forward.1']
    #allocation9 [shape = 'u8[16384]{0}', space=vmem, size = 0x4000, scoped, tag = 'input window, operand 7, single buffered']
    #allocation10 [shape = 'u8[196608]{0}', space=vmem, size = 0x30000, scoped, tag = 'input window, operand 8']
    #allocation11 [shape = 's32[2]{0}', space=sflag, size = 0x8, scoped, tag = 'scoped memory for encoder_forward.1']
    #allocation12 [shape = 'u8[1024]{0}', space=vmem, size = 0x400, scoped, tag = 'input window, operand 12']
    #allocation13 [shape = 'u8[1024]{0}', space=vmem, size = 0x400, scoped, tag = 'input window, operand 13']
    #allocation14 [shape = 's32[2]{0}', space=sflag, size = 0x8, scoped, tag = 'scoped memory for encoder_forward.1']
    #allocation15 [shape = 'u8[1048576]{0}', space=vmem, size = 0x100000, scoped, tag = 'input window, operand 14']
    #allocation16 [shape = 'u8[16384]{0}', space=vmem, size = 0x4000, scoped, tag = 'input window, operand 15']
    #allocation17 [shape = 's32[2]{0}', space=sflag, size = 0x8, scoped, tag = 'scoped memory for encoder_forward.1']
    #allocation18 [shape = 'u8[1048576]{0}', space=vmem, size = 0x100000, scoped, tag = 'input window, operand 16']
    #allocation19 [shape = 'u8[1024]{0}', space=vmem, size = 0x400, scoped, tag = 'input window, operand 17']
    #allocation20 [shape = 's32[2]{0}', space=sflag, size = 0x8, scoped, tag = 'scoped memory for encoder_forward.1']
    #allocation21 [shape = 'u8[1024]{0}', space=vmem, size = 0x400, scoped, tag = 'input window, operand 18']
    #allocation22 [shape = 'u8[1024]{0}', space=vmem, size = 0x400, scoped, tag = 'input window, operand 19']
    #allocation23 [shape = 's32[2]{0}', space=sflag, size = 0x8, scoped, tag = 'scoped memory for encoder_forward.1']
    #allocation24 [shape = 'u8[512]{0}', space=vmem, size = 0x400, scoped, tag = 'input window, operand 20, single buffered']
    #allocation25 [shape = 'u8[32768]{0}', space=vmem, size = 0x8000, scoped, tag = 'input window, operand 22, single buffered']
    #allocation26 [shape = 's32[1]{0}', space=sflag, size = 0x4, scoped, tag = 'scoped memory for encoder_forward.1']
    #allocation27 [shape = 'u8[512]{0}', space=vmem, size = 0x400, scoped, tag = 'input window, operand 23, single buffered']
    #allocation28 [shape = 'u8[1024]{0}', space=vmem, size = 0x400, scoped, tag = 'output window, operand 0, single buffered']
    %31 = vsyncpa [#allocation5], 0
    %32 = vsyncpa [#allocation8], 0
    %33 = vsyncpa [#allocation11], 0
    %s34 = scalar_lea.sflag [#allocation11], 1
    %35 = vsyncpa %s34, 0
    %36 = vsyncpa [#allocation14], 0
    %s37 = scalar_lea.sflag [#allocation14], 1
    %38 = vsyncpa %s37, 0
    %39 = vsyncpa [#allocation17], 0
    %s40 = scalar_lea.sflag [#allocation17], 1
    %41 = vsyncpa %s40, 0
    %42 = vsyncpa [#allocation20], 0
    %s43 = scalar_lea.sflag [#allocation20], 1
    %44 = vsyncpa %s43, 0
    %45 = vsyncpa [#allocation23], 0
    %s46 = scalar_lea.sflag [#allocation23], 1
    %47 = vsyncpa %s46, 0
    %48 = vsyncpa [#allocation26], 0
    %49 = vsyncpa [#allocation6], 0
    loop: start=0, step=1, limit=4
    $region2: #{encoder_forward.1} parent=1 // loop_pre_header
      _
    $region3: #{encoder_forward.1} parent=1 // loop_header
      %s51 = sphi 0, %s55
      %p52 = scmp.ge.s32.totalorder %s51, 4
      %s59 = sphi 0, %s59
      %s61 = sphi 0, %s59
      %s62 = sphi 0, %s61
      %s76 = sphi 0, %s62
      %s80 = sphi 0, %s80
      %s82 = sphi 0, %s80
      %s83 = sphi 0, %s82
      %s97 = sphi 0, %s83
      %s101 = sphi 0, %s101
      %s103 = sphi 0, %s101
      %s104 = sphi 0, %s103
      %s118 = sphi 0, %s104
      %s122 = sphi 0, %s122
      %s124 = sphi 0, %s122
      %s125 = sphi 0, %s124
      %s139 = sphi 0, %s125
      %s143 = sphi 0, %s143
      %s145 = sphi 0, %s143
      %s146 = sphi 0, %s145
      %s160 = sphi 0, %s146
      %s164 = sphi 0, %s164
      %s166 = sphi 0, %s164
      %s167 = sphi 0, %s166
      %s181 = sphi 0, %s167
      %s185 = sphi 0, %s185
      %s187 = sphi 0, %s185
      %s188 = sphi 0, %s187
      %s202 = sphi 0, %s188
      %s206 = sphi 0, %s206
      %s208 = sphi 0, %s206
      %s209 = sphi 0, %s208
      %s223 = sphi 0, %s209
      %s229 = sphi 0, %s231
      %s232 = sphi 0, %s229
      %s233 = sphi 0, %s232
      %s249 = sphi 0, %s233
      %s255 = sphi 0, %s257
      %s258 = sphi 0, %s255
      %s259 = sphi 0, %s258
      %s275 = sphi 0, %s259
      %s281 = sphi 0, %s283
      %s284 = sphi 0, %s281
      %s285 = sphi 0, %s284
      %s301 = sphi 0, %s285
      %s307 = sphi 0, %s309
      %s310 = sphi 0, %s307
      %s311 = sphi 0, %s310
      %s327 = sphi 0, %s311
      %s333 = sphi 0, %s335
      %s336 = sphi 0, %s333
      %s337 = sphi 0, %s336
      %s353 = sphi 0, %s337
      %s359 = sphi 0, %s361
      %s362 = sphi 0, %s359
      %s363 = sphi 0, %s362
      %s379 = sphi 0, %s363
      %s385 = sphi 0, %s387
      %s388 = sphi 0, %s385
      %s389 = sphi 0, %s388
      %s405 = sphi 0, %s389
      %s411 = sphi 0, %s413
      %s414 = sphi 0, %s411
      %s415 = sphi 0, %s414
      %s431 = sphi 0, %s415
      %s437 = sphi 0, %s439
      %s440 = sphi 0, %s437
      %s441 = sphi 0, %s440
      %s457 = sphi 0, %s441
      %s463 = sphi 0, %s465
      %s466 = sphi 0, %s463
      %s467 = sphi 0, %s466
      %s483 = sphi 0, %s467
      %s489 = sphi 0, %s491
      %s492 = sphi 0, %s489
      %s493 = sphi 0, %s492
      %s509 = sphi 0, %s493
      %s515 = sphi 0, %s517
      %s518 = sphi 0, %s515
      %s519 = sphi 0, %s518
      %s535 = sphi 0, %s519
      %s539 = sphi 0, %s539
      %s541 = sphi 0, %s539
      %s542 = sphi 0, %s541
      %s556 = sphi 0, %s542
      %s560 = sphi 0, %s560
      %s562 = sphi 0, %s560
      %s563 = sphi 0, %s562
      %s577 = sphi 0, %s563
      %s581 = sphi 0, %s581
      %s583 = sphi 0, %s581
      %s584 = sphi 0, %s583
      %s598 = sphi 0, %s584
      %s602 = sphi 0, %s602
      %s604 = sphi 0, %s602
      %s605 = sphi 0, %s604
      %s619 = sphi 0, %s605
      %s623 = sphi 0, %s623
      %s625 = sphi 0, %s623
      %s626 = sphi 0, %s625
      %s640 = sphi 0, %s626
    $region4: #{encoder_forward.1} parent=1 // loop_header_branch
      %54 = sbr.rel (%p52) target = $region8
    $region5: #{encoder_forward.1} parent=1 // loop_body
      %s56 = ssub.s32 %s51, 1
      %s57 = ssub.s32 %s51, 2
      %s58 = sadd.s32 %s51, 1
      %s60 = sadd.s32 %s59, 1
      %p63 = scmp.eq.s32.totalorder %s51, 1
      %p64 = scmp.ne.s32.totalorder %s59, %s61
      %p65 = scmp.eq.s32.totalorder %s51, 0
      %p66 = por %p64, %p65
      %p67 = scmp.ne.s32.totalorder %s59, %s61
      %p68 = scmp.eq.s32.totalorder %s56, 1
      %p69 = por %p67, %p68
      %p70 = scmp.ne.s32.totalorder %s61, %s62
      %p71 = scmp.eq.s32.totalorder %s56, 0
      %p72 = por %p70, %p71
      %p73 = scmp.ne.s32.totalorder %s61, %s62
      %p74 = scmp.eq.s32.totalorder %s57, 1
      %p75 = por %p73, %p74
      %p77 = scmp.ne.s32.totalorder %s62, %s76
      %p78 = scmp.eq.s32.totalorder %s57, 0
      %p79 = por %p77, %p78
      %s81 = sadd.s32 %s80, 1
      %p84 = scmp.eq.s32.totalorder %s51, 1
      %p85 = scmp.ne.s32.totalorder %s80, %s82
      %p86 = scmp.eq.s32.totalorder %s51, 0
      %p87 = por %p85, %p86
      %p88 = scmp.ne.s32.totalorder %s80, %s82
      %p89 = scmp.eq.s32.totalorder %s56, 1
      %p90 = por %p88, %p89
      %p91 = scmp.ne.s32.totalorder %s82, %s83
      %p92 = scmp.eq.s32.totalorder %s56, 0
      %p93 = por %p91, %p92
      %p94 = scmp.ne.s32.totalorder %s82, %s83
      %p95 = scmp.eq.s32.totalorder %s57, 1
      %p96 = por %p94, %p95
      %p98 = scmp.ne.s32.totalorder %s83, %s97
      %p99 = scmp.eq.s32.totalorder %s57, 0
      %p100 = por %p98, %p99
      %s102 = sadd.s32 %s101, 1
      %p105 = scmp.eq.s32.totalorder %s51, 1
      %p106 = scmp.ne.s32.totalorder %s101, %s103
      %p107 = scmp.eq.s32.totalorder %s51, 0
      %p108 = por %p106, %p107
      %p109 = scmp.ne.s32.totalorder %s101, %s103
      %p110 = scmp.eq.s32.totalorder %s56, 1
      %p111 = por %p109, %p110
      %p112 = scmp.ne.s32.totalorder %s103, %s104
      %p113 = scmp.eq.s32.totalorder %s56, 0
      %p114 = por %p112, %p113
      %p115 = scmp.ne.s32.totalorder %s103, %s104
      %p116 = scmp.eq.s32.totalorder %s57, 1
      %p117 = por %p115, %p116
      %p119 = scmp.ne.s32.totalorder %s104, %s118
      %p120 = scmp.eq.s32.totalorder %s57, 0
      %p121 = por %p119, %p120
      %s123 = sadd.s32 %s122, 1
      %p126 = scmp.eq.s32.totalorder %s51, 1
      %p127 = scmp.ne.s32.totalorder %s122, %s124
      %p128 = scmp.eq.s32.totalorder %s51, 0
      %p129 = por %p127, %p128
      %p130 = scmp.ne.s32.totalorder %s122, %s124
      %p131 = scmp.eq.s32.totalorder %s56, 1
      %p132 = por %p130, %p131
      %p133 = scmp.ne.s32.totalorder %s124, %s125
      %p134 = scmp.eq.s32.totalorder %s56, 0
      %p135 = por %p133, %p134
      %p136 = scmp.ne.s32.totalorder %s124, %s125
      %p137 = scmp.eq.s32.totalorder %s57, 1
      %p138 = por %p136, %p137
      %p140 = scmp.ne.s32.totalorder %s125, %s139
      %p141 = scmp.eq.s32.totalorder %s57, 0
      %p142 = por %p140, %p141
      %s144 = sadd.s32 %s143, 1
      %p147 = scmp.eq.s32.totalorder %s51, 1
      %p148 = scmp.ne.s32.totalorder %s143, %s145
      %p149 = scmp.eq.s32.totalorder %s51, 0
      %p150 = por %p148, %p149
      %p151 = scmp.ne.s32.totalorder %s143, %s145
      %p152 = scmp.eq.s32.totalorder %s56, 1
      %p153 = por %p151, %p152
      %p154 = scmp.ne.s32.totalorder %s145, %s146
      %p155 = scmp.eq.s32.totalorder %s56, 0
      %p156 = por %p154, %p155
      %p157 = scmp.ne.s32.totalorder %s145, %s146
      %p158 = scmp.eq.s32.totalorder %s57, 1
      %p159 = por %p157, %p158
      %p161 = scmp.ne.s32.totalorder %s146, %s160
      %p162 = scmp.eq.s32.totalorder %s57, 0
      %p163 = por %p161, %p162
      %s165 = sadd.s32 %s164, 1
      %p168 = scmp.eq.s32.totalorder %s51, 1
      %p169 = scmp.ne.s32.totalorder %s164, %s166
      %p170 = scmp.eq.s32.totalorder %s51, 0
      %p171 = por %p169, %p170
      %p172 = scmp.ne.s32.totalorder %s164, %s166
      %p173 = scmp.eq.s32.totalorder %s56, 1
      %p174 = por %p172, %p173
      %p175 = scmp.ne.s32.totalorder %s166, %s167
      %p176 = scmp.eq.s32.totalorder %s56, 0
      %p177 = por %p175, %p176
      %p178 = scmp.ne.s32.totalorder %s166, %s167
      %p179 = scmp.eq.s32.totalorder %s57, 1
      %p180 = por %p178, %p179
      %p182 = scmp.ne.s32.totalorder %s167, %s181
      %p183 = scmp.eq.s32.totalorder %s57, 0
      %p184 = por %p182, %p183
      %s186 = sadd.s32 %s185, 1
      %p189 = scmp.eq.s32.totalorder %s51, 1
      %p190 = scmp.ne.s32.totalorder %s185, %s187
      %p191 = scmp.eq.s32.totalorder %s51, 0
      %p192 = por %p190, %p191
      %p193 = scmp.ne.s32.totalorder %s185, %s187
      %p194 = scmp.eq.s32.totalorder %s56, 1
      %p195 = por %p193, %p194
      %p196 = scmp.ne.s32.totalorder %s187, %s188
      %p197 = scmp.eq.s32.totalorder %s56, 0
      %p198 = por %p196, %p197
      %p199 = scmp.ne.s32.totalorder %s187, %s188
      %p200 = scmp.eq.s32.totalorder %s57, 1
      %p201 = por %p199, %p200
      %p203 = scmp.ne.s32.totalorder %s188, %s202
      %p204 = scmp.eq.s32.totalorder %s57, 0
      %p205 = por %p203, %p204
      %s207 = sadd.s32 %s206, 1
      %p210 = scmp.eq.s32.totalorder %s51, 1
      %p211 = scmp.ne.s32.totalorder %s206, %s208
      %p212 = scmp.eq.s32.totalorder %s51, 0
      %p213 = por %p211, %p212
      %p214 = scmp.ne.s32.totalorder %s206, %s208
      %p215 = scmp.eq.s32.totalorder %s56, 1
      %p216 = por %p214, %p215
      %p217 = scmp.ne.s32.totalorder %s208, %s209
      %p218 = scmp.eq.s32.totalorder %s56, 0
      %p219 = por %p217, %p218
      %p220 = scmp.ne.s32.totalorder %s208, %s209
      %p221 = scmp.eq.s32.totalorder %s57, 1
      %p222 = por %p220, %p221
      %p224 = scmp.ne.s32.totalorder %s209, %s223
      %p225 = scmp.eq.s32.totalorder %s57, 0
      %p226 = por %p224, %p225
      %s227 = ssub.s32 %s51, %s58
      %p228 = scmp.eq.s32.totalorder %s227, 0
      %s230 = sadd.s32 %s229, 1
      %s231 = scalar_select %p228, %s229, %s230
      %p234 = pneg %p228
      %p235 = scmp.eq.s32.totalorder %s51, 1
      %p236 = por %p234, %p235
      %p237 = scmp.ne.s32.totalorder %s229, %s232
      %p238 = scmp.eq.s32.totalorder %s51, 0
      %p239 = por %p237, %p238
      %p240 = scmp.ne.s32.totalorder %s229, %s232
      %p241 = scmp.eq.s32.totalorder %s56, 1
      %p242 = por %p240, %p241
      %p243 = scmp.ne.s32.totalorder %s232, %s233
      %p244 = scmp.eq.s32.totalorder %s56, 0
      %p245 = por %p243, %p244
      %p246 = scmp.ne.s32.totalorder %s232, %s233
      %p247 = scmp.eq.s32.totalorder %s57, 1
      %p248 = por %p246, %p247
      %p250 = scmp.ne.s32.totalorder %s233, %s249
      %p251 = scmp.eq.s32.totalorder %s57, 0
      %p252 = por %p250, %p251
      %s253 = ssub.s32 %s51, %s58
      %p254 = scmp.eq.s32.totalorder %s253, 0
      %s256 = sadd.s32 %s255, 1
      %s257 = scalar_select %p254, %s255, %s256
      %p260 = pneg %p254
      %p261 = scmp.eq.s32.totalorder %s51, 1
      %p262 = por %p260, %p261
      %p263 = scmp.ne.s32.totalorder %s255, %s258
      %p264 = scmp.eq.s32.totalorder %s51, 0
      %p265 = por %p263, %p264
      %p266 = scmp.ne.s32.totalorder %s255, %s258
      %p267 = scmp.eq.s32.totalorder %s56, 1
      %p268 = por %p266, %p267
      %p269 = scmp.ne.s32.totalorder %s258, %s259
      %p270 = scmp.eq.s32.totalorder %s56, 0
      %p271 = por %p269, %p270
      %p272 = scmp.ne.s32.totalorder %s258, %s259
      %p273 = scmp.eq.s32.totalorder %s57, 1
      %p274 = por %p272, %p273
      %p276 = scmp.ne.s32.totalorder %s259, %s275
      %p277 = scmp.eq.s32.totalorder %s57, 0
      %p278 = por %p276, %p277
      %s279 = ssub.s32 %s51, %s58
      %p280 = scmp.eq.s32.totalorder %s279, 0
      %s282 = sadd.s32 %s281, 1
      %s283 = scalar_select %p280, %s281, %s282
      %p286 = pneg %p280
      %p287 = scmp.eq.s32.totalorder %s51, 1
      %p288 = por %p286, %p287
      %p289 = scmp.ne.s32.totalorder %s281, %s284
      %p290 = scmp.eq.s32.totalorder %s51, 0
      %p291 = por %p289, %p290
      %p292 = scmp.ne.s32.totalorder %s281, %s284
      %p293 = scmp.eq.s32.totalorder %s56, 1
      %p294 = por %p292, %p293
      %p295 = scmp.ne.s32.totalorder %s284, %s285
      %p296 = scmp.eq.s32.totalorder %s56, 0
      %p297 = por %p295, %p296
      %p298 = scmp.ne.s32.totalorder %s284, %s285
      %p299 = scmp.eq.s32.totalorder %s57, 1
      %p300 = por %p298, %p299
      %p302 = scmp.ne.s32.totalorder %s285, %s301
      %p303 = scmp.eq.s32.totalorder %s57, 0
      %p304 = por %p302, %p303
      %s305 = ssub.s32 %s51, %s58
      %p306 = scmp.eq.s32.totalorder %s305, 0
      %s308 = sadd.s32 %s307, 1
      %s309 = scalar_select %p306, %s307, %s308
      %p312 = pneg %p306
      %p313 = scmp.eq.s32.totalorder %s51, 1
      %p314 = por %p312, %p313
      %p315 = scmp.ne.s32.totalorder %s307, %s310
      %p316 = scmp.eq.s32.totalorder %s51, 0
      %p317 = por %p315, %p316
      %p318 = scmp.ne.s32.totalorder %s307, %s310
      %p319 = scmp.eq.s32.totalorder %s56, 1
      %p320 = por %p318, %p319
      %p321 = scmp.ne.s32.totalorder %s310, %s311
      %p322 = scmp.eq.s32.totalorder %s56, 0
      %p323 = por %p321, %p322
      %p324 = scmp.ne.s32.totalorder %s310, %s311
      %p325 = scmp.eq.s32.totalorder %s57, 1
      %p326 = por %p324, %p325
      %p328 = scmp.ne.s32.totalorder %s311, %s327
      %p329 = scmp.eq.s32.totalorder %s57, 0
      %p330 = por %p328, %p329
      %s331 = ssub.s32 %s51, %s58
      %p332 = scmp.eq.s32.totalorder %s331, 0
      %s334 = sadd.s32 %s333, 1
      %s335 = scalar_select %p332, %s333, %s334
      %p338 = pneg %p332
      %p339 = scmp.eq.s32.totalorder %s51, 1
      %p340 = por %p338, %p339
      %p341 = scmp.ne.s32.totalorder %s333, %s336
      %p342 = scmp.eq.s32.totalorder %s51, 0
      %p343 = por %p341, %p342
      %p344 = scmp.ne.s32.totalorder %s333, %s336
      %p345 = scmp.eq.s32.totalorder %s56, 1
      %p346 = por %p344, %p345
      %p347 = scmp.ne.s32.totalorder %s336, %s337
      %p348 = scmp.eq.s32.totalorder %s56, 0
      %p349 = por %p347, %p348
      %p350 = scmp.ne.s32.totalorder %s336, %s337
      %p351 = scmp.eq.s32.totalorder %s57, 1
      %p352 = por %p350, %p351
      %p354 = scmp.ne.s32.totalorder %s337, %s353
      %p355 = scmp.eq.s32.totalorder %s57, 0
      %p356 = por %p354, %p355
      %s357 = ssub.s32 %s51, %s58
      %p358 = scmp.eq.s32.totalorder %s357, 0
      %s360 = sadd.s32 %s359, 1
      %s361 = scalar_select %p358, %s359, %s360
      %p364 = pneg %p358
      %p365 = scmp.eq.s32.totalorder %s51, 1
      %p366 = por %p364, %p365
      %p367 = scmp.ne.s32.totalorder %s359, %s362
      %p368 = scmp.eq.s32.totalorder %s51, 0
      %p369 = por %p367, %p368
      %p370 = scmp.ne.s32.totalorder %s359, %s362
      %p371 = scmp.eq.s32.totalorder %s56, 1
      %p372 = por %p370, %p371
      %p373 = scmp.ne.s32.totalorder %s362, %s363
      %p374 = scmp.eq.s32.totalorder %s56, 0
      %p375 = por %p373, %p374
      %p376 = scmp.ne.s32.totalorder %s362, %s363
      %p377 = scmp.eq.s32.totalorder %s57, 1
      %p378 = por %p376, %p377
      %p380 = scmp.ne.s32.totalorder %s363, %s379
      %p381 = scmp.eq.s32.totalorder %s57, 0
      %p382 = por %p380, %p381
      %s383 = ssub.s32 %s51, %s58
      %p384 = scmp.eq.s32.totalorder %s383, 0
      %s386 = sadd.s32 %s385, 1
      %s387 = scalar_select %p384, %s385, %s386
      %p390 = pneg %p384
      %p391 = scmp.eq.s32.totalorder %s51, 1
      %p392 = por %p390, %p391
      %p393 = scmp.ne.s32.totalorder %s385, %s388
      %p394 = scmp.eq.s32.totalorder %s51, 0
      %p395 = por %p393, %p394
      %p396 = scmp.ne.s32.totalorder %s385, %s388
      %p397 = scmp.eq.s32.totalorder %s56, 1
      %p398 = por %p396, %p397
      %p399 = scmp.ne.s32.totalorder %s388, %s389
      %p400 = scmp.eq.s32.totalorder %s56, 0
      %p401 = por %p399, %p400
      %p402 = scmp.ne.s32.totalorder %s388, %s389
      %p403 = scmp.eq.s32.totalorder %s57, 1
      %p404 = por %p402, %p403
      %p406 = scmp.ne.s32.totalorder %s389, %s405
      %p407 = scmp.eq.s32.totalorder %s57, 0
      %p408 = por %p406, %p407
      %s409 = ssub.s32 %s51, %s58
      %p410 = scmp.eq.s32.totalorder %s409, 0
      %s412 = sadd.s32 %s411, 1
      %s413 = scalar_select %p410, %s411, %s412
      %p416 = pneg %p410
      %p417 = scmp.eq.s32.totalorder %s51, 1
      %p418 = por %p416, %p417
      %p419 = scmp.ne.s32.totalorder %s411, %s414
      %p420 = scmp.eq.s32.totalorder %s51, 0
      %p421 = por %p419, %p420
      %p422 = scmp.ne.s32.totalorder %s411, %s414
      %p423 = scmp.eq.s32.totalorder %s56, 1
      %p424 = por %p422, %p423
      %p425 = scmp.ne.s32.totalorder %s414, %s415
      %p426 = scmp.eq.s32.totalorder %s56, 0
      %p427 = por %p425, %p426
      %p428 = scmp.ne.s32.totalorder %s414, %s415
      %p429 = scmp.eq.s32.totalorder %s57, 1
      %p430 = por %p428, %p429
      %p432 = scmp.ne.s32.totalorder %s415, %s431
      %p433 = scmp.eq.s32.totalorder %s57, 0
      %p434 = por %p432, %p433
      %s435 = ssub.s32 %s51, %s58
      %p436 = scmp.eq.s32.totalorder %s435, 0
      %s438 = sadd.s32 %s437, 1
      %s439 = scalar_select %p436, %s437, %s438
      %p442 = pneg %p436
      %p443 = scmp.eq.s32.totalorder %s51, 1
      %p444 = por %p442, %p443
      %p445 = scmp.ne.s32.totalorder %s437, %s440
      %p446 = scmp.eq.s32.totalorder %s51, 0
      %p447 = por %p445, %p446
      %p448 = scmp.ne.s32.totalorder %s437, %s440
      %p449 = scmp.eq.s32.totalorder %s56, 1
      %p450 = por %p448, %p449
      %p451 = scmp.ne.s32.totalorder %s440, %s441
      %p452 = scmp.eq.s32.totalorder %s56, 0
      %p453 = por %p451, %p452
      %p454 = scmp.ne.s32.totalorder %s440, %s441
      %p455 = scmp.eq.s32.totalorder %s57, 1
      %p456 = por %p454, %p455
      %p458 = scmp.ne.s32.totalorder %s441, %s457
      %p459 = scmp.eq.s32.totalorder %s57, 0
      %p460 = por %p458, %p459
      %s461 = ssub.s32 %s51, %s58
      %p462 = scmp.eq.s32.totalorder %s461, 0
      %s464 = sadd.s32 %s463, 1
      %s465 = scalar_select %p462, %s463, %s464
      %p468 = pneg %p462
      %p469 = scmp.eq.s32.totalorder %s51, 1
      %p470 = por %p468, %p469
      %p471 = scmp.ne.s32.totalorder %s463, %s466
      %p472 = scmp.eq.s32.totalorder %s51, 0
      %p473 = por %p471, %p472
      %p474 = scmp.ne.s32.totalorder %s463, %s466
      %p475 = scmp.eq.s32.totalorder %s56, 1
      %p476 = por %p474, %p475
      %p477 = scmp.ne.s32.totalorder %s466, %s467
      %p478 = scmp.eq.s32.totalorder %s56, 0
      %p479 = por %p477, %p478
      %p480 = scmp.ne.s32.totalorder %s466, %s467
      %p481 = scmp.eq.s32.totalorder %s57, 1
      %p482 = por %p480, %p481
      %p484 = scmp.ne.s32.totalorder %s467, %s483
      %p485 = scmp.eq.s32.totalorder %s57, 0
      %p486 = por %p484, %p485
      %s487 = ssub.s32 %s51, %s58
      %p488 = scmp.eq.s32.totalorder %s487, 0
      %s490 = sadd.s32 %s489, 1
      %s491 = scalar_select %p488, %s489, %s490
      %p494 = pneg %p488
      %p495 = scmp.eq.s32.totalorder %s51, 1
      %p496 = por %p494, %p495
      %p497 = scmp.ne.s32.totalorder %s489, %s492
      %p498 = scmp.eq.s32.totalorder %s51, 0
      %p499 = por %p497, %p498
      %p500 = scmp.ne.s32.totalorder %s489, %s492
      %p501 = scmp.eq.s32.totalorder %s56, 1
      %p502 = por %p500, %p501
      %p503 = scmp.ne.s32.totalorder %s492, %s493
      %p504 = scmp.eq.s32.totalorder %s56, 0
      %p505 = por %p503, %p504
      %p506 = scmp.ne.s32.totalorder %s492, %s493
      %p507 = scmp.eq.s32.totalorder %s57, 1
      %p508 = por %p506, %p507
      %p510 = scmp.ne.s32.totalorder %s493, %s509
      %p511 = scmp.eq.s32.totalorder %s57, 0
      %p512 = por %p510, %p511
      %s513 = ssub.s32 %s51, %s58
      %p514 = scmp.eq.s32.totalorder %s513, 0
      %s516 = sadd.s32 %s515, 1
      %s517 = scalar_select %p514, %s515, %s516
      %p520 = pneg %p514
      %p521 = scmp.eq.s32.totalorder %s51, 1
      %p522 = por %p520, %p521
      %p523 = scmp.ne.s32.totalorder %s515, %s518
      %p524 = scmp.eq.s32.totalorder %s51, 0
      %p525 = por %p523, %p524
      %p526 = scmp.ne.s32.totalorder %s515, %s518
      %p527 = scmp.eq.s32.totalorder %s56, 1
      %p528 = por %p526, %p527
      %p529 = scmp.ne.s32.totalorder %s518, %s519
      %p530 = scmp.eq.s32.totalorder %s56, 0
      %p531 = por %p529, %p530
      %p532 = scmp.ne.s32.totalorder %s518, %s519
      %p533 = scmp.eq.s32.totalorder %s57, 1
      %p534 = por %p532, %p533
      %p536 = scmp.ne.s32.totalorder %s519, %s535
      %p537 = scmp.eq.s32.totalorder %s57, 0
      %p538 = por %p536, %p537
      %s540 = sadd.s32 %s539, 1
      %p543 = scmp.eq.s32.totalorder %s51, 1
      %p544 = scmp.ne.s32.totalorder %s539, %s541
      %p545 = scmp.eq.s32.totalorder %s51, 0
      %p546 = por %p544, %p545
      %p547 = scmp.ne.s32.totalorder %s539, %s541
      %p548 = scmp.eq.s32.totalorder %s56, 1
      %p549 = por %p547, %p548
      %p550 = scmp.ne.s32.totalorder %s541, %s542
      %p551 = scmp.eq.s32.totalorder %s56, 0
      %p552 = por %p550, %p551
      %p553 = scmp.ne.s32.totalorder %s541, %s542
      %p554 = scmp.eq.s32.totalorder %s57, 1
      %p555 = por %p553, %p554
      %p557 = scmp.ne.s32.totalorder %s542, %s556
      %p558 = scmp.eq.s32.totalorder %s57, 0
      %p559 = por %p557, %p558
      %s561 = sadd.s32 %s560, 1
      %p564 = scmp.eq.s32.totalorder %s51, 1
      %p565 = scmp.ne.s32.totalorder %s560, %s562
      %p566 = scmp.eq.s32.totalorder %s51, 0
      %p567 = por %p565, %p566
      %p568 = scmp.ne.s32.totalorder %s560, %s562
      %p569 = scmp.eq.s32.totalorder %s56, 1
      %p570 = por %p568, %p569
      %p571 = scmp.ne.s32.totalorder %s562, %s563
      %p572 = scmp.eq.s32.totalorder %s56, 0
      %p573 = por %p571, %p572
      %p574 = scmp.ne.s32.totalorder %s562, %s563
      %p575 = scmp.eq.s32.totalorder %s57, 1
      %p576 = por %p574, %p575
      %p578 = scmp.ne.s32.totalorder %s563, %s577
      %p579 = scmp.eq.s32.totalorder %s57, 0
      %p580 = por %p578, %p579
      %s582 = sadd.s32 %s581, 1
      %p585 = scmp.eq.s32.totalorder %s51, 1
      %p586 = scmp.ne.s32.totalorder %s581, %s583
      %p587 = scmp.eq.s32.totalorder %s51, 0
      %p588 = por %p586, %p587
      %p589 = scmp.ne.s32.totalorder %s581, %s583
      %p590 = scmp.eq.s32.totalorder %s56, 1
      %p591 = por %p589, %p590
      %p592 = scmp.ne.s32.totalorder %s583, %s584
      %p593 = scmp.eq.s32.totalorder %s56, 0
      %p594 = por %p592, %p593
      %p595 = scmp.ne.s32.totalorder %s583, %s584
      %p596 = scmp.eq.s32.totalorder %s57, 1
      %p597 = por %p595, %p596
      %p599 = scmp.ne.s32.totalorder %s584, %s598
      %p600 = scmp.eq.s32.totalorder %s57, 0
      %p601 = por %p599, %p600
      %s603 = sadd.s32 %s602, 1
      %p606 = scmp.eq.s32.totalorder %s51, 1
      %p607 = scmp.ne.s32.totalorder %s602, %s604
      %p608 = scmp.eq.s32.totalorder %s51, 0
      %p609 = por %p607, %p608
      %p610 = scmp.ne.s32.totalorder %s602, %s604
      %p611 = scmp.eq.s32.totalorder %s56, 1
      %p612 = por %p610, %p611
      %p613 = scmp.ne.s32.totalorder %s604, %s605
      %p614 = scmp.eq.s32.totalorder %s56, 0
      %p615 = por %p613, %p614
      %p616 = scmp.ne.s32.totalorder %s604, %s605
      %p617 = scmp.eq.s32.totalorder %s57, 1
      %p618 = por %p616, %p617
      %p620 = scmp.ne.s32.totalorder %s605, %s619
      %p621 = scmp.eq.s32.totalorder %s57, 0
      %p622 = por %p620, %p621
      %s624 = sadd.s32 %s623, 1
      %p627 = scmp.eq.s32.totalorder %s51, 1
      %p628 = scmp.ne.s32.totalorder %s623, %s625
      %p629 = scmp.eq.s32.totalorder %s51, 0
      %p630 = por %p628, %p629
      %p631 = scmp.ne.s32.totalorder %s623, %s625
      %p632 = scmp.eq.s32.totalorder %s56, 1
      %p633 = por %p631, %p632
      %p634 = scmp.ne.s32.totalorder %s625, %s626
      %p635 = scmp.eq.s32.totalorder %s56, 0
      %p636 = por %p634, %p635
      %p637 = scmp.ne.s32.totalorder %s625, %s626
      %p638 = scmp.eq.s32.totalorder %s57, 1
      %p639 = por %p637, %p638
      %p641 = scmp.ne.s32.totalorder %s626, %s640
      %p642 = scmp.eq.s32.totalorder %s57, 0
      %p643 = por %p641, %p642
      %p644 = scmp.le.s32.totalorder 1, %s51
      %p645 = scmp.lt.s32.totalorder %s51, 3
      %p646 = pnand %p644, %p645
      %p647 = pneg %p646
      // Predicated region
      $region9: #{encoder_forward.1} parent=5 // pred_check
        _
      $region10: #{encoder_forward.1} parent=5 // pred_check_branch
        %649 = sbr.rel (%p646) target = $region12
      $region11: #{encoder_forward.1} parent=5 // pred_region
        %s650 = ssub.s32 %s51, 1
        // Predicated region
        $region13: #{encoder_forward.1} parent=11 // pred_check
          %p651 = pneg %p72
        $region14: #{encoder_forward.1} parent=11 // pred_check_branch
          %653 = sbr.rel (%p651) target = $region16
        $region15: #{encoder_forward.1} parent=11 // pred_region
          _
        $region16: #{encoder_forward.1} parent=11 // pred_fallthru
          _
        // Predicated region
        $region17: #{encoder_forward.1} parent=11 // pred_check
          %p654 = pneg %p93
        $region18: #{encoder_forward.1} parent=11 // pred_check_branch
          %656 = sbr.rel (%p654) target = $region20
        $region19: #{encoder_forward.1} parent=11 // pred_region
          _
        $region20: #{encoder_forward.1} parent=11 // pred_fallthru
          _
        // Predicated region
        $region21: #{encoder_forward.1} parent=11 // pred_check
          %p657 = pneg %p114
        $region22: #{encoder_forward.1} parent=11 // pred_check_branch
          %659 = sbr.rel (%p657) target = $region24
        $region23: #{encoder_forward.1} parent=11 // pred_region
          _
        $region24: #{encoder_forward.1} parent=11 // pred_fallthru
          _
        // Predicated region
        $region25: #{encoder_forward.1} parent=11 // pred_check
          %p660 = pneg %p135
        $region26: #{encoder_forward.1} parent=11 // pred_check_branch
          %662 = sbr.rel (%p660) target = $region28
        $region27: #{encoder_forward.1} parent=11 // pred_region
          _
        $region28: #{encoder_forward.1} parent=11 // pred_fallthru
          _
        // Predicated region
        $region29: #{encoder_forward.1} parent=11 // pred_check
          %p663 = pneg %p156
        $region30: #{encoder_forward.1} parent=11 // pred_check_branch
          %665 = sbr.rel (%p663) target = $region32
        $region31: #{encoder_forward.1} parent=11 // pred_region
          %s667 = ssub.s32 16, 16
          %668 = vsyncadd [#allocation5], %s667
          %s670 = sshll.u32 [#allocation4], 4
          %s671 = int_to_ptr.vmem [resolvable:$true] %s670
          %673 = dma.hbm_to_vmem [thread:$0]  %s4, 16, %s671, [#allocation5]
        $region32: #{encoder_forward.1} parent=11 // pred_fallthru
          _
        // Predicated region
        $region33: #{encoder_forward.1} parent=11 // pred_check
          %p674 = pneg %p177
        $region34: #{encoder_forward.1} parent=11 // pred_check_branch
          %676 = sbr.rel (%p674) target = $region36
        $region35: #{encoder_forward.1} parent=11 // pred_region
          _
        $region36: #{encoder_forward.1} parent=11 // pred_fallthru
          _
        // Predicated region
        $region37: #{encoder_forward.1} parent=11 // pred_check
          %p677 = pneg %p198
        $region38: #{encoder_forward.1} parent=11 // pred_check_branch
          %679 = sbr.rel (%p677) target = $region40
        $region39: #{encoder_forward.1} parent=11 // pred_region
          %s681 = ssub.s32 16, 16
          %682 = vsyncadd [#allocation8], %s681
          %s684 = sshll.u32 [#allocation7], 4
          %s685 = int_to_ptr.vmem [resolvable:$true] %s684
          %687 = dma.hbm_to_vmem [thread:$0]  %s6, 16, %s685, [#allocation8]
        $region40: #{encoder_forward.1} parent=11 // pred_fallthru
          _
        // Predicated region
        $region41: #{encoder_forward.1} parent=11 // pred_check
          %p688 = pneg %p219
        $region42: #{encoder_forward.1} parent=11 // pred_check_branch
          %690 = sbr.rel (%p688) target = $region44
        $region43: #{encoder_forward.1} parent=11 // pred_region
          %s692 = ssub.s32 512, 512
          %693 = vsyncadd [#allocation8], %s692
          %s694 = sshll.u32 [#allocation9], 4
          %s695 = int_to_ptr.vmem [resolvable:$true] %s694
          %700 = dma.hbm_to_vmem [thread:$0]  %s7, 512, %s695, [#allocation8], 128, 128, 8
        $region44: #{encoder_forward.1} parent=11 // pred_fallthru
          _
        // Predicated region
        $region45: #{encoder_forward.1} parent=11 // pred_check
          %p701 = pneg %p552
        $region46: #{encoder_forward.1} parent=11 // pred_check_branch
          %703 = sbr.rel (%p701) target = $region48
        $region47: #{encoder_forward.1} parent=11 // pred_region
          %s705 = ssub.s32 16, 16
          %706 = vsyncadd [#allocation23], %s705
          %s708 = sshll.u32 [#allocation24], 4
          %s709 = int_to_ptr.vmem [resolvable:$true] %s708
          %711 = dma.hbm_to_vmem [thread:$0]  %s20, 16, %s709, [#allocation23]
        $region48: #{encoder_forward.1} parent=11 // pred_fallthru
          _
        // Predicated region
        $region49: #{encoder_forward.1} parent=11 // pred_check
          %p712 = pneg %p573
        $region50: #{encoder_forward.1} parent=11 // pred_check_branch
          %714 = sbr.rel (%p712) target = $region52
        $region51: #{encoder_forward.1} parent=11 // pred_region
          _
        $region52: #{encoder_forward.1} parent=11 // pred_fallthru
          _
        // Predicated region
        $region53: #{encoder_forward.1} parent=11 // pred_check
          %p715 = pneg %p594
        $region54: #{encoder_forward.1} parent=11 // pred_check_branch
          %717 = sbr.rel (%p715) target = $region56
        $region55: #{encoder_forward.1} parent=11 // pred_region
          %s719 = ssub.s32 1024, 1024
          %720 = vsyncadd [#allocation26], %s719
          %s721 = sshll.u32 [#allocation25], 4
          %s722 = int_to_ptr.vmem [resolvable:$true] %s721
          %727 = dma.hbm_to_vmem [thread:$0]  %s22, 1024, %s722, [#allocation26], 64, 64, 4
        $region56: #{encoder_forward.1} parent=11 // pred_fallthru
          _
        // Predicated region
        $region57: #{encoder_forward.1} parent=11 // pred_check
          %p728 = pneg %p615
        $region58: #{encoder_forward.1} parent=11 // pred_check_branch
          %730 = sbr.rel (%p728) target = $region60
        $region59: #{encoder_forward.1} parent=11 // pred_region
          %s732 = ssub.s32 16, 16
          %733 = vsyncadd [#allocation26], %s732
          %s735 = sshll.u32 [#allocation27], 4
          %s736 = int_to_ptr.vmem [resolvable:$true] %s735
          %738 = dma.hbm_to_vmem [thread:$0]  %s23, 16, %s736, [#allocation26]
        $region60: #{encoder_forward.1} parent=11 // pred_fallthru
          _
      $region12: #{encoder_forward.1} parent=5 // pred_fallthru
        _
      %p739 = scmp.lt.s32.totalorder %s51, 2
      // Predicated region
      $region61: #{encoder_forward.1} parent=5 // pred_check
        %p740 = pneg %p739
      $region62: #{encoder_forward.1} parent=5 // pred_check_branch
        %742 = sbr.rel (%p740) target = $region64
      $region63: #{encoder_forward.1} parent=5 // pred_region
        // Predicated region
        $region65: #{encoder_forward.1} parent=63 // pred_check
          %p743 = pneg %p239
        $region66: #{encoder_forward.1} parent=63 // pred_check_branch
          %745 = sbr.rel (%p743) target = $region68
        $region67: #{encoder_forward.1} parent=63 // pred_region
          %s746 = sand.u32 %s51, 1
          %s747 = scalar_lea.sflag [#allocation11], %s746
          %s748 = sand.u32 %s229, 1
          %s749 = smul.addr %s748, 192
          %s750 = scalar_lea.vmem [#allocation10], %s749
          %s752 = ssub.s32 3072, 3072
          %753 = vsyncadd %s747, %s752
          %s754 = smul.addr %s51, 48
          %s755 = smul.addr %s754, 64
          %s756 = scalar_lea.hbm %s8, %s755
          %s757 = sshll.u32 %s750, 4
          %s758 = int_to_ptr.vmem [resolvable:$true] %s757
          %763 = dma.hbm_to_vmem [thread:$0]  %s756, 3072, %s758, %s747, 192, 192, 12
        $region68: #{encoder_forward.1} parent=63 // pred_fallthru
          _
        // Predicated region
        $region69: #{encoder_forward.1} parent=63 // pred_check
          %p764 = pneg %p265
        $region70: #{encoder_forward.1} parent=63 // pred_check_branch
          %766 = sbr.rel (%p764) target = $region72
        $region71: #{encoder_forward.1} parent=63 // pred_region
          %p767 = scmp.lt.s32.totalorder %s51, 1
          %s768 = scalar_select %p767, %s51, 1
          %s769 = smul.addr %s768, 3
          %s770 = scalar_lea.vmem %s9, %s769
        $region72: #{encoder_forward.1} parent=63 // pred_fallthru
          _
        // Predicated region
        $region73: #{encoder_forward.1} parent=63 // pred_check
          %p771 = pneg %p291
        $region74: #{encoder_forward.1} parent=63 // pred_check_branch
          %773 = sbr.rel (%p771) target = $region76
        $region75: #{encoder_forward.1} parent=63 // pred_region
          %p774 = scmp.lt.s32.totalorder %s51, 1
          %s775 = scalar_select %p774, %s51, 1
          %s776 = smul.addr %s775, 16
          %s777 = smul.addr %s776, 4
          %s778 = scalar_lea.vmem %s10, %s777
        $region76: #{encoder_forward.1} parent=63 // pred_fallthru
          _
        // Predicated region
        $region77: #{encoder_forward.1} parent=63 // pred_check
          %p779 = pneg %p317
        $region78: #{encoder_forward.1} parent=63 // pred_check_branch
          %781 = sbr.rel (%p779) target = $region80
        $region79: #{encoder_forward.1} parent=63 // pred_region
          %p782 = scmp.lt.s32.totalorder %s51, 1
          %s783 = scalar_select %p782, %s51, 1
          %s784 = scalar_lea.vmem %s11, %s783
        $region80: #{encoder_forward.1} parent=63 // pred_fallthru
          _
        // Predicated region
        $region81: #{encoder_forward.1} parent=63 // pred_check
          %p785 = pneg %p343
        $region82: #{encoder_forward.1} parent=63 // pred_check_branch
          %787 = sbr.rel (%p785) target = $region84
        $region83: #{encoder_forward.1} parent=63 // pred_region
          %s788 = sand.u32 %s51, 1
          %s789 = scalar_lea.sflag [#allocation11], %s788
          %s790 = sand.u32 %s333, 1
          %s791 = scalar_lea.vmem [#allocation12], %s790
          %s793 = ssub.s32 16, 16
          %794 = vsyncadd %s789, %s793
          %s795 = smul.addr %s51, 16
          %s796 = scalar_lea.hbm %s12, %s795
          %s798 = sshll.u32 %s791, 4
          %s799 = int_to_ptr.vmem [resolvable:$true] %s798
          %801 = dma.hbm_to_vmem [thread:$0]  %s796, 16, %s799, %s789
        $region84: #{encoder_forward.1} parent=63 // pred_fallthru
          _
        // Predicated region
        $region85: #{encoder_forward.1} parent=63 // pred_check
          %p802 = pneg %p369
        $region86: #{encoder_forward.1} parent=63 // pred_check_branch
          %804 = sbr.rel (%p802) target = $region88
        $region87: #{encoder_forward.1} parent=63 // pred_region
          %s805 = sand.u32 %s51, 1
          %s806 = scalar_lea.sflag [#allocation14], %s805
          %s807 = sand.u32 %s359, 1
          %s808 = scalar_lea.vmem [#allocation13], %s807
          %s810 = ssub.s32 16, 16
          %811 = vsyncadd %s806, %s810
          %s812 = smul.addr %s51, 16
          %s813 = scalar_lea.hbm %s13, %s812
          %s815 = sshll.u32 %s808, 4
          %s816 = int_to_ptr.vmem [resolvable:$true] %s815
          %818 = dma.hbm_to_vmem [thread:$0]  %s813, 16, %s816, %s806
        $region88: #{encoder_forward.1} parent=63 // pred_fallthru
          _
        // Predicated region
        $region89: #{encoder_forward.1} parent=63 // pred_check
          %p819 = pneg %p395
        $region90: #{encoder_forward.1} parent=63 // pred_check_branch
          %821 = sbr.rel (%p819) target = $region92
        $region91: #{encoder_forward.1} parent=63 // pred_region
          %s822 = sand.u32 %s51, 1
          %s823 = scalar_lea.sflag [#allocation14], %s822
          %s824 = sand.u32 %s385, 1
          %s825 = smul.addr %s824, 1024
          %s826 = scalar_lea.vmem [#allocation15], %s825
          %s828 = ssub.s32 16384, 16384
          %829 = vsyncadd %s823, %s828
          %s830 = smul.addr %s51, 256
          %s831 = smul.addr %s830, 64
          %s832 = scalar_lea.hbm %s14, %s831
          %s833 = sshll.u32 %s826, 4
          %s834 = int_to_ptr.vmem [resolvable:$true] %s833
          %839 = dma.hbm_to_vmem [thread:$0]  %s832, 16384, %s834, %s823, 1024, 1024, 64
        $region92: #{encoder_forward.1} parent=63 // pred_fallthru
          _
        // Predicated region
        $region93: #{encoder_forward.1} parent=63 // pred_check
          %p840 = pneg %p421
        $region94: #{encoder_forward.1} parent=63 // pred_check_branch
          %842 = sbr.rel (%p840) target = $region96
        $region95: #{encoder_forward.1} parent=63 // pred_region
          %s843 = sand.u32 %s51, 1
          %s844 = scalar_lea.sflag [#allocation17], %s843
          %s845 = sand.u32 %s411, 1
          %s846 = smul.addr %s845, 16
          %s847 = scalar_lea.vmem [#allocation16], %s846
          %s849 = ssub.s32 256, 256
          %850 = vsyncadd %s844, %s849
          %s851 = smul.addr %s51, 16
          %s852 = smul.addr %s851, 16
          %s853 = scalar_lea.hbm %s15, %s852
          %s855 = sshll.u32 %s847, 4
          %s856 = int_to_ptr.vmem [resolvable:$true] %s855
          %858 = dma.hbm_to_vmem [thread:$0]  %s853, 256, %s856, %s844
        $region96: #{encoder_forward.1} parent=63 // pred_fallthru
          _
        // Predicated region
        $region97: #{encoder_forward.1} parent=63 // pred_check
          %p859 = pneg %p447
        $region98: #{encoder_forward.1} parent=63 // pred_check_branch
          %861 = sbr.rel (%p859) target = $region100
        $region99: #{encoder_forward.1} parent=63 // pred_region
          %s862 = sand.u32 %s51, 1
          %s863 = scalar_lea.sflag [#allocation17], %s862
          %s864 = sand.u32 %s437, 1
          %s865 = smul.addr %s864, 1024
          %s866 = scalar_lea.vmem [#allocation18], %s865
          %s868 = ssub.s32 16384, 16384
          %869 = vsyncadd %s863, %s868
          %s870 = smul.addr %s51, 256
          %s871 = smul.addr %s870, 64
          %s872 = scalar_lea.hbm %s16, %s871
          %s873 = sshll.u32 %s866, 4
          %s874 = int_to_ptr.vmem [resolvable:$true] %s873
          %879 = dma.hbm_to_vmem [thread:$0]  %s872, 16384, %s874, %s863, 64, 64, 4
        $region100: #{encoder_forward.1} parent=63 // pred_fallthru
          _
        // Predicated region
        $region101: #{encoder_forward.1} parent=63 // pred_check
          %p880 = pneg %p473
        $region102: #{encoder_forward.1} parent=63 // pred_check_branch
          %882 = sbr.rel (%p880) target = $region104
        $region103: #{encoder_forward.1} parent=63 // pred_region
          %s883 = sand.u32 %s51, 1
          %s884 = scalar_lea.sflag [#allocation20], %s883
          %s885 = sand.u32 %s463, 1
          %s886 = scalar_lea.vmem [#allocation19], %s885
          %s888 = ssub.s32 16, 16
          %889 = vsyncadd %s884, %s888
          %s890 = smul.addr %s51, 16
          %s891 = scalar_lea.hbm %s17, %s890
          %s893 = sshll.u32 %s886, 4
          %s894 = int_to_ptr.vmem [resolvable:$true] %s893
          %896 = dma.hbm_to_vmem [thread:$0]  %s891, 16, %s894, %s884
        $region104: #{encoder_forward.1} parent=63 // pred_fallthru
          _
        // Predicated region
        $region105: #{encoder_forward.1} parent=63 // pred_check
          %p897 = pneg %p499
        $region106: #{encoder_forward.1} parent=63 // pred_check_branch
          %899 = sbr.rel (%p897) target = $region108
        $region107: #{encoder_forward.1} parent=63 // pred_region
          %s900 = sand.u32 %s51, 1
          %s901 = scalar_lea.sflag [#allocation20], %s900
          %s902 = sand.u32 %s489, 1
          %s903 = scalar_lea.vmem [#allocation21], %s902
          %s905 = ssub.s32 16, 16
          %906 = vsyncadd %s901, %s905
          %s907 = smul.addr %s51, 16
          %s908 = scalar_lea.hbm %s18, %s907
          %s910 = sshll.u32 %s903, 4
          %s911 = int_to_ptr.vmem [resolvable:$true] %s910
          %913 = dma.hbm_to_vmem [thread:$0]  %s908, 16, %s911, %s901
        $region108: #{encoder_forward.1} parent=63 // pred_fallthru
          _
        // Predicated region
        $region109: #{encoder_forward.1} parent=63 // pred_check
          %p914 = pneg %p525
        $region110: #{encoder_forward.1} parent=63 // pred_check_branch
          %916 = sbr.rel (%p914) target = $region112
        $region111: #{encoder_forward.1} parent=63 // pred_region
          %s917 = sand.u32 %s51, 1
          %s918 = scalar_lea.sflag [#allocation23], %s917
          %s919 = sand.u32 %s515, 1
          %s920 = scalar_lea.vmem [#allocation22], %s919
          %s922 = ssub.s32 16, 16
          %923 = vsyncadd %s918, %s922
          %s924 = smul.addr %s51, 16
          %s925 = scalar_lea.hbm %s19, %s924
          %s927 = sshll.u32 %s920, 4
          %s928 = int_to_ptr.vmem [resolvable:$true] %s927
          %930 = dma.hbm_to_vmem [thread:$0]  %s925, 16, %s928, %s918
        $region112: #{encoder_forward.1} parent=63 // pred_fallthru
          _
      $region64: #{encoder_forward.1} parent=5 // pred_fallthru
        _
      %p931 = scmp.le.s32.totalorder 1, %s51
      %p932 = scmp.lt.s32.totalorder %s51, 3
      %p933 = pnand %p931, %p932
      %p934 = pneg %p933
      // Predicated region
      $region113: #{encoder_forward.1} parent=5 // pred_check
        _
      $region114: #{encoder_forward.1} parent=5 // pred_check_branch
        %936 = sbr.rel (%p933) target = $region116
      $region115: #{encoder_forward.1} parent=5 // pred_region
        %s937 = ssub.s32 %s51, 1
        // Predicated region
        $region117: #{encoder_forward.1} parent=115 // pred_check
          %p938 = pneg %p156
        $region118: #{encoder_forward.1} parent=115 // pred_check_branch
          %940 = sbr.rel (%p938) target = $region120
        $region119: #{encoder_forward.1} parent=115 // pred_region
          %941 = dma.done [#allocation5], 16
        $region120: #{encoder_forward.1} parent=115 // pred_fallthru
          _
        // Predicated region
        $region121: #{encoder_forward.1} parent=115 // pred_check
          %p942 = pneg %p198
        $region122: #{encoder_forward.1} parent=115 // pred_check_branch
          %944 = sbr.rel (%p942) target = $region124
        $region123: #{encoder_forward.1} parent=115 // pred_region
          %945 = dma.done [#allocation8], 16
        $region124: #{encoder_forward.1} parent=115 // pred_fallthru
          _
        // Predicated region
        $region125: #{encoder_forward.1} parent=115 // pred_check
          %p946 = pneg %p219
        $region126: #{encoder_forward.1} parent=115 // pred_check_branch
          %948 = sbr.rel (%p946) target = $region128
        $region127: #{encoder_forward.1} parent=115 // pred_region
          %949 = dma.done [#allocation8], 512
        $region128: #{encoder_forward.1} parent=115 // pred_fallthru
          _
        %s950 = sand.u32 %s56, 1
        %s951 = scalar_lea.sflag [#allocation11], %s950
        %s952 = sand.u32 %s232, 1
        %s953 = smul.addr %s952, 192
        %s954 = scalar_lea.vmem [#allocation10], %s953
        // Predicated region
        $region129: #{encoder_forward.1} parent=115 // pred_check
          %p955 = pneg %p245
        $region130: #{encoder_forward.1} parent=115 // pred_check_branch
          %957 = sbr.rel (%p955) target = $region132
        $region131: #{encoder_forward.1} parent=115 // pred_region
          %958 = dma.done %s951, 3072
        $region132: #{encoder_forward.1} parent=115 // pred_fallthru
          _
        %s959 = sand.u32 %s56, 1
        %s960 = scalar_lea.sflag [#allocation11], %s959
        %s961 = sand.u32 %s336, 1
        %s962 = scalar_lea.vmem [#allocation12], %s961
        // Predicated region
        $region133: #{encoder_forward.1} parent=115 // pred_check
          %p963 = pneg %p349
        $region134: #{encoder_forward.1} parent=115 // pred_check_branch
          %965 = sbr.rel (%p963) target = $region136
        $region135: #{encoder_forward.1} parent=115 // pred_region
          %966 = dma.done %s960, 16
        $region136: #{encoder_forward.1} parent=115 // pred_fallthru
          _
        %s967 = sand.u32 %s56, 1
        %s968 = scalar_lea.sflag [#allocation14], %s967
        %s969 = sand.u32 %s362, 1
        %s970 = scalar_lea.vmem [#allocation13], %s969
        // Predicated region
        $region137: #{encoder_forward.1} parent=115 // pred_check
          %p971 = pneg %p375
        $region138: #{encoder_forward.1} parent=115 // pred_check_branch
          %973 = sbr.rel (%p971) target = $region140
        $region139: #{encoder_forward.1} parent=115 // pred_region
          %974 = dma.done %s968, 16
        $region140: #{encoder_forward.1} parent=115 // pred_fallthru
          _
        %s975 = sand.u32 %s56, 1
        %s976 = scalar_lea.sflag [#allocation14], %s975
        %s977 = sand.u32 %s388, 1
        %s978 = smul.addr %s977, 1024
        %s979 = scalar_lea.vmem [#allocation15], %s978
        // Predicated region
        $region141: #{encoder_forward.1} parent=115 // pred_check
          %p980 = pneg %p401
        $region142: #{encoder_forward.1} parent=115 // pred_check_branch
          %982 = sbr.rel (%p980) target = $region144
        $region143: #{encoder_forward.1} parent=115 // pred_region
          %983 = dma.done %s976, 16384
        $region144: #{encoder_forward.1} parent=115 // pred_fallthru
          _
        %s984 = sand.u32 %s56, 1
        %s985 = scalar_lea.sflag [#allocation17], %s984
        %s986 = sand.u32 %s414, 1
        %s987 = smul.addr %s986, 16
        %s988 = scalar_lea.vmem [#allocation16], %s987
        // Predicated region
        $region145: #{encoder_forward.1} parent=115 // pred_check
          %p989 = pneg %p427
        $region146: #{encoder_forward.1} parent=115 // pred_check_branch
          %991 = sbr.rel (%p989) target = $region148
        $region147: #{encoder_forward.1} parent=115 // pred_region
          %992 = dma.done %s985, 256
        $region148: #{encoder_forward.1} parent=115 // pred_fallthru
          _
        %s993 = sand.u32 %s56, 1
        %s994 = scalar_lea.sflag [#allocation17], %s993
        %s995 = sand.u32 %s440, 1
        %s996 = smul.addr %s995, 1024
        %s997 = scalar_lea.vmem [#allocation18], %s996
        // Predicated region
        $region149: #{encoder_forward.1} parent=115 // pred_check
          %p998 = pneg %p453
        $region150: #{encoder_forward.1} parent=115 // pred_check_branch
          %1000 = sbr.rel (%p998) target = $region152
        $region151: #{encoder_forward.1} parent=115 // pred_region
          %1001 = dma.done %s994, 16384
        $region152: #{encoder_forward.1} parent=115 // pred_fallthru
          _
        %s1002 = sand.u32 %s56, 1
        %s1003 = scalar_lea.sflag [#allocation20], %s1002
        %s1004 = sand.u32 %s466, 1
        %s1005 = scalar_lea.vmem [#allocation19], %s1004
        // Predicated region
        $region153: #{encoder_forward.1} parent=115 // pred_check
          %p1006 = pneg %p479
        $region154: #{encoder_forward.1} parent=115 // pred_check_branch
          %1008 = sbr.rel (%p1006) target = $region156
        $region155: #{encoder_forward.1} parent=115 // pred_region
          %1009 = dma.done %s1003, 16
        $region156: #{encoder_forward.1} parent=115 // pred_fallthru
          _
        %s1010 = sand.u32 %s56, 1
        %s1011 = scalar_lea.sflag [#allocation20], %s1010
        %s1012 = sand.u32 %s492, 1
        %s1013 = scalar_lea.vmem [#allocation21], %s1012
        // Predicated region
        $region157: #{encoder_forward.1} parent=115 // pred_check
          %p1014 = pneg %p505
        $region158: #{encoder_forward.1} parent=115 // pred_check_branch
          %1016 = sbr.rel (%p1014) target = $region160
        $region159: #{encoder_forward.1} parent=115 // pred_region
          %1017 = dma.done %s1011, 16
        $region160: #{encoder_forward.1} parent=115 // pred_fallthru
          _
        %s1018 = sand.u32 %s56, 1
        %s1019 = scalar_lea.sflag [#allocation23], %s1018
        %s1020 = sand.u32 %s518, 1
        %s1021 = scalar_lea.vmem [#allocation22], %s1020
        // Predicated region
        $region161: #{encoder_forward.1} parent=115 // pred_check
          %p1022 = pneg %p531
        $region162: #{encoder_forward.1} parent=115 // pred_check_branch
          %1024 = sbr.rel (%p1022) target = $region164
        $region163: #{encoder_forward.1} parent=115 // pred_region
          %1025 = dma.done %s1019, 16
        $region164: #{encoder_forward.1} parent=115 // pred_fallthru
          _
        // Predicated region
        $region165: #{encoder_forward.1} parent=115 // pred_check
          %p1026 = pneg %p552
        $region166: #{encoder_forward.1} parent=115 // pred_check_branch
          %1028 = sbr.rel (%p1026) target = $region168
        $region167: #{encoder_forward.1} parent=115 // pred_region
          %1029 = dma.done [#allocation23], 16
        $region168: #{encoder_forward.1} parent=115 // pred_fallthru
          _
        // Predicated region
        $region169: #{encoder_forward.1} parent=115 // pred_check
          %p1030 = pneg %p594
        $region170: #{encoder_forward.1} parent=115 // pred_check_branch
          %1032 = sbr.rel (%p1030) target = $region172
        $region171: #{encoder_forward.1} parent=115 // pred_region
          %1033 = dma.done [#allocation26], 1024
        $region172: #{encoder_forward.1} parent=115 // pred_fallthru
          _
        // Predicated region
        $region173: #{encoder_forward.1} parent=115 // pred_check
          %p1034 = pneg %p615
        $region174: #{encoder_forward.1} parent=115 // pred_check_branch
          %1036 = sbr.rel (%p1034) target = $region176
        $region175: #{encoder_forward.1} parent=115 // pred_region
          %1037 = dma.done [#allocation26], 16
        $region176: #{encoder_forward.1} parent=115 // pred_fallthru
          _
        %p1038 = pneg %p72
        %p1039 = pneg %p69
        %p1040 = pneg %p93
        %p1041 = pneg %p90
        %p1042 = pneg %p114
        %p1043 = pneg %p111
        %p1044 = pneg %p135
        %p1045 = pneg %p132
        %p1046 = pneg %p156
        %p1047 = pneg %p153
        %p1048 = pneg %p177
        %p1049 = pneg %p174
        %p1050 = pneg %p198
        %p1051 = pneg %p195
        %p1052 = pneg %p219
        %p1053 = pneg %p216
        %s1054 = sand.u32 %s56, 1
        %s1055 = scalar_lea.sflag [#allocation11], %s1054
        %s1056 = sand.u32 %s232, 1
        %s1057 = smul.addr %s1056, 192
        %s1058 = scalar_lea.vmem [#allocation10], %s1057
        %p1059 = pneg %p245
        %p1060 = pneg %p242
        %p1061 = scmp.lt.s32.totalorder %s56, 1
        %s1062 = scalar_select %p1061, %s56, 1
        %s1063 = smul.addr %s1062, 3
        %s1064 = scalar_lea.vmem %s9, %s1063
        %p1065 = pneg %p271
        %p1066 = pneg %p268
        %p1067 = scmp.lt.s32.totalorder %s56, 1
        %s1068 = scalar_select %p1067, %s56, 1
        %s1069 = smul.addr %s1068, 16
        %s1070 = smul.addr %s1069, 4
        %s1071 = scalar_lea.vmem %s10, %s1070
        %p1072 = pneg %p297
        %p1073 = pneg %p294
        %p1074 = scmp.lt.s32.totalorder %s56, 1
        %s1075 = scalar_select %p1074, %s56, 1
        %s1076 = scalar_lea.vmem %s11, %s1075
        %p1077 = pneg %p323
        %p1078 = pneg %p320
        %s1079 = sand.u32 %s56, 1
        %s1080 = scalar_lea.sflag [#allocation11], %s1079
        %s1081 = sand.u32 %s336, 1
        %s1082 = scalar_lea.vmem [#allocation12], %s1081
        %p1083 = pneg %p349
        %p1084 = pneg %p346
        %s1085 = sand.u32 %s56, 1
        %s1086 = scalar_lea.sflag [#allocation14], %s1085
        %s1087 = sand.u32 %s362, 1
        %s1088 = scalar_lea.vmem [#allocation13], %s1087
        %p1089 = pneg %p375
        %p1090 = pneg %p372
        %s1091 = sand.u32 %s56, 1
        %s1092 = scalar_lea.sflag [#allocation14], %s1091
        %s1093 = sand.u32 %s388, 1
        %s1094 = smul.addr %s1093, 1024
        %s1095 = scalar_lea.vmem [#allocation15], %s1094
        %p1096 = pneg %p401
        %p1097 = pneg %p398
        %s1098 = sand.u32 %s56, 1
        %s1099 = scalar_lea.sflag [#allocation17], %s1098
        %s1100 = sand.u32 %s414, 1
        %s1101 = smul.addr %s1100, 16
        %s1102 = scalar_lea.vmem [#allocation16], %s1101
        %p1103 = pneg %p427
        %p1104 = pneg %p424
        %s1105 = sand.u32 %s56, 1
        %s1106 = scalar_lea.sflag [#allocation17], %s1105
        %s1107 = sand.u32 %s440, 1
        %s1108 = smul.addr %s1107, 1024
        %s1109 = scalar_lea.vmem [#allocation18], %s1108
        %p1110 = pneg %p453
        %p1111 = pneg %p450
        %s1112 = sand.u32 %s56, 1
        %s1113 = scalar_lea.sflag [#allocation20], %s1112
        %s1114 = sand.u32 %s466, 1
        %s1115 = scalar_lea.vmem [#allocation19], %s1114
        %p1116 = pneg %p479
        %p1117 = pneg %p476
        %s1118 = sand.u32 %s56, 1
        %s1119 = scalar_lea.sflag [#allocation20], %s1118
        %s1120 = sand.u32 %s492, 1
        %s1121 = scalar_lea.vmem [#allocation21], %s1120
        %p1122 = pneg %p505
        %p1123 = pneg %p502
        %s1124 = sand.u32 %s56, 1
        %s1125 = scalar_lea.sflag [#allocation23], %s1124
        %s1126 = sand.u32 %s518, 1
        %s1127 = scalar_lea.vmem [#allocation22], %s1126
        %p1128 = pneg %p531
        %p1129 = pneg %p528
        %p1130 = pneg %p552
        %p1131 = pneg %p549
        %p1132 = pneg %p573
        %p1133 = pneg %p570
        %p1134 = pneg %p594
        %p1135 = pneg %p591
        %p1136 = pneg %p615
        %p1137 = pneg %p612
        %p1138 = pneg %p636
        %p1139 = pneg %p633
        %p1140 = scmp.lt.s32.totalorder %s56, 1
        %s1141 = scalar_select %p1140, %s56, 1
        %s1142 = smul.addr %s1141, 3
        %s1143 = scalar_lea.vmem %s9, %s1142
        %p1144 = scmp.lt.s32.totalorder %s56, 1
        %s1145 = scalar_select %p1144, %s56, 1
        %s1146 = smul.addr %s1145, 16
        %s1147 = smul.addr %s1146, 4
        %s1148 = scalar_lea.vmem %s10, %s1147
        %p1149 = scmp.lt.s32.totalorder %s56, 1
        %s1150 = scalar_select %p1149, %s56, 1
        %s1151 = scalar_lea.vmem %s11, %s1150
        %p1153 = scmp.eq.s32.totalorder %s56, 0
        // Predicated region
        $region177: #{encoder_forward.1} parent=115 // pred_check
          %p1154 = pneg %p1153
        $region178: #{encoder_forward.1} parent=115 // pred_check_branch
          %1156 = sbr.rel (%p1154) target = $region180
        $region179: #{encoder_forward.1} parent=115 // pred_region
          %v1157 = vld [vmem:[%s0] sm:$0xff]
          %v1158 = vld [vmem:[%s0 + $0x8] sm:$0xff]
          %v1159 = vld [vmem:[%s0 + $0x10] sm:$0xff]
          %v1160 = vld [vmem:[%s0 + $0x18] sm:$0xff]
          %v1161 = vld [vmem:[%s1] sm:$0xff]
          %v1162 = vld [vmem:[%s1 + $0x8] sm:$0xff]
          %v1163 = vld [vmem:[%s1 + $0x10] sm:$0xff]
          %v1164 = vld [vmem:[%s1 + $0x18] sm:$0xff]
          %1166 = vset.pattern.permute.xlu0 0
          %1167 = vperm.xlu0 %1166, %v1161
          %v1168 = vpop.permute.xlu0 %1167
          %1171 = vset.pattern.permute.xlu0 0
          %1172 = vperm.xlu0 %1171, %v1162
          %v1173 = vpop.permute.xlu0 %1172
          %1176 = vset.pattern.permute.xlu0 0
          %1177 = vperm.xlu0 %1176, %v1163
          %v1178 = vpop.permute.xlu0 %1177
          %1181 = vset.pattern.permute.xlu0 0
          %1182 = vperm.xlu0 %1181, %v1164
          %v1183 = vpop.permute.xlu0 %1182
          %v1185 = vmul.f32 %v1157, %v1168
          %v1186 = vmul.f32 %v1158, %v1173
          %v1187 = vmul.f32 %v1159, %v1178
          %v1188 = vmul.f32 %v1160, %v1183
          %v1189 = vld [vmem:[%s2] sm:$0xff]
          %v1190 = vld [vmem:[%s2 + $0x8] sm:$0xff]
          %v1191 = vld [vmem:[%s2 + $0x10] sm:$0xff]
          %v1192 = vld [vmem:[%s2 + $0x18] sm:$0xff]
          %1194 = vset.pattern.permute.xlu0 0
          %1195 = vperm.xlu0 %1194, %v1189
          %v1196 = vpop.permute.xlu0 %1195
          %1199 = vset.pattern.permute.xlu0 0
          %1200 = vperm.xlu0 %1199, %v1190
          %v1201 = vpop.permute.xlu0 %1200
          %1204 = vset.pattern.permute.xlu0 0
          %1205 = vperm.xlu0 %1204, %v1191
          %v1206 = vpop.permute.xlu0 %1205
          %1209 = vset.pattern.permute.xlu0 0
          %1210 = vperm.xlu0 %1209, %v1192
          %v1211 = vpop.permute.xlu0 %1210
          %v1213 = vadd.f32 %v1185, %v1196
          %v1214 = vadd.f32 %v1186, %v1201
          %v1215 = vadd.f32 %v1187, %v1206
          %v1216 = vadd.f32 %v1188, %v1211
          %v1217 = vpack.c.bf16 %v1214, %v1213
          %v1218 = vpack.c.bf16 %v1216, %v1215
          %v1219 = vld [vmem:[%s3] sm:$0xf]
          %v1220 = vld [vmem:[#allocation4] sm:$0x1]
          %v1222 = vlaneseq
          %v1223 = vshrl.u32 %v1222, 7
          %v1224 = vsub.s32 0, %v1223
          %v1225 = vrot.slane %v1220, %v1224
          %vm1227 = vcmask 64512
          %v1229 = vsel %vm1227, %v1217, 0
          %v1232 = vsel %vm1227, %v1218, 0
          %vm1234 = vcmask 1043456
          %v1236 = vsel %vm1234, %v1219, 0
          %1238 = vmatprep.subr.bf16.mxu0 0
          %1239 = vmatpush1.bf16.msra.mxu0 %v1236
          %1240 = vmatprep.subr.bf16.mxu0 0
          %1241 = vmatpush1.bf16.msra.mxu0 0
          %1242 = vmatprep.subr.bf16.mxu0 0
          %1243 = vmatpush1.bf16.msra.mxu0 0
          %1244 = vmatprep.subr.bf16.mxu0 0
          %1245 = vmatpush1.bf16.msra.mxu0 0
          %1246 = vmatprep.subr.bf16.mxu0 0
          %1247 = vmatpush1.bf16.msra.mxu0 0
          %1248 = vmatprep.subr.bf16.mxu0 0
          %1249 = vmatpush1.bf16.msra.mxu0 0
          %1250 = vmatprep.subr.bf16.mxu0 0
          %1251 = vmatpush1.bf16.msra.mxu0 0
          %1252 = vmatprep.subr.bf16.mxu0 0
          %1253 = vmatpush1.bf16.msra.mxu0 0
          %1254 = vmatprep.subr.bf16.mxu0 0
          %1255 = vmatpush1.bf16.msra.mxu0 0
          %1256 = vmatprep.subr.bf16.mxu0 0
          %1257 = vmatpush1.bf16.msra.mxu0 0
          %1258 = vmatprep.subr.bf16.mxu0 0
          %1259 = vmatpush1.bf16.msra.mxu0 0
          %1260 = vmatprep.subr.bf16.mxu0 0
          %1261 = vmatpush1.bf16.msra.mxu0 0
          %1262 = vmatprep.subr.bf16.mxu0 0
          %1263 = vmatpush1.bf16.msra.mxu0 0
          %1264 = vmatprep.subr.bf16.mxu0 0
          %1265 = vmatpush1.bf16.msra.mxu0 0
          %1266 = vmatprep.subr.bf16.mxu0 0
          %1267 = vmatpush1.bf16.msra.mxu0 0
          %1268 = vmatprep.subr.bf16.mxu0 0
          %1269 = vmatpush1.bf16.msra.mxu0 0
          %1270 = vmatprep.mubr.bf16.mxu0 0
          %1271 = vmatmul.mubr.bf16.gmra.mrb[0].mxu0 %v1229
          %v1272 = vpop.f32.mrb[0].mxu0
          %v1273 = vadd.f32 %v1225, %v1272
          %v1274 = vpop.f32.mrb[0].mxu0
          %v1275 = vpop.f32.mrb[0].mxu0
          %v1276 = vadd.f32 %v1225, %v1275
          %v1277 = vpop.f32.mrb[0].mxu0
          %1278 = vmatprep.mubr.bf16.mxu0 0
          %1279 = vmatmul.mubr.bf16.gmra.mrb[0].mxu0 %v1232
          %v1280 = vpop.f32.mrb[0].mxu0
          %v1281 = vadd.f32 %v1225, %v1280
          %v1282 = vpop.f32.mrb[0].mxu0
          %v1283 = vpop.f32.mrb[0].mxu0
          %v1284 = vadd.f32 %v1225, %v1283
          %v1285 = vpop.f32.mrb[0].mxu0
          %1286 = vdwg.mxu0
          %v1287 = vmax.f32 %v1273, 0.0
          %v1288 = vmax.f32 %v1276, 0.0
          %v1289 = vmax.f32 %v1281, 0.0
          %v1290 = vmax.f32 %v1284, 0.0
          %v1291 = vpack.c.bf16 %v1288, %v1287
          %v1292 = vpack.c.bf16 %v1290, %v1289
          %v1293 = vld [vmem:[%s5] sm:$0xf]
          %v1294 = vld [vmem:[%s5 + $0x4] sm:$0xf]
          %v1295 = vld [vmem:[%s5 + $0x8] sm:$0xf]
          %v1296 = vld [vmem:[%s5 + $0xc] sm:$0xf]
          %v1297 = vld [vmem:[%s5 + $0x10] sm:$0xf]
          %v1298 = vld [vmem:[%s5 + $0x14] sm:$0xf]
          %v1299 = vld [vmem:[%s5 + $0x18] sm:$0xf]
          %v1300 = vld [vmem:[%s5 + $0x1c] sm:$0xf]
          %v1301 = vld [vmem:[%s5 + $0x20] sm:$0xf]
          %v1302 = vld [vmem:[%s5 + $0x24] sm:$0xf]
          %v1303 = vld [vmem:[%s5 + $0x28] sm:$0xf]
          %v1304 = vld [vmem:[%s5 + $0x2c] sm:$0xf]
          %v1305 = vld [vmem:[%s5 + $0x30] sm:$0xf]
          %v1306 = vld [vmem:[%s5 + $0x34] sm:$0xf]
          %v1307 = vld [vmem:[%s5 + $0x38] sm:$0xf]
          %v1308 = vld [vmem:[%s5 + $0x3c] sm:$0xf]
          %v1309 = vld [vmem:[#allocation7] sm:$0x1]
          %v1311 = vlaneseq
          %v1312 = vshrl.u32 %v1311, 7
          %v1313 = vsub.s32 0, %v1312
          %v1314 = vrot.slane %v1309, %v1313
          %v1332 = vunpack.c.l.b16 %v1293
          %v1333 = vunpack.c.l.b16 %v1294
          %v1334 = vunpack.c.l.b16 %v1295
          %v1335 = vunpack.c.l.b16 %v1296
          %v1336 = vunpack.c.l.b16 %v1297
          %v1337 = vunpack.c.l.b16 %v1298
          %v1338 = vunpack.c.l.b16 %v1299
          %v1339 = vunpack.c.l.b16 %v1300
          %v1340 = vunpack.c.l.b16 %v1301
          %v1341 = vunpack.c.l.b16 %v1302
          %v1342 = vunpack.c.l.b16 %v1303
          %v1343 = vunpack.c.l.b16 %v1304
          %v1344 = vunpack.c.l.b16 %v1305
          %v1345 = vunpack.c.l.b16 %v1306
          %v1346 = vunpack.c.l.b16 %v1307
          %v1347 = vunpack.c.l.b16 %v1308
          %v1348 = vpack.c.b16 %v1333, %v1332
          %v1349 = vpack.c.b16 %v1335, %v1334
          %v1350 = vpack.c.b16 %v1337, %v1336
          %v1351 = vpack.c.b16 %v1339, %v1338
          %v1352 = vpack.c.b16 %v1341, %v1340
          %v1353 = vpack.c.b16 %v1343, %v1342
          %v1354 = vpack.c.b16 %v1345, %v1344
          %v1355 = vpack.c.b16 %v1347, %v1346
          %1364 = vmatprep.subr.bf16.mxu0 0
          %1365 = vmatpush1.bf16.msra.mxu0 %v1348
          %1366 = vmatprep.subr.bf16.mxu0 0
          %1367 = vmatpush1.bf16.msra.mxu0 %v1349
          %1368 = vmatprep.subr.bf16.mxu0 0
          %1369 = vmatpush1.bf16.msra.mxu0 %v1350
          %1370 = vmatprep.subr.bf16.mxu0 0
          %1371 = vmatpush1.bf16.msra.mxu0 %v1351
          %1372 = vmatprep.subr.bf16.mxu0 0
          %1373 = vmatpush1.bf16.msra.mxu0 %v1352
          %1374 = vmatprep.subr.bf16.mxu0 0
          %1375 = vmatpush1.bf16.msra.mxu0 %v1353
          %1376 = vmatprep.subr.bf16.mxu0 0
          %1377 = vmatpush1.bf16.msra.mxu0 %v1354
          %1378 = vmatprep.subr.bf16.mxu0 0
          %1379 = vmatpush1.bf16.msra.mxu0 %v1355
          %1380 = vmatprep.subr.bf16.mxu0 0
          %1381 = vmatpush1.bf16.msra.mxu0 0
          %1382 = vmatprep.subr.bf16.mxu0 0
          %1383 = vmatpush1.bf16.msra.mxu0 0
          %1384 = vmatprep.subr.bf16.mxu0 0
          %1385 = vmatpush1.bf16.msra.mxu0 0
          %1386 = vmatprep.subr.bf16.mxu0 0
          %1387 = vmatpush1.bf16.msra.mxu0 0
          %1388 = vmatprep.subr.bf16.mxu0 0
          %1389 = vmatpush1.bf16.msra.mxu0 0
          %1390 = vmatprep.subr.bf16.mxu0 0
          %1391 = vmatpush1.bf16.msra.mxu0 0
          %1392 = vmatprep.subr.bf16.mxu0 0
          %1393 = vmatpush1.bf16.msra.mxu0 0
          %1394 = vmatprep.subr.bf16.mxu0 0
          %1395 = vmatpush1.bf16.msra.mxu0 0
          %1396 = vmatprep.mubr.bf16.mxu0 0
          %1397 = vmatmul.mubr.bf16.gmra.mrb[0].mxu0 %v1291
          %v1398 = vpop.f32.mrb[0].mxu0
          %v1399 = vadd.f32 %v1314, %v1398
          %v1400 = vpop.f32.mrb[0].mxu0
          %v1401 = vpop.f32.mrb[0].mxu0
          %v1402 = vadd.f32 %v1314, %v1401
          %v1403 = vpop.f32.mrb[0].mxu0
          %1404 = vmatprep.mubr.bf16.mxu0 0
          %1405 = vmatmul.mubr.bf16.gmra.mrb[0].mxu0 %v1292
          %v1406 = vpop.f32.mrb[0].mxu0
          %v1407 = vadd.f32 %v1314, %v1406
          %v1408 = vpop.f32.mrb[0].mxu0
          %v1409 = vpop.f32.mrb[0].mxu0
          %v1410 = vadd.f32 %v1314, %v1409
          %v1411 = vpop.f32.mrb[0].mxu0
          %1412 = vdwg.mxu0
          %v1413 = vld [vmem:[#allocation9] sm:$0xff]
          %v1414 = vld [vmem:[#allocation9 + $0x8] sm:$0xff]
          %v1415 = vld [vmem:[#allocation9 + $0x10] sm:$0xff]
          %v1416 = vld [vmem:[#allocation9 + $0x18] sm:$0xff]
          %v1417 = vadd.f32 %v1399, %v1413
          %v1418 = vadd.f32 %v1402, %v1414
          %v1419 = vadd.f32 %v1407, %v1415
          %v1420 = vadd.f32 %v1410, %v1416
          %1421 = vst [vmem:[#allocation2] sm:$0xff] %v1417
          %1422 = vst [vmem:[#allocation2 + $0x8] sm:$0xff] %v1418
          %1423 = vst [vmem:[#allocation2 + $0x10] sm:$0xff] %v1419
          %1424 = vst [vmem:[#allocation2 + $0x18] sm:$0xff] %v1420
        $region180: #{encoder_forward.1} parent=115 // pred_fallthru
          _
        %v1425 = vld [vmem:[#allocation2] sm:$0xff]
        %v1426 = vld [vmem:[#allocation2 + $0x8] sm:$0xff]
        %v1427 = vld [vmem:[#allocation2 + $0x10] sm:$0xff]
        %v1428 = vld [vmem:[#allocation2 + $0x18] sm:$0xff]
        %v1429 = vpack.c.bf16 %v1426, %v1425
        %v1430 = vpack.c.bf16 %v1428, %v1427
        %v1431 = vld [vmem:[%s954] sm:$0xff]
        %v1432 = vld [vmem:[%s954 + $0x8] sm:$0xf]
        %v1433 = vld [vmem:[%s954 + $0xc] sm:$0xff]
        %v1434 = vld [vmem:[%s954 + $0x14] sm:$0xf]
        %v1435 = vld [vmem:[%s954 + $0x18] sm:$0xff]
        %v1436 = vld [vmem:[%s954 + $0x20] sm:$0xf]
        %v1437 = vld [vmem:[%s954 + $0x24] sm:$0xff]
        %v1438 = vld [vmem:[%s954 + $0x2c] sm:$0xf]
        %v1439 = vld [vmem:[%s954 + $0x30] sm:$0xff]
        %v1440 = vld [vmem:[%s954 + $0x38] sm:$0xf]
        %v1441 = vld [vmem:[%s954 + $0x3c] sm:$0xff]
        %v1442 = vld [vmem:[%s954 + $0x44] sm:$0xf]
        %v1443 = vld [vmem:[%s954 + $0x48] sm:$0xff]
        %v1444 = vld [vmem:[%s954 + $0x50] sm:$0xf]
        %v1445 = vld [vmem:[%s954 + $0x54] sm:$0xff]
        %v1446 = vld [vmem:[%s954 + $0x5c] sm:$0xf]
        %v1447 = vld [vmem:[%s954 + $0x60] sm:$0xff]
        %v1448 = vld [vmem:[%s954 + $0x68] sm:$0xf]
        %v1449 = vld [vmem:[%s954 + $0x6c] sm:$0xff]
        %v1450 = vld [vmem:[%s954 + $0x74] sm:$0xf]
        %v1451 = vld [vmem:[%s954 + $0x78] sm:$0xff]
        %v1452 = vld [vmem:[%s954 + $0x80] sm:$0xf]
        %v1453 = vld [vmem:[%s954 + $0x84] sm:$0xff]
        %v1454 = vld [vmem:[%s954 + $0x8c] sm:$0xf]
        %v1455 = vld [vmem:[%s954 + $0x90] sm:$0xff]
        %v1456 = vld [vmem:[%s954 + $0x98] sm:$0xf]
        %v1457 = vld [vmem:[%s954 + $0x9c] sm:$0xff]
        %v1458 = vld [vmem:[%s954 + $0xa4] sm:$0xf]
        %v1459 = vld [vmem:[%s954 + $0xa8] sm:$0xff]
        %v1460 = vld [vmem:[%s954 + $0xb0] sm:$0xf]
        %v1461 = vld [vmem:[%s954 + $0xb4] sm:$0xff]
        %v1462 = vld [vmem:[%s954 + $0xbc] sm:$0xf]
        %v1463 = vld [vmem:[%s1143] sm:$0x7]
        %v1465 = vlaneseq
        %v1466 = vshrl.u32 %v1465, 7
        %v1467 = vsub.s32 0, %v1466
        %v1468 = vrot.slane %v1463, %v1467
        %v1469 = vlaneseq
        %v1470 = vshrl.u32 %v1469, 7
        %v1471 = vsub.s32 1, %v1470
        %v1472 = vrot.slane %v1463, %v1471
        %v1473 = vlaneseq
        %v1474 = vshrl.u32 %v1473, 7
        %v1475 = vsub.s32 2, %v1474
        %v1476 = vrot.slane %v1463, %v1475
        %v1512 = vunpack.c.l.b16 %v1431
        %v1513 = vunpack.c.h.b16 %v1431
        %v1514 = vunpack.c.l.b16 %v1432
        %v1515 = vunpack.c.l.b16 %v1433
        %v1516 = vunpack.c.h.b16 %v1433
        %v1517 = vunpack.c.l.b16 %v1434
        %v1518 = vunpack.c.l.b16 %v1435
        %v1519 = vunpack.c.h.b16 %v1435
        %v1520 = vunpack.c.l.b16 %v1436
        %v1521 = vunpack.c.l.b16 %v1437
        %v1522 = vunpack.c.h.b16 %v1437
        %v1523 = vunpack.c.l.b16 %v1438
        %v1524 = vunpack.c.l.b16 %v1439
        %v1525 = vunpack.c.h.b16 %v1439
        %v1526 = vunpack.c.l.b16 %v1440
        %v1527 = vunpack.c.l.b16 %v1441
        %v1528 = vunpack.c.h.b16 %v1441
        %v1529 = vunpack.c.l.b16 %v1442
        %v1530 = vunpack.c.l.b16 %v1443
        %v1531 = vunpack.c.h.b16 %v1443
        %v1532 = vunpack.c.l.b16 %v1444
        %v1533 = vunpack.c.l.b16 %v1445
        %v1534 = vunpack.c.h.b16 %v1445
        %v1535 = vunpack.c.l.b16 %v1446
        %v1536 = vunpack.c.l.b16 %v1447
        %v1537 = vunpack.c.h.b16 %v1447
        %v1538 = vunpack.c.l.b16 %v1448
        %v1539 = vunpack.c.l.b16 %v1449
        %v1540 = vunpack.c.h.b16 %v1449
        %v1541 = vunpack.c.l.b16 %v1450
        %v1542 = vunpack.c.l.b16 %v1451
        %v1543 = vunpack.c.h.b16 %v1451
        %v1544 = vunpack.c.l.b16 %v1452
        %v1545 = vunpack.c.l.b16 %v1453
        %v1546 = vunpack.c.h.b16 %v1453
        %v1547 = vunpack.c.l.b16 %v1454
        %v1548 = vunpack.c.l.b16 %v1455
        %v1549 = vunpack.c.h.b16 %v1455
        %v1550 = vunpack.c.l.b16 %v1456
        %v1551 = vunpack.c.l.b16 %v1457
        %v1552 = vunpack.c.h.b16 %v1457
        %v1553 = vunpack.c.l.b16 %v1458
        %v1554 = vunpack.c.l.b16 %v1459
        %v1555 = vunpack.c.h.b16 %v1459
        %v1556 = vunpack.c.l.b16 %v1460
        %v1557 = vunpack.c.l.b16 %v1461
        %v1558 = vunpack.c.h.b16 %v1461
        %v1559 = vunpack.c.l.b16 %v1462
        %v1560 = vpack.c.b16 %v1515, %v1512
        %v1561 = vpack.c.b16 %v1516, %v1513
        %v1562 = vpack.c.b16 %v1517, %v1514
        %v1563 = vpack.c.b16 %v1521, %v1518
        %v1564 = vpack.c.b16 %v1522, %v1519
        %v1565 = vpack.c.b16 %v1523, %v1520
        %v1566 = vpack.c.b16 %v1527, %v1524
        %v1567 = vpack.c.b16 %v1528, %v1525
        %v1568 = vpack.c.b16 %v1529, %v1526
        %v1569 = vpack.c.b16 %v1533, %v1530
        %v1570 = vpack.c.b16 %v1534, %v1531
        %v1571 = vpack.c.b16 %v1535, %v1532
        %v1572 = vpack.c.b16 %v1539, %v1536
        %v1573 = vpack.c.b16 %v1540, %v1537
        %v1574 = vpack.c.b16 %v1541, %v1538
        %v1575 = vpack.c.b16 %v1545, %v1542
        %v1576 = vpack.c.b16 %v1546, %v1543
        %v1577 = vpack.c.b16 %v1547, %v1544
        %v1578 = vpack.c.b16 %v1551, %v1548
        %v1579 = vpack.c.b16 %v1552, %v1549
        %v1580 = vpack.c.b16 %v1553, %v1550
        %v1581 = vpack.c.b16 %v1557, %v1554
        %v1582 = vpack.c.b16 %v1558, %v1555
        %v1583 = vpack.c.b16 %v1559, %v1556
        %1608 = vmatprep.subr.bf16.mxu0 %v1561
        %1609 = vmatpush1.bf16.msra.mxu0 %v1560
        %1610 = vmatprep.subr.bf16.mxu0 %v1564
        %1611 = vmatpush1.bf16.msra.mxu0 %v1563
        %1612 = vmatprep.subr.bf16.mxu0 %v1567
        %1613 = vmatpush1.bf16.msra.mxu0 %v1566
        %1614 = vmatprep.subr.bf16.mxu0 %v1570
        %1615 = vmatpush1.bf16.msra.mxu0 %v1569
        %1616 = vmatprep.subr.bf16.mxu0 %v1573
        %1617 = vmatpush1.bf16.msra.mxu0 %v1572
        %1618 = vmatprep.subr.bf16.mxu0 %v1576
        %1619 = vmatpush1.bf16.msra.mxu0 %v1575
        %1620 = vmatprep.subr.bf16.mxu0 %v1579
        %1621 = vmatpush1.bf16.msra.mxu0 %v1578
        %1622 = vmatprep.subr.bf16.mxu0 %v1582
        %1623 = vmatpush1.bf16.msra.mxu0 %v1581
        %1624 = vmatprep.subr.bf16.mxu0 0
        %1625 = vmatpush1.bf16.msra.mxu0 0
        %1626 = vmatprep.subr.bf16.mxu0 0
        %1627 = vmatpush1.bf16.msra.mxu0 0
        %1628 = vmatprep.subr.bf16.mxu0 0
        %1629 = vmatpush1.bf16.msra.mxu0 0
        %1630 = vmatprep.subr.bf16.mxu0 0
        %1631 = vmatpush1.bf16.msra.mxu0 0
        %1632 = vmatprep.subr.bf16.mxu0 0
        %1633 = vmatpush1.bf16.msra.mxu0 0
        %1634 = vmatprep.subr.bf16.mxu0 0
        %1635 = vmatpush1.bf16.msra.mxu0 0
        %1636 = vmatprep.subr.bf16.mxu0 0
        %1637 = vmatpush1.bf16.msra.mxu0 0
        %1638 = vmatprep.subr.bf16.mxu0 0
        %1639 = vmatpush1.bf16.msra.mxu0 0
        %1640 = vmatprep.mubr.bf16.mxu0 0
        %1641 = vmatmul.mubr.bf16.gmra.mrb[0].mxu0 %v1429
        %v1642 = vpop.f32.mrb[0].mxu0
        %v1643 = vadd.f32 %v1468, %v1642
        %v1644 = vpop.f32.mrb[0].mxu0
        %v1645 = vadd.f32 %v1472, %v1644
        %v1646 = vpop.f32.mrb[0].mxu0
        %v1647 = vadd.f32 %v1468, %v1646
        %v1648 = vpop.f32.mrb[0].mxu0
        %v1649 = vadd.f32 %v1472, %v1648
        %1650 = vmatprep.mubr.bf16.mxu0 0
        %1651 = vmatmul.mubr.bf16.gmra.mrb[0].mxu0 %v1430
        %v1652 = vpop.f32.mrb[0].mxu0
        %v1653 = vadd.f32 %v1468, %v1652
        %v1654 = vpop.f32.mrb[0].mxu0
        %v1655 = vadd.f32 %v1472, %v1654
        %v1656 = vpop.f32.mrb[0].mxu0
        %v1657 = vadd.f32 %v1468, %v1656
        %v1658 = vpop.f32.mrb[0].mxu0
        %v1659 = vadd.f32 %v1472, %v1658
        %1660 = vdwg.mxu0
        %1661 = vmatprep.subr.bf16.mxu0 0
        %1662 = vmatpush1.bf16.msra.mxu0 %v1562
        %1663 = vmatprep.subr.bf16.mxu0 0
        %1664 = vmatpush1.bf16.msra.mxu0 %v1565
        %1665 = vmatprep.subr.bf16.mxu0 0
        %1666 = vmatpush1.bf16.msra.mxu0 %v1568
        %1667 = vmatprep.subr.bf16.mxu0 0
        %1668 = vmatpush1.bf16.msra.mxu0 %v1571
        %1669 = vmatprep.subr.bf16.mxu0 0
        %1670 = vmatpush1.bf16.msra.mxu0 %v1574
        %1671 = vmatprep.subr.bf16.mxu0 0
        %1672 = vmatpush1.bf16.msra.mxu0 %v1577
        %1673 = vmatprep.subr.bf16.mxu0 0
        %1674 = vmatpush1.bf16.msra.mxu0 %v1580
        %1675 = vmatprep.subr.bf16.mxu0 0
        %1676 = vmatpush1.bf16.msra.mxu0 %v1583
        %1677 = vmatprep.subr.bf16.mxu0 0
        %1678 = vmatpush1.bf16.msra.mxu0 0
        %1679 = vmatprep.subr.bf16.mxu0 0
        %1680 = vmatpush1.bf16.msra.mxu0 0
        %1681 = vmatprep.subr.bf16.mxu0 0
        %1682 = vmatpush1.bf16.msra.mxu0 0
        %1683 = vmatprep.subr.bf16.mxu0 0
        %1684 = vmatpush1.bf16.msra.mxu0 0
        %1685 = vmatprep.subr.bf16.mxu0 0
        %1686 = vmatpush1.bf16.msra.mxu0 0
        %1687 = vmatprep.subr.bf16.mxu0 0
        %1688 = vmatpush1.bf16.msra.mxu0 0
        %1689 = vmatprep.subr.bf16.mxu0 0
        %1690 = vmatpush1.bf16.msra.mxu0 0
        %1691 = vmatprep.subr.bf16.mxu0 0
        %1692 = vmatpush1.bf16.msra.mxu0 0
        %1693 = vmatprep.mubr.bf16.mxu0 0
        %1694 = vmatmul.mubr.bf16.gmra.mrb[0].mxu0 %v1429
        %v1695 = vpop.f32.mrb[0].mxu0
        %v1696 = vadd.f32 %v1476, %v1695
        %v1697 = vpop.f32.mrb[0].mxu0
        %v1698 = vpop.f32.mrb[0].mxu0
        %v1699 = vadd.f32 %v1476, %v1698
        %v1700 = vpop.f32.mrb[0].mxu0
        %1701 = vmatprep.mubr.bf16.mxu0 0
        %1702 = vmatmul.mubr.bf16.gmra.mrb[0].mxu0 %v1430
        %v1703 = vpop.f32.mrb[0].mxu0
        %v1704 = vadd.f32 %v1476, %v1703
        %v1705 = vpop.f32.mrb[0].mxu0
        %v1706 = vpop.f32.mrb[0].mxu0
        %v1707 = vadd.f32 %v1476, %v1706
        %v1708 = vpop.f32.mrb[0].mxu0
        %1709 = vdwg.mxu0
        %v1710 = vpack.c.bf16 %v1647, %v1643
        %v1711 = vpack.c.bf16 %v1649, %v1645
        %v1712 = vpack.c.bf16 %v1699, %v1696
        %v1713 = vpack.c.bf16 %v1657, %v1653
        %v1714 = vpack.c.bf16 %v1659, %v1655
        %v1715 = vpack.c.bf16 %v1707, %v1704
        %v1716 = vlaneseq
        %v1717 = vand.u32 %v1716, 127
        %vm1718 = vcmp.ge.s32.totalorder %v1717, 0
        %vm1719 = vcmp.lt.s32.totalorder %v1717, 16
        %vm1720 = vmand %vm1718, %vm1719
        %v1721 = vsel %vm1720, 1, 0
        %v1722 = vcvt.s32.f32 %v1721
        %v1723 = vpack.c.bf16 %v1722, %v1722
        %v1724 = vmul.bf16 %v1711, %v1723
        %v1725 = vmul.bf16 %v1714, %v1723
        %1726 = vmatprep.subr.bf16.mxu0 0
        %1727 = vmatpush1.bf16.xpose.msra.mxu0 %v1724
        %1728 = vmatprep.subr.bf16.mxu0 0
        %1729 = vmatpush1.bf16.xpose.msra.mxu0 0
        %1730 = vmatprep.subr.bf16.mxu0 0
        %1731 = vmatpush1.bf16.xpose.msra.mxu0 0
        %1732 = vmatprep.subr.bf16.mxu0 0
        %1733 = vmatpush1.bf16.xpose.msra.mxu0 0
        %1734 = vmatprep.subr.bf16.mxu0 0
        %1735 = vmatpush1.bf16.xpose.msra.mxu0 0
        %1736 = vmatprep.subr.bf16.mxu0 0
        %1737 = vmatpush1.bf16.xpose.msra.mxu0 0
        %1738 = vmatprep.subr.bf16.mxu0 0
        %1739 = vmatpush1.bf16.xpose.msra.mxu0 0
        %1740 = vmatprep.subr.bf16.mxu0 0
        %1741 = vmatpush1.bf16.xpose.msra.mxu0 0
        %1742 = vmatprep.subr.bf16.mxu0 0
        %1743 = vmatpush1.bf16.xpose.msra.mxu0 0
        %1744 = vmatprep.subr.bf16.mxu0 0
        %1745 = vmatpush1.bf16.xpose.msra.mxu0 0
        %1746 = vmatprep.subr.bf16.mxu0 0
        %1747 = vmatpush1.bf16.xpose.msra.mxu0 0
        %1748 = vmatprep.subr.bf16.mxu0 0
        %1749 = vmatpush1.bf16.xpose.msra.mxu0 0
        %1750 = vmatprep.subr.bf16.mxu0 0
        %1751 = vmatpush1.bf16.xpose.msra.mxu0 0
        %1752 = vmatprep.subr.bf16.mxu0 0
        %1753 = vmatpush1.bf16.xpose.msra.mxu0 0
        %1754 = vmatprep.subr.bf16.mxu0 0
        %1755 = vmatpush1.bf16.xpose.msra.mxu0 0
        %1756 = vmatprep.subr.bf16.mxu0 0
        %1757 = vmatpush1.bf16.xpose.msra.mxu0 0
        %1758 = vmatprep.mubr.bf16.mxu0 0
        %1759 = vmatmul.mubr.bf16.gmra.mrb[0].mxu0 %v1710
        %v1760 = vpop.f32.mrb[0].mxu0
        %v1761 = vadd.f32 0.0, %v1760
        %v1762 = vpop.f32.mrb[0].mxu0
        %v1763 = vpop.f32.mrb[0].mxu0
        %v1764 = vadd.f32 0.0, %v1763
        %v1765 = vpop.f32.mrb[0].mxu0
        %1766 = vdwg.mxu0
        %1767 = vmatprep.subr.bf16.mxu0 0
        %1768 = vmatpush1.bf16.xpose.msra.mxu0 %v1725
        %1769 = vmatprep.subr.bf16.mxu0 0
        %1770 = vmatpush1.bf16.xpose.msra.mxu0 0
        %1771 = vmatprep.subr.bf16.mxu0 0
        %1772 = vmatpush1.bf16.xpose.msra.mxu0 0
        %1773 = vmatprep.subr.bf16.mxu0 0
        %1774 = vmatpush1.bf16.xpose.msra.mxu0 0
        %1775 = vmatprep.subr.bf16.mxu0 0
        %1776 = vmatpush1.bf16.xpose.msra.mxu0 0
        %1777 = vmatprep.subr.bf16.mxu0 0
        %1778 = vmatpush1.bf16.xpose.msra.mxu0 0
        %1779 = vmatprep.subr.bf16.mxu0 0
        %1780 = vmatpush1.bf16.xpose.msra.mxu0 0
        %1781 = vmatprep.subr.bf16.mxu0 0
        %1782 = vmatpush1.bf16.xpose.msra.mxu0 0
        %1783 = vmatprep.subr.bf16.mxu0 0
        %1784 = vmatpush1.bf16.xpose.msra.mxu0 0
        %1785 = vmatprep.subr.bf16.mxu0 0
        %1786 = vmatpush1.bf16.xpose.msra.mxu0 0
        %1787 = vmatprep.subr.bf16.mxu0 0
        %1788 = vmatpush1.bf16.xpose.msra.mxu0 0
        %1789 = vmatprep.subr.bf16.mxu0 0
        %1790 = vmatpush1.bf16.xpose.msra.mxu0 0
        %1791 = vmatprep.subr.bf16.mxu0 0
        %1792 = vmatpush1.bf16.xpose.msra.mxu0 0
        %1793 = vmatprep.subr.bf16.mxu0 0
        %1794 = vmatpush1.bf16.xpose.msra.mxu0 0
        %1795 = vmatprep.subr.bf16.mxu0 0
        %1796 = vmatpush1.bf16.xpose.msra.mxu0 0
        %1797 = vmatprep.subr.bf16.mxu0 0
        %1798 = vmatpush1.bf16.xpose.msra.mxu0 0
        %1799 = vmatprep.mubr.bf16.mxu0 0
        %1800 = vmatmul.mubr.bf16.gmra.mrb[0].mxu0 %v1713
        %v1801 = vpop.f32.mrb[0].mxu0
        %v1802 = vadd.f32 0.0, %v1801
        %v1803 = vpop.f32.mrb[0].mxu0
        %v1804 = vpop.f32.mrb[0].mxu0
        %v1805 = vadd.f32 0.0, %v1804
        %v1806 = vpop.f32.mrb[0].mxu0
        %1807 = vdwg.mxu0
        %vm1808 = vcmask 130048
        %v1809 = vsel %vm1808, %v1761, -inf
        %1810 = vmax.xlane.f32.xlu0 %v1809
        %v1811 = vpop.xlane.xlu0 %1810
        %v1812 = vsel %vm1808, %v1764, -inf
        %1813 = vmax.xlane.f32.xlu0 %v1812
        %v1814 = vpop.xlane.xlu0 %1813
        %v1815 = vsel %vm1808, %v1802, -inf
        %1816 = vmax.xlane.f32.xlu0 %v1815
        %v1817 = vpop.xlane.xlu0 %1816
        %v1818 = vsel %vm1808, %v1805, -inf
        %1819 = vmax.xlane.f32.xlu0 %v1818
        %v1820 = vpop.xlane.xlu0 %1819
        %v1821 = vsub.f32 %v1761, %v1811
        %v1822 = vsub.f32 %v1764, %v1814
        %v1823 = vsub.f32 %v1802, %v1817
        %v1824 = vsub.f32 %v1805, %v1820
        %v1825 = vmul.f32 %v1821, 1.442695
        %v1826 = vpow.pop %v1825
        %v1827 = vmul.f32 %v1822, 1.442695
        %v1828 = vpow.pop %v1827
        %v1829 = vmul.f32 %v1823, 1.442695
        %v1830 = vpow.pop %v1829
        %v1831 = vmul.f32 %v1824, 1.442695
        %v1832 = vpow.pop %v1831
        %v1833 = vsel %vm1808, %v1826, 0.0
        %1834 = vadd.xlane.f32.xlu0 %v1833
        %v1835 = vpop.xlane.xlu0 %1834
        %v1836 = vsel %vm1808, %v1828, 0.0
        %1837 = vadd.xlane.f32.xlu0 %v1836
        %v1838 = vpop.xlane.xlu0 %1837
        %v1839 = vsel %vm1808, %v1830, 0.0
        %1840 = vadd.xlane.f32.xlu0 %v1839
        %v1841 = vpop.xlane.xlu0 %1840
        %v1842 = vsel %vm1808, %v1832, 0.0
        %1843 = vadd.xlane.f32.xlu0 %v1842
        %v1844 = vpop.xlane.xlu0 %1843
        %v1845 = vrcp.pop %v1835
        %v1846 = vrcp.pop %v1838
        %v1847 = vrcp.pop %v1841
        %v1848 = vrcp.pop %v1844
        %v1849 = vmul.f32 %v1826, %v1845
        %v1850 = vmul.f32 %v1828, %v1846
        %v1851 = vmul.f32 %v1830, %v1847
        %v1852 = vmul.f32 %v1832, %v1848
        %v1853 = vpack.c.bf16 %v1850, %v1849
        %v1854 = vpack.c.bf16 %v1852, %v1851
        %v1855 = vmul.bf16 %v1712, %v1723
        %v1856 = vmul.bf16 %v1715, %v1723
        %vm1857 = vcmp.ge.s32.totalorder %v1717, 16
        %vm1858 = vcmp.lt.s32.totalorder %v1717, 32
        %vm1859 = vmand %vm1857, %vm1858
        %v1860 = vsel %vm1859, 1, 0
        %v1861 = vcvt.s32.f32 %v1860
        %v1862 = vpack.c.bf16 %v1861, %v1861
        %v1863 = vmul.bf16 %v1711, %v1862
        %v1864 = vmul.bf16 %v1714, %v1862
        %1865 = vmatprep.subr.bf16.mxu0 0
        %1866 = vmatpush1.bf16.xpose.msra.mxu0 %v1863
        %1867 = vmatprep.subr.bf16.mxu0 0
        %1868 = vmatpush1.bf16.xpose.msra.mxu0 0
        %1869 = vmatprep.subr.bf16.mxu0 0
        %1870 = vmatpush1.bf16.xpose.msra.mxu0 0
        %1871 = vmatprep.subr.bf16.mxu0 0
        %1872 = vmatpush1.bf16.xpose.msra.mxu0 0
        %1873 = vmatprep.subr.bf16.mxu0 0
        %1874 = vmatpush1.bf16.xpose.msra.mxu0 0
        %1875 = vmatprep.subr.bf16.mxu0 0
        %1876 = vmatpush1.bf16.xpose.msra.mxu0 0
        %1877 = vmatprep.subr.bf16.mxu0 0
        %1878 = vmatpush1.bf16.xpose.msra.mxu0 0
        %1879 = vmatprep.subr.bf16.mxu0 0
        %1880 = vmatpush1.bf16.xpose.msra.mxu0 0
        %1881 = vmatprep.subr.bf16.mxu0 0
        %1882 = vmatpush1.bf16.xpose.msra.mxu0 0
        %1883 = vmatprep.subr.bf16.mxu0 0
        %1884 = vmatpush1.bf16.xpose.msra.mxu0 0
        %1885 = vmatprep.subr.bf16.mxu0 0
        %1886 = vmatpush1.bf16.xpose.msra.mxu0 0
        %1887 = vmatprep.subr.bf16.mxu0 0
        %1888 = vmatpush1.bf16.xpose.msra.mxu0 0
        %1889 = vmatprep.subr.bf16.mxu0 0
        %1890 = vmatpush1.bf16.xpose.msra.mxu0 0
        %1891 = vmatprep.subr.bf16.mxu0 0
        %1892 = vmatpush1.bf16.xpose.msra.mxu0 0
        %1893 = vmatprep.subr.bf16.mxu0 0
        %1894 = vmatpush1.bf16.xpose.msra.mxu0 0
        %1895 = vmatprep.subr.bf16.mxu0 0
        %1896 = vmatpush1.bf16.xpose.msra.mxu0 0
        %1897 = vmatprep.mubr.bf16.mxu0 0
        %1898 = vmatmul.mubr.bf16.gmra.mrb[0].mxu0 %v1710
        %v1899 = vpop.f32.mrb[0].mxu0
        %v1900 = vadd.f32 0.0, %v1899
        %v1901 = vpop.f32.mrb[0].mxu0
        %v1902 = vpop.f32.mrb[0].mxu0
        %v1903 = vadd.f32 0.0, %v1902
        %v1904 = vpop.f32.mrb[0].mxu0
        %1905 = vdwg.mxu0
        %1906 = vmatprep.subr.bf16.mxu0 0
        %1907 = vmatpush1.bf16.xpose.msra.mxu0 %v1864
        %1908 = vmatprep.subr.bf16.mxu0 0
        %1909 = vmatpush1.bf16.xpose.msra.mxu0 0
        %1910 = vmatprep.subr.bf16.mxu0 0
        %1911 = vmatpush1.bf16.xpose.msra.mxu0 0
        %1912 = vmatprep.subr.bf16.mxu0 0
        %1913 = vmatpush1.bf16.xpose.msra.mxu0 0
        %1914 = vmatprep.subr.bf16.mxu0 0
        %1915 = vmatpush1.bf16.xpose.msra.mxu0 0
        %1916 = vmatprep.subr.bf16.mxu0 0
        %1917 = vmatpush1.bf16.xpose.msra.mxu0 0
        %1918 = vmatprep.subr.bf16.mxu0 0
        %1919 = vmatpush1.bf16.xpose.msra.mxu0 0
        %1920 = vmatprep.subr.bf16.mxu0 0
        %1921 = vmatpush1.bf16.xpose.msra.mxu0 0
        %1922 = vmatprep.subr.bf16.mxu0 0
        %1923 = vmatpush1.bf16.xpose.msra.mxu0 0
        %1924 = vmatprep.subr.bf16.mxu0 0
        %1925 = vmatpush1.bf16.xpose.msra.mxu0 0
        %1926 = vmatprep.subr.bf16.mxu0 0
        %1927 = vmatpush1.bf16.xpose.msra.mxu0 0
        %1928 = vmatprep.subr.bf16.mxu0 0
        %1929 = vmatpush1.bf16.xpose.msra.mxu0 0
        %1930 = vmatprep.subr.bf16.mxu0 0
        %1931 = vmatpush1.bf16.xpose.msra.mxu0 0
        %1932 = vmatprep.subr.bf16.mxu0 0
        %1933 = vmatpush1.bf16.xpose.msra.mxu0 0
        %1934 = vmatprep.subr.bf16.mxu0 0
        %1935 = vmatpush1.bf16.xpose.msra.mxu0 0
        %1936 = vmatprep.subr.bf16.mxu0 0
        %1937 = vmatpush1.bf16.xpose.msra.mxu0 0
        %1938 = vmatprep.mubr.bf16.mxu0 0
        %1939 = vmatmul.mubr.bf16.gmra.mrb[0].mxu0 %v1713
        %v1940 = vpop.f32.mrb[0].mxu0
        %v1941 = vadd.f32 0.0, %v1940
        %v1942 = vpop.f32.mrb[0].mxu0
        %v1943 = vpop.f32.mrb[0].mxu0
        %v1944 = vadd.f32 0.0, %v1943
        %v1945 = vpop.f32.mrb[0].mxu0
        %1946 = vdwg.mxu0
        %v1947 = vsel %vm1808, %v1900, -inf
        %1948 = vmax.xlane.f32.xlu0 %v1947
        %v1949 = vpop.xlane.xlu0 %1948
        %v1950 = vsel %vm1808, %v1903, -inf
        %1951 = vmax.xlane.f32.xlu0 %v1950
        %v1952 = vpop.xlane.xlu0 %1951
        %v1953 = vsel %vm1808, %v1941, -inf
        %1954 = vmax.xlane.f32.xlu0 %v1953
        %v1955 = vpop.xlane.xlu0 %1954
        %v1956 = vsel %vm1808, %v1944, -inf
        %1957 = vmax.xlane.f32.xlu0 %v1956
        %v1958 = vpop.xlane.xlu0 %1957
        %v1959 = vsub.f32 %v1900, %v1949
        %v1960 = vsub.f32 %v1903, %v1952
        %v1961 = vsub.f32 %v1941, %v1955
        %v1962 = vsub.f32 %v1944, %v1958
        %v1963 = vmul.f32 %v1959, 1.442695
        %v1964 = vpow.pop %v1963
        %v1965 = vmul.f32 %v1960, 1.442695
        %v1966 = vpow.pop %v1965
        %v1967 = vmul.f32 %v1961, 1.442695
        %v1968 = vpow.pop %v1967
        %v1969 = vmul.f32 %v1962, 1.442695
        %v1970 = vpow.pop %v1969
        %v1971 = vsel %vm1808, %v1964, 0.0
        %1972 = vadd.xlane.f32.xlu0 %v1971
        %v1973 = vpop.xlane.xlu0 %1972
        %v1974 = vsel %vm1808, %v1966, 0.0
        %1975 = vadd.xlane.f32.xlu0 %v1974
        %v1976 = vpop.xlane.xlu0 %1975
        %v1977 = vsel %vm1808, %v1968, 0.0
        %1978 = vadd.xlane.f32.xlu0 %v1977
        %v1979 = vpop.xlane.xlu0 %1978
        %v1980 = vsel %vm1808, %v1970, 0.0
        %1981 = vadd.xlane.f32.xlu0 %v1980
        %v1982 = vpop.xlane.xlu0 %1981
        %v1983 = vrcp.pop %v1973
        %v1984 = vrcp.pop %v1976
        %v1985 = vrcp.pop %v1979
        %v1986 = vrcp.pop %v1982
        %v1987 = vmul.f32 %v1964, %v1983
        %v1988 = vmul.f32 %v1966, %v1984
        %v1989 = vmul.f32 %v1968, %v1985
        %v1990 = vmul.f32 %v1970, %v1986
        %v1991 = vpack.c.bf16 %v1988, %v1987
        %v1992 = vpack.c.bf16 %v1990, %v1989
        %v1993 = vmul.bf16 %v1712, %v1862
        %v1994 = vmul.bf16 %v1715, %v1862
        %v1996 = vsel %vm1808, %v1991, 0
        %1998 = vmatprep.subr.bf16.mxu0 0
        %1999 = vmatpush1.bf16.msra.mxu0 %v1993
        %2000 = vmatprep.subr.bf16.mxu0 0
        %2001 = vmatpush1.bf16.msra.mxu0 0
        %2002 = vmatprep.subr.bf16.mxu0 0
        %2003 = vmatpush1.bf16.msra.mxu0 0
        %2004 = vmatprep.subr.bf16.mxu0 0
        %2005 = vmatpush1.bf16.msra.mxu0 0
        %2006 = vmatprep.subr.bf16.mxu0 0
        %2007 = vmatpush1.bf16.msra.mxu0 0
        %2008 = vmatprep.subr.bf16.mxu0 0
        %2009 = vmatpush1.bf16.msra.mxu0 0
        %2010 = vmatprep.subr.bf16.mxu0 0
        %2011 = vmatpush1.bf16.msra.mxu0 0
        %2012 = vmatprep.subr.bf16.mxu0 0
        %2013 = vmatpush1.bf16.msra.mxu0 0
        %2014 = vmatprep.subr.bf16.mxu0 0
        %2015 = vmatpush1.bf16.msra.mxu0 0
        %2016 = vmatprep.subr.bf16.mxu0 0
        %2017 = vmatpush1.bf16.msra.mxu0 0
        %2018 = vmatprep.subr.bf16.mxu0 0
        %2019 = vmatpush1.bf16.msra.mxu0 0
        %2020 = vmatprep.subr.bf16.mxu0 0
        %2021 = vmatpush1.bf16.msra.mxu0 0
        %2022 = vmatprep.subr.bf16.mxu0 0
        %2023 = vmatpush1.bf16.msra.mxu0 0
        %2024 = vmatprep.subr.bf16.mxu0 0
        %2025 = vmatpush1.bf16.msra.mxu0 0
        %2026 = vmatprep.subr.bf16.mxu0 0
        %2027 = vmatpush1.bf16.msra.mxu0 0
        %2028 = vmatprep.subr.bf16.mxu0 0
        %2029 = vmatpush1.bf16.msra.mxu0 0
        %2030 = vmatprep.mubr.bf16.mxu0 0
        %2031 = vmatmul.mubr.bf16.gmra.mrb[0].mxu0 %v1996
        %v2032 = vpop.f32.mrb[0].mxu0
        %v2033 = vadd.f32 0.0, %v2032
        %v2034 = vpop.f32.mrb[0].mxu0
        %v2035 = vpop.f32.mrb[0].mxu0
        %v2036 = vadd.f32 0.0, %v2035
        %v2037 = vpop.f32.mrb[0].mxu0
        %2038 = vdwg.mxu0
        %v2040 = vsel %vm1808, %v1992, 0
        %2042 = vmatprep.subr.bf16.mxu0 0
        %2043 = vmatpush1.bf16.msra.mxu0 %v1994
        %2044 = vmatprep.subr.bf16.mxu0 0
        %2045 = vmatpush1.bf16.msra.mxu0 0
        %2046 = vmatprep.subr.bf16.mxu0 0
        %2047 = vmatpush1.bf16.msra.mxu0 0
        %2048 = vmatprep.subr.bf16.mxu0 0
        %2049 = vmatpush1.bf16.msra.mxu0 0
        %2050 = vmatprep.subr.bf16.mxu0 0
        %2051 = vmatpush1.bf16.msra.mxu0 0
        %2052 = vmatprep.subr.bf16.mxu0 0
        %2053 = vmatpush1.bf16.msra.mxu0 0
        %2054 = vmatprep.subr.bf16.mxu0 0
        %2055 = vmatpush1.bf16.msra.mxu0 0
        %2056 = vmatprep.subr.bf16.mxu0 0
        %2057 = vmatpush1.bf16.msra.mxu0 0
        %2058 = vmatprep.subr.bf16.mxu0 0
        %2059 = vmatpush1.bf16.msra.mxu0 0
        %2060 = vmatprep.subr.bf16.mxu0 0
        %2061 = vmatpush1.bf16.msra.mxu0 0
        %2062 = vmatprep.subr.bf16.mxu0 0
        %2063 = vmatpush1.bf16.msra.mxu0 0
        %2064 = vmatprep.subr.bf16.mxu0 0
        %2065 = vmatpush1.bf16.msra.mxu0 0
        %2066 = vmatprep.subr.bf16.mxu0 0
        %2067 = vmatpush1.bf16.msra.mxu0 0
        %2068 = vmatprep.subr.bf16.mxu0 0
        %2069 = vmatpush1.bf16.msra.mxu0 0
        %2070 = vmatprep.subr.bf16.mxu0 0
        %2071 = vmatpush1.bf16.msra.mxu0 0
        %2072 = vmatprep.subr.bf16.mxu0 0
        %2073 = vmatpush1.bf16.msra.mxu0 0
        %2074 = vmatprep.mubr.bf16.mxu0 0
        %2075 = vmatmul.mubr.bf16.gmra.mrb[0].mxu0 %v2040
        %v2076 = vpop.f32.mrb[0].mxu0
        %v2077 = vadd.f32 0.0, %v2076
        %v2078 = vpop.f32.mrb[0].mxu0
        %v2079 = vpop.f32.mrb[0].mxu0
        %v2080 = vadd.f32 0.0, %v2079
        %v2081 = vpop.f32.mrb[0].mxu0
        %2082 = vdwg.mxu0
        %v2084 = vsel %vm1808, %v1853, 0
        %2086 = vmatprep.subr.bf16.mxu0 0
        %2087 = vmatpush1.bf16.msra.mxu0 %v1855
        %2088 = vmatprep.subr.bf16.mxu0 0
        %2089 = vmatpush1.bf16.msra.mxu0 0
        %2090 = vmatprep.subr.bf16.mxu0 0
        %2091 = vmatpush1.bf16.msra.mxu0 0
        %2092 = vmatprep.subr.bf16.mxu0 0
        %2093 = vmatpush1.bf16.msra.mxu0 0
        %2094 = vmatprep.subr.bf16.mxu0 0
        %2095 = vmatpush1.bf16.msra.mxu0 0
        %2096 = vmatprep.subr.bf16.mxu0 0
        %2097 = vmatpush1.bf16.msra.mxu0 0
        %2098 = vmatprep.subr.bf16.mxu0 0
        %2099 = vmatpush1.bf16.msra.mxu0 0
        %2100 = vmatprep.subr.bf16.mxu0 0
        %2101 = vmatpush1.bf16.msra.mxu0 0
        %2102 = vmatprep.subr.bf16.mxu0 0
        %2103 = vmatpush1.bf16.msra.mxu0 0
        %2104 = vmatprep.subr.bf16.mxu0 0
        %2105 = vmatpush1.bf16.msra.mxu0 0
        %2106 = vmatprep.subr.bf16.mxu0 0
        %2107 = vmatpush1.bf16.msra.mxu0 0
        %2108 = vmatprep.subr.bf16.mxu0 0
        %2109 = vmatpush1.bf16.msra.mxu0 0
        %2110 = vmatprep.subr.bf16.mxu0 0
        %2111 = vmatpush1.bf16.msra.mxu0 0
        %2112 = vmatprep.subr.bf16.mxu0 0
        %2113 = vmatpush1.bf16.msra.mxu0 0
        %2114 = vmatprep.subr.bf16.mxu0 0
        %2115 = vmatpush1.bf16.msra.mxu0 0
        %2116 = vmatprep.subr.bf16.mxu0 0
        %2117 = vmatpush1.bf16.msra.mxu0 0
        %2118 = vmatprep.mubr.bf16.mxu0 0
        %2119 = vmatmul.mubr.bf16.gmra.mrb[0].mxu0 %v2084
        %v2120 = vpop.f32.mrb[0].mxu0
        %v2121 = vadd.f32 %v2033, %v2120
        %v2122 = vpop.f32.mrb[0].mxu0
        %v2123 = vpop.f32.mrb[0].mxu0
        %v2124 = vadd.f32 %v2036, %v2123
        %v2125 = vpop.f32.mrb[0].mxu0
        %2126 = vdwg.mxu0
        %v2128 = vsel %vm1808, %v1854, 0
        %2130 = vmatprep.subr.bf16.mxu0 0
        %2131 = vmatpush1.bf16.msra.mxu0 %v1856
        %2132 = vmatprep.subr.bf16.mxu0 0
        %2133 = vmatpush1.bf16.msra.mxu0 0
        %2134 = vmatprep.subr.bf16.mxu0 0
        %2135 = vmatpush1.bf16.msra.mxu0 0
        %2136 = vmatprep.subr.bf16.mxu0 0
        %2137 = vmatpush1.bf16.msra.mxu0 0
        %2138 = vmatprep.subr.bf16.mxu0 0
        %2139 = vmatpush1.bf16.msra.mxu0 0
        %2140 = vmatprep.subr.bf16.mxu0 0
        %2141 = vmatpush1.bf16.msra.mxu0 0
        %2142 = vmatprep.subr.bf16.mxu0 0
        %2143 = vmatpush1.bf16.msra.mxu0 0
        %2144 = vmatprep.subr.bf16.mxu0 0
        %2145 = vmatpush1.bf16.msra.mxu0 0
        %2146 = vmatprep.subr.bf16.mxu0 0
        %2147 = vmatpush1.bf16.msra.mxu0 0
        %2148 = vmatprep.subr.bf16.mxu0 0
        %2149 = vmatpush1.bf16.msra.mxu0 0
        %2150 = vmatprep.subr.bf16.mxu0 0
        %2151 = vmatpush1.bf16.msra.mxu0 0
        %2152 = vmatprep.subr.bf16.mxu0 0
        %2153 = vmatpush1.bf16.msra.mxu0 0
        %2154 = vmatprep.subr.bf16.mxu0 0
        %2155 = vmatpush1.bf16.msra.mxu0 0
        %2156 = vmatprep.subr.bf16.mxu0 0
        %2157 = vmatpush1.bf16.msra.mxu0 0
        %2158 = vmatprep.subr.bf16.mxu0 0
        %2159 = vmatpush1.bf16.msra.mxu0 0
        %2160 = vmatprep.subr.bf16.mxu0 0
        %2161 = vmatpush1.bf16.msra.mxu0 0
        %2162 = vmatprep.mubr.bf16.mxu0 0
        %2163 = vmatmul.mubr.bf16.gmra.mrb[0].mxu0 %v2128
        %v2164 = vpop.f32.mrb[0].mxu0
        %v2165 = vadd.f32 %v2077, %v2164
        %v2166 = vpop.f32.mrb[0].mxu0
        %v2167 = vpop.f32.mrb[0].mxu0
        %v2168 = vadd.f32 %v2080, %v2167
        %v2169 = vpop.f32.mrb[0].mxu0
        %2170 = vdwg.mxu0
        %vm2171 = vcmp.ge.s32.totalorder %v1717, 32
        %vm2172 = vcmp.lt.s32.totalorder %v1717, 48
        %vm2173 = vmand %vm2171, %vm2172
        %v2174 = vsel %vm2173, 1, 0
        %v2175 = vcvt.s32.f32 %v2174
        %v2176 = vpack.c.bf16 %v2175, %v2175
        %v2177 = vmul.bf16 %v1711, %v2176
        %v2178 = vmul.bf16 %v1714, %v2176
        %2179 = vmatprep.subr.bf16.mxu0 0
        %2180 = vmatpush1.bf16.xpose.msra.mxu0 %v2177
        %2181 = vmatprep.subr.bf16.mxu0 0
        %2182 = vmatpush1.bf16.xpose.msra.mxu0 0
        %2183 = vmatprep.subr.bf16.mxu0 0
        %2184 = vmatpush1.bf16.xpose.msra.mxu0 0
        %2185 = vmatprep.subr.bf16.mxu0 0
        %2186 = vmatpush1.bf16.xpose.msra.mxu0 0
        %2187 = vmatprep.subr.bf16.mxu0 0
        %2188 = vmatpush1.bf16.xpose.msra.mxu0 0
        %2189 = vmatprep.subr.bf16.mxu0 0
        %2190 = vmatpush1.bf16.xpose.msra.mxu0 0
        %2191 = vmatprep.subr.bf16.mxu0 0
        %2192 = vmatpush1.bf16.xpose.msra.mxu0 0
        %2193 = vmatprep.subr.bf16.mxu0 0
        %2194 = vmatpush1.bf16.xpose.msra.mxu0 0
        %2195 = vmatprep.subr.bf16.mxu0 0
        %2196 = vmatpush1.bf16.xpose.msra.mxu0 0
        %2197 = vmatprep.subr.bf16.mxu0 0
        %2198 = vmatpush1.bf16.xpose.msra.mxu0 0
        %2199 = vmatprep.subr.bf16.mxu0 0
        %2200 = vmatpush1.bf16.xpose.msra.mxu0 0
        %2201 = vmatprep.subr.bf16.mxu0 0
        %2202 = vmatpush1.bf16.xpose.msra.mxu0 0
        %2203 = vmatprep.subr.bf16.mxu0 0
        %2204 = vmatpush1.bf16.xpose.msra.mxu0 0
        %2205 = vmatprep.subr.bf16.mxu0 0
        %2206 = vmatpush1.bf16.xpose.msra.mxu0 0
        %2207 = vmatprep.subr.bf16.mxu0 0
        %2208 = vmatpush1.bf16.xpose.msra.mxu0 0
        %2209 = vmatprep.subr.bf16.mxu0 0
        %2210 = vmatpush1.bf16.xpose.msra.mxu0 0
        %2211 = vmatprep.mubr.bf16.mxu0 0
        %2212 = vmatmul.mubr.bf16.gmra.mrb[0].mxu0 %v1710
        %v2213 = vpop.f32.mrb[0].mxu0
        %v2214 = vadd.f32 0.0, %v2213
        %v2215 = vpop.f32.mrb[0].mxu0
        %v2216 = vpop.f32.mrb[0].mxu0
        %v2217 = vadd.f32 0.0, %v2216
        %v2218 = vpop.f32.mrb[0].mxu0
        %2219 = vdwg.mxu0
        %2220 = vmatprep.subr.bf16.mxu0 0
        %2221 = vmatpush1.bf16.xpose.msra.mxu0 %v2178
        %2222 = vmatprep.subr.bf16.mxu0 0
        %2223 = vmatpush1.bf16.xpose.msra.mxu0 0
        %2224 = vmatprep.subr.bf16.mxu0 0
        %2225 = vmatpush1.bf16.xpose.msra.mxu0 0
        %2226 = vmatprep.subr.bf16.mxu0 0
        %2227 = vmatpush1.bf16.xpose.msra.mxu0 0
        %2228 = vmatprep.subr.bf16.mxu0 0
        %2229 = vmatpush1.bf16.xpose.msra.mxu0 0
        %2230 = vmatprep.subr.bf16.mxu0 0
        %2231 = vmatpush1.bf16.xpose.msra.mxu0 0
        %2232 = vmatprep.subr.bf16.mxu0 0
        %2233 = vmatpush1.bf16.xpose.msra.mxu0 0
        %2234 = vmatprep.subr.bf16.mxu0 0
        %2235 = vmatpush1.bf16.xpose.msra.mxu0 0
        %2236 = vmatprep.subr.bf16.mxu0 0
        %2237 = vmatpush1.bf16.xpose.msra.mxu0 0
        %2238 = vmatprep.subr.bf16.mxu0 0
        %2239 = vmatpush1.bf16.xpose.msra.mxu0 0
        %2240 = vmatprep.subr.bf16.mxu0 0
        %2241 = vmatpush1.bf16.xpose.msra.mxu0 0
        %2242 = vmatprep.subr.bf16.mxu0 0
        %2243 = vmatpush1.bf16.xpose.msra.mxu0 0
        %2244 = vmatprep.subr.bf16.mxu0 0
        %2245 = vmatpush1.bf16.xpose.msra.mxu0 0
        %2246 = vmatprep.subr.bf16.mxu0 0
        %2247 = vmatpush1.bf16.xpose.msra.mxu0 0
        %2248 = vmatprep.subr.bf16.mxu0 0
        %2249 = vmatpush1.bf16.xpose.msra.mxu0 0
        %2250 = vmatprep.subr.bf16.mxu0 0
        %2251 = vmatpush1.bf16.xpose.msra.mxu0 0
        %2252 = vmatprep.mubr.bf16.mxu0 0
        %2253 = vmatmul.mubr.bf16.gmra.mrb[0].mxu0 %v1713
        %v2254 = vpop.f32.mrb[0].mxu0
        %v2255 = vadd.f32 0.0, %v2254
        %v2256 = vpop.f32.mrb[0].mxu0
        %v2257 = vpop.f32.mrb[0].mxu0
        %v2258 = vadd.f32 0.0, %v2257
        %v2259 = vpop.f32.mrb[0].mxu0
        %2260 = vdwg.mxu0
        %v2261 = vsel %vm1808, %v2214, -inf
        %2262 = vmax.xlane.f32.xlu0 %v2261
        %v2263 = vpop.xlane.xlu0 %2262
        %v2264 = vsel %vm1808, %v2217, -inf
        %2265 = vmax.xlane.f32.xlu0 %v2264
        %v2266 = vpop.xlane.xlu0 %2265
        %v2267 = vsel %vm1808, %v2255, -inf
        %2268 = vmax.xlane.f32.xlu0 %v2267
        %v2269 = vpop.xlane.xlu0 %2268
        %v2270 = vsel %vm1808, %v2258, -inf
        %2271 = vmax.xlane.f32.xlu0 %v2270
        %v2272 = vpop.xlane.xlu0 %2271
        %v2273 = vsub.f32 %v2214, %v2263
        %v2274 = vsub.f32 %v2217, %v2266
        %v2275 = vsub.f32 %v2255, %v2269
        %v2276 = vsub.f32 %v2258, %v2272
        %v2277 = vmul.f32 %v2273, 1.442695
        %v2278 = vpow.pop %v2277
        %v2279 = vmul.f32 %v2274, 1.442695
        %v2280 = vpow.pop %v2279
        %v2281 = vmul.f32 %v2275, 1.442695
        %v2282 = vpow.pop %v2281
        %v2283 = vmul.f32 %v2276, 1.442695
        %v2284 = vpow.pop %v2283
        %v2285 = vsel %vm1808, %v2278, 0.0
        %2286 = vadd.xlane.f32.xlu0 %v2285
        %v2287 = vpop.xlane.xlu0 %2286
        %v2288 = vsel %vm1808, %v2280, 0.0
        %2289 = vadd.xlane.f32.xlu0 %v2288
        %v2290 = vpop.xlane.xlu0 %2289
        %v2291 = vsel %vm1808, %v2282, 0.0
        %2292 = vadd.xlane.f32.xlu0 %v2291
        %v2293 = vpop.xlane.xlu0 %2292
        %v2294 = vsel %vm1808, %v2284, 0.0
        %2295 = vadd.xlane.f32.xlu0 %v2294
        %v2296 = vpop.xlane.xlu0 %2295
        %v2297 = vrcp.pop %v2287
        %v2298 = vrcp.pop %v2290
        %v2299 = vrcp.pop %v2293
        %v2300 = vrcp.pop %v2296
        %v2301 = vmul.f32 %v2278, %v2297
        %v2302 = vmul.f32 %v2280, %v2298
        %v2303 = vmul.f32 %v2282, %v2299
        %v2304 = vmul.f32 %v2284, %v2300
        %v2305 = vpack.c.bf16 %v2302, %v2301
        %v2306 = vpack.c.bf16 %v2304, %v2303
        %v2307 = vmul.bf16 %v1712, %v2176
        %v2308 = vmul.bf16 %v1715, %v2176
        %v2310 = vsel %vm1808, %v2305, 0
        %2312 = vmatprep.subr.bf16.mxu0 0
        %2313 = vmatpush1.bf16.msra.mxu0 %v2307
        %2314 = vmatprep.subr.bf16.mxu0 0
        %2315 = vmatpush1.bf16.msra.mxu0 0
        %2316 = vmatprep.subr.bf16.mxu0 0
        %2317 = vmatpush1.bf16.msra.mxu0 0
        %2318 = vmatprep.subr.bf16.mxu0 0
        %2319 = vmatpush1.bf16.msra.mxu0 0
        %2320 = vmatprep.subr.bf16.mxu0 0
        %2321 = vmatpush1.bf16.msra.mxu0 0
        %2322 = vmatprep.subr.bf16.mxu0 0
        %2323 = vmatpush1.bf16.msra.mxu0 0
        %2324 = vmatprep.subr.bf16.mxu0 0
        %2325 = vmatpush1.bf16.msra.mxu0 0
        %2326 = vmatprep.subr.bf16.mxu0 0
        %2327 = vmatpush1.bf16.msra.mxu0 0
        %2328 = vmatprep.subr.bf16.mxu0 0
        %2329 = vmatpush1.bf16.msra.mxu0 0
        %2330 = vmatprep.subr.bf16.mxu0 0
        %2331 = vmatpush1.bf16.msra.mxu0 0
        %2332 = vmatprep.subr.bf16.mxu0 0
        %2333 = vmatpush1.bf16.msra.mxu0 0
        %2334 = vmatprep.subr.bf16.mxu0 0
        %2335 = vmatpush1.bf16.msra.mxu0 0
        %2336 = vmatprep.subr.bf16.mxu0 0
        %2337 = vmatpush1.bf16.msra.mxu0 0
        %2338 = vmatprep.subr.bf16.mxu0 0
        %2339 = vmatpush1.bf16.msra.mxu0 0
        %2340 = vmatprep.subr.bf16.mxu0 0
        %2341 = vmatpush1.bf16.msra.mxu0 0
        %2342 = vmatprep.subr.bf16.mxu0 0
        %2343 = vmatpush1.bf16.msra.mxu0 0
        %2344 = vmatprep.mubr.bf16.mxu0 0
        %2345 = vmatmul.mubr.bf16.gmra.mrb[0].mxu0 %v2310
        %v2346 = vpop.f32.mrb[0].mxu0
        %v2347 = vadd.f32 0.0, %v2346
        %v2348 = vpop.f32.mrb[0].mxu0
        %v2349 = vpop.f32.mrb[0].mxu0
        %v2350 = vadd.f32 0.0, %v2349
        %v2351 = vpop.f32.mrb[0].mxu0
        %2352 = vdwg.mxu0
        %v2354 = vsel %vm1808, %v2306, 0
        %2356 = vmatprep.subr.bf16.mxu0 0
        %2357 = vmatpush1.bf16.msra.mxu0 %v2308
        %2358 = vmatprep.subr.bf16.mxu0 0
        %2359 = vmatpush1.bf16.msra.mxu0 0
        %2360 = vmatprep.subr.bf16.mxu0 0
        %2361 = vmatpush1.bf16.msra.mxu0 0
        %2362 = vmatprep.subr.bf16.mxu0 0
        %2363 = vmatpush1.bf16.msra.mxu0 0
        %2364 = vmatprep.subr.bf16.mxu0 0
        %2365 = vmatpush1.bf16.msra.mxu0 0
        %2366 = vmatprep.subr.bf16.mxu0 0
        %2367 = vmatpush1.bf16.msra.mxu0 0
        %2368 = vmatprep.subr.bf16.mxu0 0
        %2369 = vmatpush1.bf16.msra.mxu0 0
        %2370 = vmatprep.subr.bf16.mxu0 0
        %2371 = vmatpush1.bf16.msra.mxu0 0
        %2372 = vmatprep.subr.bf16.mxu0 0
        %2373 = vmatpush1.bf16.msra.mxu0 0
        %2374 = vmatprep.subr.bf16.mxu0 0
        %2375 = vmatpush1.bf16.msra.mxu0 0
        %2376 = vmatprep.subr.bf16.mxu0 0
        %2377 = vmatpush1.bf16.msra.mxu0 0
        %2378 = vmatprep.subr.bf16.mxu0 0
        %2379 = vmatpush1.bf16.msra.mxu0 0
        %2380 = vmatprep.subr.bf16.mxu0 0
        %2381 = vmatpush1.bf16.msra.mxu0 0
        %2382 = vmatprep.subr.bf16.mxu0 0
        %2383 = vmatpush1.bf16.msra.mxu0 0
        %2384 = vmatprep.subr.bf16.mxu0 0
        %2385 = vmatpush1.bf16.msra.mxu0 0
        %2386 = vmatprep.subr.bf16.mxu0 0
        %2387 = vmatpush1.bf16.msra.mxu0 0
        %2388 = vmatprep.mubr.bf16.mxu0 0
        %2389 = vmatmul.mubr.bf16.gmra.mrb[0].mxu0 %v2354
        %v2390 = vpop.f32.mrb[0].mxu0
        %v2391 = vadd.f32 0.0, %v2390
        %v2392 = vpop.f32.mrb[0].mxu0
        %v2393 = vpop.f32.mrb[0].mxu0
        %v2394 = vadd.f32 0.0, %v2393
        %v2395 = vpop.f32.mrb[0].mxu0
        %2396 = vdwg.mxu0
        %v2397 = vadd.f32 %v2121, %v2347
        %v2398 = vadd.f32 %v2124, %v2350
        %v2399 = vadd.f32 %v2165, %v2391
        %v2400 = vadd.f32 %v2168, %v2394
        %vm2401 = vcmp.ge.s32.totalorder %v1717, 48
        %vm2402 = vcmp.lt.s32.totalorder %v1717, 64
        %vm2403 = vmand %vm2401, %vm2402
        %v2404 = vsel %vm2403, 1, 0
        %v2405 = vcvt.s32.f32 %v2404
        %v2406 = vpack.c.bf16 %v2405, %v2405
        %v2407 = vmul.bf16 %v1711, %v2406
        %v2408 = vmul.bf16 %v1714, %v2406
        %2409 = vmatprep.subr.bf16.mxu0 0
        %2410 = vmatpush1.bf16.xpose.msra.mxu0 %v2407
        %2411 = vmatprep.subr.bf16.mxu0 0
        %2412 = vmatpush1.bf16.xpose.msra.mxu0 0
        %2413 = vmatprep.subr.bf16.mxu0 0
        %2414 = vmatpush1.bf16.xpose.msra.mxu0 0
        %2415 = vmatprep.subr.bf16.mxu0 0
        %2416 = vmatpush1.bf16.xpose.msra.mxu0 0
        %2417 = vmatprep.subr.bf16.mxu0 0
        %2418 = vmatpush1.bf16.xpose.msra.mxu0 0
        %2419 = vmatprep.subr.bf16.mxu0 0
        %2420 = vmatpush1.bf16.xpose.msra.mxu0 0
        %2421 = vmatprep.subr.bf16.mxu0 0
        %2422 = vmatpush1.bf16.xpose.msra.mxu0 0
        %2423 = vmatprep.subr.bf16.mxu0 0
        %2424 = vmatpush1.bf16.xpose.msra.mxu0 0
        %2425 = vmatprep.subr.bf16.mxu0 0
        %2426 = vmatpush1.bf16.xpose.msra.mxu0 0
        %2427 = vmatprep.subr.bf16.mxu0 0
        %2428 = vmatpush1.bf16.xpose.msra.mxu0 0
        %2429 = vmatprep.subr.bf16.mxu0 0
        %2430 = vmatpush1.bf16.xpose.msra.mxu0 0
        %2431 = vmatprep.subr.bf16.mxu0 0
        %2432 = vmatpush1.bf16.xpose.msra.mxu0 0
        %2433 = vmatprep.subr.bf16.mxu0 0
        %2434 = vmatpush1.bf16.xpose.msra.mxu0 0
        %2435 = vmatprep.subr.bf16.mxu0 0
        %2436 = vmatpush1.bf16.xpose.msra.mxu0 0
        %2437 = vmatprep.subr.bf16.mxu0 0
        %2438 = vmatpush1.bf16.xpose.msra.mxu0 0
        %2439 = vmatprep.subr.bf16.mxu0 0
        %2440 = vmatpush1.bf16.xpose.msra.mxu0 0
        %2441 = vmatprep.mubr.bf16.mxu0 0
        %2442 = vmatmul.mubr.bf16.gmra.mrb[0].mxu0 %v1710
        %v2443 = vpop.f32.mrb[0].mxu0
        %v2444 = vadd.f32 0.0, %v2443
        %v2445 = vpop.f32.mrb[0].mxu0
        %v2446 = vpop.f32.mrb[0].mxu0
        %v2447 = vadd.f32 0.0, %v2446
        %v2448 = vpop.f32.mrb[0].mxu0
        %2449 = vdwg.mxu0
        %2450 = vmatprep.subr.bf16.mxu0 0
        %2451 = vmatpush1.bf16.xpose.msra.mxu0 %v2408
        %2452 = vmatprep.subr.bf16.mxu0 0
        %2453 = vmatpush1.bf16.xpose.msra.mxu0 0
        %2454 = vmatprep.subr.bf16.mxu0 0
        %2455 = vmatpush1.bf16.xpose.msra.mxu0 0
        %2456 = vmatprep.subr.bf16.mxu0 0
        %2457 = vmatpush1.bf16.xpose.msra.mxu0 0
        %2458 = vmatprep.subr.bf16.mxu0 0
        %2459 = vmatpush1.bf16.xpose.msra.mxu0 0
        %2460 = vmatprep.subr.bf16.mxu0 0
        %2461 = vmatpush1.bf16.xpose.msra.mxu0 0
        %2462 = vmatprep.subr.bf16.mxu0 0
        %2463 = vmatpush1.bf16.xpose.msra.mxu0 0
        %2464 = vmatprep.subr.bf16.mxu0 0
        %2465 = vmatpush1.bf16.xpose.msra.mxu0 0
        %2466 = vmatprep.subr.bf16.mxu0 0
        %2467 = vmatpush1.bf16.xpose.msra.mxu0 0
        %2468 = vmatprep.subr.bf16.mxu0 0
        %2469 = vmatpush1.bf16.xpose.msra.mxu0 0
        %2470 = vmatprep.subr.bf16.mxu0 0
        %2471 = vmatpush1.bf16.xpose.msra.mxu0 0
        %2472 = vmatprep.subr.bf16.mxu0 0
        %2473 = vmatpush1.bf16.xpose.msra.mxu0 0
        %2474 = vmatprep.subr.bf16.mxu0 0
        %2475 = vmatpush1.bf16.xpose.msra.mxu0 0
        %2476 = vmatprep.subr.bf16.mxu0 0
        %2477 = vmatpush1.bf16.xpose.msra.mxu0 0
        %2478 = vmatprep.subr.bf16.mxu0 0
        %2479 = vmatpush1.bf16.xpose.msra.mxu0 0
        %2480 = vmatprep.subr.bf16.mxu0 0
        %2481 = vmatpush1.bf16.xpose.msra.mxu0 0
        %2482 = vmatprep.mubr.bf16.mxu0 0
        %2483 = vmatmul.mubr.bf16.gmra.mrb[0].mxu0 %v1713
        %v2484 = vpop.f32.mrb[0].mxu0
        %v2485 = vadd.f32 0.0, %v2484
        %v2486 = vpop.f32.mrb[0].mxu0
        %v2487 = vpop.f32.mrb[0].mxu0
        %v2488 = vadd.f32 0.0, %v2487
        %v2489 = vpop.f32.mrb[0].mxu0
        %2490 = vdwg.mxu0
        %v2491 = vsel %vm1808, %v2444, -inf
        %2492 = vmax.xlane.f32.xlu0 %v2491
        %v2493 = vpop.xlane.xlu0 %2492
        %v2494 = vsel %vm1808, %v2447, -inf
        %2495 = vmax.xlane.f32.xlu0 %v2494
        %v2496 = vpop.xlane.xlu0 %2495
        %v2497 = vsel %vm1808, %v2485, -inf
        %2498 = vmax.xlane.f32.xlu0 %v2497
        %v2499 = vpop.xlane.xlu0 %2498
        %v2500 = vsel %vm1808, %v2488, -inf
        %2501 = vmax.xlane.f32.xlu0 %v2500
        %v2502 = vpop.xlane.xlu0 %2501
        %v2503 = vsub.f32 %v2444, %v2493
        %v2504 = vsub.f32 %v2447, %v2496
        %v2505 = vsub.f32 %v2485, %v2499
        %v2506 = vsub.f32 %v2488, %v2502
        %v2507 = vmul.f32 %v2503, 1.442695
        %v2508 = vpow.pop %v2507
        %v2509 = vmul.f32 %v2504, 1.442695
        %v2510 = vpow.pop %v2509
        %v2511 = vmul.f32 %v2505, 1.442695
        %v2512 = vpow.pop %v2511
        %v2513 = vmul.f32 %v2506, 1.442695
        %v2514 = vpow.pop %v2513
        %v2515 = vsel %vm1808, %v2508, 0.0
        %2516 = vadd.xlane.f32.xlu0 %v2515
        %v2517 = vpop.xlane.xlu0 %2516
        %v2518 = vsel %vm1808, %v2510, 0.0
        %2519 = vadd.xlane.f32.xlu0 %v2518
        %v2520 = vpop.xlane.xlu0 %2519
        %v2521 = vsel %vm1808, %v2512, 0.0
        %2522 = vadd.xlane.f32.xlu0 %v2521
        %v2523 = vpop.xlane.xlu0 %2522
        %v2524 = vsel %vm1808, %v2514, 0.0
        %2525 = vadd.xlane.f32.xlu0 %v2524
        %v2526 = vpop.xlane.xlu0 %2525
        %v2527 = vrcp.pop %v2517
        %v2528 = vrcp.pop %v2520
        %v2529 = vrcp.pop %v2523
        %v2530 = vrcp.pop %v2526
        %v2531 = vmul.f32 %v2508, %v2527
        %v2532 = vmul.f32 %v2510, %v2528
        %v2533 = vmul.f32 %v2512, %v2529
        %v2534 = vmul.f32 %v2514, %v2530
        %v2535 = vpack.c.bf16 %v2532, %v2531
        %v2536 = vpack.c.bf16 %v2534, %v2533
        %v2537 = vmul.bf16 %v1712, %v2406
        %v2538 = vmul.bf16 %v1715, %v2406
        %v2540 = vsel %vm1808, %v2535, 0
        %2542 = vmatprep.subr.bf16.mxu0 0
        %2543 = vmatpush1.bf16.msra.mxu0 %v2537
        %2544 = vmatprep.subr.bf16.mxu0 0
        %2545 = vmatpush1.bf16.msra.mxu0 0
        %2546 = vmatprep.subr.bf16.mxu0 0
        %2547 = vmatpush1.bf16.msra.mxu0 0
        %2548 = vmatprep.subr.bf16.mxu0 0
        %2549 = vmatpush1.bf16.msra.mxu0 0
        %2550 = vmatprep.subr.bf16.mxu0 0
        %2551 = vmatpush1.bf16.msra.mxu0 0
        %2552 = vmatprep.subr.bf16.mxu0 0
        %2553 = vmatpush1.bf16.msra.mxu0 0
        %2554 = vmatprep.subr.bf16.mxu0 0
        %2555 = vmatpush1.bf16.msra.mxu0 0
        %2556 = vmatprep.subr.bf16.mxu0 0
        %2557 = vmatpush1.bf16.msra.mxu0 0
        %2558 = vmatprep.subr.bf16.mxu0 0
        %2559 = vmatpush1.bf16.msra.mxu0 0
        %2560 = vmatprep.subr.bf16.mxu0 0
        %2561 = vmatpush1.bf16.msra.mxu0 0
        %2562 = vmatprep.subr.bf16.mxu0 0
        %2563 = vmatpush1.bf16.msra.mxu0 0
        %2564 = vmatprep.subr.bf16.mxu0 0
        %2565 = vmatpush1.bf16.msra.mxu0 0
        %2566 = vmatprep.subr.bf16.mxu0 0
        %2567 = vmatpush1.bf16.msra.mxu0 0
        %2568 = vmatprep.subr.bf16.mxu0 0
        %2569 = vmatpush1.bf16.msra.mxu0 0
        %2570 = vmatprep.subr.bf16.mxu0 0
        %2571 = vmatpush1.bf16.msra.mxu0 0
        %2572 = vmatprep.subr.bf16.mxu0 0
        %2573 = vmatpush1.bf16.msra.mxu0 0
        %2574 = vmatprep.mubr.bf16.mxu0 0
        %2575 = vmatmul.mubr.bf16.gmra.mrb[0].mxu0 %v2540
        %v2576 = vpop.f32.mrb[0].mxu0
        %v2577 = vadd.f32 0.0, %v2576
        %v2578 = vpop.f32.mrb[0].mxu0
        %v2579 = vpop.f32.mrb[0].mxu0
        %v2580 = vadd.f32 0.0, %v2579
        %v2581 = vpop.f32.mrb[0].mxu0
        %2582 = vdwg.mxu0
        %v2584 = vsel %vm1808, %v2536, 0
        %2586 = vmatprep.subr.bf16.mxu0 0
        %2587 = vmatpush1.bf16.msra.mxu0 %v2538
        %2588 = vmatprep.subr.bf16.mxu0 0
        %2589 = vmatpush1.bf16.msra.mxu0 0
        %2590 = vmatprep.subr.bf16.mxu0 0
        %2591 = vmatpush1.bf16.msra.mxu0 0
        %2592 = vmatprep.subr.bf16.mxu0 0
        %2593 = vmatpush1.bf16.msra.mxu0 0
        %2594 = vmatprep.subr.bf16.mxu0 0
        %2595 = vmatpush1.bf16.msra.mxu0 0
        %2596 = vmatprep.subr.bf16.mxu0 0
        %2597 = vmatpush1.bf16.msra.mxu0 0
        %2598 = vmatprep.subr.bf16.mxu0 0
        %2599 = vmatpush1.bf16.msra.mxu0 0
        %2600 = vmatprep.subr.bf16.mxu0 0
        %2601 = vmatpush1.bf16.msra.mxu0 0
        %2602 = vmatprep.subr.bf16.mxu0 0
        %2603 = vmatpush1.bf16.msra.mxu0 0
        %2604 = vmatprep.subr.bf16.mxu0 0
        %2605 = vmatpush1.bf16.msra.mxu0 0
        %2606 = vmatprep.subr.bf16.mxu0 0
        %2607 = vmatpush1.bf16.msra.mxu0 0
        %2608 = vmatprep.subr.bf16.mxu0 0
        %2609 = vmatpush1.bf16.msra.mxu0 0
        %2610 = vmatprep.subr.bf16.mxu0 0
        %2611 = vmatpush1.bf16.msra.mxu0 0
        %2612 = vmatprep.subr.bf16.mxu0 0
        %2613 = vmatpush1.bf16.msra.mxu0 0
        %2614 = vmatprep.subr.bf16.mxu0 0
        %2615 = vmatpush1.bf16.msra.mxu0 0
        %2616 = vmatprep.subr.bf16.mxu0 0
        %2617 = vmatpush1.bf16.msra.mxu0 0
        %2618 = vmatprep.mubr.bf16.mxu0 0
        %2619 = vmatmul.mubr.bf16.gmra.mrb[0].mxu0 %v2584
        %v2620 = vpop.f32.mrb[0].mxu0
        %v2621 = vadd.f32 0.0, %v2620
        %v2622 = vpop.f32.mrb[0].mxu0
        %v2623 = vpop.f32.mrb[0].mxu0
        %v2624 = vadd.f32 0.0, %v2623
        %v2625 = vpop.f32.mrb[0].mxu0
        %2626 = vdwg.mxu0
        %v2627 = vadd.f32 %v2397, %v2577
        %v2628 = vadd.f32 %v2398, %v2580
        %v2629 = vadd.f32 %v2399, %v2621
        %v2630 = vadd.f32 %v2400, %v2624
        %vm2631 = vcmp.ge.s32.totalorder %v1717, 64
        %vm2632 = vcmp.lt.s32.totalorder %v1717, 80
        %vm2633 = vmand %vm2631, %vm2632
        %v2634 = vsel %vm2633, 1, 0
        %v2635 = vcvt.s32.f32 %v2634
        %v2636 = vpack.c.bf16 %v2635, %v2635
        %v2637 = vmul.bf16 %v1711, %v2636
        %v2638 = vmul.bf16 %v1714, %v2636
        %2639 = vmatprep.subr.bf16.mxu0 0
        %2640 = vmatpush1.bf16.xpose.msra.mxu0 %v2637
        %2641 = vmatprep.subr.bf16.mxu0 0
        %2642 = vmatpush1.bf16.xpose.msra.mxu0 0
        %2643 = vmatprep.subr.bf16.mxu0 0
        %2644 = vmatpush1.bf16.xpose.msra.mxu0 0
        %2645 = vmatprep.subr.bf16.mxu0 0
        %2646 = vmatpush1.bf16.xpose.msra.mxu0 0
        %2647 = vmatprep.subr.bf16.mxu0 0
        %2648 = vmatpush1.bf16.xpose.msra.mxu0 0
        %2649 = vmatprep.subr.bf16.mxu0 0
        %2650 = vmatpush1.bf16.xpose.msra.mxu0 0
        %2651 = vmatprep.subr.bf16.mxu0 0
        %2652 = vmatpush1.bf16.xpose.msra.mxu0 0
        %2653 = vmatprep.subr.bf16.mxu0 0
        %2654 = vmatpush1.bf16.xpose.msra.mxu0 0
        %2655 = vmatprep.subr.bf16.mxu0 0
        %2656 = vmatpush1.bf16.xpose.msra.mxu0 0
        %2657 = vmatprep.subr.bf16.mxu0 0
        %2658 = vmatpush1.bf16.xpose.msra.mxu0 0
        %2659 = vmatprep.subr.bf16.mxu0 0
        %2660 = vmatpush1.bf16.xpose.msra.mxu0 0
        %2661 = vmatprep.subr.bf16.mxu0 0
        %2662 = vmatpush1.bf16.xpose.msra.mxu0 0
        %2663 = vmatprep.subr.bf16.mxu0 0
        %2664 = vmatpush1.bf16.xpose.msra.mxu0 0
        %2665 = vmatprep.subr.bf16.mxu0 0
        %2666 = vmatpush1.bf16.xpose.msra.mxu0 0
        %2667 = vmatprep.subr.bf16.mxu0 0
        %2668 = vmatpush1.bf16.xpose.msra.mxu0 0
        %2669 = vmatprep.subr.bf16.mxu0 0
        %2670 = vmatpush1.bf16.xpose.msra.mxu0 0
        %2671 = vmatprep.mubr.bf16.mxu0 0
        %2672 = vmatmul.mubr.bf16.gmra.mrb[0].mxu0 %v1710
        %v2673 = vpop.f32.mrb[0].mxu0
        %v2674 = vadd.f32 0.0, %v2673
        %v2675 = vpop.f32.mrb[0].mxu0
        %v2676 = vpop.f32.mrb[0].mxu0
        %v2677 = vadd.f32 0.0, %v2676
        %v2678 = vpop.f32.mrb[0].mxu0
        %2679 = vdwg.mxu0
        %2680 = vmatprep.subr.bf16.mxu0 0
        %2681 = vmatpush1.bf16.xpose.msra.mxu0 %v2638
        %2682 = vmatprep.subr.bf16.mxu0 0
        %2683 = vmatpush1.bf16.xpose.msra.mxu0 0
        %2684 = vmatprep.subr.bf16.mxu0 0
        %2685 = vmatpush1.bf16.xpose.msra.mxu0 0
        %2686 = vmatprep.subr.bf16.mxu0 0
        %2687 = vmatpush1.bf16.xpose.msra.mxu0 0
        %2688 = vmatprep.subr.bf16.mxu0 0
        %2689 = vmatpush1.bf16.xpose.msra.mxu0 0
        %2690 = vmatprep.subr.bf16.mxu0 0
        %2691 = vmatpush1.bf16.xpose.msra.mxu0 0
        %2692 = vmatprep.subr.bf16.mxu0 0
        %2693 = vmatpush1.bf16.xpose.msra.mxu0 0
        %2694 = vmatprep.subr.bf16.mxu0 0
        %2695 = vmatpush1.bf16.xpose.msra.mxu0 0
        %2696 = vmatprep.subr.bf16.mxu0 0
        %2697 = vmatpush1.bf16.xpose.msra.mxu0 0
        %2698 = vmatprep.subr.bf16.mxu0 0
        %2699 = vmatpush1.bf16.xpose.msra.mxu0 0
        %2700 = vmatprep.subr.bf16.mxu0 0
        %2701 = vmatpush1.bf16.xpose.msra.mxu0 0
        %2702 = vmatprep.subr.bf16.mxu0 0
        %2703 = vmatpush1.bf16.xpose.msra.mxu0 0
        %2704 = vmatprep.subr.bf16.mxu0 0
        %2705 = vmatpush1.bf16.xpose.msra.mxu0 0
        %2706 = vmatprep.subr.bf16.mxu0 0
        %2707 = vmatpush1.bf16.xpose.msra.mxu0 0
        %2708 = vmatprep.subr.bf16.mxu0 0
        %2709 = vmatpush1.bf16.xpose.msra.mxu0 0
        %2710 = vmatprep.subr.bf16.mxu0 0
        %2711 = vmatpush1.bf16.xpose.msra.mxu0 0
        %2712 = vmatprep.mubr.bf16.mxu0 0
        %2713 = vmatmul.mubr.bf16.gmra.mrb[0].mxu0 %v1713
        %v2714 = vpop.f32.mrb[0].mxu0
        %v2715 = vadd.f32 0.0, %v2714
        %v2716 = vpop.f32.mrb[0].mxu0
        %v2717 = vpop.f32.mrb[0].mxu0
        %v2718 = vadd.f32 0.0, %v2717
        %v2719 = vpop.f32.mrb[0].mxu0
        %2720 = vdwg.mxu0
        %v2721 = vsel %vm1808, %v2674, -inf
        %2722 = vmax.xlane.f32.xlu0 %v2721
        %v2723 = vpop.xlane.xlu0 %2722
        %v2724 = vsel %vm1808, %v2677, -inf
        %2725 = vmax.xlane.f32.xlu0 %v2724
        %v2726 = vpop.xlane.xlu0 %2725
        %v2727 = vsel %vm1808, %v2715, -inf
        %2728 = vmax.xlane.f32.xlu0 %v2727
        %v2729 = vpop.xlane.xlu0 %2728
        %v2730 = vsel %vm1808, %v2718, -inf
        %2731 = vmax.xlane.f32.xlu0 %v2730
        %v2732 = vpop.xlane.xlu0 %2731
        %v2733 = vsub.f32 %v2674, %v2723
        %v2734 = vsub.f32 %v2677, %v2726
        %v2735 = vsub.f32 %v2715, %v2729
        %v2736 = vsub.f32 %v2718, %v2732
        %v2737 = vmul.f32 %v2733, 1.442695
        %v2738 = vpow.pop %v2737
        %v2739 = vmul.f32 %v2734, 1.442695
        %v2740 = vpow.pop %v2739
        %v2741 = vmul.f32 %v2735, 1.442695
        %v2742 = vpow.pop %v2741
        %v2743 = vmul.f32 %v2736, 1.442695
        %v2744 = vpow.pop %v2743
        %v2745 = vsel %vm1808, %v2738, 0.0
        %2746 = vadd.xlane.f32.xlu0 %v2745
        %v2747 = vpop.xlane.xlu0 %2746
        %v2748 = vsel %vm1808, %v2740, 0.0
        %2749 = vadd.xlane.f32.xlu0 %v2748
        %v2750 = vpop.xlane.xlu0 %2749
        %v2751 = vsel %vm1808, %v2742, 0.0
        %2752 = vadd.xlane.f32.xlu0 %v2751
        %v2753 = vpop.xlane.xlu0 %2752
        %v2754 = vsel %vm1808, %v2744, 0.0
        %2755 = vadd.xlane.f32.xlu0 %v2754
        %v2756 = vpop.xlane.xlu0 %2755
        %v2757 = vrcp.pop %v2747
        %v2758 = vrcp.pop %v2750
        %v2759 = vrcp.pop %v2753
        %v2760 = vrcp.pop %v2756
        %v2761 = vmul.f32 %v2738, %v2757
        %v2762 = vmul.f32 %v2740, %v2758
        %v2763 = vmul.f32 %v2742, %v2759
        %v2764 = vmul.f32 %v2744, %v2760
        %v2765 = vpack.c.bf16 %v2762, %v2761
        %v2766 = vpack.c.bf16 %v2764, %v2763
        %v2767 = vmul.bf16 %v1712, %v2636
        %v2768 = vmul.bf16 %v1715, %v2636
        %v2770 = vsel %vm1808, %v2765, 0
        %2772 = vmatprep.subr.bf16.mxu0 0
        %2773 = vmatpush1.bf16.msra.mxu0 %v2767
        %2774 = vmatprep.subr.bf16.mxu0 0
        %2775 = vmatpush1.bf16.msra.mxu0 0
        %2776 = vmatprep.subr.bf16.mxu0 0
        %2777 = vmatpush1.bf16.msra.mxu0 0
        %2778 = vmatprep.subr.bf16.mxu0 0
        %2779 = vmatpush1.bf16.msra.mxu0 0
        %2780 = vmatprep.subr.bf16.mxu0 0
        %2781 = vmatpush1.bf16.msra.mxu0 0
        %2782 = vmatprep.subr.bf16.mxu0 0
        %2783 = vmatpush1.bf16.msra.mxu0 0
        %2784 = vmatprep.subr.bf16.mxu0 0
        %2785 = vmatpush1.bf16.msra.mxu0 0
        %2786 = vmatprep.subr.bf16.mxu0 0
        %2787 = vmatpush1.bf16.msra.mxu0 0
        %2788 = vmatprep.subr.bf16.mxu0 0
        %2789 = vmatpush1.bf16.msra.mxu0 0
        %2790 = vmatprep.subr.bf16.mxu0 0
        %2791 = vmatpush1.bf16.msra.mxu0 0
        %2792 = vmatprep.subr.bf16.mxu0 0
        %2793 = vmatpush1.bf16.msra.mxu0 0
        %2794 = vmatprep.subr.bf16.mxu0 0
        %2795 = vmatpush1.bf16.msra.mxu0 0
        %2796 = vmatprep.subr.bf16.mxu0 0
        %2797 = vmatpush1.bf16.msra.mxu0 0
        %2798 = vmatprep.subr.bf16.mxu0 0
        %2799 = vmatpush1.bf16.msra.mxu0 0
        %2800 = vmatprep.subr.bf16.mxu0 0
        %2801 = vmatpush1.bf16.msra.mxu0 0
        %2802 = vmatprep.subr.bf16.mxu0 0
        %2803 = vmatpush1.bf16.msra.mxu0 0
        %2804 = vmatprep.mubr.bf16.mxu0 0
        %2805 = vmatmul.mubr.bf16.gmra.mrb[0].mxu0 %v2770
        %v2806 = vpop.f32.mrb[0].mxu0
        %v2807 = vadd.f32 0.0, %v2806
        %v2808 = vpop.f32.mrb[0].mxu0
        %v2809 = vpop.f32.mrb[0].mxu0
        %v2810 = vadd.f32 0.0, %v2809
        %v2811 = vpop.f32.mrb[0].mxu0
        %2812 = vdwg.mxu0
        %v2814 = vsel %vm1808, %v2766, 0
        %2816 = vmatprep.subr.bf16.mxu0 0
        %2817 = vmatpush1.bf16.msra.mxu0 %v2768
        %2818 = vmatprep.subr.bf16.mxu0 0
        %2819 = vmatpush1.bf16.msra.mxu0 0
        %2820 = vmatprep.subr.bf16.mxu0 0
        %2821 = vmatpush1.bf16.msra.mxu0 0
        %2822 = vmatprep.subr.bf16.mxu0 0
        %2823 = vmatpush1.bf16.msra.mxu0 0
        %2824 = vmatprep.subr.bf16.mxu0 0
        %2825 = vmatpush1.bf16.msra.mxu0 0
        %2826 = vmatprep.subr.bf16.mxu0 0
        %2827 = vmatpush1.bf16.msra.mxu0 0
        %2828 = vmatprep.subr.bf16.mxu0 0
        %2829 = vmatpush1.bf16.msra.mxu0 0
        %2830 = vmatprep.subr.bf16.mxu0 0
        %2831 = vmatpush1.bf16.msra.mxu0 0
        %2832 = vmatprep.subr.bf16.mxu0 0
        %2833 = vmatpush1.bf16.msra.mxu0 0
        %2834 = vmatprep.subr.bf16.mxu0 0
        %2835 = vmatpush1.bf16.msra.mxu0 0
        %2836 = vmatprep.subr.bf16.mxu0 0
        %2837 = vmatpush1.bf16.msra.mxu0 0
        %2838 = vmatprep.subr.bf16.mxu0 0
        %2839 = vmatpush1.bf16.msra.mxu0 0
        %2840 = vmatprep.subr.bf16.mxu0 0
        %2841 = vmatpush1.bf16.msra.mxu0 0
        %2842 = vmatprep.subr.bf16.mxu0 0
        %2843 = vmatpush1.bf16.msra.mxu0 0
        %2844 = vmatprep.subr.bf16.mxu0 0
        %2845 = vmatpush1.bf16.msra.mxu0 0
        %2846 = vmatprep.subr.bf16.mxu0 0
        %2847 = vmatpush1.bf16.msra.mxu0 0
        %2848 = vmatprep.mubr.bf16.mxu0 0
        %2849 = vmatmul.mubr.bf16.gmra.mrb[0].mxu0 %v2814
        %v2850 = vpop.f32.mrb[0].mxu0
        %v2851 = vadd.f32 0.0, %v2850
        %v2852 = vpop.f32.mrb[0].mxu0
        %v2853 = vpop.f32.mrb[0].mxu0
        %v2854 = vadd.f32 0.0, %v2853
        %v2855 = vpop.f32.mrb[0].mxu0
        %2856 = vdwg.mxu0
        %v2857 = vadd.f32 %v2627, %v2807
        %v2858 = vadd.f32 %v2628, %v2810
        %v2859 = vadd.f32 %v2629, %v2851
        %v2860 = vadd.f32 %v2630, %v2854
        %vm2861 = vcmp.ge.s32.totalorder %v1717, 80
        %vm2862 = vcmp.lt.s32.totalorder %v1717, 96
        %vm2863 = vmand %vm2861, %vm2862
        %v2864 = vsel %vm2863, 1, 0
        %v2865 = vcvt.s32.f32 %v2864
        %v2866 = vpack.c.bf16 %v2865, %v2865
        %v2867 = vmul.bf16 %v1711, %v2866
        %v2868 = vmul.bf16 %v1714, %v2866
        %2869 = vmatprep.subr.bf16.mxu0 0
        %2870 = vmatpush1.bf16.xpose.msra.mxu0 %v2867
        %2871 = vmatprep.subr.bf16.mxu0 0
        %2872 = vmatpush1.bf16.xpose.msra.mxu0 0
        %2873 = vmatprep.subr.bf16.mxu0 0
        %2874 = vmatpush1.bf16.xpose.msra.mxu0 0
        %2875 = vmatprep.subr.bf16.mxu0 0
        %2876 = vmatpush1.bf16.xpose.msra.mxu0 0
        %2877 = vmatprep.subr.bf16.mxu0 0
        %2878 = vmatpush1.bf16.xpose.msra.mxu0 0
        %2879 = vmatprep.subr.bf16.mxu0 0
        %2880 = vmatpush1.bf16.xpose.msra.mxu0 0
        %2881 = vmatprep.subr.bf16.mxu0 0
        %2882 = vmatpush1.bf16.xpose.msra.mxu0 0
        %2883 = vmatprep.subr.bf16.mxu0 0
        %2884 = vmatpush1.bf16.xpose.msra.mxu0 0
        %2885 = vmatprep.subr.bf16.mxu0 0
        %2886 = vmatpush1.bf16.xpose.msra.mxu0 0
        %2887 = vmatprep.subr.bf16.mxu0 0
        %2888 = vmatpush1.bf16.xpose.msra.mxu0 0
        %2889 = vmatprep.subr.bf16.mxu0 0
        %2890 = vmatpush1.bf16.xpose.msra.mxu0 0
        %2891 = vmatprep.subr.bf16.mxu0 0
        %2892 = vmatpush1.bf16.xpose.msra.mxu0 0
        %2893 = vmatprep.subr.bf16.mxu0 0
        %2894 = vmatpush1.bf16.xpose.msra.mxu0 0
        %2895 = vmatprep.subr.bf16.mxu0 0
        %2896 = vmatpush1.bf16.xpose.msra.mxu0 0
        %2897 = vmatprep.subr.bf16.mxu0 0
        %2898 = vmatpush1.bf16.xpose.msra.mxu0 0
        %2899 = vmatprep.subr.bf16.mxu0 0
        %2900 = vmatpush1.bf16.xpose.msra.mxu0 0
        %2901 = vmatprep.mubr.bf16.mxu0 0
        %2902 = vmatmul.mubr.bf16.gmra.mrb[0].mxu0 %v1710
        %v2903 = vpop.f32.mrb[0].mxu0
        %v2904 = vadd.f32 0.0, %v2903
        %v2905 = vpop.f32.mrb[0].mxu0
        %v2906 = vpop.f32.mrb[0].mxu0
        %v2907 = vadd.f32 0.0, %v2906
        %v2908 = vpop.f32.mrb[0].mxu0
        %2909 = vdwg.mxu0
        %2910 = vmatprep.subr.bf16.mxu0 0
        %2911 = vmatpush1.bf16.xpose.msra.mxu0 %v2868
        %2912 = vmatprep.subr.bf16.mxu0 0
        %2913 = vmatpush1.bf16.xpose.msra.mxu0 0
        %2914 = vmatprep.subr.bf16.mxu0 0
        %2915 = vmatpush1.bf16.xpose.msra.mxu0 0
        %2916 = vmatprep.subr.bf16.mxu0 0
        %2917 = vmatpush1.bf16.xpose.msra.mxu0 0
        %2918 = vmatprep.subr.bf16.mxu0 0
        %2919 = vmatpush1.bf16.xpose.msra.mxu0 0
        %2920 = vmatprep.subr.bf16.mxu0 0
        %2921 = vmatpush1.bf16.xpose.msra.mxu0 0
        %2922 = vmatprep.subr.bf16.mxu0 0
        %2923 = vmatpush1.bf16.xpose.msra.mxu0 0
        %2924 = vmatprep.subr.bf16.mxu0 0
        %2925 = vmatpush1.bf16.xpose.msra.mxu0 0
        %2926 = vmatprep.subr.bf16.mxu0 0
        %2927 = vmatpush1.bf16.xpose.msra.mxu0 0
        %2928 = vmatprep.subr.bf16.mxu0 0
        %2929 = vmatpush1.bf16.xpose.msra.mxu0 0
        %2930 = vmatprep.subr.bf16.mxu0 0
        %2931 = vmatpush1.bf16.xpose.msra.mxu0 0
        %2932 = vmatprep.subr.bf16.mxu0 0
        %2933 = vmatpush1.bf16.xpose.msra.mxu0 0
        %2934 = vmatprep.subr.bf16.mxu0 0
        %2935 = vmatpush1.bf16.xpose.msra.mxu0 0
        %2936 = vmatprep.subr.bf16.mxu0 0
        %2937 = vmatpush1.bf16.xpose.msra.mxu0 0
        %2938 = vmatprep.subr.bf16.mxu0 0
        %2939 = vmatpush1.bf16.xpose.msra.mxu0 0
        %2940 = vmatprep.subr.bf16.mxu0 0
        %2941 = vmatpush1.bf16.xpose.msra.mxu0 0
        %2942 = vmatprep.mubr.bf16.mxu0 0
        %2943 = vmatmul.mubr.bf16.gmra.mrb[0].mxu0 %v1713
        %v2944 = vpop.f32.mrb[0].mxu0
        %v2945 = vadd.f32 0.0, %v2944
        %v2946 = vpop.f32.mrb[0].mxu0
        %v2947 = vpop.f32.mrb[0].mxu0
        %v2948 = vadd.f32 0.0, %v2947
        %v2949 = vpop.f32.mrb[0].mxu0
        %2950 = vdwg.mxu0
        %v2951 = vsel %vm1808, %v2904, -inf
        %2952 = vmax.xlane.f32.xlu0 %v2951
        %v2953 = vpop.xlane.xlu0 %2952
        %v2954 = vsel %vm1808, %v2907, -inf
        %2955 = vmax.xlane.f32.xlu0 %v2954
        %v2956 = vpop.xlane.xlu0 %2955
        %v2957 = vsel %vm1808, %v2945, -inf
        %2958 = vmax.xlane.f32.xlu0 %v2957
        %v2959 = vpop.xlane.xlu0 %2958
        %v2960 = vsel %vm1808, %v2948, -inf
        %2961 = vmax.xlane.f32.xlu0 %v2960
        %v2962 = vpop.xlane.xlu0 %2961
        %v2963 = vsub.f32 %v2904, %v2953
        %v2964 = vsub.f32 %v2907, %v2956
        %v2965 = vsub.f32 %v2945, %v2959
        %v2966 = vsub.f32 %v2948, %v2962
        %v2967 = vmul.f32 %v2963, 1.442695
        %v2968 = vpow.pop %v2967
        %v2969 = vmul.f32 %v2964, 1.442695
        %v2970 = vpow.pop %v2969
        %v2971 = vmul.f32 %v2965, 1.442695
        %v2972 = vpow.pop %v2971
        %v2973 = vmul.f32 %v2966, 1.442695
        %v2974 = vpow.pop %v2973
        %v2975 = vsel %vm1808, %v2968, 0.0
        %2976 = vadd.xlane.f32.xlu0 %v2975
        %v2977 = vpop.xlane.xlu0 %2976
        %v2978 = vsel %vm1808, %v2970, 0.0
        %2979 = vadd.xlane.f32.xlu0 %v2978
        %v2980 = vpop.xlane.xlu0 %2979
        %v2981 = vsel %vm1808, %v2972, 0.0
        %2982 = vadd.xlane.f32.xlu0 %v2981
        %v2983 = vpop.xlane.xlu0 %2982
        %v2984 = vsel %vm1808, %v2974, 0.0
        %2985 = vadd.xlane.f32.xlu0 %v2984
        %v2986 = vpop.xlane.xlu0 %2985
        %v2987 = vrcp.pop %v2977
        %v2988 = vrcp.pop %v2980
        %v2989 = vrcp.pop %v2983
        %v2990 = vrcp.pop %v2986
        %v2991 = vmul.f32 %v2968, %v2987
        %v2992 = vmul.f32 %v2970, %v2988
        %v2993 = vmul.f32 %v2972, %v2989
        %v2994 = vmul.f32 %v2974, %v2990
        %v2995 = vpack.c.bf16 %v2992, %v2991
        %v2996 = vpack.c.bf16 %v2994, %v2993
        %v2997 = vmul.bf16 %v1712, %v2866
        %v2998 = vmul.bf16 %v1715, %v2866
        %v3000 = vsel %vm1808, %v2995, 0
        %3002 = vmatprep.subr.bf16.mxu0 0
        %3003 = vmatpush1.bf16.msra.mxu0 %v2997
        %3004 = vmatprep.subr.bf16.mxu0 0
        %3005 = vmatpush1.bf16.msra.mxu0 0
        %3006 = vmatprep.subr.bf16.mxu0 0
        %3007 = vmatpush1.bf16.msra.mxu0 0
        %3008 = vmatprep.subr.bf16.mxu0 0
        %3009 = vmatpush1.bf16.msra.mxu0 0
        %3010 = vmatprep.subr.bf16.mxu0 0
        %3011 = vmatpush1.bf16.msra.mxu0 0
        %3012 = vmatprep.subr.bf16.mxu0 0
        %3013 = vmatpush1.bf16.msra.mxu0 0
        %3014 = vmatprep.subr.bf16.mxu0 0
        %3015 = vmatpush1.bf16.msra.mxu0 0
        %3016 = vmatprep.subr.bf16.mxu0 0
        %3017 = vmatpush1.bf16.msra.mxu0 0
        %3018 = vmatprep.subr.bf16.mxu0 0
        %3019 = vmatpush1.bf16.msra.mxu0 0
        %3020 = vmatprep.subr.bf16.mxu0 0
        %3021 = vmatpush1.bf16.msra.mxu0 0
        %3022 = vmatprep.subr.bf16.mxu0 0
        %3023 = vmatpush1.bf16.msra.mxu0 0
        %3024 = vmatprep.subr.bf16.mxu0 0
        %3025 = vmatpush1.bf16.msra.mxu0 0
        %3026 = vmatprep.subr.bf16.mxu0 0
        %3027 = vmatpush1.bf16.msra.mxu0 0
        %3028 = vmatprep.subr.bf16.mxu0 0
        %3029 = vmatpush1.bf16.msra.mxu0 0
        %3030 = vmatprep.subr.bf16.mxu0 0
        %3031 = vmatpush1.bf16.msra.mxu0 0
        %3032 = vmatprep.subr.bf16.mxu0 0
        %3033 = vmatpush1.bf16.msra.mxu0 0
        %3034 = vmatprep.mubr.bf16.mxu0 0
        %3035 = vmatmul.mubr.bf16.gmra.mrb[0].mxu0 %v3000
        %v3036 = vpop.f32.mrb[0].mxu0
        %v3037 = vadd.f32 0.0, %v3036
        %v3038 = vpop.f32.mrb[0].mxu0
        %v3039 = vpop.f32.mrb[0].mxu0
        %v3040 = vadd.f32 0.0, %v3039
        %v3041 = vpop.f32.mrb[0].mxu0
        %3042 = vdwg.mxu0
        %v3044 = vsel %vm1808, %v2996, 0
        %3046 = vmatprep.subr.bf16.mxu0 0
        %3047 = vmatpush1.bf16.msra.mxu0 %v2998
        %3048 = vmatprep.subr.bf16.mxu0 0
        %3049 = vmatpush1.bf16.msra.mxu0 0
        %3050 = vmatprep.subr.bf16.mxu0 0
        %3051 = vmatpush1.bf16.msra.mxu0 0
        %3052 = vmatprep.subr.bf16.mxu0 0
        %3053 = vmatpush1.bf16.msra.mxu0 0
        %3054 = vmatprep.subr.bf16.mxu0 0
        %3055 = vmatpush1.bf16.msra.mxu0 0
        %3056 = vmatprep.subr.bf16.mxu0 0
        %3057 = vmatpush1.bf16.msra.mxu0 0
        %3058 = vmatprep.subr.bf16.mxu0 0
        %3059 = vmatpush1.bf16.msra.mxu0 0
        %3060 = vmatprep.subr.bf16.mxu0 0
        %3061 = vmatpush1.bf16.msra.mxu0 0
        %3062 = vmatprep.subr.bf16.mxu0 0
        %3063 = vmatpush1.bf16.msra.mxu0 0
        %3064 = vmatprep.subr.bf16.mxu0 0
        %3065 = vmatpush1.bf16.msra.mxu0 0
        %3066 = vmatprep.subr.bf16.mxu0 0
        %3067 = vmatpush1.bf16.msra.mxu0 0
        %3068 = vmatprep.subr.bf16.mxu0 0
        %3069 = vmatpush1.bf16.msra.mxu0 0
        %3070 = vmatprep.subr.bf16.mxu0 0
        %3071 = vmatpush1.bf16.msra.mxu0 0
        %3072 = vmatprep.subr.bf16.mxu0 0
        %3073 = vmatpush1.bf16.msra.mxu0 0
        %3074 = vmatprep.subr.bf16.mxu0 0
        %3075 = vmatpush1.bf16.msra.mxu0 0
        %3076 = vmatprep.subr.bf16.mxu0 0
        %3077 = vmatpush1.bf16.msra.mxu0 0
        %3078 = vmatprep.mubr.bf16.mxu0 0
        %3079 = vmatmul.mubr.bf16.gmra.mrb[0].mxu0 %v3044
        %v3080 = vpop.f32.mrb[0].mxu0
        %v3081 = vadd.f32 0.0, %v3080
        %v3082 = vpop.f32.mrb[0].mxu0
        %v3083 = vpop.f32.mrb[0].mxu0
        %v3084 = vadd.f32 0.0, %v3083
        %v3085 = vpop.f32.mrb[0].mxu0
        %3086 = vdwg.mxu0
        %v3087 = vadd.f32 %v2857, %v3037
        %v3088 = vadd.f32 %v2858, %v3040
        %v3089 = vadd.f32 %v2859, %v3081
        %v3090 = vadd.f32 %v2860, %v3084
        %vm3091 = vcmp.ge.s32.totalorder %v1717, 96
        %vm3092 = vcmp.lt.s32.totalorder %v1717, 112
        %vm3093 = vmand %vm3091, %vm3092
        %v3094 = vsel %vm3093, 1, 0
        %v3095 = vcvt.s32.f32 %v3094
        %v3096 = vpack.c.bf16 %v3095, %v3095
        %v3097 = vmul.bf16 %v1711, %v3096
        %v3098 = vmul.bf16 %v1714, %v3096
        %3099 = vmatprep.subr.bf16.mxu0 0
        %3100 = vmatpush1.bf16.xpose.msra.mxu0 %v3097
        %3101 = vmatprep.subr.bf16.mxu0 0
        %3102 = vmatpush1.bf16.xpose.msra.mxu0 0
        %3103 = vmatprep.subr.bf16.mxu0 0
        %3104 = vmatpush1.bf16.xpose.msra.mxu0 0
        %3105 = vmatprep.subr.bf16.mxu0 0
        %3106 = vmatpush1.bf16.xpose.msra.mxu0 0
        %3107 = vmatprep.subr.bf16.mxu0 0
        %3108 = vmatpush1.bf16.xpose.msra.mxu0 0
        %3109 = vmatprep.subr.bf16.mxu0 0
        %3110 = vmatpush1.bf16.xpose.msra.mxu0 0
        %3111 = vmatprep.subr.bf16.mxu0 0
        %3112 = vmatpush1.bf16.xpose.msra.mxu0 0
        %3113 = vmatprep.subr.bf16.mxu0 0
        %3114 = vmatpush1.bf16.xpose.msra.mxu0 0
        %3115 = vmatprep.subr.bf16.mxu0 0
        %3116 = vmatpush1.bf16.xpose.msra.mxu0 0
        %3117 = vmatprep.subr.bf16.mxu0 0
        %3118 = vmatpush1.bf16.xpose.msra.mxu0 0
        %3119 = vmatprep.subr.bf16.mxu0 0
        %3120 = vmatpush1.bf16.xpose.msra.mxu0 0
        %3121 = vmatprep.subr.bf16.mxu0 0
        %3122 = vmatpush1.bf16.xpose.msra.mxu0 0
        %3123 = vmatprep.subr.bf16.mxu0 0
        %3124 = vmatpush1.bf16.xpose.msra.mxu0 0
        %3125 = vmatprep.subr.bf16.mxu0 0
        %3126 = vmatpush1.bf16.xpose.msra.mxu0 0
        %3127 = vmatprep.subr.bf16.mxu0 0
        %3128 = vmatpush1.bf16.xpose.msra.mxu0 0
        %3129 = vmatprep.subr.bf16.mxu0 0
        %3130 = vmatpush1.bf16.xpose.msra.mxu0 0
        %3131 = vmatprep.mubr.bf16.mxu0 0
        %3132 = vmatmul.mubr.bf16.gmra.mrb[0].mxu0 %v1710
        %v3133 = vpop.f32.mrb[0].mxu0
        %v3134 = vadd.f32 0.0, %v3133
        %v3135 = vpop.f32.mrb[0].mxu0
        %v3136 = vpop.f32.mrb[0].mxu0
        %v3137 = vadd.f32 0.0, %v3136
        %v3138 = vpop.f32.mrb[0].mxu0
        %3139 = vdwg.mxu0
        %3140 = vmatprep.subr.bf16.mxu0 0
        %3141 = vmatpush1.bf16.xpose.msra.mxu0 %v3098
        %3142 = vmatprep.subr.bf16.mxu0 0
        %3143 = vmatpush1.bf16.xpose.msra.mxu0 0
        %3144 = vmatprep.subr.bf16.mxu0 0
        %3145 = vmatpush1.bf16.xpose.msra.mxu0 0
        %3146 = vmatprep.subr.bf16.mxu0 0
        %3147 = vmatpush1.bf16.xpose.msra.mxu0 0
        %3148 = vmatprep.subr.bf16.mxu0 0
        %3149 = vmatpush1.bf16.xpose.msra.mxu0 0
        %3150 = vmatprep.subr.bf16.mxu0 0
        %3151 = vmatpush1.bf16.xpose.msra.mxu0 0
        %3152 = vmatprep.subr.bf16.mxu0 0
        %3153 = vmatpush1.bf16.xpose.msra.mxu0 0
        %3154 = vmatprep.subr.bf16.mxu0 0
        %3155 = vmatpush1.bf16.xpose.msra.mxu0 0
        %3156 = vmatprep.subr.bf16.mxu0 0
        %3157 = vmatpush1.bf16.xpose.msra.mxu0 0
        %3158 = vmatprep.subr.bf16.mxu0 0
        %3159 = vmatpush1.bf16.xpose.msra.mxu0 0
        %3160 = vmatprep.subr.bf16.mxu0 0
        %3161 = vmatpush1.bf16.xpose.msra.mxu0 0
        %3162 = vmatprep.subr.bf16.mxu0 0
        %3163 = vmatpush1.bf16.xpose.msra.mxu0 0
        %3164 = vmatprep.subr.bf16.mxu0 0
        %3165 = vmatpush1.bf16.xpose.msra.mxu0 0
        %3166 = vmatprep.subr.bf16.mxu0 0
        %3167 = vmatpush1.bf16.xpose.msra.mxu0 0
        %3168 = vmatprep.subr.bf16.mxu0 0
        %3169 = vmatpush1.bf16.xpose.msra.mxu0 0
        %3170 = vmatprep.subr.bf16.mxu0 0
        %3171 = vmatpush1.bf16.xpose.msra.mxu0 0
        %3172 = vmatprep.mubr.bf16.mxu0 0
        %3173 = vmatmul.mubr.bf16.gmra.mrb[0].mxu0 %v1713
        %v3174 = vpop.f32.mrb[0].mxu0
        %v3175 = vadd.f32 0.0, %v3174
        %v3176 = vpop.f32.mrb[0].mxu0
        %v3177 = vpop.f32.mrb[0].mxu0
        %v3178 = vadd.f32 0.0, %v3177
        %v3179 = vpop.f32.mrb[0].mxu0
        %3180 = vdwg.mxu0
        %v3181 = vsel %vm1808, %v3134, -inf
        %3182 = vmax.xlane.f32.xlu0 %v3181
        %v3183 = vpop.xlane.xlu0 %3182
        %v3184 = vsel %vm1808, %v3137, -inf
        %3185 = vmax.xlane.f32.xlu0 %v3184
        %v3186 = vpop.xlane.xlu0 %3185
        %v3187 = vsel %vm1808, %v3175, -inf
        %3188 = vmax.xlane.f32.xlu0 %v3187
        %v3189 = vpop.xlane.xlu0 %3188
        %v3190 = vsel %vm1808, %v3178, -inf
        %3191 = vmax.xlane.f32.xlu0 %v3190
        %v3192 = vpop.xlane.xlu0 %3191
        %v3193 = vsub.f32 %v3134, %v3183
        %v3194 = vsub.f32 %v3137, %v3186
        %v3195 = vsub.f32 %v3175, %v3189
        %v3196 = vsub.f32 %v3178, %v3192
        %v3197 = vmul.f32 %v3193, 1.442695
        %v3198 = vpow.pop %v3197
        %v3199 = vmul.f32 %v3194, 1.442695
        %v3200 = vpow.pop %v3199
        %v3201 = vmul.f32 %v3195, 1.442695
        %v3202 = vpow.pop %v3201
        %v3203 = vmul.f32 %v3196, 1.442695
        %v3204 = vpow.pop %v3203
        %v3205 = vsel %vm1808, %v3198, 0.0
        %3206 = vadd.xlane.f32.xlu0 %v3205
        %v3207 = vpop.xlane.xlu0 %3206
        %v3208 = vsel %vm1808, %v3200, 0.0
        %3209 = vadd.xlane.f32.xlu0 %v3208
        %v3210 = vpop.xlane.xlu0 %3209
        %v3211 = vsel %vm1808, %v3202, 0.0
        %3212 = vadd.xlane.f32.xlu0 %v3211
        %v3213 = vpop.xlane.xlu0 %3212
        %v3214 = vsel %vm1808, %v3204, 0.0
        %3215 = vadd.xlane.f32.xlu0 %v3214
        %v3216 = vpop.xlane.xlu0 %3215
        %v3217 = vrcp.pop %v3207
        %v3218 = vrcp.pop %v3210
        %v3219 = vrcp.pop %v3213
        %v3220 = vrcp.pop %v3216
        %v3221 = vmul.f32 %v3198, %v3217
        %v3222 = vmul.f32 %v3200, %v3218
        %v3223 = vmul.f32 %v3202, %v3219
        %v3224 = vmul.f32 %v3204, %v3220
        %v3225 = vpack.c.bf16 %v3222, %v3221
        %v3226 = vpack.c.bf16 %v3224, %v3223
        %v3227 = vmul.bf16 %v1712, %v3096
        %v3228 = vmul.bf16 %v1715, %v3096
        %v3230 = vsel %vm1808, %v3225, 0
        %3232 = vmatprep.subr.bf16.mxu0 0
        %3233 = vmatpush1.bf16.msra.mxu0 %v3227
        %3234 = vmatprep.subr.bf16.mxu0 0
        %3235 = vmatpush1.bf16.msra.mxu0 0
        %3236 = vmatprep.subr.bf16.mxu0 0
        %3237 = vmatpush1.bf16.msra.mxu0 0
        %3238 = vmatprep.subr.bf16.mxu0 0
        %3239 = vmatpush1.bf16.msra.mxu0 0
        %3240 = vmatprep.subr.bf16.mxu0 0
        %3241 = vmatpush1.bf16.msra.mxu0 0
        %3242 = vmatprep.subr.bf16.mxu0 0
        %3243 = vmatpush1.bf16.msra.mxu0 0
        %3244 = vmatprep.subr.bf16.mxu0 0
        %3245 = vmatpush1.bf16.msra.mxu0 0
        %3246 = vmatprep.subr.bf16.mxu0 0
        %3247 = vmatpush1.bf16.msra.mxu0 0
        %3248 = vmatprep.subr.bf16.mxu0 0
        %3249 = vmatpush1.bf16.msra.mxu0 0
        %3250 = vmatprep.subr.bf16.mxu0 0
        %3251 = vmatpush1.bf16.msra.mxu0 0
        %3252 = vmatprep.subr.bf16.mxu0 0
        %3253 = vmatpush1.bf16.msra.mxu0 0
        %3254 = vmatprep.subr.bf16.mxu0 0
        %3255 = vmatpush1.bf16.msra.mxu0 0
        %3256 = vmatprep.subr.bf16.mxu0 0
        %3257 = vmatpush1.bf16.msra.mxu0 0
        %3258 = vmatprep.subr.bf16.mxu0 0
        %3259 = vmatpush1.bf16.msra.mxu0 0
        %3260 = vmatprep.subr.bf16.mxu0 0
        %3261 = vmatpush1.bf16.msra.mxu0 0
        %3262 = vmatprep.subr.bf16.mxu0 0
        %3263 = vmatpush1.bf16.msra.mxu0 0
        %3264 = vmatprep.mubr.bf16.mxu0 0
        %3265 = vmatmul.mubr.bf16.gmra.mrb[0].mxu0 %v3230
        %v3266 = vpop.f32.mrb[0].mxu0
        %v3267 = vadd.f32 0.0, %v3266
        %v3268 = vpop.f32.mrb[0].mxu0
        %v3269 = vpop.f32.mrb[0].mxu0
        %v3270 = vadd.f32 0.0, %v3269
        %v3271 = vpop.f32.mrb[0].mxu0
        %3272 = vdwg.mxu0
        %v3274 = vsel %vm1808, %v3226, 0
        %3276 = vmatprep.subr.bf16.mxu0 0
        %3277 = vmatpush1.bf16.msra.mxu0 %v3228
        %3278 = vmatprep.subr.bf16.mxu0 0
        %3279 = vmatpush1.bf16.msra.mxu0 0
        %3280 = vmatprep.subr.bf16.mxu0 0
        %3281 = vmatpush1.bf16.msra.mxu0 0
        %3282 = vmatprep.subr.bf16.mxu0 0
        %3283 = vmatpush1.bf16.msra.mxu0 0
        %3284 = vmatprep.subr.bf16.mxu0 0
        %3285 = vmatpush1.bf16.msra.mxu0 0
        %3286 = vmatprep.subr.bf16.mxu0 0
        %3287 = vmatpush1.bf16.msra.mxu0 0
        %3288 = vmatprep.subr.bf16.mxu0 0
        %3289 = vmatpush1.bf16.msra.mxu0 0
        %3290 = vmatprep.subr.bf16.mxu0 0
        %3291 = vmatpush1.bf16.msra.mxu0 0
        %3292 = vmatprep.subr.bf16.mxu0 0
        %3293 = vmatpush1.bf16.msra.mxu0 0
        %3294 = vmatprep.subr.bf16.mxu0 0
        %3295 = vmatpush1.bf16.msra.mxu0 0
        %3296 = vmatprep.subr.bf16.mxu0 0
        %3297 = vmatpush1.bf16.msra.mxu0 0
        %3298 = vmatprep.subr.bf16.mxu0 0
        %3299 = vmatpush1.bf16.msra.mxu0 0
        %3300 = vmatprep.subr.bf16.mxu0 0
        %3301 = vmatpush1.bf16.msra.mxu0 0
        %3302 = vmatprep.subr.bf16.mxu0 0
        %3303 = vmatpush1.bf16.msra.mxu0 0
        %3304 = vmatprep.subr.bf16.mxu0 0
        %3305 = vmatpush1.bf16.msra.mxu0 0
        %3306 = vmatprep.subr.bf16.mxu0 0
        %3307 = vmatpush1.bf16.msra.mxu0 0
        %3308 = vmatprep.mubr.bf16.mxu0 0
        %3309 = vmatmul.mubr.bf16.gmra.mrb[0].mxu0 %v3274
        %v3310 = vpop.f32.mrb[0].mxu0
        %v3311 = vadd.f32 0.0, %v3310
        %v3312 = vpop.f32.mrb[0].mxu0
        %v3313 = vpop.f32.mrb[0].mxu0
        %v3314 = vadd.f32 0.0, %v3313
        %v3315 = vpop.f32.mrb[0].mxu0
        %3316 = vdwg.mxu0
        %v3317 = vadd.f32 %v3087, %v3267
        %v3318 = vadd.f32 %v3088, %v3270
        %v3319 = vadd.f32 %v3089, %v3311
        %v3320 = vadd.f32 %v3090, %v3314
        %vm3321 = vcmp.ge.s32.totalorder %v1717, 112
        %vm3322 = vcmp.lt.s32.totalorder %v1717, 128
        %vm3323 = vmand %vm3321, %vm3322
        %v3324 = vsel %vm3323, 1, 0
        %v3325 = vcvt.s32.f32 %v3324
        %v3326 = vpack.c.bf16 %v3325, %v3325
        %v3327 = vmul.bf16 %v1711, %v3326
        %v3328 = vmul.bf16 %v1714, %v3326
        %3329 = vmatprep.subr.bf16.mxu0 0
        %3330 = vmatpush1.bf16.xpose.msra.mxu0 %v3327
        %3331 = vmatprep.subr.bf16.mxu0 0
        %3332 = vmatpush1.bf16.xpose.msra.mxu0 0
        %3333 = vmatprep.subr.bf16.mxu0 0
        %3334 = vmatpush1.bf16.xpose.msra.mxu0 0
        %3335 = vmatprep.subr.bf16.mxu0 0
        %3336 = vmatpush1.bf16.xpose.msra.mxu0 0
        %3337 = vmatprep.subr.bf16.mxu0 0
        %3338 = vmatpush1.bf16.xpose.msra.mxu0 0
        %3339 = vmatprep.subr.bf16.mxu0 0
        %3340 = vmatpush1.bf16.xpose.msra.mxu0 0
        %3341 = vmatprep.subr.bf16.mxu0 0
        %3342 = vmatpush1.bf16.xpose.msra.mxu0 0
        %3343 = vmatprep.subr.bf16.mxu0 0
        %3344 = vmatpush1.bf16.xpose.msra.mxu0 0
        %3345 = vmatprep.subr.bf16.mxu0 0
        %3346 = vmatpush1.bf16.xpose.msra.mxu0 0
        %3347 = vmatprep.subr.bf16.mxu0 0
        %3348 = vmatpush1.bf16.xpose.msra.mxu0 0
        %3349 = vmatprep.subr.bf16.mxu0 0
        %3350 = vmatpush1.bf16.xpose.msra.mxu0 0
        %3351 = vmatprep.subr.bf16.mxu0 0
        %3352 = vmatpush1.bf16.xpose.msra.mxu0 0
        %3353 = vmatprep.subr.bf16.mxu0 0
        %3354 = vmatpush1.bf16.xpose.msra.mxu0 0
        %3355 = vmatprep.subr.bf16.mxu0 0
        %3356 = vmatpush1.bf16.xpose.msra.mxu0 0
        %3357 = vmatprep.subr.bf16.mxu0 0
        %3358 = vmatpush1.bf16.xpose.msra.mxu0 0
        %3359 = vmatprep.subr.bf16.mxu0 0
        %3360 = vmatpush1.bf16.xpose.msra.mxu0 0
        %3361 = vmatprep.mubr.bf16.mxu0 0
        %3362 = vmatmul.mubr.bf16.gmra.mrb[0].mxu0 %v1710
        %v3363 = vpop.f32.mrb[0].mxu0
        %v3364 = vadd.f32 0.0, %v3363
        %v3365 = vpop.f32.mrb[0].mxu0
        %v3366 = vpop.f32.mrb[0].mxu0
        %v3367 = vadd.f32 0.0, %v3366
        %v3368 = vpop.f32.mrb[0].mxu0
        %3369 = vdwg.mxu0
        %3370 = vmatprep.subr.bf16.mxu0 0
        %3371 = vmatpush1.bf16.xpose.msra.mxu0 %v3328
        %3372 = vmatprep.subr.bf16.mxu0 0
        %3373 = vmatpush1.bf16.xpose.msra.mxu0 0
        %3374 = vmatprep.subr.bf16.mxu0 0
        %3375 = vmatpush1.bf16.xpose.msra.mxu0 0
        %3376 = vmatprep.subr.bf16.mxu0 0
        %3377 = vmatpush1.bf16.xpose.msra.mxu0 0
        %3378 = vmatprep.subr.bf16.mxu0 0
        %3379 = vmatpush1.bf16.xpose.msra.mxu0 0
        %3380 = vmatprep.subr.bf16.mxu0 0
        %3381 = vmatpush1.bf16.xpose.msra.mxu0 0
        %3382 = vmatprep.subr.bf16.mxu0 0
        %3383 = vmatpush1.bf16.xpose.msra.mxu0 0
        %3384 = vmatprep.subr.bf16.mxu0 0
        %3385 = vmatpush1.bf16.xpose.msra.mxu0 0
        %3386 = vmatprep.subr.bf16.mxu0 0
        %3387 = vmatpush1.bf16.xpose.msra.mxu0 0
        %3388 = vmatprep.subr.bf16.mxu0 0
        %3389 = vmatpush1.bf16.xpose.msra.mxu0 0
        %3390 = vmatprep.subr.bf16.mxu0 0
        %3391 = vmatpush1.bf16.xpose.msra.mxu0 0
        %3392 = vmatprep.subr.bf16.mxu0 0
        %3393 = vmatpush1.bf16.xpose.msra.mxu0 0
        %3394 = vmatprep.subr.bf16.mxu0 0
        %3395 = vmatpush1.bf16.xpose.msra.mxu0 0
        %3396 = vmatprep.subr.bf16.mxu0 0
        %3397 = vmatpush1.bf16.xpose.msra.mxu0 0
        %3398 = vmatprep.subr.bf16.mxu0 0
        %3399 = vmatpush1.bf16.xpose.msra.mxu0 0
        %3400 = vmatprep.subr.bf16.mxu0 0
        %3401 = vmatpush1.bf16.xpose.msra.mxu0 0
        %3402 = vmatprep.mubr.bf16.mxu0 0
        %3403 = vmatmul.mubr.bf16.gmra.mrb[0].mxu0 %v1713
        %v3404 = vpop.f32.mrb[0].mxu0
        %v3405 = vadd.f32 0.0, %v3404
        %v3406 = vpop.f32.mrb[0].mxu0
        %v3407 = vpop.f32.mrb[0].mxu0
        %v3408 = vadd.f32 0.0, %v3407
        %v3409 = vpop.f32.mrb[0].mxu0
        %3410 = vdwg.mxu0
        %v3411 = vsel %vm1808, %v3364, -inf
        %3412 = vmax.xlane.f32.xlu0 %v3411
        %v3413 = vpop.xlane.xlu0 %3412
        %v3414 = vsel %vm1808, %v3367, -inf
        %3415 = vmax.xlane.f32.xlu0 %v3414
        %v3416 = vpop.xlane.xlu0 %3415
        %v3417 = vsel %vm1808, %v3405, -inf
        %3418 = vmax.xlane.f32.xlu0 %v3417
        %v3419 = vpop.xlane.xlu0 %3418
        %v3420 = vsel %vm1808, %v3408, -inf
        %3421 = vmax.xlane.f32.xlu0 %v3420
        %v3422 = vpop.xlane.xlu0 %3421
        %v3423 = vsub.f32 %v3364, %v3413
        %v3424 = vsub.f32 %v3367, %v3416
        %v3425 = vsub.f32 %v3405, %v3419
        %v3426 = vsub.f32 %v3408, %v3422
        %v3427 = vmul.f32 %v3423, 1.442695
        %v3428 = vpow.pop %v3427
        %v3429 = vmul.f32 %v3424, 1.442695
        %v3430 = vpow.pop %v3429
        %v3431 = vmul.f32 %v3425, 1.442695
        %v3432 = vpow.pop %v3431
        %v3433 = vmul.f32 %v3426, 1.442695
        %v3434 = vpow.pop %v3433
        %v3435 = vsel %vm1808, %v3428, 0.0
        %3436 = vadd.xlane.f32.xlu0 %v3435
        %v3437 = vpop.xlane.xlu0 %3436
        %v3438 = vsel %vm1808, %v3430, 0.0
        %3439 = vadd.xlane.f32.xlu0 %v3438
        %v3440 = vpop.xlane.xlu0 %3439
        %v3441 = vsel %vm1808, %v3432, 0.0
        %3442 = vadd.xlane.f32.xlu0 %v3441
        %v3443 = vpop.xlane.xlu0 %3442
        %v3444 = vsel %vm1808, %v3434, 0.0
        %3445 = vadd.xlane.f32.xlu0 %v3444
        %v3446 = vpop.xlane.xlu0 %3445
        %v3447 = vrcp.pop %v3437
        %v3448 = vrcp.pop %v3440
        %v3449 = vrcp.pop %v3443
        %v3450 = vrcp.pop %v3446
        %v3451 = vmul.f32 %v3428, %v3447
        %v3452 = vmul.f32 %v3430, %v3448
        %v3453 = vmul.f32 %v3432, %v3449
        %v3454 = vmul.f32 %v3434, %v3450
        %v3455 = vpack.c.bf16 %v3452, %v3451
        %v3456 = vpack.c.bf16 %v3454, %v3453
        %v3457 = vmul.bf16 %v1712, %v3326
        %v3458 = vmul.bf16 %v1715, %v3326
        %v3460 = vsel %vm1808, %v3455, 0
        %3462 = vmatprep.subr.bf16.mxu0 0
        %3463 = vmatpush1.bf16.msra.mxu0 %v3457
        %3464 = vmatprep.subr.bf16.mxu0 0
        %3465 = vmatpush1.bf16.msra.mxu0 0
        %3466 = vmatprep.subr.bf16.mxu0 0
        %3467 = vmatpush1.bf16.msra.mxu0 0
        %3468 = vmatprep.subr.bf16.mxu0 0
        %3469 = vmatpush1.bf16.msra.mxu0 0
        %3470 = vmatprep.subr.bf16.mxu0 0
        %3471 = vmatpush1.bf16.msra.mxu0 0
        %3472 = vmatprep.subr.bf16.mxu0 0
        %3473 = vmatpush1.bf16.msra.mxu0 0
        %3474 = vmatprep.subr.bf16.mxu0 0
        %3475 = vmatpush1.bf16.msra.mxu0 0
        %3476 = vmatprep.subr.bf16.mxu0 0
        %3477 = vmatpush1.bf16.msra.mxu0 0
        %3478 = vmatprep.subr.bf16.mxu0 0
        %3479 = vmatpush1.bf16.msra.mxu0 0
        %3480 = vmatprep.subr.bf16.mxu0 0
        %3481 = vmatpush1.bf16.msra.mxu0 0
        %3482 = vmatprep.subr.bf16.mxu0 0
        %3483 = vmatpush1.bf16.msra.mxu0 0
        %3484 = vmatprep.subr.bf16.mxu0 0
        %3485 = vmatpush1.bf16.msra.mxu0 0
        %3486 = vmatprep.subr.bf16.mxu0 0
        %3487 = vmatpush1.bf16.msra.mxu0 0
        %3488 = vmatprep.subr.bf16.mxu0 0
        %3489 = vmatpush1.bf16.msra.mxu0 0
        %3490 = vmatprep.subr.bf16.mxu0 0
        %3491 = vmatpush1.bf16.msra.mxu0 0
        %3492 = vmatprep.subr.bf16.mxu0 0
        %3493 = vmatpush1.bf16.msra.mxu0 0
        %3494 = vmatprep.mubr.bf16.mxu0 0
        %3495 = vmatmul.mubr.bf16.gmra.mrb[0].mxu0 %v3460
        %v3496 = vpop.f32.mrb[0].mxu0
        %v3497 = vadd.f32 0.0, %v3496
        %v3498 = vpop.f32.mrb[0].mxu0
        %v3499 = vpop.f32.mrb[0].mxu0
        %v3500 = vadd.f32 0.0, %v3499
        %v3501 = vpop.f32.mrb[0].mxu0
        %3502 = vdwg.mxu0
        %v3504 = vsel %vm1808, %v3456, 0
        %3506 = vmatprep.subr.bf16.mxu0 0
        %3507 = vmatpush1.bf16.msra.mxu0 %v3458
        %3508 = vmatprep.subr.bf16.mxu0 0
        %3509 = vmatpush1.bf16.msra.mxu0 0
        %3510 = vmatprep.subr.bf16.mxu0 0
        %3511 = vmatpush1.bf16.msra.mxu0 0
        %3512 = vmatprep.subr.bf16.mxu0 0
        %3513 = vmatpush1.bf16.msra.mxu0 0
        %3514 = vmatprep.subr.bf16.mxu0 0
        %3515 = vmatpush1.bf16.msra.mxu0 0
        %3516 = vmatprep.subr.bf16.mxu0 0
        %3517 = vmatpush1.bf16.msra.mxu0 0
        %3518 = vmatprep.subr.bf16.mxu0 0
        %3519 = vmatpush1.bf16.msra.mxu0 0
        %3520 = vmatprep.subr.bf16.mxu0 0
        %3521 = vmatpush1.bf16.msra.mxu0 0
        %3522 = vmatprep.subr.bf16.mxu0 0
        %3523 = vmatpush1.bf16.msra.mxu0 0
        %3524 = vmatprep.subr.bf16.mxu0 0
        %3525 = vmatpush1.bf16.msra.mxu0 0
        %3526 = vmatprep.subr.bf16.mxu0 0
        %3527 = vmatpush1.bf16.msra.mxu0 0
        %3528 = vmatprep.subr.bf16.mxu0 0
        %3529 = vmatpush1.bf16.msra.mxu0 0
        %3530 = vmatprep.subr.bf16.mxu0 0
        %3531 = vmatpush1.bf16.msra.mxu0 0
        %3532 = vmatprep.subr.bf16.mxu0 0
        %3533 = vmatpush1.bf16.msra.mxu0 0
        %3534 = vmatprep.subr.bf16.mxu0 0
        %3535 = vmatpush1.bf16.msra.mxu0 0
        %3536 = vmatprep.subr.bf16.mxu0 0
        %3537 = vmatpush1.bf16.msra.mxu0 0
        %3538 = vmatprep.mubr.bf16.mxu0 0
        %3539 = vmatmul.mubr.bf16.gmra.mrb[0].mxu0 %v3504
        %v3540 = vpop.f32.mrb[0].mxu0
        %v3541 = vadd.f32 0.0, %v3540
        %v3542 = vpop.f32.mrb[0].mxu0
        %v3543 = vpop.f32.mrb[0].mxu0
        %v3544 = vadd.f32 0.0, %v3543
        %v3545 = vpop.f32.mrb[0].mxu0
        %3546 = vdwg.mxu0
        %v3547 = vadd.f32 %v3317, %v3497
        %v3548 = vadd.f32 %v3318, %v3500
        %v3549 = vadd.f32 %v3319, %v3541
        %v3550 = vadd.f32 %v3320, %v3544
        %v3551 = vpack.c.bf16 %v3548, %v3547
        %v3552 = vpack.c.bf16 %v3550, %v3549
        %v3553 = vld [vmem:[%s1148] sm:$0xf]
        %v3554 = vld [vmem:[%s1148 + $0x4] sm:$0xf]
        %v3555 = vld [vmem:[%s1148 + $0x8] sm:$0xf]
        %v3556 = vld [vmem:[%s1148 + $0xc] sm:$0xf]
        %v3557 = vld [vmem:[%s1148 + $0x10] sm:$0xf]
        %v3558 = vld [vmem:[%s1148 + $0x14] sm:$0xf]
        %v3559 = vld [vmem:[%s1148 + $0x18] sm:$0xf]
        %v3560 = vld [vmem:[%s1148 + $0x1c] sm:$0xf]
        %v3561 = vld [vmem:[%s1148 + $0x20] sm:$0xf]
        %v3562 = vld [vmem:[%s1148 + $0x24] sm:$0xf]
        %v3563 = vld [vmem:[%s1148 + $0x28] sm:$0xf]
        %v3564 = vld [vmem:[%s1148 + $0x2c] sm:$0xf]
        %v3565 = vld [vmem:[%s1148 + $0x30] sm:$0xf]
        %v3566 = vld [vmem:[%s1148 + $0x34] sm:$0xf]
        %v3567 = vld [vmem:[%s1148 + $0x38] sm:$0xf]
        %v3568 = vld [vmem:[%s1148 + $0x3c] sm:$0xf]
        %v3569 = vld [vmem:[%s1151] sm:$0x1]
        %v3571 = vlaneseq
        %v3572 = vshrl.u32 %v3571, 7
        %v3573 = vsub.s32 0, %v3572
        %v3574 = vrot.slane %v3569, %v3573
        %v3592 = vunpack.c.l.b16 %v3553
        %v3593 = vunpack.c.l.b16 %v3554
        %v3594 = vunpack.c.l.b16 %v3555
        %v3595 = vunpack.c.l.b16 %v3556
        %v3596 = vunpack.c.l.b16 %v3557
        %v3597 = vunpack.c.l.b16 %v3558
        %v3598 = vunpack.c.l.b16 %v3559
        %v3599 = vunpack.c.l.b16 %v3560
        %v3600 = vunpack.c.l.b16 %v3561
        %v3601 = vunpack.c.l.b16 %v3562
        %v3602 = vunpack.c.l.b16 %v3563
        %v3603 = vunpack.c.l.b16 %v3564
        %v3604 = vunpack.c.l.b16 %v3565
        %v3605 = vunpack.c.l.b16 %v3566
        %v3606 = vunpack.c.l.b16 %v3567
        %v3607 = vunpack.c.l.b16 %v3568
        %v3608 = vpack.c.b16 %v3593, %v3592
        %v3609 = vpack.c.b16 %v3595, %v3594
        %v3610 = vpack.c.b16 %v3597, %v3596
        %v3611 = vpack.c.b16 %v3599, %v3598
        %v3612 = vpack.c.b16 %v3601, %v3600
        %v3613 = vpack.c.b16 %v3603, %v3602
        %v3614 = vpack.c.b16 %v3605, %v3604
        %v3615 = vpack.c.b16 %v3607, %v3606
        %3624 = vmatprep.subr.bf16.mxu0 0
        %3625 = vmatpush1.bf16.msra.mxu0 %v3608
        %3626 = vmatprep.subr.bf16.mxu0 0
        %3627 = vmatpush1.bf16.msra.mxu0 %v3609
        %3628 = vmatprep.subr.bf16.mxu0 0
        %3629 = vmatpush1.bf16.msra.mxu0 %v3610
        %3630 = vmatprep.subr.bf16.mxu0 0
        %3631 = vmatpush1.bf16.msra.mxu0 %v3611
        %3632 = vmatprep.subr.bf16.mxu0 0
        %3633 = vmatpush1.bf16.msra.mxu0 %v3612
        %3634 = vmatprep.subr.bf16.mxu0 0
        %3635 = vmatpush1.bf16.msra.mxu0 %v3613
        %3636 = vmatprep.subr.bf16.mxu0 0
        %3637 = vmatpush1.bf16.msra.mxu0 %v3614
        %3638 = vmatprep.subr.bf16.mxu0 0
        %3639 = vmatpush1.bf16.msra.mxu0 %v3615
        %3640 = vmatprep.subr.bf16.mxu0 0
        %3641 = vmatpush1.bf16.msra.mxu0 0
        %3642 = vmatprep.subr.bf16.mxu0 0
        %3643 = vmatpush1.bf16.msra.mxu0 0
        %3644 = vmatprep.subr.bf16.mxu0 0
        %3645 = vmatpush1.bf16.msra.mxu0 0
        %3646 = vmatprep.subr.bf16.mxu0 0
        %3647 = vmatpush1.bf16.msra.mxu0 0
        %3648 = vmatprep.subr.bf16.mxu0 0
        %3649 = vmatpush1.bf16.msra.mxu0 0
        %3650 = vmatprep.subr.bf16.mxu0 0
        %3651 = vmatpush1.bf16.msra.mxu0 0
        %3652 = vmatprep.subr.bf16.mxu0 0
        %3653 = vmatpush1.bf16.msra.mxu0 0
        %3654 = vmatprep.subr.bf16.mxu0 0
        %3655 = vmatpush1.bf16.msra.mxu0 0
        %3656 = vmatprep.mubr.bf16.mxu0 0
        %3657 = vmatmul.mubr.bf16.gmra.mrb[0].mxu0 %v3551
        %v3658 = vpop.f32.mrb[0].mxu0
        %v3659 = vadd.f32 %v3574, %v3658
        %v3660 = vpop.f32.mrb[0].mxu0
        %v3661 = vpop.f32.mrb[0].mxu0
        %v3662 = vadd.f32 %v3574, %v3661
        %v3663 = vpop.f32.mrb[0].mxu0
        %3664 = vmatprep.mubr.bf16.mxu0 0
        %3665 = vmatmul.mubr.bf16.gmra.mrb[0].mxu0 %v3552
        %v3666 = vpop.f32.mrb[0].mxu0
        %v3667 = vadd.f32 %v3574, %v3666
        %v3668 = vpop.f32.mrb[0].mxu0
        %v3669 = vpop.f32.mrb[0].mxu0
        %v3670 = vadd.f32 %v3574, %v3669
        %v3671 = vpop.f32.mrb[0].mxu0
        %3672 = vdwg.mxu0
        %v3673 = vadd.f32 %v1425, %v3659
        %v3674 = vadd.f32 %v1426, %v3662
        %v3675 = vadd.f32 %v1427, %v3667
        %v3676 = vadd.f32 %v1428, %v3670
        %v3677 = vld [vmem:[%s962] sm:$0x1]
        %v3678 = vld [vmem:[%s970] sm:$0x1]
        %3679 = vadd.xlane.f32.xlu0 %v3673
        %v3680 = vpop.xlane.xlu0 %3679
        %3681 = vadd.xlane.f32.xlu0 %v3674
        %v3682 = vpop.xlane.xlu0 %3681
        %3683 = vadd.xlane.f32.xlu0 %v3675
        %v3684 = vpop.xlane.xlu0 %3683
        %3685 = vadd.xlane.f32.xlu0 %v3676
        %v3686 = vpop.xlane.xlu0 %3685
        %v3687 = vrcp.pop 128.0
        %v3688 = vmul.f32 %v3680, %v3687
        %v3689 = vmul.f32 %v3682, %v3687
        %v3690 = vmul.f32 %v3684, %v3687
        %v3691 = vmul.f32 %v3686, %v3687
        %v3692 = vsub.f32 %v3673, %v3688
        %v3693 = vsub.f32 %v3674, %v3689
        %v3694 = vsub.f32 %v3675, %v3690
        %v3695 = vsub.f32 %v3676, %v3691
        %v3696 = vmul.f32 %v3692, %v3692
        %v3697 = vmul.f32 %v3693, %v3693
        %v3698 = vmul.f32 %v3694, %v3694
        %v3699 = vmul.f32 %v3695, %v3695
        %3700 = vadd.xlane.f32.xlu0 %v3696
        %v3701 = vpop.xlane.xlu0 %3700
        %3702 = vadd.xlane.f32.xlu0 %v3697
        %v3703 = vpop.xlane.xlu0 %3702
        %3704 = vadd.xlane.f32.xlu0 %v3698
        %v3705 = vpop.xlane.xlu0 %3704
        %3706 = vadd.xlane.f32.xlu0 %v3699
        %v3707 = vpop.xlane.xlu0 %3706
        %v3708 = vmul.f32 %v3701, %v3687
        %v3709 = vmul.f32 %v3703, %v3687
        %v3710 = vmul.f32 %v3705, %v3687
        %v3711 = vmul.f32 %v3707, %v3687
        %v3712 = vadd.f32 %v3708, 1e-05
        %v3713 = vadd.f32 %v3709, 1e-05
        %v3714 = vadd.f32 %v3710, 1e-05
        %v3715 = vadd.f32 %v3711, 1e-05
        %v3716 = vrsqrt.pop %v3712
        %v3717 = vrsqrt.pop %v3713
        %v3718 = vrsqrt.pop %v3714
        %v3719 = vrsqrt.pop %v3715
        %v3720 = vmul.f32 %v3692, %v3716
        %v3721 = vmul.f32 %v3693, %v3717
        %v3722 = vmul.f32 %v3694, %v3718
        %v3723 = vmul.f32 %v3695, %v3719
        %v3725 = vlaneseq
        %v3726 = vshrl.u32 %v3725, 7
        %v3727 = vsub.s32 0, %v3726
        %v3728 = vrot.slane %v3677, %v3727
        %v3730 = vmul.f32 %v3720, %v3728
        %v3731 = vmul.f32 %v3721, %v3728
        %v3732 = vmul.f32 %v3722, %v3728
        %v3733 = vmul.f32 %v3723, %v3728
        %v3735 = vlaneseq
        %v3736 = vshrl.u32 %v3735, 7
        %v3737 = vsub.s32 0, %v3736
        %v3738 = vrot.slane %v3678, %v3737
        %v3740 = vadd.f32 %v3730, %v3738
        %v3741 = vadd.f32 %v3731, %v3738
        %v3742 = vadd.f32 %v3732, %v3738
        %v3743 = vadd.f32 %v3733, %v3738
        %v3744 = vpack.c.bf16 %v3741, %v3740
        %v3745 = vpack.c.bf16 %v3743, %v3742
        %v3746 = vld [vmem:[%s979] sm:$0xff]
        %v3747 = vld [vmem:[%s979 + $0x8] sm:$0xff]
        %v3748 = vld [vmem:[%s979 + $0x10] sm:$0xff]
        %v3749 = vld [vmem:[%s979 + $0x18] sm:$0xff]
        %v3750 = vld [vmem:[%s979 + $0x20] sm:$0xff]
        %v3751 = vld [vmem:[%s979 + $0x28] sm:$0xff]
        %v3752 = vld [vmem:[%s979 + $0x30] sm:$0xff]
        %v3753 = vld [vmem:[%s979 + $0x38] sm:$0xff]
        %v3754 = vld [vmem:[%s979 + $0x40] sm:$0xff]
        %v3755 = vld [vmem:[%s979 + $0x48] sm:$0xff]
        %v3756 = vld [vmem:[%s979 + $0x50] sm:$0xff]
        %v3757 = vld [vmem:[%s979 + $0x58] sm:$0xff]
        %v3758 = vld [vmem:[%s979 + $0x60] sm:$0xff]
        %v3759 = vld [vmem:[%s979 + $0x68] sm:$0xff]
        %v3760 = vld [vmem:[%s979 + $0x70] sm:$0xff]
        %v3761 = vld [vmem:[%s979 + $0x78] sm:$0xff]
        %v3762 = vld [vmem:[%s979 + $0x80] sm:$0xff]
        %v3763 = vld [vmem:[%s979 + $0x88] sm:$0xff]
        %v3764 = vld [vmem:[%s979 + $0x90] sm:$0xff]
        %v3765 = vld [vmem:[%s979 + $0x98] sm:$0xff]
        %v3766 = vld [vmem:[%s979 + $0xa0] sm:$0xff]
        %v3767 = vld [vmem:[%s979 + $0xa8] sm:$0xff]
        %v3768 = vld [vmem:[%s979 + $0xb0] sm:$0xff]
        %v3769 = vld [vmem:[%s979 + $0xb8] sm:$0xff]
        %v3770 = vld [vmem:[%s979 + $0xc0] sm:$0xff]
        %v3771 = vld [vmem:[%s979 + $0xc8] sm:$0xff]
        %v3772 = vld [vmem:[%s979 + $0xd0] sm:$0xff]
        %v3773 = vld [vmem:[%s979 + $0xd8] sm:$0xff]
        %v3774 = vld [vmem:[%s979 + $0xe0] sm:$0xff]
        %v3775 = vld [vmem:[%s979 + $0xe8] sm:$0xff]
        %v3776 = vld [vmem:[%s979 + $0xf0] sm:$0xff]
        %v3777 = vld [vmem:[%s979 + $0xf8] sm:$0xff]
        %v3778 = vld [vmem:[%s979 + $0x100] sm:$0xff]
        %v3779 = vld [vmem:[%s979 + $0x108] sm:$0xff]
        %v3780 = vld [vmem:[%s979 + $0x110] sm:$0xff]
        %v3781 = vld [vmem:[%s979 + $0x118] sm:$0xff]
        %v3782 = vld [vmem:[%s979 + $0x120] sm:$0xff]
        %v3783 = vld [vmem:[%s979 + $0x128] sm:$0xff]
        %v3784 = vld [vmem:[%s979 + $0x130] sm:$0xff]
        %v3785 = vld [vmem:[%s979 + $0x138] sm:$0xff]
        %v3786 = vld [vmem:[%s979 + $0x140] sm:$0xff]
        %v3787 = vld [vmem:[%s979 + $0x148] sm:$0xff]
        %v3788 = vld [vmem:[%s979 + $0x150] sm:$0xff]
        %v3789 = vld [vmem:[%s979 + $0x158] sm:$0xff]
        %v3790 = vld [vmem:[%s979 + $0x160] sm:$0xff]
        %v3791 = vld [vmem:[%s979 + $0x168] sm:$0xff]
        %v3792 = vld [vmem:[%s979 + $0x170] sm:$0xff]
        %v3793 = vld [vmem:[%s979 + $0x178] sm:$0xff]
        %v3794 = vld [vmem:[%s979 + $0x180] sm:$0xff]
        %v3795 = vld [vmem:[%s979 + $0x188] sm:$0xff]
        %v3796 = vld [vmem:[%s979 + $0x190] sm:$0xff]
        %v3797 = vld [vmem:[%s979 + $0x198] sm:$0xff]
        %v3798 = vld [vmem:[%s979 + $0x1a0] sm:$0xff]
        %v3799 = vld [vmem:[%s979 + $0x1a8] sm:$0xff]
        %v3800 = vld [vmem:[%s979 + $0x1b0] sm:$0xff]
        %v3801 = vld [vmem:[%s979 + $0x1b8] sm:$0xff]
        %v3802 = vld [vmem:[%s979 + $0x1c0] sm:$0xff]
        %v3803 = vld [vmem:[%s979 + $0x1c8] sm:$0xff]
        %v3804 = vld [vmem:[%s979 + $0x1d0] sm:$0xff]
        %v3805 = vld [vmem:[%s979 + $0x1d8] sm:$0xff]
        %v3806 = vld [vmem:[%s979 + $0x1e0] sm:$0xff]
        %v3807 = vld [vmem:[%s979 + $0x1e8] sm:$0xff]
        %v3808 = vld [vmem:[%s979 + $0x1f0] sm:$0xff]
        %v3809 = vld [vmem:[%s979 + $0x1f8] sm:$0xff]
        %v3810 = vld [vmem:[%s979 + $0x200] sm:$0xff]
        %v3811 = vld [vmem:[%s979 + $0x208] sm:$0xff]
        %v3812 = vld [vmem:[%s979 + $0x210] sm:$0xff]
        %v3813 = vld [vmem:[%s979 + $0x218] sm:$0xff]
        %v3814 = vld [vmem:[%s979 + $0x220] sm:$0xff]
        %v3815 = vld [vmem:[%s979 + $0x228] sm:$0xff]
        %v3816 = vld [vmem:[%s979 + $0x230] sm:$0xff]
        %v3817 = vld [vmem:[%s979 + $0x238] sm:$0xff]
        %v3818 = vld [vmem:[%s979 + $0x240] sm:$0xff]
        %v3819 = vld [vmem:[%s979 + $0x248] sm:$0xff]
        %v3820 = vld [vmem:[%s979 + $0x250] sm:$0xff]
        %v3821 = vld [vmem:[%s979 + $0x258] sm:$0xff]
        %v3822 = vld [vmem:[%s979 + $0x260] sm:$0xff]
        %v3823 = vld [vmem:[%s979 + $0x268] sm:$0xff]
        %v3824 = vld [vmem:[%s979 + $0x270] sm:$0xff]
        %v3825 = vld [vmem:[%s979 + $0x278] sm:$0xff]
        %v3826 = vld [vmem:[%s979 + $0x280] sm:$0xff]
        %v3827 = vld [vmem:[%s979 + $0x288] sm:$0xff]
        %v3828 = vld [vmem:[%s979 + $0x290] sm:$0xff]
        %v3829 = vld [vmem:[%s979 + $0x298] sm:$0xff]
        %v3830 = vld [vmem:[%s979 + $0x2a0] sm:$0xff]
        %v3831 = vld [vmem:[%s979 + $0x2a8] sm:$0xff]
        %v3832 = vld [vmem:[%s979 + $0x2b0] sm:$0xff]
        %v3833 = vld [vmem:[%s979 + $0x2b8] sm:$0xff]
        %v3834 = vld [vmem:[%s979 + $0x2c0] sm:$0xff]
        %v3835 = vld [vmem:[%s979 + $0x2c8] sm:$0xff]
        %v3836 = vld [vmem:[%s979 + $0x2d0] sm:$0xff]
        %v3837 = vld [vmem:[%s979 + $0x2d8] sm:$0xff]
        %v3838 = vld [vmem:[%s979 + $0x2e0] sm:$0xff]
        %v3839 = vld [vmem:[%s979 + $0x2e8] sm:$0xff]
        %v3840 = vld [vmem:[%s979 + $0x2f0] sm:$0xff]
        %v3841 = vld [vmem:[%s979 + $0x2f8] sm:$0xff]
        %v3842 = vld [vmem:[%s979 + $0x300] sm:$0xff]
        %v3843 = vld [vmem:[%s979 + $0x308] sm:$0xff]
        %v3844 = vld [vmem:[%s979 + $0x310] sm:$0xff]
        %v3845 = vld [vmem:[%s979 + $0x318] sm:$0xff]
        %v3846 = vld [vmem:[%s979 + $0x320] sm:$0xff]
        %v3847 = vld [vmem:[%s979 + $0x328] sm:$0xff]
        %v3848 = vld [vmem:[%s979 + $0x330] sm:$0xff]
        %v3849 = vld [vmem:[%s979 + $0x338] sm:$0xff]
        %v3850 = vld [vmem:[%s979 + $0x340] sm:$0xff]
        %v3851 = vld [vmem:[%s979 + $0x348] sm:$0xff]
        %v3852 = vld [vmem:[%s979 + $0x350] sm:$0xff]
        %v3853 = vld [vmem:[%s979 + $0x358] sm:$0xff]
        %v3854 = vld [vmem:[%s979 + $0x360] sm:$0xff]
        %v3855 = vld [vmem:[%s979 + $0x368] sm:$0xff]
        %v3856 = vld [vmem:[%s979 + $0x370] sm:$0xff]
        %v3857 = vld [vmem:[%s979 + $0x378] sm:$0xff]
        %v3858 = vld [vmem:[%s979 + $0x380] sm:$0xff]
        %v3859 = vld [vmem:[%s979 + $0x388] sm:$0xff]
        %v3860 = vld [vmem:[%s979 + $0x390] sm:$0xff]
        %v3861 = vld [vmem:[%s979 + $0x398] sm:$0xff]
        %v3862 = vld [vmem:[%s979 + $0x3a0] sm:$0xff]
        %v3863 = vld [vmem:[%s979 + $0x3a8] sm:$0xff]
        %v3864 = vld [vmem:[%s979 + $0x3b0] sm:$0xff]
        %v3865 = vld [vmem:[%s979 + $0x3b8] sm:$0xff]
        %v3866 = vld [vmem:[%s979 + $0x3c0] sm:$0xff]
        %v3867 = vld [vmem:[%s979 + $0x3c8] sm:$0xff]
        %v3868 = vld [vmem:[%s979 + $0x3d0] sm:$0xff]
        %v3869 = vld [vmem:[%s979 + $0x3d8] sm:$0xff]
        %v3870 = vld [vmem:[%s979 + $0x3e0] sm:$0xff]
        %v3871 = vld [vmem:[%s979 + $0x3e8] sm:$0xff]
        %v3872 = vld [vmem:[%s979 + $0x3f0] sm:$0xff]
        %v3873 = vld [vmem:[%s979 + $0x3f8] sm:$0xff]
        %v3874 = vld [vmem:[%s988] sm:$0xff]
        %v3875 = vld [vmem:[%s988 + $0x8] sm:$0xff]
        %v3878 = vlaneseq
        %v3879 = vshrl.u32 %v3878, 7
        %v3880 = vsub.s32 0, %v3879
        %v3881 = vrot.slane %v3874, %v3880
        %v3882 = vlaneseq
        %v3883 = vshrl.u32 %v3882, 7
        %v3884 = vsub.s32 1, %v3883
        %v3885 = vrot.slane %v3874, %v3884
        %v3886 = vlaneseq
        %v3887 = vshrl.u32 %v3886, 7
        %v3888 = vsub.s32 2, %v3887
        %v3889 = vrot.slane %v3874, %v3888
        %v3890 = vlaneseq
        %v3891 = vshrl.u32 %v3890, 7
        %v3892 = vsub.s32 3, %v3891
        %v3893 = vrot.slane %v3874, %v3892
        %v3894 = vlaneseq
        %v3895 = vshrl.u32 %v3894, 7
        %v3896 = vsub.s32 4, %v3895
        %v3897 = vrot.slane %v3874, %v3896
        %v3898 = vlaneseq
        %v3899 = vshrl.u32 %v3898, 7
        %v3900 = vsub.s32 5, %v3899
        %v3901 = vrot.slane %v3874, %v3900
        %v3902 = vlaneseq
        %v3903 = vshrl.u32 %v3902, 7
        %v3904 = vsub.s32 6, %v3903
        %v3905 = vrot.slane %v3874, %v3904
        %v3906 = vlaneseq
        %v3907 = vshrl.u32 %v3906, 7
        %v3908 = vsub.s32 7, %v3907
        %v3909 = vrot.slane %v3874, %v3908
        %v3910 = vlaneseq
        %v3911 = vshrl.u32 %v3910, 7
        %v3912 = vsub.s32 0, %v3911
        %v3913 = vrot.slane %v3875, %v3912
        %v3914 = vlaneseq
        %v3915 = vshrl.u32 %v3914, 7
        %v3916 = vsub.s32 1, %v3915
        %v3917 = vrot.slane %v3875, %v3916
        %v3918 = vlaneseq
        %v3919 = vshrl.u32 %v3918, 7
        %v3920 = vsub.s32 2, %v3919
        %v3921 = vrot.slane %v3875, %v3920
        %v3922 = vlaneseq
        %v3923 = vshrl.u32 %v3922, 7
        %v3924 = vsub.s32 3, %v3923
        %v3925 = vrot.slane %v3875, %v3924
        %v3926 = vlaneseq
        %v3927 = vshrl.u32 %v3926, 7
        %v3928 = vsub.s32 4, %v3927
        %v3929 = vrot.slane %v3875, %v3928
        %v3930 = vlaneseq
        %v3931 = vshrl.u32 %v3930, 7
        %v3932 = vsub.s32 5, %v3931
        %v3933 = vrot.slane %v3875, %v3932
        %v3934 = vlaneseq
        %v3935 = vshrl.u32 %v3934, 7
        %v3936 = vsub.s32 6, %v3935
        %v3937 = vrot.slane %v3875, %v3936
        %v3938 = vlaneseq
        %v3939 = vshrl.u32 %v3938, 7
        %v3940 = vsub.s32 7, %v3939
        %v3941 = vrot.slane %v3875, %v3940
        %v4086 = vunpack.c.l.b16 %v3746
        %v4087 = vunpack.c.h.b16 %v3746
        %v4088 = vunpack.c.l.b16 %v3747
        %v4089 = vunpack.c.h.b16 %v3747
        %v4090 = vunpack.c.l.b16 %v3748
        %v4091 = vunpack.c.h.b16 %v3748
        %v4092 = vunpack.c.l.b16 %v3749
        %v4093 = vunpack.c.h.b16 %v3749
        %v4094 = vunpack.c.l.b16 %v3750
        %v4095 = vunpack.c.h.b16 %v3750
        %v4096 = vunpack.c.l.b16 %v3751
        %v4097 = vunpack.c.h.b16 %v3751
        %v4098 = vunpack.c.l.b16 %v3752
        %v4099 = vunpack.c.h.b16 %v3752
        %v4100 = vunpack.c.l.b16 %v3753
        %v4101 = vunpack.c.h.b16 %v3753
        %v4102 = vunpack.c.l.b16 %v3754
        %v4103 = vunpack.c.h.b16 %v3754
        %v4104 = vunpack.c.l.b16 %v3755
        %v4105 = vunpack.c.h.b16 %v3755
        %v4106 = vunpack.c.l.b16 %v3756
        %v4107 = vunpack.c.h.b16 %v3756
        %v4108 = vunpack.c.l.b16 %v3757
        %v4109 = vunpack.c.h.b16 %v3757
        %v4110 = vunpack.c.l.b16 %v3758
        %v4111 = vunpack.c.h.b16 %v3758
        %v4112 = vunpack.c.l.b16 %v3759
        %v4113 = vunpack.c.h.b16 %v3759
        %v4114 = vunpack.c.l.b16 %v3760
        %v4115 = vunpack.c.h.b16 %v3760
        %v4116 = vunpack.c.l.b16 %v3761
        %v4117 = vunpack.c.h.b16 %v3761
        %v4118 = vunpack.c.l.b16 %v3762
        %v4119 = vunpack.c.h.b16 %v3762
        %v4120 = vunpack.c.l.b16 %v3763
        %v4121 = vunpack.c.h.b16 %v3763
        %v4122 = vunpack.c.l.b16 %v3764
        %v4123 = vunpack.c.h.b16 %v3764
        %v4124 = vunpack.c.l.b16 %v3765
        %v4125 = vunpack.c.h.b16 %v3765
        %v4126 = vunpack.c.l.b16 %v3766
        %v4127 = vunpack.c.h.b16 %v3766
        %v4128 = vunpack.c.l.b16 %v3767
        %v4129 = vunpack.c.h.b16 %v3767
        %v4130 = vunpack.c.l.b16 %v3768
        %v4131 = vunpack.c.h.b16 %v3768
        %v4132 = vunpack.c.l.b16 %v3769
        %v4133 = vunpack.c.h.b16 %v3769
        %v4134 = vunpack.c.l.b16 %v3770
        %v4135 = vunpack.c.h.b16 %v3770
        %v4136 = vunpack.c.l.b16 %v3771
        %v4137 = vunpack.c.h.b16 %v3771
        %v4138 = vunpack.c.l.b16 %v3772
        %v4139 = vunpack.c.h.b16 %v3772
        %v4140 = vunpack.c.l.b16 %v3773
        %v4141 = vunpack.c.h.b16 %v3773
        %v4142 = vunpack.c.l.b16 %v3774
        %v4143 = vunpack.c.h.b16 %v3774
        %v4144 = vunpack.c.l.b16 %v3775
        %v4145 = vunpack.c.h.b16 %v3775
        %v4146 = vunpack.c.l.b16 %v3776
        %v4147 = vunpack.c.h.b16 %v3776
        %v4148 = vunpack.c.l.b16 %v3777
        %v4149 = vunpack.c.h.b16 %v3777
        %v4150 = vunpack.c.l.b16 %v3778
        %v4151 = vunpack.c.h.b16 %v3778
        %v4152 = vunpack.c.l.b16 %v3779
        %v4153 = vunpack.c.h.b16 %v3779
        %v4154 = vunpack.c.l.b16 %v3780
        %v4155 = vunpack.c.h.b16 %v3780
        %v4156 = vunpack.c.l.b16 %v3781
        %v4157 = vunpack.c.h.b16 %v3781
        %v4158 = vunpack.c.l.b16 %v3782
        %v4159 = vunpack.c.h.b16 %v3782
        %v4160 = vunpack.c.l.b16 %v3783
        %v4161 = vunpack.c.h.b16 %v3783
        %v4162 = vunpack.c.l.b16 %v3784
        %v4163 = vunpack.c.h.b16 %v3784
        %v4164 = vunpack.c.l.b16 %v3785
        %v4165 = vunpack.c.h.b16 %v3785
        %v4166 = vunpack.c.l.b16 %v3786
        %v4167 = vunpack.c.h.b16 %v3786
        %v4168 = vunpack.c.l.b16 %v3787
        %v4169 = vunpack.c.h.b16 %v3787
        %v4170 = vunpack.c.l.b16 %v3788
        %v4171 = vunpack.c.h.b16 %v3788
        %v4172 = vunpack.c.l.b16 %v3789
        %v4173 = vunpack.c.h.b16 %v3789
        %v4174 = vunpack.c.l.b16 %v3790
        %v4175 = vunpack.c.h.b16 %v3790
        %v4176 = vunpack.c.l.b16 %v3791
        %v4177 = vunpack.c.h.b16 %v3791
        %v4178 = vunpack.c.l.b16 %v3792
        %v4179 = vunpack.c.h.b16 %v3792
        %v4180 = vunpack.c.l.b16 %v3793
        %v4181 = vunpack.c.h.b16 %v3793
        %v4182 = vunpack.c.l.b16 %v3794
        %v4183 = vunpack.c.h.b16 %v3794
        %v4184 = vunpack.c.l.b16 %v3795
        %v4185 = vunpack.c.h.b16 %v3795
        %v4186 = vunpack.c.l.b16 %v3796
        %v4187 = vunpack.c.h.b16 %v3796
        %v4188 = vunpack.c.l.b16 %v3797
        %v4189 = vunpack.c.h.b16 %v3797
        %v4190 = vunpack.c.l.b16 %v3798
        %v4191 = vunpack.c.h.b16 %v3798
        %v4192 = vunpack.c.l.b16 %v3799
        %v4193 = vunpack.c.h.b16 %v3799
        %v4194 = vunpack.c.l.b16 %v3800
        %v4195 = vunpack.c.h.b16 %v3800
        %v4196 = vunpack.c.l.b16 %v3801
        %v4197 = vunpack.c.h.b16 %v3801
        %v4198 = vunpack.c.l.b16 %v3802
        %v4199 = vunpack.c.h.b16 %v3802
        %v4200 = vunpack.c.l.b16 %v3803
        %v4201 = vunpack.c.h.b16 %v3803
        %v4202 = vunpack.c.l.b16 %v3804
        %v4203 = vunpack.c.h.b16 %v3804
        %v4204 = vunpack.c.l.b16 %v3805
        %v4205 = vunpack.c.h.b16 %v3805
        %v4206 = vunpack.c.l.b16 %v3806
        %v4207 = vunpack.c.h.b16 %v3806
        %v4208 = vunpack.c.l.b16 %v3807
        %v4209 = vunpack.c.h.b16 %v3807
        %v4210 = vunpack.c.l.b16 %v3808
        %v4211 = vunpack.c.h.b16 %v3808
        %v4212 = vunpack.c.l.b16 %v3809
        %v4213 = vunpack.c.h.b16 %v3809
        %v4214 = vunpack.c.l.b16 %v3810
        %v4215 = vunpack.c.h.b16 %v3810
        %v4216 = vunpack.c.l.b16 %v3811
        %v4217 = vunpack.c.h.b16 %v3811
        %v4218 = vunpack.c.l.b16 %v3812
        %v4219 = vunpack.c.h.b16 %v3812
        %v4220 = vunpack.c.l.b16 %v3813
        %v4221 = vunpack.c.h.b16 %v3813
        %v4222 = vunpack.c.l.b16 %v3814
        %v4223 = vunpack.c.h.b16 %v3814
        %v4224 = vunpack.c.l.b16 %v3815
        %v4225 = vunpack.c.h.b16 %v3815
        %v4226 = vunpack.c.l.b16 %v3816
        %v4227 = vunpack.c.h.b16 %v3816
        %v4228 = vunpack.c.l.b16 %v3817
        %v4229 = vunpack.c.h.b16 %v3817
        %v4230 = vunpack.c.l.b16 %v3818
        %v4231 = vunpack.c.h.b16 %v3818
        %v4232 = vunpack.c.l.b16 %v3819
        %v4233 = vunpack.c.h.b16 %v3819
        %v4234 = vunpack.c.l.b16 %v3820
        %v4235 = vunpack.c.h.b16 %v3820
        %v4236 = vunpack.c.l.b16 %v3821
        %v4237 = vunpack.c.h.b16 %v3821
        %v4238 = vunpack.c.l.b16 %v3822
        %v4239 = vunpack.c.h.b16 %v3822
        %v4240 = vunpack.c.l.b16 %v3823
        %v4241 = vunpack.c.h.b16 %v3823
        %v4242 = vunpack.c.l.b16 %v3824
        %v4243 = vunpack.c.h.b16 %v3824
        %v4244 = vunpack.c.l.b16 %v3825
        %v4245 = vunpack.c.h.b16 %v3825
        %v4246 = vunpack.c.l.b16 %v3826
        %v4247 = vunpack.c.h.b16 %v3826
        %v4248 = vunpack.c.l.b16 %v3827
        %v4249 = vunpack.c.h.b16 %v3827
        %v4250 = vunpack.c.l.b16 %v3828
        %v4251 = vunpack.c.h.b16 %v3828
        %v4252 = vunpack.c.l.b16 %v3829
        %v4253 = vunpack.c.h.b16 %v3829
        %v4254 = vunpack.c.l.b16 %v3830
        %v4255 = vunpack.c.h.b16 %v3830
        %v4256 = vunpack.c.l.b16 %v3831
        %v4257 = vunpack.c.h.b16 %v3831
        %v4258 = vunpack.c.l.b16 %v3832
        %v4259 = vunpack.c.h.b16 %v3832
        %v4260 = vunpack.c.l.b16 %v3833
        %v4261 = vunpack.c.h.b16 %v3833
        %v4262 = vunpack.c.l.b16 %v3834
        %v4263 = vunpack.c.h.b16 %v3834
        %v4264 = vunpack.c.l.b16 %v3835
        %v4265 = vunpack.c.h.b16 %v3835
        %v4266 = vunpack.c.l.b16 %v3836
        %v4267 = vunpack.c.h.b16 %v3836
        %v4268 = vunpack.c.l.b16 %v3837
        %v4269 = vunpack.c.h.b16 %v3837
        %v4270 = vunpack.c.l.b16 %v3838
        %v4271 = vunpack.c.h.b16 %v3838
        %v4272 = vunpack.c.l.b16 %v3839
        %v4273 = vunpack.c.h.b16 %v3839
        %v4274 = vunpack.c.l.b16 %v3840
        %v4275 = vunpack.c.h.b16 %v3840
        %v4276 = vunpack.c.l.b16 %v3841
        %v4277 = vunpack.c.h.b16 %v3841
        %v4278 = vunpack.c.l.b16 %v3842
        %v4279 = vunpack.c.h.b16 %v3842
        %v4280 = vunpack.c.l.b16 %v3843
        %v4281 = vunpack.c.h.b16 %v3843
        %v4282 = vunpack.c.l.b16 %v3844
        %v4283 = vunpack.c.h.b16 %v3844
        %v4284 = vunpack.c.l.b16 %v3845
        %v4285 = vunpack.c.h.b16 %v3845
        %v4286 = vunpack.c.l.b16 %v3846
        %v4287 = vunpack.c.h.b16 %v3846
        %v4288 = vunpack.c.l.b16 %v3847
        %v4289 = vunpack.c.h.b16 %v3847
        %v4290 = vunpack.c.l.b16 %v3848
        %v4291 = vunpack.c.h.b16 %v3848
        %v4292 = vunpack.c.l.b16 %v3849
        %v4293 = vunpack.c.h.b16 %v3849
        %v4294 = vunpack.c.l.b16 %v3850
        %v4295 = vunpack.c.h.b16 %v3850
        %v4296 = vunpack.c.l.b16 %v3851
        %v4297 = vunpack.c.h.b16 %v3851
        %v4298 = vunpack.c.l.b16 %v3852
        %v4299 = vunpack.c.h.b16 %v3852
        %v4300 = vunpack.c.l.b16 %v3853
        %v4301 = vunpack.c.h.b16 %v3853
        %v4302 = vunpack.c.l.b16 %v3854
        %v4303 = vunpack.c.h.b16 %v3854
        %v4304 = vunpack.c.l.b16 %v3855
        %v4305 = vunpack.c.h.b16 %v3855
        %v4306 = vunpack.c.l.b16 %v3856
        %v4307 = vunpack.c.h.b16 %v3856
        %v4308 = vunpack.c.l.b16 %v3857
        %v4309 = vunpack.c.h.b16 %v3857
        %v4310 = vunpack.c.l.b16 %v3858
        %v4311 = vunpack.c.h.b16 %v3858
        %v4312 = vunpack.c.l.b16 %v3859
        %v4313 = vunpack.c.h.b16 %v3859
        %v4314 = vunpack.c.l.b16 %v3860
        %v4315 = vunpack.c.h.b16 %v3860
        %v4316 = vunpack.c.l.b16 %v3861
        %v4317 = vunpack.c.h.b16 %v3861
        %v4318 = vunpack.c.l.b16 %v3862
        %v4319 = vunpack.c.h.b16 %v3862
        %v4320 = vunpack.c.l.b16 %v3863
        %v4321 = vunpack.c.h.b16 %v3863
        %v4322 = vunpack.c.l.b16 %v3864
        %v4323 = vunpack.c.h.b16 %v3864
        %v4324 = vunpack.c.l.b16 %v3865
        %v4325 = vunpack.c.h.b16 %v3865
        %v4326 = vunpack.c.l.b16 %v3866
        %v4327 = vunpack.c.h.b16 %v3866
        %v4328 = vunpack.c.l.b16 %v3867
        %v4329 = vunpack.c.h.b16 %v3867
        %v4330 = vunpack.c.l.b16 %v3868
        %v4331 = vunpack.c.h.b16 %v3868
        %v4332 = vunpack.c.l.b16 %v3869
        %v4333 = vunpack.c.h.b16 %v3869
        %v4334 = vunpack.c.l.b16 %v3870
        %v4335 = vunpack.c.h.b16 %v3870
        %v4336 = vunpack.c.l.b16 %v3871
        %v4337 = vunpack.c.h.b16 %v3871
        %v4338 = vunpack.c.l.b16 %v3872
        %v4339 = vunpack.c.h.b16 %v3872
        %v4340 = vunpack.c.l.b16 %v3873
        %v4341 = vunpack.c.h.b16 %v3873
        %v4342 = vpack.c.b16 %v4102, %v4086
        %v4343 = vpack.c.b16 %v4103, %v4087
        %v4344 = vpack.c.b16 %v4104, %v4088
        %v4345 = vpack.c.b16 %v4105, %v4089
        %v4346 = vpack.c.b16 %v4106, %v4090
        %v4347 = vpack.c.b16 %v4107, %v4091
        %v4348 = vpack.c.b16 %v4108, %v4092
        %v4349 = vpack.c.b16 %v4109, %v4093
        %v4350 = vpack.c.b16 %v4110, %v4094
        %v4351 = vpack.c.b16 %v4111, %v4095
        %v4352 = vpack.c.b16 %v4112, %v4096
        %v4353 = vpack.c.b16 %v4113, %v4097
        %v4354 = vpack.c.b16 %v4114, %v4098
        %v4355 = vpack.c.b16 %v4115, %v4099
        %v4356 = vpack.c.b16 %v4116, %v4100
        %v4357 = vpack.c.b16 %v4117, %v4101
        %v4358 = vpack.c.b16 %v4134, %v4118
        %v4359 = vpack.c.b16 %v4135, %v4119
        %v4360 = vpack.c.b16 %v4136, %v4120
        %v4361 = vpack.c.b16 %v4137, %v4121
        %v4362 = vpack.c.b16 %v4138, %v4122
        %v4363 = vpack.c.b16 %v4139, %v4123
        %v4364 = vpack.c.b16 %v4140, %v4124
        %v4365 = vpack.c.b16 %v4141, %v4125
        %v4366 = vpack.c.b16 %v4142, %v4126
        %v4367 = vpack.c.b16 %v4143, %v4127
        %v4368 = vpack.c.b16 %v4144, %v4128
        %v4369 = vpack.c.b16 %v4145, %v4129
        %v4370 = vpack.c.b16 %v4146, %v4130
        %v4371 = vpack.c.b16 %v4147, %v4131
        %v4372 = vpack.c.b16 %v4148, %v4132
        %v4373 = vpack.c.b16 %v4149, %v4133
        %v4374 = vpack.c.b16 %v4166, %v4150
        %v4375 = vpack.c.b16 %v4167, %v4151
        %v4376 = vpack.c.b16 %v4168, %v4152
        %v4377 = vpack.c.b16 %v4169, %v4153
        %v4378 = vpack.c.b16 %v4170, %v4154
        %v4379 = vpack.c.b16 %v4171, %v4155
        %v4380 = vpack.c.b16 %v4172, %v4156
        %v4381 = vpack.c.b16 %v4173, %v4157
        %v4382 = vpack.c.b16 %v4174, %v4158
        %v4383 = vpack.c.b16 %v4175, %v4159
        %v4384 = vpack.c.b16 %v4176, %v4160
        %v4385 = vpack.c.b16 %v4177, %v4161
        %v4386 = vpack.c.b16 %v4178, %v4162
        %v4387 = vpack.c.b16 %v4179, %v4163
        %v4388 = vpack.c.b16 %v4180, %v4164
        %v4389 = vpack.c.b16 %v4181, %v4165
        %v4390 = vpack.c.b16 %v4198, %v4182
        %v4391 = vpack.c.b16 %v4199, %v4183
        %v4392 = vpack.c.b16 %v4200, %v4184
        %v4393 = vpack.c.b16 %v4201, %v4185
        %v4394 = vpack.c.b16 %v4202, %v4186
        %v4395 = vpack.c.b16 %v4203, %v4187
        %v4396 = vpack.c.b16 %v4204, %v4188
        %v4397 = vpack.c.b16 %v4205, %v4189
        %v4398 = vpack.c.b16 %v4206, %v4190
        %v4399 = vpack.c.b16 %v4207, %v4191
        %v4400 = vpack.c.b16 %v4208, %v4192
        %v4401 = vpack.c.b16 %v4209, %v4193
        %v4402 = vpack.c.b16 %v4210, %v4194
        %v4403 = vpack.c.b16 %v4211, %v4195
        %v4404 = vpack.c.b16 %v4212, %v4196
        %v4405 = vpack.c.b16 %v4213, %v4197
        %v4406 = vpack.c.b16 %v4230, %v4214
        %v4407 = vpack.c.b16 %v4231, %v4215
        %v4408 = vpack.c.b16 %v4232, %v4216
        %v4409 = vpack.c.b16 %v4233, %v4217
        %v4410 = vpack.c.b16 %v4234, %v4218
        %v4411 = vpack.c.b16 %v4235, %v4219
        %v4412 = vpack.c.b16 %v4236, %v4220
        %v4413 = vpack.c.b16 %v4237, %v4221
        %v4414 = vpack.c.b16 %v4238, %v4222
        %v4415 = vpack.c.b16 %v4239, %v4223
        %v4416 = vpack.c.b16 %v4240, %v4224
        %v4417 = vpack.c.b16 %v4241, %v4225
        %v4418 = vpack.c.b16 %v4242, %v4226
        %v4419 = vpack.c.b16 %v4243, %v4227
        %v4420 = vpack.c.b16 %v4244, %v4228
        %v4421 = vpack.c.b16 %v4245, %v4229
        %v4422 = vpack.c.b16 %v4262, %v4246
        %v4423 = vpack.c.b16 %v4263, %v4247
        %v4424 = vpack.c.b16 %v4264, %v4248
        %v4425 = vpack.c.b16 %v4265, %v4249
        %v4426 = vpack.c.b16 %v4266, %v4250
        %v4427 = vpack.c.b16 %v4267, %v4251
        %v4428 = vpack.c.b16 %v4268, %v4252
        %v4429 = vpack.c.b16 %v4269, %v4253
        %v4430 = vpack.c.b16 %v4270, %v4254
        %v4431 = vpack.c.b16 %v4271, %v4255
        %v4432 = vpack.c.b16 %v4272, %v4256
        %v4433 = vpack.c.b16 %v4273, %v4257
        %v4434 = vpack.c.b16 %v4274, %v4258
        %v4435 = vpack.c.b16 %v4275, %v4259
        %v4436 = vpack.c.b16 %v4276, %v4260
        %v4437 = vpack.c.b16 %v4277, %v4261
        %v4438 = vpack.c.b16 %v4294, %v4278
        %v4439 = vpack.c.b16 %v4295, %v4279
        %v4440 = vpack.c.b16 %v4296, %v4280
        %v4441 = vpack.c.b16 %v4297, %v4281
        %v4442 = vpack.c.b16 %v4298, %v4282
        %v4443 = vpack.c.b16 %v4299, %v4283
        %v4444 = vpack.c.b16 %v4300, %v4284
        %v4445 = vpack.c.b16 %v4301, %v4285
        %v4446 = vpack.c.b16 %v4302, %v4286
        %v4447 = vpack.c.b16 %v4303, %v4287
        %v4448 = vpack.c.b16 %v4304, %v4288
        %v4449 = vpack.c.b16 %v4305, %v4289
        %v4450 = vpack.c.b16 %v4306, %v4290
        %v4451 = vpack.c.b16 %v4307, %v4291
        %v4452 = vpack.c.b16 %v4308, %v4292
        %v4453 = vpack.c.b16 %v4309, %v4293
        %v4454 = vpack.c.b16 %v4326, %v4310
        %v4455 = vpack.c.b16 %v4327, %v4311
        %v4456 = vpack.c.b16 %v4328, %v4312
        %v4457 = vpack.c.b16 %v4329, %v4313
        %v4458 = vpack.c.b16 %v4330, %v4314
        %v4459 = vpack.c.b16 %v4331, %v4315
        %v4460 = vpack.c.b16 %v4332, %v4316
        %v4461 = vpack.c.b16 %v4333, %v4317
        %v4462 = vpack.c.b16 %v4334, %v4318
        %v4463 = vpack.c.b16 %v4335, %v4319
        %v4464 = vpack.c.b16 %v4336, %v4320
        %v4465 = vpack.c.b16 %v4337, %v4321
        %v4466 = vpack.c.b16 %v4338, %v4322
        %v4467 = vpack.c.b16 %v4339, %v4323
        %v4468 = vpack.c.b16 %v4340, %v4324
        %v4469 = vpack.c.b16 %v4341, %v4325
        %4598 = vmatprep.subr.bf16.mxu0 %v4343
        %4599 = vmatpush1.bf16.msra.mxu0 %v4342
        %4600 = vmatprep.subr.bf16.mxu0 %v4359
        %4601 = vmatpush1.bf16.msra.mxu0 %v4358
        %4602 = vmatprep.subr.bf16.mxu0 %v4375
        %4603 = vmatpush1.bf16.msra.mxu0 %v4374
        %4604 = vmatprep.subr.bf16.mxu0 %v4391
        %4605 = vmatpush1.bf16.msra.mxu0 %v4390
        %4606 = vmatprep.subr.bf16.mxu0 %v4407
        %4607 = vmatpush1.bf16.msra.mxu0 %v4406
        %4608 = vmatprep.subr.bf16.mxu0 %v4423
        %4609 = vmatpush1.bf16.msra.mxu0 %v4422
        %4610 = vmatprep.subr.bf16.mxu0 %v4439
        %4611 = vmatpush1.bf16.msra.mxu0 %v4438
        %4612 = vmatprep.subr.bf16.mxu0 %v4455
        %4613 = vmatpush1.bf16.msra.mxu0 %v4454
        %4614 = vmatprep.subr.bf16.mxu0 0
        %4615 = vmatpush1.bf16.msra.mxu0 0
        %4616 = vmatprep.subr.bf16.mxu0 0
        %4617 = vmatpush1.bf16.msra.mxu0 0
        %4618 = vmatprep.subr.bf16.mxu0 0
        %4619 = vmatpush1.bf16.msra.mxu0 0
        %4620 = vmatprep.subr.bf16.mxu0 0
        %4621 = vmatpush1.bf16.msra.mxu0 0
        %4622 = vmatprep.subr.bf16.mxu0 0
        %4623 = vmatpush1.bf16.msra.mxu0 0
        %4624 = vmatprep.subr.bf16.mxu0 0
        %4625 = vmatpush1.bf16.msra.mxu0 0
        %4626 = vmatprep.subr.bf16.mxu0 0
        %4627 = vmatpush1.bf16.msra.mxu0 0
        %4628 = vmatprep.subr.bf16.mxu0 0
        %4629 = vmatpush1.bf16.msra.mxu0 0
        %4630 = vmatprep.mubr.bf16.mxu0 0
        %4631 = vmatmul.mubr.bf16.gmra.mrb[0].mxu0 %v3744
        %v4632 = vpop.f32.mrb[0].mxu0
        %v4633 = vadd.f32 %v3881, %v4632
        %v4634 = vpop.f32.mrb[0].mxu0
        %v4635 = vadd.f32 %v3885, %v4634
        %v4636 = vpop.f32.mrb[0].mxu0
        %v4637 = vadd.f32 %v3881, %v4636
        %v4638 = vpop.f32.mrb[0].mxu0
        %v4639 = vadd.f32 %v3885, %v4638
        %4640 = vmatprep.mubr.bf16.mxu0 0
        %4641 = vmatmul.mubr.bf16.gmra.mrb[0].mxu0 %v3745
        %v4642 = vpop.f32.mrb[0].mxu0
        %v4643 = vadd.f32 %v3881, %v4642
        %v4644 = vpop.f32.mrb[0].mxu0
        %v4645 = vadd.f32 %v3885, %v4644
        %v4646 = vpop.f32.mrb[0].mxu0
        %v4647 = vadd.f32 %v3881, %v4646
        %v4648 = vpop.f32.mrb[0].mxu0
        %v4649 = vadd.f32 %v3885, %v4648
        %4650 = vdwg.mxu0
        %4651 = vmatprep.subr.bf16.mxu0 %v4345
        %4652 = vmatpush1.bf16.msra.mxu0 %v4344
        %4653 = vmatprep.subr.bf16.mxu0 %v4361
        %4654 = vmatpush1.bf16.msra.mxu0 %v4360
        %4655 = vmatprep.subr.bf16.mxu0 %v4377
        %4656 = vmatpush1.bf16.msra.mxu0 %v4376
        %4657 = vmatprep.subr.bf16.mxu0 %v4393
        %4658 = vmatpush1.bf16.msra.mxu0 %v4392
        %4659 = vmatprep.subr.bf16.mxu0 %v4409
        %4660 = vmatpush1.bf16.msra.mxu0 %v4408
        %4661 = vmatprep.subr.bf16.mxu0 %v4425
        %4662 = vmatpush1.bf16.msra.mxu0 %v4424
        %4663 = vmatprep.subr.bf16.mxu0 %v4441
        %4664 = vmatpush1.bf16.msra.mxu0 %v4440
        %4665 = vmatprep.subr.bf16.mxu0 %v4457
        %4666 = vmatpush1.bf16.msra.mxu0 %v4456
        %4667 = vmatprep.subr.bf16.mxu0 0
        %4668 = vmatpush1.bf16.msra.mxu0 0
        %4669 = vmatprep.subr.bf16.mxu0 0
        %4670 = vmatpush1.bf16.msra.mxu0 0
        %4671 = vmatprep.subr.bf16.mxu0 0
        %4672 = vmatpush1.bf16.msra.mxu0 0
        %4673 = vmatprep.subr.bf16.mxu0 0
        %4674 = vmatpush1.bf16.msra.mxu0 0
        %4675 = vmatprep.subr.bf16.mxu0 0
        %4676 = vmatpush1.bf16.msra.mxu0 0
        %4677 = vmatprep.subr.bf16.mxu0 0
        %4678 = vmatpush1.bf16.msra.mxu0 0
        %4679 = vmatprep.subr.bf16.mxu0 0
        %4680 = vmatpush1.bf16.msra.mxu0 0
        %4681 = vmatprep.subr.bf16.mxu0 0
        %4682 = vmatpush1.bf16.msra.mxu0 0
        %4683 = vmatprep.mubr.bf16.mxu0 0
        %4684 = vmatmul.mubr.bf16.gmra.mrb[0].mxu0 %v3744
        %v4685 = vpop.f32.mrb[0].mxu0
        %v4686 = vadd.f32 %v3889, %v4685
        %v4687 = vpop.f32.mrb[0].mxu0
        %v4688 = vadd.f32 %v3893, %v4687
        %v4689 = vpop.f32.mrb[0].mxu0
        %v4690 = vadd.f32 %v3889, %v4689
        %v4691 = vpop.f32.mrb[0].mxu0
        %v4692 = vadd.f32 %v3893, %v4691
        %4693 = vmatprep.mubr.bf16.mxu0 0
        %4694 = vmatmul.mubr.bf16.gmra.mrb[0].mxu0 %v3745
        %v4695 = vpop.f32.mrb[0].mxu0
        %v4696 = vadd.f32 %v3889, %v4695
        %v4697 = vpop.f32.mrb[0].mxu0
        %v4698 = vadd.f32 %v3893, %v4697
        %v4699 = vpop.f32.mrb[0].mxu0
        %v4700 = vadd.f32 %v3889, %v4699
        %v4701 = vpop.f32.mrb[0].mxu0
        %v4702 = vadd.f32 %v3893, %v4701
        %4703 = vdwg.mxu0
        %4704 = vmatprep.subr.bf16.mxu0 %v4347
        %4705 = vmatpush1.bf16.msra.mxu0 %v4346
        %4706 = vmatprep.subr.bf16.mxu0 %v4363
        %4707 = vmatpush1.bf16.msra.mxu0 %v4362
        %4708 = vmatprep.subr.bf16.mxu0 %v4379
        %4709 = vmatpush1.bf16.msra.mxu0 %v4378
        %4710 = vmatprep.subr.bf16.mxu0 %v4395
        %4711 = vmatpush1.bf16.msra.mxu0 %v4394
        %4712 = vmatprep.subr.bf16.mxu0 %v4411
        %4713 = vmatpush1.bf16.msra.mxu0 %v4410
        %4714 = vmatprep.subr.bf16.mxu0 %v4427
        %4715 = vmatpush1.bf16.msra.mxu0 %v4426
        %4716 = vmatprep.subr.bf16.mxu0 %v4443
        %4717 = vmatpush1.bf16.msra.mxu0 %v4442
        %4718 = vmatprep.subr.bf16.mxu0 %v4459
        %4719 = vmatpush1.bf16.msra.mxu0 %v4458
        %4720 = vmatprep.subr.bf16.mxu0 0
        %4721 = vmatpush1.bf16.msra.mxu0 0
        %4722 = vmatprep.subr.bf16.mxu0 0
        %4723 = vmatpush1.bf16.msra.mxu0 0
        %4724 = vmatprep.subr.bf16.mxu0 0
        %4725 = vmatpush1.bf16.msra.mxu0 0
        %4726 = vmatprep.subr.bf16.mxu0 0
        %4727 = vmatpush1.bf16.msra.mxu0 0
        %4728 = vmatprep.subr.bf16.mxu0 0
        %4729 = vmatpush1.bf16.msra.mxu0 0
        %4730 = vmatprep.subr.bf16.mxu0 0
        %4731 = vmatpush1.bf16.msra.mxu0 0
        %4732 = vmatprep.subr.bf16.mxu0 0
        %4733 = vmatpush1.bf16.msra.mxu0 0
        %4734 = vmatprep.subr.bf16.mxu0 0
        %4735 = vmatpush1.bf16.msra.mxu0 0
        %4736 = vmatprep.mubr.bf16.mxu0 0
        %4737 = vmatmul.mubr.bf16.gmra.mrb[0].mxu0 %v3744
        %v4738 = vpop.f32.mrb[0].mxu0
        %v4739 = vadd.f32 %v3897, %v4738
        %v4740 = vpop.f32.mrb[0].mxu0
        %v4741 = vadd.f32 %v3901, %v4740
        %v4742 = vpop.f32.mrb[0].mxu0
        %v4743 = vadd.f32 %v3897, %v4742
        %v4744 = vpop.f32.mrb[0].mxu0
        %v4745 = vadd.f32 %v3901, %v4744
        %4746 = vmatprep.mubr.bf16.mxu0 0
        %4747 = vmatmul.mubr.bf16.gmra.mrb[0].mxu0 %v3745
        %v4748 = vpop.f32.mrb[0].mxu0
        %v4749 = vadd.f32 %v3897, %v4748
        %v4750 = vpop.f32.mrb[0].mxu0
        %v4751 = vadd.f32 %v3901, %v4750
        %v4752 = vpop.f32.mrb[0].mxu0
        %v4753 = vadd.f32 %v3897, %v4752
        %v4754 = vpop.f32.mrb[0].mxu0
        %v4755 = vadd.f32 %v3901, %v4754
        %4756 = vdwg.mxu0
        %4757 = vmatprep.subr.bf16.mxu0 %v4349
        %4758 = vmatpush1.bf16.msra.mxu0 %v4348
        %4759 = vmatprep.subr.bf16.mxu0 %v4365
        %4760 = vmatpush1.bf16.msra.mxu0 %v4364
        %4761 = vmatprep.subr.bf16.mxu0 %v4381
        %4762 = vmatpush1.bf16.msra.mxu0 %v4380
        %4763 = vmatprep.subr.bf16.mxu0 %v4397
        %4764 = vmatpush1.bf16.msra.mxu0 %v4396
        %4765 = vmatprep.subr.bf16.mxu0 %v4413
        %4766 = vmatpush1.bf16.msra.mxu0 %v4412
        %4767 = vmatprep.subr.bf16.mxu0 %v4429
        %4768 = vmatpush1.bf16.msra.mxu0 %v4428
        %4769 = vmatprep.subr.bf16.mxu0 %v4445
        %4770 = vmatpush1.bf16.msra.mxu0 %v4444
        %4771 = vmatprep.subr.bf16.mxu0 %v4461
        %4772 = vmatpush1.bf16.msra.mxu0 %v4460
        %4773 = vmatprep.subr.bf16.mxu0 0
        %4774 = vmatpush1.bf16.msra.mxu0 0
        %4775 = vmatprep.subr.bf16.mxu0 0
        %4776 = vmatpush1.bf16.msra.mxu0 0
        %4777 = vmatprep.subr.bf16.mxu0 0
        %4778 = vmatpush1.bf16.msra.mxu0 0
        %4779 = vmatprep.subr.bf16.mxu0 0
        %4780 = vmatpush1.bf16.msra.mxu0 0
        %4781 = vmatprep.subr.bf16.mxu0 0
        %4782 = vmatpush1.bf16.msra.mxu0 0
        %4783 = vmatprep.subr.bf16.mxu0 0
        %4784 = vmatpush1.bf16.msra.mxu0 0
        %4785 = vmatprep.subr.bf16.mxu0 0
        %4786 = vmatpush1.bf16.msra.mxu0 0
        %4787 = vmatprep.subr.bf16.mxu0 0
        %4788 = vmatpush1.bf16.msra.mxu0 0
        %4789 = vmatprep.mubr.bf16.mxu0 0
        %4790 = vmatmul.mubr.bf16.gmra.mrb[0].mxu0 %v3744
        %v4791 = vpop.f32.mrb[0].mxu0
        %v4792 = vadd.f32 %v3905, %v4791
        %v4793 = vpop.f32.mrb[0].mxu0
        %v4794 = vadd.f32 %v3909, %v4793
        %v4795 = vpop.f32.mrb[0].mxu0
        %v4796 = vadd.f32 %v3905, %v4795
        %v4797 = vpop.f32.mrb[0].mxu0
        %v4798 = vadd.f32 %v3909, %v4797
        %4799 = vmatprep.mubr.bf16.mxu0 0
        %4800 = vmatmul.mubr.bf16.gmra.mrb[0].mxu0 %v3745
        %v4801 = vpop.f32.mrb[0].mxu0
        %v4802 = vadd.f32 %v3905, %v4801
        %v4803 = vpop.f32.mrb[0].mxu0
        %v4804 = vadd.f32 %v3909, %v4803
        %v4805 = vpop.f32.mrb[0].mxu0
        %v4806 = vadd.f32 %v3905, %v4805
        %v4807 = vpop.f32.mrb[0].mxu0
        %v4808 = vadd.f32 %v3909, %v4807
        %4809 = vdwg.mxu0
        %4810 = vmatprep.subr.bf16.mxu0 %v4351
        %4811 = vmatpush1.bf16.msra.mxu0 %v4350
        %4812 = vmatprep.subr.bf16.mxu0 %v4367
        %4813 = vmatpush1.bf16.msra.mxu0 %v4366
        %4814 = vmatprep.subr.bf16.mxu0 %v4383
        %4815 = vmatpush1.bf16.msra.mxu0 %v4382
        %4816 = vmatprep.subr.bf16.mxu0 %v4399
        %4817 = vmatpush1.bf16.msra.mxu0 %v4398
        %4818 = vmatprep.subr.bf16.mxu0 %v4415
        %4819 = vmatpush1.bf16.msra.mxu0 %v4414
        %4820 = vmatprep.subr.bf16.mxu0 %v4431
        %4821 = vmatpush1.bf16.msra.mxu0 %v4430
        %4822 = vmatprep.subr.bf16.mxu0 %v4447
        %4823 = vmatpush1.bf16.msra.mxu0 %v4446
        %4824 = vmatprep.subr.bf16.mxu0 %v4463
        %4825 = vmatpush1.bf16.msra.mxu0 %v4462
        %4826 = vmatprep.subr.bf16.mxu0 0
        %4827 = vmatpush1.bf16.msra.mxu0 0
        %4828 = vmatprep.subr.bf16.mxu0 0
        %4829 = vmatpush1.bf16.msra.mxu0 0
        %4830 = vmatprep.subr.bf16.mxu0 0
        %4831 = vmatpush1.bf16.msra.mxu0 0
        %4832 = vmatprep.subr.bf16.mxu0 0
        %4833 = vmatpush1.bf16.msra.mxu0 0
        %4834 = vmatprep.subr.bf16.mxu0 0
        %4835 = vmatpush1.bf16.msra.mxu0 0
        %4836 = vmatprep.subr.bf16.mxu0 0
        %4837 = vmatpush1.bf16.msra.mxu0 0
        %4838 = vmatprep.subr.bf16.mxu0 0
        %4839 = vmatpush1.bf16.msra.mxu0 0
        %4840 = vmatprep.subr.bf16.mxu0 0
        %4841 = vmatpush1.bf16.msra.mxu0 0
        %4842 = vmatprep.mubr.bf16.mxu0 0
        %4843 = vmatmul.mubr.bf16.gmra.mrb[0].mxu0 %v3744
        %v4844 = vpop.f32.mrb[0].mxu0
        %v4845 = vadd.f32 %v3913, %v4844
        %v4846 = vpop.f32.mrb[0].mxu0
        %v4847 = vadd.f32 %v3917, %v4846
        %v4848 = vpop.f32.mrb[0].mxu0
        %v4849 = vadd.f32 %v3913, %v4848
        %v4850 = vpop.f32.mrb[0].mxu0
        %v4851 = vadd.f32 %v3917, %v4850
        %4852 = vmatprep.mubr.bf16.mxu0 0
        %4853 = vmatmul.mubr.bf16.gmra.mrb[0].mxu0 %v3745
        %v4854 = vpop.f32.mrb[0].mxu0
        %v4855 = vadd.f32 %v3913, %v4854
        %v4856 = vpop.f32.mrb[0].mxu0
        %v4857 = vadd.f32 %v3917, %v4856
        %v4858 = vpop.f32.mrb[0].mxu0
        %v4859 = vadd.f32 %v3913, %v4858
        %v4860 = vpop.f32.mrb[0].mxu0
        %v4861 = vadd.f32 %v3917, %v4860
        %4862 = vdwg.mxu0
        %4863 = vmatprep.subr.bf16.mxu0 %v4353
        %4864 = vmatpush1.bf16.msra.mxu0 %v4352
        %4865 = vmatprep.subr.bf16.mxu0 %v4369
        %4866 = vmatpush1.bf16.msra.mxu0 %v4368
        %4867 = vmatprep.subr.bf16.mxu0 %v4385
        %4868 = vmatpush1.bf16.msra.mxu0 %v4384
        %4869 = vmatprep.subr.bf16.mxu0 %v4401
        %4870 = vmatpush1.bf16.msra.mxu0 %v4400
        %4871 = vmatprep.subr.bf16.mxu0 %v4417
        %4872 = vmatpush1.bf16.msra.mxu0 %v4416
        %4873 = vmatprep.subr.bf16.mxu0 %v4433
        %4874 = vmatpush1.bf16.msra.mxu0 %v4432
        %4875 = vmatprep.subr.bf16.mxu0 %v4449
        %4876 = vmatpush1.bf16.msra.mxu0 %v4448
        %4877 = vmatprep.subr.bf16.mxu0 %v4465
        %4878 = vmatpush1.bf16.msra.mxu0 %v4464
        %4879 = vmatprep.subr.bf16.mxu0 0
        %4880 = vmatpush1.bf16.msra.mxu0 0
        %4881 = vmatprep.subr.bf16.mxu0 0
        %4882 = vmatpush1.bf16.msra.mxu0 0
        %4883 = vmatprep.subr.bf16.mxu0 0
        %4884 = vmatpush1.bf16.msra.mxu0 0
        %4885 = vmatprep.subr.bf16.mxu0 0
        %4886 = vmatpush1.bf16.msra.mxu0 0
        %4887 = vmatprep.subr.bf16.mxu0 0
        %4888 = vmatpush1.bf16.msra.mxu0 0
        %4889 = vmatprep.subr.bf16.mxu0 0
        %4890 = vmatpush1.bf16.msra.mxu0 0
        %4891 = vmatprep.subr.bf16.mxu0 0
        %4892 = vmatpush1.bf16.msra.mxu0 0
        %4893 = vmatprep.subr.bf16.mxu0 0
        %4894 = vmatpush1.bf16.msra.mxu0 0
        %4895 = vmatprep.mubr.bf16.mxu0 0
        %4896 = vmatmul.mubr.bf16.gmra.mrb[0].mxu0 %v3744
        %v4897 = vpop.f32.mrb[0].mxu0
        %v4898 = vadd.f32 %v3921, %v4897
        %v4899 = vpop.f32.mrb[0].mxu0
        %v4900 = vadd.f32 %v3925, %v4899
        %v4901 = vpop.f32.mrb[0].mxu0
        %v4902 = vadd.f32 %v3921, %v4901
        %v4903 = vpop.f32.mrb[0].mxu0
        %v4904 = vadd.f32 %v3925, %v4903
        %4905 = vmatprep.mubr.bf16.mxu0 0
        %4906 = vmatmul.mubr.bf16.gmra.mrb[0].mxu0 %v3745
        %v4907 = vpop.f32.mrb[0].mxu0
        %v4908 = vadd.f32 %v3921, %v4907
        %v4909 = vpop.f32.mrb[0].mxu0
        %v4910 = vadd.f32 %v3925, %v4909
        %v4911 = vpop.f32.mrb[0].mxu0
        %v4912 = vadd.f32 %v3921, %v4911
        %v4913 = vpop.f32.mrb[0].mxu0
        %v4914 = vadd.f32 %v3925, %v4913
        %4915 = vdwg.mxu0
        %4916 = vmatprep.subr.bf16.mxu0 %v4355
        %4917 = vmatpush1.bf16.msra.mxu0 %v4354
        %4918 = vmatprep.subr.bf16.mxu0 %v4371
        %4919 = vmatpush1.bf16.msra.mxu0 %v4370
        %4920 = vmatprep.subr.bf16.mxu0 %v4387
        %4921 = vmatpush1.bf16.msra.mxu0 %v4386
        %4922 = vmatprep.subr.bf16.mxu0 %v4403
        %4923 = vmatpush1.bf16.msra.mxu0 %v4402
        %4924 = vmatprep.subr.bf16.mxu0 %v4419
        %4925 = vmatpush1.bf16.msra.mxu0 %v4418
        %4926 = vmatprep.subr.bf16.mxu0 %v4435
        %4927 = vmatpush1.bf16.msra.mxu0 %v4434
        %4928 = vmatprep.subr.bf16.mxu0 %v4451
        %4929 = vmatpush1.bf16.msra.mxu0 %v4450
        %4930 = vmatprep.subr.bf16.mxu0 %v4467
        %4931 = vmatpush1.bf16.msra.mxu0 %v4466
        %4932 = vmatprep.subr.bf16.mxu0 0
        %4933 = vmatpush1.bf16.msra.mxu0 0
        %4934 = vmatprep.subr.bf16.mxu0 0
        %4935 = vmatpush1.bf16.msra.mxu0 0
        %4936 = vmatprep.subr.bf16.mxu0 0
        %4937 = vmatpush1.bf16.msra.mxu0 0
        %4938 = vmatprep.subr.bf16.mxu0 0
        %4939 = vmatpush1.bf16.msra.mxu0 0
        %4940 = vmatprep.subr.bf16.mxu0 0
        %4941 = vmatpush1.bf16.msra.mxu0 0
        %4942 = vmatprep.subr.bf16.mxu0 0
        %4943 = vmatpush1.bf16.msra.mxu0 0
        %4944 = vmatprep.subr.bf16.mxu0 0
        %4945 = vmatpush1.bf16.msra.mxu0 0
        %4946 = vmatprep.subr.bf16.mxu0 0
        %4947 = vmatpush1.bf16.msra.mxu0 0
        %4948 = vmatprep.mubr.bf16.mxu0 0
        %4949 = vmatmul.mubr.bf16.gmra.mrb[0].mxu0 %v3744
        %v4950 = vpop.f32.mrb[0].mxu0
        %v4951 = vadd.f32 %v3929, %v4950
        %v4952 = vpop.f32.mrb[0].mxu0
        %v4953 = vadd.f32 %v3933, %v4952
        %v4954 = vpop.f32.mrb[0].mxu0
        %v4955 = vadd.f32 %v3929, %v4954
        %v4956 = vpop.f32.mrb[0].mxu0
        %v4957 = vadd.f32 %v3933, %v4956
        %4958 = vmatprep.mubr.bf16.mxu0 0
        %4959 = vmatmul.mubr.bf16.gmra.mrb[0].mxu0 %v3745
        %v4960 = vpop.f32.mrb[0].mxu0
        %v4961 = vadd.f32 %v3929, %v4960
        %v4962 = vpop.f32.mrb[0].mxu0
        %v4963 = vadd.f32 %v3933, %v4962
        %v4964 = vpop.f32.mrb[0].mxu0
        %v4965 = vadd.f32 %v3929, %v4964
        %v4966 = vpop.f32.mrb[0].mxu0
        %v4967 = vadd.f32 %v3933, %v4966
        %4968 = vdwg.mxu0
        %4969 = vmatprep.subr.bf16.mxu0 %v4357
        %4970 = vmatpush1.bf16.msra.mxu0 %v4356
        %4971 = vmatprep.subr.bf16.mxu0 %v4373
        %4972 = vmatpush1.bf16.msra.mxu0 %v4372
        %4973 = vmatprep.subr.bf16.mxu0 %v4389
        %4974 = vmatpush1.bf16.msra.mxu0 %v4388
        %4975 = vmatprep.subr.bf16.mxu0 %v4405
        %4976 = vmatpush1.bf16.msra.mxu0 %v4404
        %4977 = vmatprep.subr.bf16.mxu0 %v4421
        %4978 = vmatpush1.bf16.msra.mxu0 %v4420
        %4979 = vmatprep.subr.bf16.mxu0 %v4437
        %4980 = vmatpush1.bf16.msra.mxu0 %v4436
        %4981 = vmatprep.subr.bf16.mxu0 %v4453
        %4982 = vmatpush1.bf16.msra.mxu0 %v4452
        %4983 = vmatprep.subr.bf16.mxu0 %v4469
        %4984 = vmatpush1.bf16.msra.mxu0 %v4468
        %4985 = vmatprep.subr.bf16.mxu0 0
        %4986 = vmatpush1.bf16.msra.mxu0 0
        %4987 = vmatprep.subr.bf16.mxu0 0
        %4988 = vmatpush1.bf16.msra.mxu0 0
        %4989 = vmatprep.subr.bf16.mxu0 0
        %4990 = vmatpush1.bf16.msra.mxu0 0
        %4991 = vmatprep.subr.bf16.mxu0 0
        %4992 = vmatpush1.bf16.msra.mxu0 0
        %4993 = vmatprep.subr.bf16.mxu0 0
        %4994 = vmatpush1.bf16.msra.mxu0 0
        %4995 = vmatprep.subr.bf16.mxu0 0
        %4996 = vmatpush1.bf16.msra.mxu0 0
        %4997 = vmatprep.subr.bf16.mxu0 0
        %4998 = vmatpush1.bf16.msra.mxu0 0
        %4999 = vmatprep.subr.bf16.mxu0 0
        %5000 = vmatpush1.bf16.msra.mxu0 0
        %5001 = vmatprep.mubr.bf16.mxu0 0
        %5002 = vmatmul.mubr.bf16.gmra.mrb[0].mxu0 %v3744
        %v5003 = vpop.f32.mrb[0].mxu0
        %v5004 = vadd.f32 %v3937, %v5003
        %v5005 = vpop.f32.mrb[0].mxu0
        %v5006 = vadd.f32 %v3941, %v5005
        %v5007 = vpop.f32.mrb[0].mxu0
        %v5008 = vadd.f32 %v3937, %v5007
        %v5009 = vpop.f32.mrb[0].mxu0
        %v5010 = vadd.f32 %v3941, %v5009
        %5011 = vmatprep.mubr.bf16.mxu0 0
        %5012 = vmatmul.mubr.bf16.gmra.mrb[0].mxu0 %v3745
        %v5013 = vpop.f32.mrb[0].mxu0
        %v5014 = vadd.f32 %v3937, %v5013
        %v5015 = vpop.f32.mrb[0].mxu0
        %v5016 = vadd.f32 %v3941, %v5015
        %v5017 = vpop.f32.mrb[0].mxu0
        %v5018 = vadd.f32 %v3937, %v5017
        %v5019 = vpop.f32.mrb[0].mxu0
        %v5020 = vadd.f32 %v3941, %v5019
        %5021 = vdwg.mxu0
        %v5022 = vmax.f32 %v4633, 0.0
        %v5023 = vmax.f32 %v4635, 0.0
        %v5024 = vmax.f32 %v4686, 0.0
        %v5025 = vmax.f32 %v4688, 0.0
        %v5026 = vmax.f32 %v4739, 0.0
        %v5027 = vmax.f32 %v4741, 0.0
        %v5028 = vmax.f32 %v4792, 0.0
        %v5029 = vmax.f32 %v4794, 0.0
        %v5030 = vmax.f32 %v4845, 0.0
        %v5031 = vmax.f32 %v4847, 0.0
        %v5032 = vmax.f32 %v4898, 0.0
        %v5033 = vmax.f32 %v4900, 0.0
        %v5034 = vmax.f32 %v4951, 0.0
        %v5035 = vmax.f32 %v4953, 0.0
        %v5036 = vmax.f32 %v5004, 0.0
        %v5037 = vmax.f32 %v5006, 0.0
        %v5038 = vmax.f32 %v4637, 0.0
        %v5039 = vmax.f32 %v4639, 0.0
        %v5040 = vmax.f32 %v4690, 0.0
        %v5041 = vmax.f32 %v4692, 0.0
        %v5042 = vmax.f32 %v4743, 0.0
        %v5043 = vmax.f32 %v4745, 0.0
        %v5044 = vmax.f32 %v4796, 0.0
        %v5045 = vmax.f32 %v4798, 0.0
        %v5046 = vmax.f32 %v4849, 0.0
        %v5047 = vmax.f32 %v4851, 0.0
        %v5048 = vmax.f32 %v4902, 0.0
        %v5049 = vmax.f32 %v4904, 0.0
        %v5050 = vmax.f32 %v4955, 0.0
        %v5051 = vmax.f32 %v4957, 0.0
        %v5052 = vmax.f32 %v5008, 0.0
        %v5053 = vmax.f32 %v5010, 0.0
        %v5054 = vmax.f32 %v4643, 0.0
        %v5055 = vmax.f32 %v4645, 0.0
        %v5056 = vmax.f32 %v4696, 0.0
        %v5057 = vmax.f32 %v4698, 0.0
        %v5058 = vmax.f32 %v4749, 0.0
        %v5059 = vmax.f32 %v4751, 0.0
        %v5060 = vmax.f32 %v4802, 0.0
        %v5061 = vmax.f32 %v4804, 0.0
        %v5062 = vmax.f32 %v4855, 0.0
        %v5063 = vmax.f32 %v4857, 0.0
        %v5064 = vmax.f32 %v4908, 0.0
        %v5065 = vmax.f32 %v4910, 0.0
        %v5066 = vmax.f32 %v4961, 0.0
        %v5067 = vmax.f32 %v4963, 0.0
        %v5068 = vmax.f32 %v5014, 0.0
        %v5069 = vmax.f32 %v5016, 0.0
        %v5070 = vmax.f32 %v4647, 0.0
        %v5071 = vmax.f32 %v4649, 0.0
        %v5072 = vmax.f32 %v4700, 0.0
        %v5073 = vmax.f32 %v4702, 0.0
        %v5074 = vmax.f32 %v4753, 0.0
        %v5075 = vmax.f32 %v4755, 0.0
        %v5076 = vmax.f32 %v4806, 0.0
        %v5077 = vmax.f32 %v4808, 0.0
        %v5078 = vmax.f32 %v4859, 0.0
        %v5079 = vmax.f32 %v4861, 0.0
        %v5080 = vmax.f32 %v4912, 0.0
        %v5081 = vmax.f32 %v4914, 0.0
        %v5082 = vmax.f32 %v4965, 0.0
        %v5083 = vmax.f32 %v4967, 0.0
        %v5084 = vmax.f32 %v5018, 0.0
        %v5085 = vmax.f32 %v5020, 0.0
        %v5086 = vpack.c.bf16 %v5038, %v5022
        %v5087 = vpack.c.bf16 %v5039, %v5023
        %v5088 = vpack.c.bf16 %v5040, %v5024
        %v5089 = vpack.c.bf16 %v5041, %v5025
        %v5090 = vpack.c.bf16 %v5042, %v5026
        %v5091 = vpack.c.bf16 %v5043, %v5027
        %v5092 = vpack.c.bf16 %v5044, %v5028
        %v5093 = vpack.c.bf16 %v5045, %v5029
        %v5094 = vpack.c.bf16 %v5046, %v5030
        %v5095 = vpack.c.bf16 %v5047, %v5031
        %v5096 = vpack.c.bf16 %v5048, %v5032
        %v5097 = vpack.c.bf16 %v5049, %v5033
        %v5098 = vpack.c.bf16 %v5050, %v5034
        %v5099 = vpack.c.bf16 %v5051, %v5035
        %v5100 = vpack.c.bf16 %v5052, %v5036
        %v5101 = vpack.c.bf16 %v5053, %v5037
        %v5102 = vpack.c.bf16 %v5070, %v5054
        %v5103 = vpack.c.bf16 %v5071, %v5055
        %v5104 = vpack.c.bf16 %v5072, %v5056
        %v5105 = vpack.c.bf16 %v5073, %v5057
        %v5106 = vpack.c.bf16 %v5074, %v5058
        %v5107 = vpack.c.bf16 %v5075, %v5059
        %v5108 = vpack.c.bf16 %v5076, %v5060
        %v5109 = vpack.c.bf16 %v5077, %v5061
        %v5110 = vpack.c.bf16 %v5078, %v5062
        %v5111 = vpack.c.bf16 %v5079, %v5063
        %v5112 = vpack.c.bf16 %v5080, %v5064
        %v5113 = vpack.c.bf16 %v5081, %v5065
        %v5114 = vpack.c.bf16 %v5082, %v5066
        %v5115 = vpack.c.bf16 %v5083, %v5067
        %v5116 = vpack.c.bf16 %v5084, %v5068
        %v5117 = vpack.c.bf16 %v5085, %v5069
        %v5118 = vld [vmem:[%s997] sm:$0xf]
        %v5119 = vld [vmem:[%s997 + $0x4] sm:$0xf]
        %v5120 = vld [vmem:[%s997 + $0x8] sm:$0xf]
        %v5121 = vld [vmem:[%s997 + $0xc] sm:$0xf]
        %v5122 = vld [vmem:[%s997 + $0x10] sm:$0xf]
        %v5123 = vld [vmem:[%s997 + $0x14] sm:$0xf]
        %v5124 = vld [vmem:[%s997 + $0x18] sm:$0xf]
        %v5125 = vld [vmem:[%s997 + $0x1c] sm:$0xf]
        %v5126 = vld [vmem:[%s997 + $0x20] sm:$0xf]
        %v5127 = vld [vmem:[%s997 + $0x24] sm:$0xf]
        %v5128 = vld [vmem:[%s997 + $0x28] sm:$0xf]
        %v5129 = vld [vmem:[%s997 + $0x2c] sm:$0xf]
        %v5130 = vld [vmem:[%s997 + $0x30] sm:$0xf]
        %v5131 = vld [vmem:[%s997 + $0x34] sm:$0xf]
        %v5132 = vld [vmem:[%s997 + $0x38] sm:$0xf]
        %v5133 = vld [vmem:[%s997 + $0x3c] sm:$0xf]
        %v5134 = vld [vmem:[%s997 + $0x40] sm:$0xf]
        %v5135 = vld [vmem:[%s997 + $0x44] sm:$0xf]
        %v5136 = vld [vmem:[%s997 + $0x48] sm:$0xf]
        %v5137 = vld [vmem:[%s997 + $0x4c] sm:$0xf]
        %v5138 = vld [vmem:[%s997 + $0x50] sm:$0xf]
        %v5139 = vld [vmem:[%s997 + $0x54] sm:$0xf]
        %v5140 = vld [vmem:[%s997 + $0x58] sm:$0xf]
        %v5141 = vld [vmem:[%s997 + $0x5c] sm:$0xf]
        %v5142 = vld [vmem:[%s997 + $0x60] sm:$0xf]
        %v5143 = vld [vmem:[%s997 + $0x64] sm:$0xf]
        %v5144 = vld [vmem:[%s997 + $0x68] sm:$0xf]
        %v5145 = vld [vmem:[%s997 + $0x6c] sm:$0xf]
        %v5146 = vld [vmem:[%s997 + $0x70] sm:$0xf]
        %v5147 = vld [vmem:[%s997 + $0x74] sm:$0xf]
        %v5148 = vld [vmem:[%s997 + $0x78] sm:$0xf]
        %v5149 = vld [vmem:[%s997 + $0x7c] sm:$0xf]
        %v5150 = vld [vmem:[%s997 + $0x80] sm:$0xf]
        %v5151 = vld [vmem:[%s997 + $0x84] sm:$0xf]
        %v5152 = vld [vmem:[%s997 + $0x88] sm:$0xf]
        %v5153 = vld [vmem:[%s997 + $0x8c] sm:$0xf]
        %v5154 = vld [vmem:[%s997 + $0x90] sm:$0xf]
        %v5155 = vld [vmem:[%s997 + $0x94] sm:$0xf]
        %v5156 = vld [vmem:[%s997 + $0x98] sm:$0xf]
        %v5157 = vld [vmem:[%s997 + $0x9c] sm:$0xf]
        %v5158 = vld [vmem:[%s997 + $0xa0] sm:$0xf]
        %v5159 = vld [vmem:[%s997 + $0xa4] sm:$0xf]
        %v5160 = vld [vmem:[%s997 + $0xa8] sm:$0xf]
        %v5161 = vld [vmem:[%s997 + $0xac] sm:$0xf]
        %v5162 = vld [vmem:[%s997 + $0xb0] sm:$0xf]
        %v5163 = vld [vmem:[%s997 + $0xb4] sm:$0xf]
        %v5164 = vld [vmem:[%s997 + $0xb8] sm:$0xf]
        %v5165 = vld [vmem:[%s997 + $0xbc] sm:$0xf]
        %v5166 = vld [vmem:[%s997 + $0xc0] sm:$0xf]
        %v5167 = vld [vmem:[%s997 + $0xc4] sm:$0xf]
        %v5168 = vld [vmem:[%s997 + $0xc8] sm:$0xf]
        %v5169 = vld [vmem:[%s997 + $0xcc] sm:$0xf]
        %v5170 = vld [vmem:[%s997 + $0xd0] sm:$0xf]
        %v5171 = vld [vmem:[%s997 + $0xd4] sm:$0xf]
        %v5172 = vld [vmem:[%s997 + $0xd8] sm:$0xf]
        %v5173 = vld [vmem:[%s997 + $0xdc] sm:$0xf]
        %v5174 = vld [vmem:[%s997 + $0xe0] sm:$0xf]
        %v5175 = vld [vmem:[%s997 + $0xe4] sm:$0xf]
        %v5176 = vld [vmem:[%s997 + $0xe8] sm:$0xf]
        %v5177 = vld [vmem:[%s997 + $0xec] sm:$0xf]
        %v5178 = vld [vmem:[%s997 + $0xf0] sm:$0xf]
        %v5179 = vld [vmem:[%s997 + $0xf4] sm:$0xf]
        %v5180 = vld [vmem:[%s997 + $0xf8] sm:$0xf]
        %v5181 = vld [vmem:[%s997 + $0xfc] sm:$0xf]
        %v5182 = vld [vmem:[%s997 + $0x100] sm:$0xf]
        %v5183 = vld [vmem:[%s997 + $0x104] sm:$0xf]
        %v5184 = vld [vmem:[%s997 + $0x108] sm:$0xf]
        %v5185 = vld [vmem:[%s997 + $0x10c] sm:$0xf]
        %v5186 = vld [vmem:[%s997 + $0x110] sm:$0xf]
        %v5187 = vld [vmem:[%s997 + $0x114] sm:$0xf]
        %v5188 = vld [vmem:[%s997 + $0x118] sm:$0xf]
        %v5189 = vld [vmem:[%s997 + $0x11c] sm:$0xf]
        %v5190 = vld [vmem:[%s997 + $0x120] sm:$0xf]
        %v5191 = vld [vmem:[%s997 + $0x124] sm:$0xf]
        %v5192 = vld [vmem:[%s997 + $0x128] sm:$0xf]
        %v5193 = vld [vmem:[%s997 + $0x12c] sm:$0xf]
        %v5194 = vld [vmem:[%s997 + $0x130] sm:$0xf]
        %v5195 = vld [vmem:[%s997 + $0x134] sm:$0xf]
        %v5196 = vld [vmem:[%s997 + $0x138] sm:$0xf]
        %v5197 = vld [vmem:[%s997 + $0x13c] sm:$0xf]
        %v5198 = vld [vmem:[%s997 + $0x140] sm:$0xf]
        %v5199 = vld [vmem:[%s997 + $0x144] sm:$0xf]
        %v5200 = vld [vmem:[%s997 + $0x148] sm:$0xf]
        %v5201 = vld [vmem:[%s997 + $0x14c] sm:$0xf]
        %v5202 = vld [vmem:[%s997 + $0x150] sm:$0xf]
        %v5203 = vld [vmem:[%s997 + $0x154] sm:$0xf]
        %v5204 = vld [vmem:[%s997 + $0x158] sm:$0xf]
        %v5205 = vld [vmem:[%s997 + $0x15c] sm:$0xf]
        %v5206 = vld [vmem:[%s997 + $0x160] sm:$0xf]
        %v5207 = vld [vmem:[%s997 + $0x164] sm:$0xf]
        %v5208 = vld [vmem:[%s997 + $0x168] sm:$0xf]
        %v5209 = vld [vmem:[%s997 + $0x16c] sm:$0xf]
        %v5210 = vld [vmem:[%s997 + $0x170] sm:$0xf]
        %v5211 = vld [vmem:[%s997 + $0x174] sm:$0xf]
        %v5212 = vld [vmem:[%s997 + $0x178] sm:$0xf]
        %v5213 = vld [vmem:[%s997 + $0x17c] sm:$0xf]
        %v5214 = vld [vmem:[%s997 + $0x180] sm:$0xf]
        %v5215 = vld [vmem:[%s997 + $0x184] sm:$0xf]
        %v5216 = vld [vmem:[%s997 + $0x188] sm:$0xf]
        %v5217 = vld [vmem:[%s997 + $0x18c] sm:$0xf]
        %v5218 = vld [vmem:[%s997 + $0x190] sm:$0xf]
        %v5219 = vld [vmem:[%s997 + $0x194] sm:$0xf]
        %v5220 = vld [vmem:[%s997 + $0x198] sm:$0xf]
        %v5221 = vld [vmem:[%s997 + $0x19c] sm:$0xf]
        %v5222 = vld [vmem:[%s997 + $0x1a0] sm:$0xf]
        %v5223 = vld [vmem:[%s997 + $0x1a4] sm:$0xf]
        %v5224 = vld [vmem:[%s997 + $0x1a8] sm:$0xf]
        %v5225 = vld [vmem:[%s997 + $0x1ac] sm:$0xf]
        %v5226 = vld [vmem:[%s997 + $0x1b0] sm:$0xf]
        %v5227 = vld [vmem:[%s997 + $0x1b4] sm:$0xf]
        %v5228 = vld [vmem:[%s997 + $0x1b8] sm:$0xf]
        %v5229 = vld [vmem:[%s997 + $0x1bc] sm:$0xf]
        %v5230 = vld [vmem:[%s997 + $0x1c0] sm:$0xf]
        %v5231 = vld [vmem:[%s997 + $0x1c4] sm:$0xf]
        %v5232 = vld [vmem:[%s997 + $0x1c8] sm:$0xf]
        %v5233 = vld [vmem:[%s997 + $0x1cc] sm:$0xf]
        %v5234 = vld [vmem:[%s997 + $0x1d0] sm:$0xf]
        %v5235 = vld [vmem:[%s997 + $0x1d4] sm:$0xf]
        %v5236 = vld [vmem:[%s997 + $0x1d8] sm:$0xf]
        %v5237 = vld [vmem:[%s997 + $0x1dc] sm:$0xf]
        %v5238 = vld [vmem:[%s997 + $0x1e0] sm:$0xf]
        %v5239 = vld [vmem:[%s997 + $0x1e4] sm:$0xf]
        %v5240 = vld [vmem:[%s997 + $0x1e8] sm:$0xf]
        %v5241 = vld [vmem:[%s997 + $0x1ec] sm:$0xf]
        %v5242 = vld [vmem:[%s997 + $0x1f0] sm:$0xf]
        %v5243 = vld [vmem:[%s997 + $0x1f4] sm:$0xf]
        %v5244 = vld [vmem:[%s997 + $0x1f8] sm:$0xf]
        %v5245 = vld [vmem:[%s997 + $0x1fc] sm:$0xf]
        %v5246 = vld [vmem:[%s997 + $0x200] sm:$0xf]
        %v5247 = vld [vmem:[%s997 + $0x204] sm:$0xf]
        %v5248 = vld [vmem:[%s997 + $0x208] sm:$0xf]
        %v5249 = vld [vmem:[%s997 + $0x20c] sm:$0xf]
        %v5250 = vld [vmem:[%s997 + $0x210] sm:$0xf]
        %v5251 = vld [vmem:[%s997 + $0x214] sm:$0xf]
        %v5252 = vld [vmem:[%s997 + $0x218] sm:$0xf]
        %v5253 = vld [vmem:[%s997 + $0x21c] sm:$0xf]
        %v5254 = vld [vmem:[%s997 + $0x220] sm:$0xf]
        %v5255 = vld [vmem:[%s997 + $0x224] sm:$0xf]
        %v5256 = vld [vmem:[%s997 + $0x228] sm:$0xf]
        %v5257 = vld [vmem:[%s997 + $0x22c] sm:$0xf]
        %v5258 = vld [vmem:[%s997 + $0x230] sm:$0xf]
        %v5259 = vld [vmem:[%s997 + $0x234] sm:$0xf]
        %v5260 = vld [vmem:[%s997 + $0x238] sm:$0xf]
        %v5261 = vld [vmem:[%s997 + $0x23c] sm:$0xf]
        %v5262 = vld [vmem:[%s997 + $0x240] sm:$0xf]
        %v5263 = vld [vmem:[%s997 + $0x244] sm:$0xf]
        %v5264 = vld [vmem:[%s997 + $0x248] sm:$0xf]
        %v5265 = vld [vmem:[%s997 + $0x24c] sm:$0xf]
        %v5266 = vld [vmem:[%s997 + $0x250] sm:$0xf]
        %v5267 = vld [vmem:[%s997 + $0x254] sm:$0xf]
        %v5268 = vld [vmem:[%s997 + $0x258] sm:$0xf]
        %v5269 = vld [vmem:[%s997 + $0x25c] sm:$0xf]
        %v5270 = vld [vmem:[%s997 + $0x260] sm:$0xf]
        %v5271 = vld [vmem:[%s997 + $0x264] sm:$0xf]
        %v5272 = vld [vmem:[%s997 + $0x268] sm:$0xf]
        %v5273 = vld [vmem:[%s997 + $0x26c] sm:$0xf]
        %v5274 = vld [vmem:[%s997 + $0x270] sm:$0xf]
        %v5275 = vld [vmem:[%s997 + $0x274] sm:$0xf]
        %v5276 = vld [vmem:[%s997 + $0x278] sm:$0xf]
        %v5277 = vld [vmem:[%s997 + $0x27c] sm:$0xf]
        %v5278 = vld [vmem:[%s997 + $0x280] sm:$0xf]
        %v5279 = vld [vmem:[%s997 + $0x284] sm:$0xf]
        %v5280 = vld [vmem:[%s997 + $0x288] sm:$0xf]
        %v5281 = vld [vmem:[%s997 + $0x28c] sm:$0xf]
        %v5282 = vld [vmem:[%s997 + $0x290] sm:$0xf]
        %v5283 = vld [vmem:[%s997 + $0x294] sm:$0xf]
        %v5284 = vld [vmem:[%s997 + $0x298] sm:$0xf]
        %v5285 = vld [vmem:[%s997 + $0x29c] sm:$0xf]
        %v5286 = vld [vmem:[%s997 + $0x2a0] sm:$0xf]
        %v5287 = vld [vmem:[%s997 + $0x2a4] sm:$0xf]
        %v5288 = vld [vmem:[%s997 + $0x2a8] sm:$0xf]
        %v5289 = vld [vmem:[%s997 + $0x2ac] sm:$0xf]
        %v5290 = vld [vmem:[%s997 + $0x2b0] sm:$0xf]
        %v5291 = vld [vmem:[%s997 + $0x2b4] sm:$0xf]
        %v5292 = vld [vmem:[%s997 + $0x2b8] sm:$0xf]
        %v5293 = vld [vmem:[%s997 + $0x2bc] sm:$0xf]
        %v5294 = vld [vmem:[%s997 + $0x2c0] sm:$0xf]
        %v5295 = vld [vmem:[%s997 + $0x2c4] sm:$0xf]
        %v5296 = vld [vmem:[%s997 + $0x2c8] sm:$0xf]
        %v5297 = vld [vmem:[%s997 + $0x2cc] sm:$0xf]
        %v5298 = vld [vmem:[%s997 + $0x2d0] sm:$0xf]
        %v5299 = vld [vmem:[%s997 + $0x2d4] sm:$0xf]
        %v5300 = vld [vmem:[%s997 + $0x2d8] sm:$0xf]
        %v5301 = vld [vmem:[%s997 + $0x2dc] sm:$0xf]
        %v5302 = vld [vmem:[%s997 + $0x2e0] sm:$0xf]
        %v5303 = vld [vmem:[%s997 + $0x2e4] sm:$0xf]
        %v5304 = vld [vmem:[%s997 + $0x2e8] sm:$0xf]
        %v5305 = vld [vmem:[%s997 + $0x2ec] sm:$0xf]
        %v5306 = vld [vmem:[%s997 + $0x2f0] sm:$0xf]
        %v5307 = vld [vmem:[%s997 + $0x2f4] sm:$0xf]
        %v5308 = vld [vmem:[%s997 + $0x2f8] sm:$0xf]
        %v5309 = vld [vmem:[%s997 + $0x2fc] sm:$0xf]
        %v5310 = vld [vmem:[%s997 + $0x300] sm:$0xf]
        %v5311 = vld [vmem:[%s997 + $0x304] sm:$0xf]
        %v5312 = vld [vmem:[%s997 + $0x308] sm:$0xf]
        %v5313 = vld [vmem:[%s997 + $0x30c] sm:$0xf]
        %v5314 = vld [vmem:[%s997 + $0x310] sm:$0xf]
        %v5315 = vld [vmem:[%s997 + $0x314] sm:$0xf]
        %v5316 = vld [vmem:[%s997 + $0x318] sm:$0xf]
        %v5317 = vld [vmem:[%s997 + $0x31c] sm:$0xf]
        %v5318 = vld [vmem:[%s997 + $0x320] sm:$0xf]
        %v5319 = vld [vmem:[%s997 + $0x324] sm:$0xf]
        %v5320 = vld [vmem:[%s997 + $0x328] sm:$0xf]
        %v5321 = vld [vmem:[%s997 + $0x32c] sm:$0xf]
        %v5322 = vld [vmem:[%s997 + $0x330] sm:$0xf]
        %v5323 = vld [vmem:[%s997 + $0x334] sm:$0xf]
        %v5324 = vld [vmem:[%s997 + $0x338] sm:$0xf]
        %v5325 = vld [vmem:[%s997 + $0x33c] sm:$0xf]
        %v5326 = vld [vmem:[%s997 + $0x340] sm:$0xf]
        %v5327 = vld [vmem:[%s997 + $0x344] sm:$0xf]
        %v5328 = vld [vmem:[%s997 + $0x348] sm:$0xf]
        %v5329 = vld [vmem:[%s997 + $0x34c] sm:$0xf]
        %v5330 = vld [vmem:[%s997 + $0x350] sm:$0xf]
        %v5331 = vld [vmem:[%s997 + $0x354] sm:$0xf]
        %v5332 = vld [vmem:[%s997 + $0x358] sm:$0xf]
        %v5333 = vld [vmem:[%s997 + $0x35c] sm:$0xf]
        %v5334 = vld [vmem:[%s997 + $0x360] sm:$0xf]
        %v5335 = vld [vmem:[%s997 + $0x364] sm:$0xf]
        %v5336 = vld [vmem:[%s997 + $0x368] sm:$0xf]
        %v5337 = vld [vmem:[%s997 + $0x36c] sm:$0xf]
        %v5338 = vld [vmem:[%s997 + $0x370] sm:$0xf]
        %v5339 = vld [vmem:[%s997 + $0x374] sm:$0xf]
        %v5340 = vld [vmem:[%s997 + $0x378] sm:$0xf]
        %v5341 = vld [vmem:[%s997 + $0x37c] sm:$0xf]
        %v5342 = vld [vmem:[%s997 + $0x380] sm:$0xf]
        %v5343 = vld [vmem:[%s997 + $0x384] sm:$0xf]
        %v5344 = vld [vmem:[%s997 + $0x388] sm:$0xf]
        %v5345 = vld [vmem:[%s997 + $0x38c] sm:$0xf]
        %v5346 = vld [vmem:[%s997 + $0x390] sm:$0xf]
        %v5347 = vld [vmem:[%s997 + $0x394] sm:$0xf]
        %v5348 = vld [vmem:[%s997 + $0x398] sm:$0xf]
        %v5349 = vld [vmem:[%s997 + $0x39c] sm:$0xf]
        %v5350 = vld [vmem:[%s997 + $0x3a0] sm:$0xf]
        %v5351 = vld [vmem:[%s997 + $0x3a4] sm:$0xf]
        %v5352 = vld [vmem:[%s997 + $0x3a8] sm:$0xf]
        %v5353 = vld [vmem:[%s997 + $0x3ac] sm:$0xf]
        %v5354 = vld [vmem:[%s997 + $0x3b0] sm:$0xf]
        %v5355 = vld [vmem:[%s997 + $0x3b4] sm:$0xf]
        %v5356 = vld [vmem:[%s997 + $0x3b8] sm:$0xf]
        %v5357 = vld [vmem:[%s997 + $0x3bc] sm:$0xf]
        %v5358 = vld [vmem:[%s997 + $0x3c0] sm:$0xf]
        %v5359 = vld [vmem:[%s997 + $0x3c4] sm:$0xf]
        %v5360 = vld [vmem:[%s997 + $0x3c8] sm:$0xf]
        %v5361 = vld [vmem:[%s997 + $0x3cc] sm:$0xf]
        %v5362 = vld [vmem:[%s997 + $0x3d0] sm:$0xf]
        %v5363 = vld [vmem:[%s997 + $0x3d4] sm:$0xf]
        %v5364 = vld [vmem:[%s997 + $0x3d8] sm:$0xf]
        %v5365 = vld [vmem:[%s997 + $0x3dc] sm:$0xf]
        %v5366 = vld [vmem:[%s997 + $0x3e0] sm:$0xf]
        %v5367 = vld [vmem:[%s997 + $0x3e4] sm:$0xf]
        %v5368 = vld [vmem:[%s997 + $0x3e8] sm:$0xf]
        %v5369 = vld [vmem:[%s997 + $0x3ec] sm:$0xf]
        %v5370 = vld [vmem:[%s997 + $0x3f0] sm:$0xf]
        %v5371 = vld [vmem:[%s997 + $0x3f4] sm:$0xf]
        %v5372 = vld [vmem:[%s997 + $0x3f8] sm:$0xf]
        %v5373 = vld [vmem:[%s997 + $0x3fc] sm:$0xf]
        %v5374 = vld [vmem:[%s1005] sm:$0x1]
        %v5376 = vlaneseq
        %v5377 = vshrl.u32 %v5376, 7
        %v5378 = vsub.s32 0, %v5377
        %v5379 = vrot.slane %v5374, %v5378
        %v5637 = vunpack.c.l.b16 %v5118
        %v5638 = vunpack.c.l.b16 %v5119
        %v5639 = vunpack.c.l.b16 %v5120
        %v5640 = vunpack.c.l.b16 %v5121
        %v5641 = vunpack.c.l.b16 %v5122
        %v5642 = vunpack.c.l.b16 %v5123
        %v5643 = vunpack.c.l.b16 %v5124
        %v5644 = vunpack.c.l.b16 %v5125
        %v5645 = vunpack.c.l.b16 %v5126
        %v5646 = vunpack.c.l.b16 %v5127
        %v5647 = vunpack.c.l.b16 %v5128
        %v5648 = vunpack.c.l.b16 %v5129
        %v5649 = vunpack.c.l.b16 %v5130
        %v5650 = vunpack.c.l.b16 %v5131
        %v5651 = vunpack.c.l.b16 %v5132
        %v5652 = vunpack.c.l.b16 %v5133
        %v5653 = vunpack.c.l.b16 %v5134
        %v5654 = vunpack.c.l.b16 %v5135
        %v5655 = vunpack.c.l.b16 %v5136
        %v5656 = vunpack.c.l.b16 %v5137
        %v5657 = vunpack.c.l.b16 %v5138
        %v5658 = vunpack.c.l.b16 %v5139
        %v5659 = vunpack.c.l.b16 %v5140
        %v5660 = vunpack.c.l.b16 %v5141
        %v5661 = vunpack.c.l.b16 %v5142
        %v5662 = vunpack.c.l.b16 %v5143
        %v5663 = vunpack.c.l.b16 %v5144
        %v5664 = vunpack.c.l.b16 %v5145
        %v5665 = vunpack.c.l.b16 %v5146
        %v5666 = vunpack.c.l.b16 %v5147
        %v5667 = vunpack.c.l.b16 %v5148
        %v5668 = vunpack.c.l.b16 %v5149
        %v5669 = vunpack.c.l.b16 %v5150
        %v5670 = vunpack.c.l.b16 %v5151
        %v5671 = vunpack.c.l.b16 %v5152
        %v5672 = vunpack.c.l.b16 %v5153
        %v5673 = vunpack.c.l.b16 %v5154
        %v5674 = vunpack.c.l.b16 %v5155
        %v5675 = vunpack.c.l.b16 %v5156
        %v5676 = vunpack.c.l.b16 %v5157
        %v5677 = vunpack.c.l.b16 %v5158
        %v5678 = vunpack.c.l.b16 %v5159
        %v5679 = vunpack.c.l.b16 %v5160
        %v5680 = vunpack.c.l.b16 %v5161
        %v5681 = vunpack.c.l.b16 %v5162
        %v5682 = vunpack.c.l.b16 %v5163
        %v5683 = vunpack.c.l.b16 %v5164
        %v5684 = vunpack.c.l.b16 %v5165
        %v5685 = vunpack.c.l.b16 %v5166
        %v5686 = vunpack.c.l.b16 %v5167
        %v5687 = vunpack.c.l.b16 %v5168
        %v5688 = vunpack.c.l.b16 %v5169
        %v5689 = vunpack.c.l.b16 %v5170
        %v5690 = vunpack.c.l.b16 %v5171
        %v5691 = vunpack.c.l.b16 %v5172
        %v5692 = vunpack.c.l.b16 %v5173
        %v5693 = vunpack.c.l.b16 %v5174
        %v5694 = vunpack.c.l.b16 %v5175
        %v5695 = vunpack.c.l.b16 %v5176
        %v5696 = vunpack.c.l.b16 %v5177
        %v5697 = vunpack.c.l.b16 %v5178
        %v5698 = vunpack.c.l.b16 %v5179
        %v5699 = vunpack.c.l.b16 %v5180
        %v5700 = vunpack.c.l.b16 %v5181
        %v5701 = vunpack.c.l.b16 %v5182
        %v5702 = vunpack.c.l.b16 %v5183
        %v5703 = vunpack.c.l.b16 %v5184
        %v5704 = vunpack.c.l.b16 %v5185
        %v5705 = vunpack.c.l.b16 %v5186
        %v5706 = vunpack.c.l.b16 %v5187
        %v5707 = vunpack.c.l.b16 %v5188
        %v5708 = vunpack.c.l.b16 %v5189
        %v5709 = vunpack.c.l.b16 %v5190
        %v5710 = vunpack.c.l.b16 %v5191
        %v5711 = vunpack.c.l.b16 %v5192
        %v5712 = vunpack.c.l.b16 %v5193
        %v5713 = vunpack.c.l.b16 %v5194
        %v5714 = vunpack.c.l.b16 %v5195
        %v5715 = vunpack.c.l.b16 %v5196
        %v5716 = vunpack.c.l.b16 %v5197
        %v5717 = vunpack.c.l.b16 %v5198
        %v5718 = vunpack.c.l.b16 %v5199
        %v5719 = vunpack.c.l.b16 %v5200
        %v5720 = vunpack.c.l.b16 %v5201
        %v5721 = vunpack.c.l.b16 %v5202
        %v5722 = vunpack.c.l.b16 %v5203
        %v5723 = vunpack.c.l.b16 %v5204
        %v5724 = vunpack.c.l.b16 %v5205
        %v5725 = vunpack.c.l.b16 %v5206
        %v5726 = vunpack.c.l.b16 %v5207
        %v5727 = vunpack.c.l.b16 %v5208
        %v5728 = vunpack.c.l.b16 %v5209
        %v5729 = vunpack.c.l.b16 %v5210
        %v5730 = vunpack.c.l.b16 %v5211
        %v5731 = vunpack.c.l.b16 %v5212
        %v5732 = vunpack.c.l.b16 %v5213
        %v5733 = vunpack.c.l.b16 %v5214
        %v5734 = vunpack.c.l.b16 %v5215
        %v5735 = vunpack.c.l.b16 %v5216
        %v5736 = vunpack.c.l.b16 %v5217
        %v5737 = vunpack.c.l.b16 %v5218
        %v5738 = vunpack.c.l.b16 %v5219
        %v5739 = vunpack.c.l.b16 %v5220
        %v5740 = vunpack.c.l.b16 %v5221
        %v5741 = vunpack.c.l.b16 %v5222
        %v5742 = vunpack.c.l.b16 %v5223
        %v5743 = vunpack.c.l.b16 %v5224
        %v5744 = vunpack.c.l.b16 %v5225
        %v5745 = vunpack.c.l.b16 %v5226
        %v5746 = vunpack.c.l.b16 %v5227
        %v5747 = vunpack.c.l.b16 %v5228
        %v5748 = vunpack.c.l.b16 %v5229
        %v5749 = vunpack.c.l.b16 %v5230
        %v5750 = vunpack.c.l.b16 %v5231
        %v5751 = vunpack.c.l.b16 %v5232
        %v5752 = vunpack.c.l.b16 %v5233
        %v5753 = vunpack.c.l.b16 %v5234
        %v5754 = vunpack.c.l.b16 %v5235
        %v5755 = vunpack.c.l.b16 %v5236
        %v5756 = vunpack.c.l.b16 %v5237
        %v5757 = vunpack.c.l.b16 %v5238
        %v5758 = vunpack.c.l.b16 %v5239
        %v5759 = vunpack.c.l.b16 %v5240
        %v5760 = vunpack.c.l.b16 %v5241
        %v5761 = vunpack.c.l.b16 %v5242
        %v5762 = vunpack.c.l.b16 %v5243
        %v5763 = vunpack.c.l.b16 %v5244
        %v5764 = vunpack.c.l.b16 %v5245
        %v5765 = vunpack.c.l.b16 %v5246
        %v5766 = vunpack.c.l.b16 %v5247
        %v5767 = vunpack.c.l.b16 %v5248
        %v5768 = vunpack.c.l.b16 %v5249
        %v5769 = vunpack.c.l.b16 %v5250
        %v5770 = vunpack.c.l.b16 %v5251
        %v5771 = vunpack.c.l.b16 %v5252
        %v5772 = vunpack.c.l.b16 %v5253
        %v5773 = vunpack.c.l.b16 %v5254
        %v5774 = vunpack.c.l.b16 %v5255
        %v5775 = vunpack.c.l.b16 %v5256
        %v5776 = vunpack.c.l.b16 %v5257
        %v5777 = vunpack.c.l.b16 %v5258
        %v5778 = vunpack.c.l.b16 %v5259
        %v5779 = vunpack.c.l.b16 %v5260
        %v5780 = vunpack.c.l.b16 %v5261
        %v5781 = vunpack.c.l.b16 %v5262
        %v5782 = vunpack.c.l.b16 %v5263
        %v5783 = vunpack.c.l.b16 %v5264
        %v5784 = vunpack.c.l.b16 %v5265
        %v5785 = vunpack.c.l.b16 %v5266
        %v5786 = vunpack.c.l.b16 %v5267
        %v5787 = vunpack.c.l.b16 %v5268
        %v5788 = vunpack.c.l.b16 %v5269
        %v5789 = vunpack.c.l.b16 %v5270
        %v5790 = vunpack.c.l.b16 %v5271
        %v5791 = vunpack.c.l.b16 %v5272
        %v5792 = vunpack.c.l.b16 %v5273
        %v5793 = vunpack.c.l.b16 %v5274
        %v5794 = vunpack.c.l.b16 %v5275
        %v5795 = vunpack.c.l.b16 %v5276
        %v5796 = vunpack.c.l.b16 %v5277
        %v5797 = vunpack.c.l.b16 %v5278
        %v5798 = vunpack.c.l.b16 %v5279
        %v5799 = vunpack.c.l.b16 %v5280
        %v5800 = vunpack.c.l.b16 %v5281
        %v5801 = vunpack.c.l.b16 %v5282
        %v5802 = vunpack.c.l.b16 %v5283
        %v5803 = vunpack.c.l.b16 %v5284
        %v5804 = vunpack.c.l.b16 %v5285
        %v5805 = vunpack.c.l.b16 %v5286
        %v5806 = vunpack.c.l.b16 %v5287
        %v5807 = vunpack.c.l.b16 %v5288
        %v5808 = vunpack.c.l.b16 %v5289
        %v5809 = vunpack.c.l.b16 %v5290
        %v5810 = vunpack.c.l.b16 %v5291
        %v5811 = vunpack.c.l.b16 %v5292
        %v5812 = vunpack.c.l.b16 %v5293
        %v5813 = vunpack.c.l.b16 %v5294
        %v5814 = vunpack.c.l.b16 %v5295
        %v5815 = vunpack.c.l.b16 %v5296
        %v5816 = vunpack.c.l.b16 %v5297
        %v5817 = vunpack.c.l.b16 %v5298
        %v5818 = vunpack.c.l.b16 %v5299
        %v5819 = vunpack.c.l.b16 %v5300
        %v5820 = vunpack.c.l.b16 %v5301
        %v5821 = vunpack.c.l.b16 %v5302
        %v5822 = vunpack.c.l.b16 %v5303
        %v5823 = vunpack.c.l.b16 %v5304
        %v5824 = vunpack.c.l.b16 %v5305
        %v5825 = vunpack.c.l.b16 %v5306
        %v5826 = vunpack.c.l.b16 %v5307
        %v5827 = vunpack.c.l.b16 %v5308
        %v5828 = vunpack.c.l.b16 %v5309
        %v5829 = vunpack.c.l.b16 %v5310
        %v5830 = vunpack.c.l.b16 %v5311
        %v5831 = vunpack.c.l.b16 %v5312
        %v5832 = vunpack.c.l.b16 %v5313
        %v5833 = vunpack.c.l.b16 %v5314
        %v5834 = vunpack.c.l.b16 %v5315
        %v5835 = vunpack.c.l.b16 %v5316
        %v5836 = vunpack.c.l.b16 %v5317
        %v5837 = vunpack.c.l.b16 %v5318
        %v5838 = vunpack.c.l.b16 %v5319
        %v5839 = vunpack.c.l.b16 %v5320
        %v5840 = vunpack.c.l.b16 %v5321
        %v5841 = vunpack.c.l.b16 %v5322
        %v5842 = vunpack.c.l.b16 %v5323
        %v5843 = vunpack.c.l.b16 %v5324
        %v5844 = vunpack.c.l.b16 %v5325
        %v5845 = vunpack.c.l.b16 %v5326
        %v5846 = vunpack.c.l.b16 %v5327
        %v5847 = vunpack.c.l.b16 %v5328
        %v5848 = vunpack.c.l.b16 %v5329
        %v5849 = vunpack.c.l.b16 %v5330
        %v5850 = vunpack.c.l.b16 %v5331
        %v5851 = vunpack.c.l.b16 %v5332
        %v5852 = vunpack.c.l.b16 %v5333
        %v5853 = vunpack.c.l.b16 %v5334
        %v5854 = vunpack.c.l.b16 %v5335
        %v5855 = vunpack.c.l.b16 %v5336
        %v5856 = vunpack.c.l.b16 %v5337
        %v5857 = vunpack.c.l.b16 %v5338
        %v5858 = vunpack.c.l.b16 %v5339
        %v5859 = vunpack.c.l.b16 %v5340
        %v5860 = vunpack.c.l.b16 %v5341
        %v5861 = vunpack.c.l.b16 %v5342
        %v5862 = vunpack.c.l.b16 %v5343
        %v5863 = vunpack.c.l.b16 %v5344
        %v5864 = vunpack.c.l.b16 %v5345
        %v5865 = vunpack.c.l.b16 %v5346
        %v5866 = vunpack.c.l.b16 %v5347
        %v5867 = vunpack.c.l.b16 %v5348
        %v5868 = vunpack.c.l.b16 %v5349
        %v5869 = vunpack.c.l.b16 %v5350
        %v5870 = vunpack.c.l.b16 %v5351
        %v5871 = vunpack.c.l.b16 %v5352
        %v5872 = vunpack.c.l.b16 %v5353
        %v5873 = vunpack.c.l.b16 %v5354
        %v5874 = vunpack.c.l.b16 %v5355
        %v5875 = vunpack.c.l.b16 %v5356
        %v5876 = vunpack.c.l.b16 %v5357
        %v5877 = vunpack.c.l.b16 %v5358
        %v5878 = vunpack.c.l.b16 %v5359
        %v5879 = vunpack.c.l.b16 %v5360
        %v5880 = vunpack.c.l.b16 %v5361
        %v5881 = vunpack.c.l.b16 %v5362
        %v5882 = vunpack.c.l.b16 %v5363
        %v5883 = vunpack.c.l.b16 %v5364
        %v5884 = vunpack.c.l.b16 %v5365
        %v5885 = vunpack.c.l.b16 %v5366
        %v5886 = vunpack.c.l.b16 %v5367
        %v5887 = vunpack.c.l.b16 %v5368
        %v5888 = vunpack.c.l.b16 %v5369
        %v5889 = vunpack.c.l.b16 %v5370
        %v5890 = vunpack.c.l.b16 %v5371
        %v5891 = vunpack.c.l.b16 %v5372
        %v5892 = vunpack.c.l.b16 %v5373
        %v5893 = vpack.c.b16 %v5638, %v5637
        %v5894 = vpack.c.b16 %v5640, %v5639
        %v5895 = vpack.c.b16 %v5642, %v5641
        %v5896 = vpack.c.b16 %v5644, %v5643
        %v5897 = vpack.c.b16 %v5646, %v5645
        %v5898 = vpack.c.b16 %v5648, %v5647
        %v5899 = vpack.c.b16 %v5650, %v5649
        %v5900 = vpack.c.b16 %v5652, %v5651
        %v5901 = vpack.c.b16 %v5654, %v5653
        %v5902 = vpack.c.b16 %v5656, %v5655
        %v5903 = vpack.c.b16 %v5658, %v5657
        %v5904 = vpack.c.b16 %v5660, %v5659
        %v5905 = vpack.c.b16 %v5662, %v5661
        %v5906 = vpack.c.b16 %v5664, %v5663
        %v5907 = vpack.c.b16 %v5666, %v5665
        %v5908 = vpack.c.b16 %v5668, %v5667
        %v5909 = vpack.c.b16 %v5670, %v5669
        %v5910 = vpack.c.b16 %v5672, %v5671
        %v5911 = vpack.c.b16 %v5674, %v5673
        %v5912 = vpack.c.b16 %v5676, %v5675
        %v5913 = vpack.c.b16 %v5678, %v5677
        %v5914 = vpack.c.b16 %v5680, %v5679
        %v5915 = vpack.c.b16 %v5682, %v5681
        %v5916 = vpack.c.b16 %v5684, %v5683
        %v5917 = vpack.c.b16 %v5686, %v5685
        %v5918 = vpack.c.b16 %v5688, %v5687
        %v5919 = vpack.c.b16 %v5690, %v5689
        %v5920 = vpack.c.b16 %v5692, %v5691
        %v5921 = vpack.c.b16 %v5694, %v5693
        %v5922 = vpack.c.b16 %v5696, %v5695
        %v5923 = vpack.c.b16 %v5698, %v5697
        %v5924 = vpack.c.b16 %v5700, %v5699
        %v5925 = vpack.c.b16 %v5702, %v5701
        %v5926 = vpack.c.b16 %v5704, %v5703
        %v5927 = vpack.c.b16 %v5706, %v5705
        %v5928 = vpack.c.b16 %v5708, %v5707
        %v5929 = vpack.c.b16 %v5710, %v5709
        %v5930 = vpack.c.b16 %v5712, %v5711
        %v5931 = vpack.c.b16 %v5714, %v5713
        %v5932 = vpack.c.b16 %v5716, %v5715
        %v5933 = vpack.c.b16 %v5718, %v5717
        %v5934 = vpack.c.b16 %v5720, %v5719
        %v5935 = vpack.c.b16 %v5722, %v5721
        %v5936 = vpack.c.b16 %v5724, %v5723
        %v5937 = vpack.c.b16 %v5726, %v5725
        %v5938 = vpack.c.b16 %v5728, %v5727
        %v5939 = vpack.c.b16 %v5730, %v5729
        %v5940 = vpack.c.b16 %v5732, %v5731
        %v5941 = vpack.c.b16 %v5734, %v5733
        %v5942 = vpack.c.b16 %v5736, %v5735
        %v5943 = vpack.c.b16 %v5738, %v5737
        %v5944 = vpack.c.b16 %v5740, %v5739
        %v5945 = vpack.c.b16 %v5742, %v5741
        %v5946 = vpack.c.b16 %v5744, %v5743
        %v5947 = vpack.c.b16 %v5746, %v5745
        %v5948 = vpack.c.b16 %v5748, %v5747
        %v5949 = vpack.c.b16 %v5750, %v5749
        %v5950 = vpack.c.b16 %v5752, %v5751
        %v5951 = vpack.c.b16 %v5754, %v5753
        %v5952 = vpack.c.b16 %v5756, %v5755
        %v5953 = vpack.c.b16 %v5758, %v5757
        %v5954 = vpack.c.b16 %v5760, %v5759
        %v5955 = vpack.c.b16 %v5762, %v5761
        %v5956 = vpack.c.b16 %v5764, %v5763
        %v5957 = vpack.c.b16 %v5766, %v5765
        %v5958 = vpack.c.b16 %v5768, %v5767
        %v5959 = vpack.c.b16 %v5770, %v5769
        %v5960 = vpack.c.b16 %v5772, %v5771
        %v5961 = vpack.c.b16 %v5774, %v5773
        %v5962 = vpack.c.b16 %v5776, %v5775
        %v5963 = vpack.c.b16 %v5778, %v5777
        %v5964 = vpack.c.b16 %v5780, %v5779
        %v5965 = vpack.c.b16 %v5782, %v5781
        %v5966 = vpack.c.b16 %v5784, %v5783
        %v5967 = vpack.c.b16 %v5786, %v5785
        %v5968 = vpack.c.b16 %v5788, %v5787
        %v5969 = vpack.c.b16 %v5790, %v5789
        %v5970 = vpack.c.b16 %v5792, %v5791
        %v5971 = vpack.c.b16 %v5794, %v5793
        %v5972 = vpack.c.b16 %v5796, %v5795
        %v5973 = vpack.c.b16 %v5798, %v5797
        %v5974 = vpack.c.b16 %v5800, %v5799
        %v5975 = vpack.c.b16 %v5802, %v5801
        %v5976 = vpack.c.b16 %v5804, %v5803
        %v5977 = vpack.c.b16 %v5806, %v5805
        %v5978 = vpack.c.b16 %v5808, %v5807
        %v5979 = vpack.c.b16 %v5810, %v5809
        %v5980 = vpack.c.b16 %v5812, %v5811
        %v5981 = vpack.c.b16 %v5814, %v5813
        %v5982 = vpack.c.b16 %v5816, %v5815
        %v5983 = vpack.c.b16 %v5818, %v5817
        %v5984 = vpack.c.b16 %v5820, %v5819
        %v5985 = vpack.c.b16 %v5822, %v5821
        %v5986 = vpack.c.b16 %v5824, %v5823
        %v5987 = vpack.c.b16 %v5826, %v5825
        %v5988 = vpack.c.b16 %v5828, %v5827
        %v5989 = vpack.c.b16 %v5830, %v5829
        %v5990 = vpack.c.b16 %v5832, %v5831
        %v5991 = vpack.c.b16 %v5834, %v5833
        %v5992 = vpack.c.b16 %v5836, %v5835
        %v5993 = vpack.c.b16 %v5838, %v5837
        %v5994 = vpack.c.b16 %v5840, %v5839
        %v5995 = vpack.c.b16 %v5842, %v5841
        %v5996 = vpack.c.b16 %v5844, %v5843
        %v5997 = vpack.c.b16 %v5846, %v5845
        %v5998 = vpack.c.b16 %v5848, %v5847
        %v5999 = vpack.c.b16 %v5850, %v5849
        %v6000 = vpack.c.b16 %v5852, %v5851
        %v6001 = vpack.c.b16 %v5854, %v5853
        %v6002 = vpack.c.b16 %v5856, %v5855
        %v6003 = vpack.c.b16 %v5858, %v5857
        %v6004 = vpack.c.b16 %v5860, %v5859
        %v6005 = vpack.c.b16 %v5862, %v5861
        %v6006 = vpack.c.b16 %v5864, %v5863
        %v6007 = vpack.c.b16 %v5866, %v5865
        %v6008 = vpack.c.b16 %v5868, %v5867
        %v6009 = vpack.c.b16 %v5870, %v5869
        %v6010 = vpack.c.b16 %v5872, %v5871
        %v6011 = vpack.c.b16 %v5874, %v5873
        %v6012 = vpack.c.b16 %v5876, %v5875
        %v6013 = vpack.c.b16 %v5878, %v5877
        %v6014 = vpack.c.b16 %v5880, %v5879
        %v6015 = vpack.c.b16 %v5882, %v5881
        %v6016 = vpack.c.b16 %v5884, %v5883
        %v6017 = vpack.c.b16 %v5886, %v5885
        %v6018 = vpack.c.b16 %v5888, %v5887
        %v6019 = vpack.c.b16 %v5890, %v5889
        %v6020 = vpack.c.b16 %v5892, %v5891
        %6149 = vmatprep.subr.bf16.mxu0 0
        %6150 = vmatpush1.bf16.msra.mxu0 %v5893
        %6151 = vmatprep.subr.bf16.mxu0 0
        %6152 = vmatpush1.bf16.msra.mxu0 %v5894
        %6153 = vmatprep.subr.bf16.mxu0 0
        %6154 = vmatpush1.bf16.msra.mxu0 %v5895
        %6155 = vmatprep.subr.bf16.mxu0 0
        %6156 = vmatpush1.bf16.msra.mxu0 %v5896
        %6157 = vmatprep.subr.bf16.mxu0 0
        %6158 = vmatpush1.bf16.msra.mxu0 %v5897
        %6159 = vmatprep.subr.bf16.mxu0 0
        %6160 = vmatpush1.bf16.msra.mxu0 %v5898
        %6161 = vmatprep.subr.bf16.mxu0 0
        %6162 = vmatpush1.bf16.msra.mxu0 %v5899
        %6163 = vmatprep.subr.bf16.mxu0 0
        %6164 = vmatpush1.bf16.msra.mxu0 %v5900
        %6165 = vmatprep.subr.bf16.mxu0 0
        %6166 = vmatpush1.bf16.msra.mxu0 %v5901
        %6167 = vmatprep.subr.bf16.mxu0 0
        %6168 = vmatpush1.bf16.msra.mxu0 %v5902
        %6169 = vmatprep.subr.bf16.mxu0 0
        %6170 = vmatpush1.bf16.msra.mxu0 %v5903
        %6171 = vmatprep.subr.bf16.mxu0 0
        %6172 = vmatpush1.bf16.msra.mxu0 %v5904
        %6173 = vmatprep.subr.bf16.mxu0 0
        %6174 = vmatpush1.bf16.msra.mxu0 %v5905
        %6175 = vmatprep.subr.bf16.mxu0 0
        %6176 = vmatpush1.bf16.msra.mxu0 %v5906
        %6177 = vmatprep.subr.bf16.mxu0 0
        %6178 = vmatpush1.bf16.msra.mxu0 %v5907
        %6179 = vmatprep.subr.bf16.mxu0 0
        %6180 = vmatpush1.bf16.msra.mxu0 %v5908
        %6181 = vmatprep.mubr.bf16.mxu0 %v5087
        %6182 = vmatmul.mubr.bf16.gmra.mrb[0].mxu0 %v5086
        %v6183 = vpop.f32.mrb[0].mxu0
        %v6184 = vadd.f32 %v5379, %v6183
        %v6185 = vpop.f32.mrb[0].mxu0
        %v6186 = vpop.f32.mrb[0].mxu0
        %v6187 = vadd.f32 %v5379, %v6186
        %v6188 = vpop.f32.mrb[0].mxu0
        %6189 = vmatprep.mubr.bf16.mxu0 %v5103
        %6190 = vmatmul.mubr.bf16.gmra.mrb[0].mxu0 %v5102
        %v6191 = vpop.f32.mrb[0].mxu0
        %v6192 = vadd.f32 %v5379, %v6191
        %v6193 = vpop.f32.mrb[0].mxu0
        %v6194 = vpop.f32.mrb[0].mxu0
        %v6195 = vadd.f32 %v5379, %v6194
        %v6196 = vpop.f32.mrb[0].mxu0
        %6197 = vdwg.mxu0
        %6198 = vmatprep.subr.bf16.mxu0 0
        %6199 = vmatpush1.bf16.msra.mxu0 %v5909
        %6200 = vmatprep.subr.bf16.mxu0 0
        %6201 = vmatpush1.bf16.msra.mxu0 %v5910
        %6202 = vmatprep.subr.bf16.mxu0 0
        %6203 = vmatpush1.bf16.msra.mxu0 %v5911
        %6204 = vmatprep.subr.bf16.mxu0 0
        %6205 = vmatpush1.bf16.msra.mxu0 %v5912
        %6206 = vmatprep.subr.bf16.mxu0 0
        %6207 = vmatpush1.bf16.msra.mxu0 %v5913
        %6208 = vmatprep.subr.bf16.mxu0 0
        %6209 = vmatpush1.bf16.msra.mxu0 %v5914
        %6210 = vmatprep.subr.bf16.mxu0 0
        %6211 = vmatpush1.bf16.msra.mxu0 %v5915
        %6212 = vmatprep.subr.bf16.mxu0 0
        %6213 = vmatpush1.bf16.msra.mxu0 %v5916
        %6214 = vmatprep.subr.bf16.mxu0 0
        %6215 = vmatpush1.bf16.msra.mxu0 %v5917
        %6216 = vmatprep.subr.bf16.mxu0 0
        %6217 = vmatpush1.bf16.msra.mxu0 %v5918
        %6218 = vmatprep.subr.bf16.mxu0 0
        %6219 = vmatpush1.bf16.msra.mxu0 %v5919
        %6220 = vmatprep.subr.bf16.mxu0 0
        %6221 = vmatpush1.bf16.msra.mxu0 %v5920
        %6222 = vmatprep.subr.bf16.mxu0 0
        %6223 = vmatpush1.bf16.msra.mxu0 %v5921
        %6224 = vmatprep.subr.bf16.mxu0 0
        %6225 = vmatpush1.bf16.msra.mxu0 %v5922
        %6226 = vmatprep.subr.bf16.mxu0 0
        %6227 = vmatpush1.bf16.msra.mxu0 %v5923
        %6228 = vmatprep.subr.bf16.mxu0 0
        %6229 = vmatpush1.bf16.msra.mxu0 %v5924
        %6230 = vmatprep.mubr.bf16.mxu0 %v5089
        %6231 = vmatmul.mubr.bf16.gmra.mrb[0].mxu0 %v5088
        %v6232 = vpop.f32.mrb[0].mxu0
        %v6233 = vadd.f32 %v6184, %v6232
        %v6234 = vpop.f32.mrb[0].mxu0
        %v6235 = vpop.f32.mrb[0].mxu0
        %v6236 = vadd.f32 %v6187, %v6235
        %v6237 = vpop.f32.mrb[0].mxu0
        %6238 = vmatprep.mubr.bf16.mxu0 %v5105
        %6239 = vmatmul.mubr.bf16.gmra.mrb[0].mxu0 %v5104
        %v6240 = vpop.f32.mrb[0].mxu0
        %v6241 = vadd.f32 %v6192, %v6240
        %v6242 = vpop.f32.mrb[0].mxu0
        %v6243 = vpop.f32.mrb[0].mxu0
        %v6244 = vadd.f32 %v6195, %v6243
        %v6245 = vpop.f32.mrb[0].mxu0
        %6246 = vdwg.mxu0
        %6247 = vmatprep.subr.bf16.mxu0 0
        %6248 = vmatpush1.bf16.msra.mxu0 %v5925
        %6249 = vmatprep.subr.bf16.mxu0 0
        %6250 = vmatpush1.bf16.msra.mxu0 %v5926
        %6251 = vmatprep.subr.bf16.mxu0 0
        %6252 = vmatpush1.bf16.msra.mxu0 %v5927
        %6253 = vmatprep.subr.bf16.mxu0 0
        %6254 = vmatpush1.bf16.msra.mxu0 %v5928
        %6255 = vmatprep.subr.bf16.mxu0 0
        %6256 = vmatpush1.bf16.msra.mxu0 %v5929
        %6257 = vmatprep.subr.bf16.mxu0 0
        %6258 = vmatpush1.bf16.msra.mxu0 %v5930
        %6259 = vmatprep.subr.bf16.mxu0 0
        %6260 = vmatpush1.bf16.msra.mxu0 %v5931
        %6261 = vmatprep.subr.bf16.mxu0 0
        %6262 = vmatpush1.bf16.msra.mxu0 %v5932
        %6263 = vmatprep.subr.bf16.mxu0 0
        %6264 = vmatpush1.bf16.msra.mxu0 %v5933
        %6265 = vmatprep.subr.bf16.mxu0 0
        %6266 = vmatpush1.bf16.msra.mxu0 %v5934
        %6267 = vmatprep.subr.bf16.mxu0 0
        %6268 = vmatpush1.bf16.msra.mxu0 %v5935
        %6269 = vmatprep.subr.bf16.mxu0 0
        %6270 = vmatpush1.bf16.msra.mxu0 %v5936
        %6271 = vmatprep.subr.bf16.mxu0 0
        %6272 = vmatpush1.bf16.msra.mxu0 %v5937
        %6273 = vmatprep.subr.bf16.mxu0 0
        %6274 = vmatpush1.bf16.msra.mxu0 %v5938
        %6275 = vmatprep.subr.bf16.mxu0 0
        %6276 = vmatpush1.bf16.msra.mxu0 %v5939
        %6277 = vmatprep.subr.bf16.mxu0 0
        %6278 = vmatpush1.bf16.msra.mxu0 %v5940
        %6279 = vmatprep.mubr.bf16.mxu0 %v5091
        %6280 = vmatmul.mubr.bf16.gmra.mrb[0].mxu0 %v5090
        %v6281 = vpop.f32.mrb[0].mxu0
        %v6282 = vadd.f32 %v6233, %v6281
        %v6283 = vpop.f32.mrb[0].mxu0
        %v6284 = vpop.f32.mrb[0].mxu0
        %v6285 = vadd.f32 %v6236, %v6284
        %v6286 = vpop.f32.mrb[0].mxu0
        %6287 = vmatprep.mubr.bf16.mxu0 %v5107
        %6288 = vmatmul.mubr.bf16.gmra.mrb[0].mxu0 %v5106
        %v6289 = vpop.f32.mrb[0].mxu0
        %v6290 = vadd.f32 %v6241, %v6289
        %v6291 = vpop.f32.mrb[0].mxu0
        %v6292 = vpop.f32.mrb[0].mxu0
        %v6293 = vadd.f32 %v6244, %v6292
        %v6294 = vpop.f32.mrb[0].mxu0
        %6295 = vdwg.mxu0
        %6296 = vmatprep.subr.bf16.mxu0 0
        %6297 = vmatpush1.bf16.msra.mxu0 %v5941
        %6298 = vmatprep.subr.bf16.mxu0 0
        %6299 = vmatpush1.bf16.msra.mxu0 %v5942
        %6300 = vmatprep.subr.bf16.mxu0 0
        %6301 = vmatpush1.bf16.msra.mxu0 %v5943
        %6302 = vmatprep.subr.bf16.mxu0 0
        %6303 = vmatpush1.bf16.msra.mxu0 %v5944
        %6304 = vmatprep.subr.bf16.mxu0 0
        %6305 = vmatpush1.bf16.msra.mxu0 %v5945
        %6306 = vmatprep.subr.bf16.mxu0 0
        %6307 = vmatpush1.bf16.msra.mxu0 %v5946
        %6308 = vmatprep.subr.bf16.mxu0 0
        %6309 = vmatpush1.bf16.msra.mxu0 %v5947
        %6310 = vmatprep.subr.bf16.mxu0 0
        %6311 = vmatpush1.bf16.msra.mxu0 %v5948
        %6312 = vmatprep.subr.bf16.mxu0 0
        %6313 = vmatpush1.bf16.msra.mxu0 %v5949
        %6314 = vmatprep.subr.bf16.mxu0 0
        %6315 = vmatpush1.bf16.msra.mxu0 %v5950
        %6316 = vmatprep.subr.bf16.mxu0 0
        %6317 = vmatpush1.bf16.msra.mxu0 %v5951
        %6318 = vmatprep.subr.bf16.mxu0 0
        %6319 = vmatpush1.bf16.msra.mxu0 %v5952
        %6320 = vmatprep.subr.bf16.mxu0 0
        %6321 = vmatpush1.bf16.msra.mxu0 %v5953
        %6322 = vmatprep.subr.bf16.mxu0 0
        %6323 = vmatpush1.bf16.msra.mxu0 %v5954
        %6324 = vmatprep.subr.bf16.mxu0 0
        %6325 = vmatpush1.bf16.msra.mxu0 %v5955
        %6326 = vmatprep.subr.bf16.mxu0 0
        %6327 = vmatpush1.bf16.msra.mxu0 %v5956
        %6328 = vmatprep.mubr.bf16.mxu0 %v5093
        %6329 = vmatmul.mubr.bf16.gmra.mrb[0].mxu0 %v5092
        %v6330 = vpop.f32.mrb[0].mxu0
        %v6331 = vadd.f32 %v6282, %v6330
        %v6332 = vpop.f32.mrb[0].mxu0
        %v6333 = vpop.f32.mrb[0].mxu0
        %v6334 = vadd.f32 %v6285, %v6333
        %v6335 = vpop.f32.mrb[0].mxu0
        %6336 = vmatprep.mubr.bf16.mxu0 %v5109
        %6337 = vmatmul.mubr.bf16.gmra.mrb[0].mxu0 %v5108
        %v6338 = vpop.f32.mrb[0].mxu0
        %v6339 = vadd.f32 %v6290, %v6338
        %v6340 = vpop.f32.mrb[0].mxu0
        %v6341 = vpop.f32.mrb[0].mxu0
        %v6342 = vadd.f32 %v6293, %v6341
        %v6343 = vpop.f32.mrb[0].mxu0
        %6344 = vdwg.mxu0
        %6345 = vmatprep.subr.bf16.mxu0 0
        %6346 = vmatpush1.bf16.msra.mxu0 %v5957
        %6347 = vmatprep.subr.bf16.mxu0 0
        %6348 = vmatpush1.bf16.msra.mxu0 %v5958
        %6349 = vmatprep.subr.bf16.mxu0 0
        %6350 = vmatpush1.bf16.msra.mxu0 %v5959
        %6351 = vmatprep.subr.bf16.mxu0 0
        %6352 = vmatpush1.bf16.msra.mxu0 %v5960
        %6353 = vmatprep.subr.bf16.mxu0 0
        %6354 = vmatpush1.bf16.msra.mxu0 %v5961
        %6355 = vmatprep.subr.bf16.mxu0 0
        %6356 = vmatpush1.bf16.msra.mxu0 %v5962
        %6357 = vmatprep.subr.bf16.mxu0 0
        %6358 = vmatpush1.bf16.msra.mxu0 %v5963
        %6359 = vmatprep.subr.bf16.mxu0 0
        %6360 = vmatpush1.bf16.msra.mxu0 %v5964
        %6361 = vmatprep.subr.bf16.mxu0 0
        %6362 = vmatpush1.bf16.msra.mxu0 %v5965
        %6363 = vmatprep.subr.bf16.mxu0 0
        %6364 = vmatpush1.bf16.msra.mxu0 %v5966
        %6365 = vmatprep.subr.bf16.mxu0 0
        %6366 = vmatpush1.bf16.msra.mxu0 %v5967
        %6367 = vmatprep.subr.bf16.mxu0 0
        %6368 = vmatpush1.bf16.msra.mxu0 %v5968
        %6369 = vmatprep.subr.bf16.mxu0 0
        %6370 = vmatpush1.bf16.msra.mxu0 %v5969
        %6371 = vmatprep.subr.bf16.mxu0 0
        %6372 = vmatpush1.bf16.msra.mxu0 %v5970
        %6373 = vmatprep.subr.bf16.mxu0 0
        %6374 = vmatpush1.bf16.msra.mxu0 %v5971
        %6375 = vmatprep.subr.bf16.mxu0 0
        %6376 = vmatpush1.bf16.msra.mxu0 %v5972
        %6377 = vmatprep.mubr.bf16.mxu0 %v5095
        %6378 = vmatmul.mubr.bf16.gmra.mrb[0].mxu0 %v5094
        %v6379 = vpop.f32.mrb[0].mxu0
        %v6380 = vadd.f32 %v6331, %v6379
        %v6381 = vpop.f32.mrb[0].mxu0
        %v6382 = vpop.f32.mrb[0].mxu0
        %v6383 = vadd.f32 %v6334, %v6382
        %v6384 = vpop.f32.mrb[0].mxu0
        %6385 = vmatprep.mubr.bf16.mxu0 %v5111
        %6386 = vmatmul.mubr.bf16.gmra.mrb[0].mxu0 %v5110
        %v6387 = vpop.f32.mrb[0].mxu0
        %v6388 = vadd.f32 %v6339, %v6387
        %v6389 = vpop.f32.mrb[0].mxu0
        %v6390 = vpop.f32.mrb[0].mxu0
        %v6391 = vadd.f32 %v6342, %v6390
        %v6392 = vpop.f32.mrb[0].mxu0
        %6393 = vdwg.mxu0
        %6394 = vmatprep.subr.bf16.mxu0 0
        %6395 = vmatpush1.bf16.msra.mxu0 %v5973
        %6396 = vmatprep.subr.bf16.mxu0 0
        %6397 = vmatpush1.bf16.msra.mxu0 %v5974
        %6398 = vmatprep.subr.bf16.mxu0 0
        %6399 = vmatpush1.bf16.msra.mxu0 %v5975
        %6400 = vmatprep.subr.bf16.mxu0 0
        %6401 = vmatpush1.bf16.msra.mxu0 %v5976
        %6402 = vmatprep.subr.bf16.mxu0 0
        %6403 = vmatpush1.bf16.msra.mxu0 %v5977
        %6404 = vmatprep.subr.bf16.mxu0 0
        %6405 = vmatpush1.bf16.msra.mxu0 %v5978
        %6406 = vmatprep.subr.bf16.mxu0 0
        %6407 = vmatpush1.bf16.msra.mxu0 %v5979
        %6408 = vmatprep.subr.bf16.mxu0 0
        %6409 = vmatpush1.bf16.msra.mxu0 %v5980
        %6410 = vmatprep.subr.bf16.mxu0 0
        %6411 = vmatpush1.bf16.msra.mxu0 %v5981
        %6412 = vmatprep.subr.bf16.mxu0 0
        %6413 = vmatpush1.bf16.msra.mxu0 %v5982
        %6414 = vmatprep.subr.bf16.mxu0 0
        %6415 = vmatpush1.bf16.msra.mxu0 %v5983
        %6416 = vmatprep.subr.bf16.mxu0 0
        %6417 = vmatpush1.bf16.msra.mxu0 %v5984
        %6418 = vmatprep.subr.bf16.mxu0 0
        %6419 = vmatpush1.bf16.msra.mxu0 %v5985
        %6420 = vmatprep.subr.bf16.mxu0 0
        %6421 = vmatpush1.bf16.msra.mxu0 %v5986
        %6422 = vmatprep.subr.bf16.mxu0 0
        %6423 = vmatpush1.bf16.msra.mxu0 %v5987
        %6424 = vmatprep.subr.bf16.mxu0 0
        %6425 = vmatpush1.bf16.msra.mxu0 %v5988
        %6426 = vmatprep.mubr.bf16.mxu0 %v5097
        %6427 = vmatmul.mubr.bf16.gmra.mrb[0].mxu0 %v5096
        %v6428 = vpop.f32.mrb[0].mxu0
        %v6429 = vadd.f32 %v6380, %v6428
        %v6430 = vpop.f32.mrb[0].mxu0
        %v6431 = vpop.f32.mrb[0].mxu0
        %v6432 = vadd.f32 %v6383, %v6431
        %v6433 = vpop.f32.mrb[0].mxu0
        %6434 = vmatprep.mubr.bf16.mxu0 %v5113
        %6435 = vmatmul.mubr.bf16.gmra.mrb[0].mxu0 %v5112
        %v6436 = vpop.f32.mrb[0].mxu0
        %v6437 = vadd.f32 %v6388, %v6436
        %v6438 = vpop.f32.mrb[0].mxu0
        %v6439 = vpop.f32.mrb[0].mxu0
        %v6440 = vadd.f32 %v6391, %v6439
        %v6441 = vpop.f32.mrb[0].mxu0
        %6442 = vdwg.mxu0
        %6443 = vmatprep.subr.bf16.mxu0 0
        %6444 = vmatpush1.bf16.msra.mxu0 %v5989
        %6445 = vmatprep.subr.bf16.mxu0 0
        %6446 = vmatpush1.bf16.msra.mxu0 %v5990
        %6447 = vmatprep.subr.bf16.mxu0 0
        %6448 = vmatpush1.bf16.msra.mxu0 %v5991
        %6449 = vmatprep.subr.bf16.mxu0 0
        %6450 = vmatpush1.bf16.msra.mxu0 %v5992
        %6451 = vmatprep.subr.bf16.mxu0 0
        %6452 = vmatpush1.bf16.msra.mxu0 %v5993
        %6453 = vmatprep.subr.bf16.mxu0 0
        %6454 = vmatpush1.bf16.msra.mxu0 %v5994
        %6455 = vmatprep.subr.bf16.mxu0 0
        %6456 = vmatpush1.bf16.msra.mxu0 %v5995
        %6457 = vmatprep.subr.bf16.mxu0 0
        %6458 = vmatpush1.bf16.msra.mxu0 %v5996
        %6459 = vmatprep.subr.bf16.mxu0 0
        %6460 = vmatpush1.bf16.msra.mxu0 %v5997
        %6461 = vmatprep.subr.bf16.mxu0 0
        %6462 = vmatpush1.bf16.msra.mxu0 %v5998
        %6463 = vmatprep.subr.bf16.mxu0 0
        %6464 = vmatpush1.bf16.msra.mxu0 %v5999
        %6465 = vmatprep.subr.bf16.mxu0 0
        %6466 = vmatpush1.bf16.msra.mxu0 %v6000
        %6467 = vmatprep.subr.bf16.mxu0 0
        %6468 = vmatpush1.bf16.msra.mxu0 %v6001
        %6469 = vmatprep.subr.bf16.mxu0 0
        %6470 = vmatpush1.bf16.msra.mxu0 %v6002
        %6471 = vmatprep.subr.bf16.mxu0 0
        %6472 = vmatpush1.bf16.msra.mxu0 %v6003
        %6473 = vmatprep.subr.bf16.mxu0 0
        %6474 = vmatpush1.bf16.msra.mxu0 %v6004
        %6475 = vmatprep.mubr.bf16.mxu0 %v5099
        %6476 = vmatmul.mubr.bf16.gmra.mrb[0].mxu0 %v5098
        %v6477 = vpop.f32.mrb[0].mxu0
        %v6478 = vadd.f32 %v6429, %v6477
        %v6479 = vpop.f32.mrb[0].mxu0
        %v6480 = vpop.f32.mrb[0].mxu0
        %v6481 = vadd.f32 %v6432, %v6480
        %v6482 = vpop.f32.mrb[0].mxu0
        %6483 = vmatprep.mubr.bf16.mxu0 %v5115
        %6484 = vmatmul.mubr.bf16.gmra.mrb[0].mxu0 %v5114
        %v6485 = vpop.f32.mrb[0].mxu0
        %v6486 = vadd.f32 %v6437, %v6485
        %v6487 = vpop.f32.mrb[0].mxu0
        %v6488 = vpop.f32.mrb[0].mxu0
        %v6489 = vadd.f32 %v6440, %v6488
        %v6490 = vpop.f32.mrb[0].mxu0
        %6491 = vdwg.mxu0
        %6492 = vmatprep.subr.bf16.mxu0 0
        %6493 = vmatpush1.bf16.msra.mxu0 %v6005
        %6494 = vmatprep.subr.bf16.mxu0 0
        %6495 = vmatpush1.bf16.msra.mxu0 %v6006
        %6496 = vmatprep.subr.bf16.mxu0 0
        %6497 = vmatpush1.bf16.msra.mxu0 %v6007
        %6498 = vmatprep.subr.bf16.mxu0 0
        %6499 = vmatpush1.bf16.msra.mxu0 %v6008
        %6500 = vmatprep.subr.bf16.mxu0 0
        %6501 = vmatpush1.bf16.msra.mxu0 %v6009
        %6502 = vmatprep.subr.bf16.mxu0 0
        %6503 = vmatpush1.bf16.msra.mxu0 %v6010
        %6504 = vmatprep.subr.bf16.mxu0 0
        %6505 = vmatpush1.bf16.msra.mxu0 %v6011
        %6506 = vmatprep.subr.bf16.mxu0 0
        %6507 = vmatpush1.bf16.msra.mxu0 %v6012
        %6508 = vmatprep.subr.bf16.mxu0 0
        %6509 = vmatpush1.bf16.msra.mxu0 %v6013
        %6510 = vmatprep.subr.bf16.mxu0 0
        %6511 = vmatpush1.bf16.msra.mxu0 %v6014
        %6512 = vmatprep.subr.bf16.mxu0 0
        %6513 = vmatpush1.bf16.msra.mxu0 %v6015
        %6514 = vmatprep.subr.bf16.mxu0 0
        %6515 = vmatpush1.bf16.msra.mxu0 %v6016
        %6516 = vmatprep.subr.bf16.mxu0 0
        %6517 = vmatpush1.bf16.msra.mxu0 %v6017
        %6518 = vmatprep.subr.bf16.mxu0 0
        %6519 = vmatpush1.bf16.msra.mxu0 %v6018
        %6520 = vmatprep.subr.bf16.mxu0 0
        %6521 = vmatpush1.bf16.msra.mxu0 %v6019
        %6522 = vmatprep.subr.bf16.mxu0 0
        %6523 = vmatpush1.bf16.msra.mxu0 %v6020
        %6524 = vmatprep.mubr.bf16.mxu0 %v5101
        %6525 = vmatmul.mubr.bf16.gmra.mrb[0].mxu0 %v5100
        %v6526 = vpop.f32.mrb[0].mxu0
        %v6527 = vadd.f32 %v6478, %v6526
        %v6528 = vpop.f32.mrb[0].mxu0
        %v6529 = vpop.f32.mrb[0].mxu0
        %v6530 = vadd.f32 %v6481, %v6529
        %v6531 = vpop.f32.mrb[0].mxu0
        %6532 = vmatprep.mubr.bf16.mxu0 %v5117
        %6533 = vmatmul.mubr.bf16.gmra.mrb[0].mxu0 %v5116
        %v6534 = vpop.f32.mrb[0].mxu0
        %v6535 = vadd.f32 %v6486, %v6534
        %v6536 = vpop.f32.mrb[0].mxu0
        %v6537 = vpop.f32.mrb[0].mxu0
        %v6538 = vadd.f32 %v6489, %v6537
        %v6539 = vpop.f32.mrb[0].mxu0
        %6540 = vdwg.mxu0
        %v6541 = vadd.f32 %v3740, %v6527
        %v6542 = vadd.f32 %v3741, %v6530
        %v6543 = vadd.f32 %v3742, %v6535
        %v6544 = vadd.f32 %v3743, %v6538
        %v6545 = vld [vmem:[%s1013] sm:$0x1]
        %v6546 = vld [vmem:[%s1021] sm:$0x1]
        %6547 = vadd.xlane.f32.xlu0 %v6541
        %v6548 = vpop.xlane.xlu0 %6547
        %6549 = vadd.xlane.f32.xlu0 %v6542
        %v6550 = vpop.xlane.xlu0 %6549
        %6551 = vadd.xlane.f32.xlu0 %v6543
        %v6552 = vpop.xlane.xlu0 %6551
        %6553 = vadd.xlane.f32.xlu0 %v6544
        %v6554 = vpop.xlane.xlu0 %6553
        %v6555 = vmul.f32 %v6548, %v3687
        %v6556 = vmul.f32 %v6550, %v3687
        %v6557 = vmul.f32 %v6552, %v3687
        %v6558 = vmul.f32 %v6554, %v3687
        %v6559 = vsub.f32 %v6541, %v6555
        %v6560 = vsub.f32 %v6542, %v6556
        %v6561 = vsub.f32 %v6543, %v6557
        %v6562 = vsub.f32 %v6544, %v6558
        %v6563 = vmul.f32 %v6559, %v6559
        %v6564 = vmul.f32 %v6560, %v6560
        %v6565 = vmul.f32 %v6561, %v6561
        %v6566 = vmul.f32 %v6562, %v6562
        %6567 = vadd.xlane.f32.xlu0 %v6563
        %v6568 = vpop.xlane.xlu0 %6567
        %6569 = vadd.xlane.f32.xlu0 %v6564
        %v6570 = vpop.xlane.xlu0 %6569
        %6571 = vadd.xlane.f32.xlu0 %v6565
        %v6572 = vpop.xlane.xlu0 %6571
        %6573 = vadd.xlane.f32.xlu0 %v6566
        %v6574 = vpop.xlane.xlu0 %6573
        %v6575 = vmul.f32 %v6568, %v3687
        %v6576 = vmul.f32 %v6570, %v3687
        %v6577 = vmul.f32 %v6572, %v3687
        %v6578 = vmul.f32 %v6574, %v3687
        %v6579 = vadd.f32 %v6575, 1e-05
        %v6580 = vadd.f32 %v6576, 1e-05
        %v6581 = vadd.f32 %v6577, 1e-05
        %v6582 = vadd.f32 %v6578, 1e-05
        %v6583 = vrsqrt.pop %v6579
        %v6584 = vrsqrt.pop %v6580
        %v6585 = vrsqrt.pop %v6581
        %v6586 = vrsqrt.pop %v6582
        %v6587 = vmul.f32 %v6559, %v6583
        %v6588 = vmul.f32 %v6560, %v6584
        %v6589 = vmul.f32 %v6561, %v6585
        %v6590 = vmul.f32 %v6562, %v6586
        %v6592 = vlaneseq
        %v6593 = vshrl.u32 %v6592, 7
        %v6594 = vsub.s32 0, %v6593
        %v6595 = vrot.slane %v6545, %v6594
        %v6597 = vmul.f32 %v6587, %v6595
        %v6598 = vmul.f32 %v6588, %v6595
        %v6599 = vmul.f32 %v6589, %v6595
        %v6600 = vmul.f32 %v6590, %v6595
        %v6602 = vlaneseq
        %v6603 = vshrl.u32 %v6602, 7
        %v6604 = vsub.s32 0, %v6603
        %v6605 = vrot.slane %v6546, %v6604
        %v6607 = vadd.f32 %v6597, %v6605
        %v6608 = vadd.f32 %v6598, %v6605
        %v6609 = vadd.f32 %v6599, %v6605
        %v6610 = vadd.f32 %v6600, %v6605
        %6611 = vst [vmem:[#allocation2] sm:$0xff] %v6607
        %6612 = vst [vmem:[#allocation2 + $0x8] sm:$0xff] %v6608
        %6613 = vst [vmem:[#allocation2 + $0x10] sm:$0xff] %v6609
        %6614 = vst [vmem:[#allocation2 + $0x18] sm:$0xff] %v6610
        %p6615 = scmp.eq.s32.totalorder %s56, 1
        // Predicated region
        $region181: #{encoder_forward.1} parent=115 // pred_check
          %p6616 = pneg %p6615
        $region182: #{encoder_forward.1} parent=115 // pred_check_branch
          %6618 = sbr.rel (%p6616) target = $region184
        $region183: #{encoder_forward.1} parent=115 // pred_region
          %v6619 = vld [vmem:[#allocation24] sm:$0x1]
          %v6621 = vlaneseq
          %v6622 = vshrl.u32 %v6621, 7
          %v6623 = vsub.s32 0, %v6622
          %v6624 = vrot.slane %v6619, %v6623
          %v6626 = vmul.f32 %v6607, %v6624
          %v6627 = vmul.f32 %v6608, %v6624
          %v6628 = vmul.f32 %v6609, %v6624
          %v6629 = vmul.f32 %v6610, %v6624
          %6630 = vadd.xlane.f32.xlu0 %v6626
          %v6631 = vpop.xlane.xlu0 %6630
          %6632 = vadd.xlane.f32.xlu0 %v6627
          %v6633 = vpop.xlane.xlu0 %6632
          %6634 = vadd.xlane.f32.xlu0 %v6628
          %v6635 = vpop.xlane.xlu0 %6634
          %6636 = vadd.xlane.f32.xlu0 %v6629
          %v6637 = vpop.xlane.xlu0 %6636
          %v6638 = vld [vmem:[#allocation3] sm:$0x1]
          %v6640 = vlaneseq
          %v6641 = vshrl.u32 %v6640, 7
          %v6642 = vsub.s32 0, %v6641
          %v6643 = vrot.slane %v6638, %v6642
          %v6645 = vadd.f32 %v6631, %v6643
          %v6646 = vadd.f32 %v6633, %v6643
          %v6647 = vadd.f32 %v6635, %v6643
          %v6648 = vadd.f32 %v6637, %v6643
          %vm6649 = vcmask 7168
          %v6650 = vsel %vm6649, %v6645, -inf
          %v6651 = vsel %vm6649, %v6646, -inf
          %v6652 = vmax.f32 %v6650, %v6651
          %v6653 = vrot.slane %v6652, 4
          %v6654 = vmax.f32 %v6652, %v6653
          %v6655 = vrot.slane %v6654, 2
          %v6656 = vmax.f32 %v6654, %v6655
          %v6657 = vrot.slane %v6656, 1
          %v6658 = vmax.f32 %v6656, %v6657
          %v6659 = vsel %vm6649, %v6647, -inf
          %v6660 = vsel %vm6649, %v6648, -inf
          %v6661 = vmax.f32 %v6659, %v6660
          %v6662 = vrot.slane %v6661, 4
          %v6663 = vmax.f32 %v6661, %v6662
          %v6664 = vrot.slane %v6663, 2
          %v6665 = vmax.f32 %v6663, %v6664
          %v6666 = vrot.slane %v6665, 1
          %v6667 = vmax.f32 %v6665, %v6666
          %v6668 = vsub.f32 %v6645, %v6658
          %v6669 = vsub.f32 %v6646, %v6658
          %v6670 = vsub.f32 %v6647, %v6667
          %v6671 = vsub.f32 %v6648, %v6667
          %v6672 = vmul.f32 %v6668, 1.442695
          %v6673 = vpow.pop %v6672
          %v6674 = vmul.f32 %v6669, 1.442695
          %v6675 = vpow.pop %v6674
          %v6676 = vmul.f32 %v6670, 1.442695
          %v6677 = vpow.pop %v6676
          %v6678 = vmul.f32 %v6671, 1.442695
          %v6679 = vpow.pop %v6678
          %v6680 = vsel %vm6649, %v6673, 0.0
          %v6681 = vsel %vm6649, %v6675, 0.0
          %v6682 = vadd.f32 %v6680, %v6681
          %v6683 = vrot.slane %v6682, 4
          %v6684 = vadd.f32 %v6682, %v6683
          %v6685 = vrot.slane %v6684, 2
          %v6686 = vadd.f32 %v6684, %v6685
          %v6687 = vrot.slane %v6686, 1
          %v6688 = vadd.f32 %v6686, %v6687
          %v6689 = vsel %vm6649, %v6677, 0.0
          %v6690 = vsel %vm6649, %v6679, 0.0
          %v6691 = vadd.f32 %v6689, %v6690
          %v6692 = vrot.slane %v6691, 4
          %v6693 = vadd.f32 %v6691, %v6692
          %v6694 = vrot.slane %v6693, 2
          %v6695 = vadd.f32 %v6693, %v6694
          %v6696 = vrot.slane %v6695, 1
          %v6697 = vadd.f32 %v6695, %v6696
          %v6698 = vrcp.pop %v6688
          %v6699 = vmul.f32 %v6673, %v6698
          %v6700 = vmul.f32 %v6675, %v6698
          %v6701 = vrcp.pop %v6697
          %v6702 = vmul.f32 %v6677, %v6701
          %v6703 = vmul.f32 %v6679, %v6701
          %6705 = vset.pattern.permute.xlu0 0
          %6706 = vperm.xlu0 %6705, %v6699
          %v6707 = vpop.permute.xlu0 %6706
          %6710 = vset.pattern.permute.xlu0 0
          %6711 = vperm.xlu0 %6710, %v6700
          %v6712 = vpop.permute.xlu0 %6711
          %6715 = vset.pattern.permute.xlu0 0
          %6716 = vperm.xlu0 %6715, %v6702
          %v6717 = vpop.permute.xlu0 %6716
          %6720 = vset.pattern.permute.xlu0 0
          %6721 = vperm.xlu0 %6720, %v6703
          %v6722 = vpop.permute.xlu0 %6721
          %v6724 = vmul.f32 %v6607, %v6707
          %v6725 = vmul.f32 %v6608, %v6712
          %v6726 = vmul.f32 %v6609, %v6717
          %v6727 = vmul.f32 %v6610, %v6722
          %v6728 = vadd.f32 %v6724, %v6725
          %v6729 = vrot.slane %v6728, 4
          %v6730 = vadd.f32 %v6728, %v6729
          %v6731 = vrot.slane %v6730, 2
          %v6732 = vadd.f32 %v6730, %v6731
          %v6733 = vrot.slane %v6732, 1
          %v6734 = vadd.f32 %v6732, %v6733
          %v6735 = vadd.f32 %v6726, %v6727
          %v6736 = vrot.slane %v6735, 4
          %v6737 = vadd.f32 %v6735, %v6736
          %v6738 = vrot.slane %v6737, 2
          %v6739 = vadd.f32 %v6737, %v6738
          %v6740 = vrot.slane %v6739, 1
          %v6741 = vadd.f32 %v6739, %v6740
          %v6742 = vpack.c.bf16 %v6734, %v6734
          %v6743 = vpack.c.bf16 %v6741, %v6741
          %v6744 = vld [vmem:[#allocation25] sm:$0xf]
          %v6745 = vld [vmem:[#allocation25 + $0x4] sm:$0xf]
          %v6746 = vld [vmem:[#allocation25 + $0x8] sm:$0xf]
          %v6747 = vld [vmem:[#allocation25 + $0xc] sm:$0xf]
          %v6748 = vld [vmem:[#allocation25 + $0x10] sm:$0xf]
          %v6749 = vld [vmem:[#allocation25 + $0x14] sm:$0xf]
          %v6750 = vld [vmem:[#allocation25 + $0x18] sm:$0xf]
          %v6751 = vld [vmem:[#allocation25 + $0x1c] sm:$0xf]
          %v6752 = vld [vmem:[#allocation25 + $0x20] sm:$0xf]
          %v6753 = vld [vmem:[#allocation25 + $0x24] sm:$0xf]
          %v6754 = vld [vmem:[#allocation25 + $0x28] sm:$0xf]
          %v6755 = vld [vmem:[#allocation25 + $0x2c] sm:$0xf]
          %v6756 = vld [vmem:[#allocation25 + $0x30] sm:$0xf]
          %v6757 = vld [vmem:[#allocation25 + $0x34] sm:$0xf]
          %v6758 = vld [vmem:[#allocation25 + $0x38] sm:$0xf]
          %v6759 = vld [vmem:[#allocation25 + $0x3c] sm:$0xf]
          %v6760 = vld [vmem:[#allocation27] sm:$0x1]
          %v6762 = vlaneseq
          %v6763 = vshrl.u32 %v6762, 7
          %v6764 = vsub.s32 0, %v6763
          %v6765 = vrot.slane %v6760, %v6764
          %v6769 = vunpack.c.l.b16 %v6742
          %v6770 = vunpack.c.l.b16 %v6743
          %vm6771 = vcmask 1041409
          %v6772 = vsel %vm6771, %v6770, %v6769
          %v6773 = vpack.c.b16 %v6772, %v6772
          %v6791 = vunpack.c.l.b16 %v6744
          %v6792 = vunpack.c.l.b16 %v6745
          %v6793 = vunpack.c.l.b16 %v6746
          %v6794 = vunpack.c.l.b16 %v6747
          %v6795 = vunpack.c.l.b16 %v6748
          %v6796 = vunpack.c.l.b16 %v6749
          %v6797 = vunpack.c.l.b16 %v6750
          %v6798 = vunpack.c.l.b16 %v6751
          %v6799 = vunpack.c.l.b16 %v6752
          %v6800 = vunpack.c.l.b16 %v6753
          %v6801 = vunpack.c.l.b16 %v6754
          %v6802 = vunpack.c.l.b16 %v6755
          %v6803 = vunpack.c.l.b16 %v6756
          %v6804 = vunpack.c.l.b16 %v6757
          %v6805 = vunpack.c.l.b16 %v6758
          %v6806 = vunpack.c.l.b16 %v6759
          %v6807 = vpack.c.b16 %v6792, %v6791
          %v6808 = vpack.c.b16 %v6794, %v6793
          %v6809 = vpack.c.b16 %v6796, %v6795
          %v6810 = vpack.c.b16 %v6798, %v6797
          %v6811 = vpack.c.b16 %v6800, %v6799
          %v6812 = vpack.c.b16 %v6802, %v6801
          %v6813 = vpack.c.b16 %v6804, %v6803
          %v6814 = vpack.c.b16 %v6806, %v6805
          %6823 = vmatprep.subr.bf16.mxu0 0
          %6824 = vmatpush1.bf16.msra.mxu0 %v6807
          %6825 = vmatprep.subr.bf16.mxu0 0
          %6826 = vmatpush1.bf16.msra.mxu0 %v6808
          %6827 = vmatprep.subr.bf16.mxu0 0
          %6828 = vmatpush1.bf16.msra.mxu0 %v6809
          %6829 = vmatprep.subr.bf16.mxu0 0
          %6830 = vmatpush1.bf16.msra.mxu0 %v6810
          %6831 = vmatprep.subr.bf16.mxu0 0
          %6832 = vmatpush1.bf16.msra.mxu0 %v6811
          %6833 = vmatprep.subr.bf16.mxu0 0
          %6834 = vmatpush1.bf16.msra.mxu0 %v6812
          %6835 = vmatprep.subr.bf16.mxu0 0
          %6836 = vmatpush1.bf16.msra.mxu0 %v6813
          %6837 = vmatprep.subr.bf16.mxu0 0
          %6838 = vmatpush1.bf16.msra.mxu0 %v6814
          %6839 = vmatprep.subr.bf16.mxu0 0
          %6840 = vmatpush1.bf16.msra.mxu0 0
          %6841 = vmatprep.subr.bf16.mxu0 0
          %6842 = vmatpush1.bf16.msra.mxu0 0
          %6843 = vmatprep.subr.bf16.mxu0 0
          %6844 = vmatpush1.bf16.msra.mxu0 0
          %6845 = vmatprep.subr.bf16.mxu0 0
          %6846 = vmatpush1.bf16.msra.mxu0 0
          %6847 = vmatprep.subr.bf16.mxu0 0
          %6848 = vmatpush1.bf16.msra.mxu0 0
          %6849 = vmatprep.subr.bf16.mxu0 0
          %6850 = vmatpush1.bf16.msra.mxu0 0
          %6851 = vmatprep.subr.bf16.mxu0 0
          %6852 = vmatpush1.bf16.msra.mxu0 0
          %6853 = vmatprep.subr.bf16.mxu0 0
          %6854 = vmatpush1.bf16.msra.mxu0 0
          %6855 = vmatprep.mubr.bf16.mxu0 0
          %6856 = vmatmul.mubr.bf16.gmra.mrb[0].mxu0 %v6773
          %v6857 = vpop.f32.mrb[0].mxu0
          %v6858 = vadd.f32 %v6765, %v6857
          %v6859 = vpop.f32.mrb[0].mxu0
          %v6860 = vpop.f32.mrb[0].mxu0
          %v6861 = vpop.f32.mrb[0].mxu0
          %6862 = vdwg.mxu0
          %6863 = vst [vmem:[#allocation28] sm:$0x3] %v6858
        $region184: #{encoder_forward.1} parent=115 // pred_fallthru
          _
        // Predicated region
        $region185: #{encoder_forward.1} parent=115 // pred_check
          %p6864 = pneg %p633
        $region186: #{encoder_forward.1} parent=115 // pred_check_branch
          %6866 = sbr.rel (%p6864) target = $region188
        $region187: #{encoder_forward.1} parent=115 // pred_region
          %s6868 = ssub.s32 32, 32
          %6869 = vsyncadd [#allocation6], %s6868
          %s6871 = sshll.u32 [#allocation28], 4
          %s6872 = int_to_ptr.vmem [resolvable:$true] %s6871
          %6874 = dma.vmem_to_hbm [thread:$0]  %s6872, 32, %s24, [#allocation6]
        $region188: #{encoder_forward.1} parent=115 // pred_fallthru
          _
        // Predicated region
        $region189: #{encoder_forward.1} parent=115 // pred_check
          %p6875 = pneg %p633
        $region190: #{encoder_forward.1} parent=115 // pred_check_branch
          %6877 = sbr.rel (%p6875) target = $region192
        $region191: #{encoder_forward.1} parent=115 // pred_region
          %6878 = dma.done [#allocation6], 32
        $region192: #{encoder_forward.1} parent=115 // pred_fallthru
          _
      $region116: #{encoder_forward.1} parent=5 // pred_fallthru
        _
      %p6879 = scmp.le.s32.totalorder 2, %s51
      // Predicated region
      $region193: #{encoder_forward.1} parent=5 // pred_check
        %p6880 = pneg %p6879
      $region194: #{encoder_forward.1} parent=5 // pred_check_branch
        %6882 = sbr.rel (%p6880) target = $region196
      $region195: #{encoder_forward.1} parent=5 // pred_region
        %s6883 = ssub.s32 %s51, 2
      $region196: #{encoder_forward.1} parent=5 // pred_fallthru
        _
    $region6: #{encoder_forward.1} parent=1 // loop_footer
      %s55 = sadd.s32 1, %s51
    $region7: #{encoder_forward.1} parent=1 // loop_footer_branch
      %50 = sbr.rel target = $region3
    $region8: #{encoder_forward.1} parent=1 // loop_exit
      _
    %6884 = vsyncpa [#allocation5], 1
    %s6885 = scalar_lea.sflag [#allocation5], 1
    %6886 = vsyncpa %s6885, 1
    %6887 = vsyncpa [#allocation8], 1
    %6888 = vsyncpa [#allocation11], 1
    %s6889 = scalar_lea.sflag [#allocation11], 1
    %6890 = vsyncpa %s6889, 1
    %6891 = vsyncpa [#allocation14], 1
    %s6892 = scalar_lea.sflag [#allocation14], 1
    %6893 = vsyncpa %s6892, 1
    %6894 = vsyncpa [#allocation17], 1
    %s6895 = scalar_lea.sflag [#allocation17], 1
    %6896 = vsyncpa %s6895, 1
    %6897 = vsyncpa [#allocation20], 1
    %s6898 = scalar_lea.sflag [#allocation20], 1
    %6899 = vsyncpa %s6898, 1
    %6900 = vsyncpa [#allocation23], 1
    %s6901 = scalar_lea.sflag [#allocation23], 1
    %6902 = vsyncpa %s6901, 1
    %6903 = vsyncpa [#allocation26], 1
    %6904 = vsyncpa [#allocation6], 1
    %s6905 = scalar_lea.sflag [#allocation6], 1
    %6906 = vsyncpa %s6905, 1

</llo_original>
